<compile_context>
chip_gen: v6e
topology: v6e:2x2x1
jax: 0.10.0
libtpu: 0.0.40
codegen_flags: <defaults>
</compile_context>

<pallas_src>
from functools import partial

import numpy as np
import jax
import jax.numpy as jnp
from jax import lax
from jax.experimental import pallas as pl
from jax.experimental.pallas import tpu as pltpu


# ----------------------------- in-kernel helpers ----------------------------

def _im2col(x, hh, ww):
    """Build 3x3 same-conv patches from flattened rows.

    x: (R, Cin) f32, rows ordered (image, y, x)-major with a power-of-two
       per-image row stride that is a multiple of ww (and of ww*hh / ww).
    Returns (R, 9*Cin) f32 patches; out-of-image taps are zeroed.
    """
    r_total = x.shape[0]
    log2w = ww.bit_length() - 1
    ridx = lax.broadcasted_iota(jnp.int32, (r_total, 1), 0)
    xcol = ridx & (ww - 1)
    yrow = (ridx >> log2w) & (hh - 1)

    taps = []
    for dy in (-1, 0, 1):
        for dx in (-1, 0, 1):
            off = dy * ww + dx
            t = x if off == 0 else pltpu.roll(x, (-off) % r_total, axis=0)
            conds = []
            if dy == -1:
                conds.append(yrow >= 1)
            elif dy == 1:
                conds.append(yrow <= hh - 2)
            if dx == -1:
                conds.append(xcol >= 1)
            elif dx == 1:
                conds.append(xcol <= ww - 2)
            if conds:
                mask = conds[0]
                for extra in conds[1:]:
                    mask = jnp.logical_and(mask, extra)
                t = jnp.where(mask, t, 0.0)
            taps.append(t)
    return jnp.concatenate(taps, axis=1)


# ------------------------------- fused kernel -------------------------------

def mnist_fused_kernel(x_ref,
                       w1_ref, b1_ref, s1_ref,
                       w2_ref, b2_ref, s2_ref,
                       w3_ref, b3_ref, s3_ref,
                       w4_ref, b4_ref,
                       fw1_ref, fb1_ref, fw2_ref, fb2_ref,
                       o_ref):
    bsz = x_ref.shape[0]

    def bias_relu_fold(y, b_ref, ww):
        """bias + ReLU + fold 2x2 neighbourhood maxima into every row."""
        y = jnp.maximum(y + b_ref[...], 0.0)
        r = y.shape[0]
        y = jnp.maximum(y, pltpu.roll(y, (-1) % r, axis=0))
        y = jnp.maximum(y, pltpu.roll(y, (-ww) % r, axis=0))
        return y

    def pool_compact(y, s_ref):
        """Pick the (even y, even x) rows with a batched 0/1 selection dot."""
        m_img = s_ref.shape[2]
        mo_img = s_ref.shape[1]
        c = y.shape[1]
        y3 = y.reshape(bsz, m_img, c).astype(jnp.bfloat16)
        p = jnp.einsum('bom,bmc->boc', s_ref[...], y3,
                       preferred_element_type=jnp.float32)
        return p.reshape(bsz * mo_img, c)

    def conv_block(a, w_ref, b_ref, hh, ww):
        patches = _im2col(a, hh, ww).astype(jnp.bfloat16)
        y = jnp.dot(patches, w_ref[...], preferred_element_type=jnp.float32)
        return bias_relu_fold(y, b_ref, ww)

    # ---- layer 1: patches already built by the wrapper -----------------
    p1 = x_ref[...].reshape(bsz * 256, 9)                         # bf16
    y = jnp.dot(p1, w1_ref[...], preferred_element_type=jnp.float32)
    y = bias_relu_fold(y, b1_ref, 16)                             # (256B, 32)
    a = pool_compact(y, s1_ref)                                   # (64B, 32)

    # ---- layers 2-4 -----------------------------------------------------
    a = pool_compact(conv_block(a, w2_ref, b2_ref, 8, 8), s2_ref)   # (16B, 64)
    a = pool_compact(conv_block(a, w3_ref, b3_ref, 4, 4), s3_ref)   # (8B, 64): 4 real + 4 zero rows/img
    a = conv_block(a, w4_ref, b4_ref, 2, 2)                         # (8B, 32): row 8b = pooled 1x1 feature

    # ---- fc head (runs on all 8 rows/image; wrapper keeps row 0) --------
    h = jnp.dot(a.astype(jnp.bfloat16), fw1_ref[...],
                preferred_element_type=jnp.float32) + fb1_ref[...]
    h = jnp.maximum(h, 0.0)
    # TODO(synk): nn.Dropout(0.5) is identity in eval mode; training-mode RNG
    # masking (pltpu.prng_*) is not implemented here.
    logits = jnp.dot(h.astype(jnp.bfloat16), fw2_ref[...],
                     preferred_element_type=jnp.float32) + fb2_ref[...]
    o_ref[...] = logits.reshape(bsz, 8, 128)


# --------------------------------- wrapper ----------------------------------

def _pool_select(hh, ww, in_rows, out_rows):
    """Constant 0/1 matrix S with (S @ a)[yo*Wo + xo] = a[(2*yo)*W + 2*xo].
    Extra output rows (padding for sublane alignment) are all-zero."""
    ho, wo = hh // 2, ww // 2
    sel = np.zeros((out_rows, in_rows), np.float32)
    for o in range(ho * wo):
        yo, xo = divmod(o, wo)
        sel[o, (2 * yo) * ww + 2 * xo] = 1.0
    return sel


def _full_spec(shape):
    nd = len(shape)
    return pl.BlockSpec(shape, lambda i, _nd=nd: (0,) * _nd)


@partial(jax.jit, static_argnames=("block_batch",))
def mnist_net_forward(x_nchw, params, block_batch=16):
    n, c, h, w = x_nchw.shape
    assert (c, h, w) == (1, 16, 16), "MNISTNet fc1 expects 16x16x1 inputs"

    bb = max(1, min(block_batch, n))
    n_pad = ((n + bb - 1) // bb) * bb

    # ---- conv1 im2col in the wrapper (lane-denser input, no layer-1 rolls) --
    img = x_nchw.reshape(n, 16, 16).astype(jnp.float32)
    imgp = jnp.pad(img, ((0, 0), (1, 1), (1, 1)))
    taps = [imgp[:, 1 + dy:17 + dy, 1 + dx:17 + dx]
            for dy in (-1, 0, 1) for dx in (-1, 0, 1)]
    xp = jnp.stack(taps, axis=-1).reshape(n, 256, 9).astype(jnp.bfloat16)
    xp = jnp.pad(xp, ((0, n_pad - n), (0, 0), (0, 0)))

    # ---- weights (bf16 for MXU), biases (f32), pool selection (bf16) -------
    w1 = params["w1"].reshape(9 * 1, 32).astype(jnp.bfloat16)
    w2 = params["w2"].reshape(9 * 32, 64).astype(jnp.bfloat16)
    w3 = params["w3"].reshape(9 * 64, 64).astype(jnp.bfloat16)
    w4 = params["w4"].reshape(9 * 64, 32).astype(jnp.bfloat16)
    b1 = params["b1"].reshape(1, 32)
    b2 = params["b2"].reshape(1, 64)
    b3 = params["b3"].reshape(1, 64)
    b4 = params["b4"].reshape(1, 32)
    fw1 = params["fc1_w"].astype(jnp.bfloat16)                       # (32, 128)
    fb1 = params["fc1_b"].reshape(1, 128)
    # lane-dense logits: pad fc2 to 128 output columns (zeros beyond col 10)
    fw2p = jnp.zeros((128, 128), jnp.float32).at[:, :10].set(
        params["fc2_w"]).astype(jnp.bfloat16)
    fb2p = jnp.zeros((1, 128), jnp.float32).at[:, :10].set(
        params["fc2_b"].reshape(1, 10))

    s1 = _pool_select(16, 16, 256, 64)
    s2 = _pool_select(8, 8, 64, 16)
    s3 = _pool_select(4, 4, 16, 8)          # 4 real + 4 zero output rows/img
    s1b = jnp.asarray(np.broadcast_to(s1, (bb,) + s1.shape), jnp.bfloat16)
    s2b = jnp.asarray(np.broadcast_to(s2, (bb,) + s2.shape), jnp.bfloat16)
    s3b = jnp.asarray(np.broadcast_to(s3, (bb,) + s3.shape), jnp.bfloat16)

    consts = (w1, b1, s1b, w2, b2, s2b, w3, b3, s3b, w4, b4,
              fw1, fb1, fw2p, fb2p)

    macs_per_img = (256 * 9 * 32 + 64 * 256 * 32        # conv1 + pool1
                    + 64 * 288 * 64 + 16 * 64 * 64      # conv2 + pool2
                    + 16 * 576 * 64 + 8 * 16 * 64       # conv3 + pool3
                    + 8 * 576 * 32                      # conv4
                    + 8 * 32 * 128 + 8 * 128 * 128)     # fc1 + fc2 (8 rows/img)
    flops = 2 * n_pad * macs_per_img
    bytes_accessed = (n_pad * 256 * 9 * 2 + n_pad * 8 * 128 * 4
                      + sum(int(np.prod(a.shape)) * a.dtype.itemsize
                            for a in consts))

    out = pl.pallas_call(
        mnist_fused_kernel,
        out_shape=jax.ShapeDtypeStruct((n_pad, 8, 128), jnp.float32),
        grid=(n_pad // bb,),
        in_specs=[pl.BlockSpec((bb, 256, 9), lambda i: (i, 0, 0))]
                 + [_full_spec(a.shape) for a in consts],
        out_specs=pl.BlockSpec((bb, 8, 128), lambda i: (i, 0, 0)),
        compiler_params=pltpu.CompilerParams(
            dimension_semantics=("parallel",)),
        cost_estimate=pl.CostEstimate(flops=int(flops), transcendentals=0,
                                      bytes_accessed=int(bytes_accessed)),
    )(xp, *consts)

    # real logits live in row 0 of each image's 8-row slab, cols 0..9
    return out[:n, 0, :10]


# --------------------------- params / reference ------------------------------

def init_params(key):
    ks = jax.random.split(key, 12)

    def cw(k, cin, cout):     # HWIO
        return 0.05 * jax.random.normal(k, (3, 3, cin, cout), jnp.float32)

    def bias(k, c):
        return 0.01 * jax.random.normal(k, (c,), jnp.float32)

    return dict(
        w1=cw(ks[0], 1, 32),   b1=bias(ks[1], 32),
        w2=cw(ks[2], 32, 64),  b2=bias(ks[3], 64),
        w3=cw(ks[4], 64, 64),  b3=bias(ks[5], 64),
        w4=cw(ks[6], 64, 32),  b4=bias(ks[7], 32),
        fc1_w=0.05 * jax.random.normal(ks[8], (32, 128), jnp.float32),
        fc1_b=bias(ks[9], 128),
        fc2_w=0.05 * jax.random.normal(ks[10], (128, 10), jnp.float32),
        fc2_b=bias(ks[11], 10),
    )


def reference_forward(x_nchw, params):
    """Pure-JAX reference matching the PyTorch forward (eval mode)."""
    x = x_nchw.astype(jnp.float32)

    def conv(x, w_hwio, b):
        y = jax.lax.conv_general_dilated(
            x, w_hwio, window_strides=(1, 1), padding=((1, 1), (1, 1)),
            dimension_numbers=("NCHW", "HWIO", "NCHW"))
        return jax.nn.relu(y + b.reshape(1, -1, 1, 1))

    def pool(x):
        return jax.lax.reduce_window(x, -jnp.inf, jax.lax.max,
                                     (1, 1, 2, 2), (1, 1, 2, 2), "VALID")

    x = pool(conv(x, params["w1"], params["b1"]))
    x = pool(conv(x, params["w2"], params["b2"]))
    x = pool(conv(x, params["w3"], params["b3"]))
    x = pool(conv(x, params["w4"], params["b4"]))
    x = x.reshape(x.shape[0], 32)
    h = jax.nn.relu(x @ params["fc1_w"] + params["fc1_b"])
    return h @ params["fc2_w"] + params["fc2_b"]


# ----------------------------------- main ------------------------------------

if __name__ == "__main__":
    key = jax.random.PRNGKey(0)
    k_x, k_p = jax.random.split(key)
    # 16x16 input: 16 -> 8 -> 4 -> 2 -> 1 after four 2x2 maxpools, so the
    # flatten to 32*1*1 features is consistent with the module.
    x = jax.random.normal(k_x, (8, 1, 16, 16), jnp.float32)
    params = init_params(k_p)

    # block_batch=4 -> grid=(2,): both v7x TensorCores get work.
    out = mnist_net_forward(x, params, block_batch=4)
    out = jax.block_until_ready(out)

    ref = reference_forward(x, params)
    assert out.shape == (8, 10), out.shape
    # bf16 MXU operands (f32 accumulation) => loosened tolerance vs f32 ref.
    assert jnp.allclose(out, ref, rtol=2e-2, atol=2e-2), (
        "Pallas output does not match JAX reference")

    print("KERNEL_OK")
</pallas_src>

<mosaic_0001>
module attributes {stable_mosaic.version = 11 : i64} {
  func.func @mnist_fused_kernel(%arg0: i32, %arg1: memref<4x256x9xbf16, #tpu.memory_space<vmem>>, %arg2: memref<9x32xbf16, #tpu.memory_space<vmem>>, %arg3: memref<1x32xf32, #tpu.memory_space<vmem>>, %arg4: memref<4x64x256xbf16, #tpu.memory_space<vmem>>, %arg5: memref<288x64xbf16, #tpu.memory_space<vmem>>, %arg6: memref<1x64xf32, #tpu.memory_space<vmem>>, %arg7: memref<4x16x64xbf16, #tpu.memory_space<vmem>>, %arg8: memref<576x64xbf16, #tpu.memory_space<vmem>>, %arg9: memref<1x64xf32, #tpu.memory_space<vmem>>, %arg10: memref<4x8x16xbf16, #tpu.memory_space<vmem>>, %arg11: memref<576x32xbf16, #tpu.memory_space<vmem>>, %arg12: memref<1x32xf32, #tpu.memory_space<vmem>>, %arg13: memref<32x128xbf16, #tpu.memory_space<vmem>>, %arg14: memref<1x128xf32, #tpu.memory_space<vmem>>, %arg15: memref<128x128xbf16, #tpu.memory_space<vmem>>, %arg16: memref<1x128xf32, #tpu.memory_space<vmem>>, %arg17: memref<4x8x128xf32, #tpu.memory_space<vmem>>) attributes {dimension_semantics = [#tpu.dimension_semantics<parallel>], iteration_bounds = array<i64: 2>, scalar_prefetch = 0 : i64, scratch_operands = 0 : i64, tpu.core_type = #tpu.core_type<tc>, window_params = [{transform_indices = @transform_0, window_bounds = array<i64: 4, 256, 9>}, {pipeline_mode = #tpu.pipeline_mode<synchronous>, transform_indices = @transform_1, window_bounds = array<i64: 9, 32>}, {pipeline_mode = #tpu.pipeline_mode<synchronous>, transform_indices = @transform_2, window_bounds = array<i64: 1, 32>}, {pipeline_mode = #tpu.pipeline_mode<synchronous>, transform_indices = @transform_3, window_bounds = array<i64: 4, 64, 256>}, {pipeline_mode = #tpu.pipeline_mode<synchronous>, transform_indices = @transform_4, window_bounds = array<i64: 288, 64>}, {pipeline_mode = #tpu.pipeline_mode<synchronous>, transform_indices = @transform_5, window_bounds = array<i64: 1, 64>}, {pipeline_mode = #tpu.pipeline_mode<synchronous>, transform_indices = @transform_6, window_bounds = array<i64: 4, 16, 64>}, {pipeline_mode = #tpu.pipeline_mode<synchronous>, transform_indices = @transform_7, window_bounds = array<i64: 576, 64>}, {pipeline_mode = #tpu.pipeline_mode<synchronous>, transform_indices = @transform_8, window_bounds = array<i64: 1, 64>}, {pipeline_mode = #tpu.pipeline_mode<synchronous>, transform_indices = @transform_9, window_bounds = array<i64: 4, 8, 16>}, {pipeline_mode = #tpu.pipeline_mode<synchronous>, transform_indices = @transform_10, window_bounds = array<i64: 576, 32>}, {pipeline_mode = #tpu.pipeline_mode<synchronous>, transform_indices = @transform_11, window_bounds = array<i64: 1, 32>}, {pipeline_mode = #tpu.pipeline_mode<synchronous>, transform_indices = @transform_12, window_bounds = array<i64: 32, 128>}, {pipeline_mode = #tpu.pipeline_mode<synchronous>, transform_indices = @transform_13, window_bounds = array<i64: 1, 128>}, {pipeline_mode = #tpu.pipeline_mode<synchronous>, transform_indices = @transform_14, window_bounds = array<i64: 128, 128>}, {pipeline_mode = #tpu.pipeline_mode<synchronous>, transform_indices = @transform_15, window_bounds = array<i64: 1, 128>}, {transform_indices = @transform_16, window_bounds = array<i64: 4, 8, 128>}]} {
    %c0 = arith.constant 0 : index
    %c0_0 = arith.constant 0 : index
    %c0_1 = arith.constant 0 : index
    %0 = vector.load %arg1[%c0, %c0_0, %c0_1] : memref<4x256x9xbf16, #tpu.memory_space<vmem>>, vector<4x256x9xbf16>
    %1 = vector.shape_cast %0 : vector<4x256x9xbf16> to vector<1024x9xbf16>
    %c0_2 = arith.constant 0 : index
    %c0_3 = arith.constant 0 : index
    %2 = vector.load %arg2[%c0_2, %c0_3] : memref<9x32xbf16, #tpu.memory_space<vmem>>, vector<9x32xbf16>
    %cst = arith.constant dense<0.000000e+00> : vector<1024x32xf32>
    %3 = tpu.matmul %1, %2, %cst {dimension_numbers = #tpu.dot_dimension_numbers<[1], [0], [0], [1], [0, 0, 1, 1], [], []>} : vector<1024x9xbf16>, vector<9x32xbf16>, vector<1024x32xf32> -> vector<1024x32xf32>
    %c0_4 = arith.constant 0 : index
    %c0_5 = arith.constant 0 : index
    %4 = vector.load %arg3[%c0_4, %c0_5] : memref<1x32xf32, #tpu.memory_space<vmem>>, vector<1x32xf32>
    %5 = vector.broadcast %4 : vector<1x32xf32> to vector<1024x32xf32>
    %6 = arith.addf %3, %5 : vector<1024x32xf32>
    %cst_6 = arith.constant 0.000000e+00 : f32
    %7 = vector.broadcast %cst_6 : f32 to vector<1024x32xf32>
    %8 = arith.maximumf %6, %7 : vector<1024x32xf32>
    %c1023_i32 = arith.constant 1023 : i32
    %9 = tpu.dynamic_rotate %8 by %c1023_i32 dim 0 : vector<1024x32xf32>, i32 -> vector<1024x32xf32>
    %10 = arith.maximumf %8, %9 : vector<1024x32xf32>
    %c1008_i32 = arith.constant 1008 : i32
    %11 = tpu.dynamic_rotate %10 by %c1008_i32 dim 0 : vector<1024x32xf32>, i32 -> vector<1024x32xf32>
    %12 = arith.maximumf %10, %11 : vector<1024x32xf32>
    %13 = vector.shape_cast %12 : vector<1024x32xf32> to vector<4x256x32xf32>
    %14 = arith.truncf %13 : vector<4x256x32xf32> to vector<4x256x32xbf16>
    %c0_7 = arith.constant 0 : index
    %c0_8 = arith.constant 0 : index
    %c0_9 = arith.constant 0 : index
    %15 = vector.load %arg4[%c0_7, %c0_8, %c0_9] : memref<4x64x256xbf16, #tpu.memory_space<vmem>>, vector<4x64x256xbf16>
    "tpu.trace_start"() <{level = 10 : i32, message = "bom,bmc->boc"}> : () -> ()
    %cst_10 = arith.constant dense<0.000000e+00> : vector<4x64x32xf32>
    %16 = tpu.matmul %15, %14, %cst_10 {dimension_numbers = #tpu.dot_dimension_numbers<[2], [1], [1], [2], [0, 0, 0, 1, 1, 2], [0], [0]>} : vector<4x64x256xbf16>, vector<4x256x32xbf16>, vector<4x64x32xf32> -> vector<4x64x32xf32>
    "tpu.trace_stop"() : () -> ()
    %17 = vector.shape_cast %16 : vector<4x64x32xf32> to vector<256x32xf32>
    %18 = tpu.iota {dimensions = array<i32: 0>} : vector<256x1xi32>
    %c7_i32 = arith.constant 7 : i32
    %19 = vector.broadcast %c7_i32 : i32 to vector<256x1xi32>
    %20 = arith.andi %18, %19 : vector<256x1xi32>
    %c3_i32 = arith.constant 3 : i32
    %21 = vector.broadcast %c3_i32 : i32 to vector<256x1xi32>
    %22 = arith.shrsi %18, %21 : vector<256x1xi32>
    %c7_i32_11 = arith.constant 7 : i32
    %23 = vector.broadcast %c7_i32_11 : i32 to vector<256x1xi32>
    %24 = arith.andi %22, %23 : vector<256x1xi32>
    %c9_i32 = arith.constant 9 : i32
    %25 = tpu.dynamic_rotate %17 by %c9_i32 dim 0 : vector<256x32xf32>, i32 -> vector<256x32xf32>
    %c1_i32 = arith.constant 1 : i32
    %26 = vector.broadcast %c1_i32 : i32 to vector<256x1xi32>
    %27 = arith.cmpi sge, %24, %26 : vector<256x1xi32>
    %c1_i32_12 = arith.constant 1 : i32
    %28 = vector.broadcast %c1_i32_12 : i32 to vector<256x1xi32>
    %29 = arith.cmpi sge, %20, %28 : vector<256x1xi32>
    %30 = arith.andi %27, %29 : vector<256x1xi1>
    %cst_13 = arith.constant 0.000000e+00 : f32
    %31 = vector.shape_cast %30 : vector<256x1xi1> to vector<256x1xi1>
    %32 = vector.broadcast %31 : vector<256x1xi1> to vector<256x32xi1>
    %33 = vector.broadcast %cst_13 : f32 to vector<256x32xf32>
    %34 = arith.select %32, %25, %33 : vector<256x32xi1>, vector<256x32xf32>
    %c8_i32 = arith.constant 8 : i32
    %35 = tpu.dynamic_rotate %17 by %c8_i32 dim 0 : vector<256x32xf32>, i32 -> vector<256x32xf32>
    %c1_i32_14 = arith.constant 1 : i32
    %36 = vector.broadcast %c1_i32_14 : i32 to vector<256x1xi32>
    %37 = arith.cmpi sge, %24, %36 : vector<256x1xi32>
    %cst_15 = arith.constant 0.000000e+00 : f32
    %38 = vector.shape_cast %37 : vector<256x1xi1> to vector<256x1xi1>
    %39 = vector.broadcast %38 : vector<256x1xi1> to vector<256x32xi1>
    %40 = vector.broadcast %cst_15 : f32 to vector<256x32xf32>
    %41 = arith.select %39, %35, %40 : vector<256x32xi1>, vector<256x32xf32>
    %c7_i32_16 = arith.constant 7 : i32
    %42 = tpu.dynamic_rotate %17 by %c7_i32_16 dim 0 : vector<256x32xf32>, i32 -> vector<256x32xf32>
    %c1_i32_17 = arith.constant 1 : i32
    %43 = vector.broadcast %c1_i32_17 : i32 to vector<256x1xi32>
    %44 = arith.cmpi sge, %24, %43 : vector<256x1xi32>
    %c6_i32 = arith.constant 6 : i32
    %45 = vector.broadcast %c6_i32 : i32 to vector<256x1xi32>
    %46 = arith.cmpi sle, %20, %45 : vector<256x1xi32>
    %47 = arith.andi %44, %46 : vector<256x1xi1>
    %cst_18 = arith.constant 0.000000e+00 : f32
    %48 = vector.shape_cast %47 : vector<256x1xi1> to vector<256x1xi1>
    %49 = vector.broadcast %48 : vector<256x1xi1> to vector<256x32xi1>
    %50 = vector.broadcast %cst_18 : f32 to vector<256x32xf32>
    %51 = arith.select %49, %42, %50 : vector<256x32xi1>, vector<256x32xf32>
    %c1_i32_19 = arith.constant 1 : i32
    %52 = tpu.dynamic_rotate %17 by %c1_i32_19 dim 0 : vector<256x32xf32>, i32 -> vector<256x32xf32>
    %c1_i32_20 = arith.constant 1 : i32
    %53 = vector.broadcast %c1_i32_20 : i32 to vector<256x1xi32>
    %54 = arith.cmpi sge, %20, %53 : vector<256x1xi32>
    %cst_21 = arith.constant 0.000000e+00 : f32
    %55 = vector.shape_cast %54 : vector<256x1xi1> to vector<256x1xi1>
    %56 = vector.broadcast %55 : vector<256x1xi1> to vector<256x32xi1>
    %57 = vector.broadcast %cst_21 : f32 to vector<256x32xf32>
    %58 = arith.select %56, %52, %57 : vector<256x32xi1>, vector<256x32xf32>
    %c255_i32 = arith.constant 255 : i32
    %59 = tpu.dynamic_rotate %17 by %c255_i32 dim 0 : vector<256x32xf32>, i32 -> vector<256x32xf32>
    %c6_i32_22 = arith.constant 6 : i32
    %60 = vector.broadcast %c6_i32_22 : i32 to vector<256x1xi32>
    %61 = arith.cmpi sle, %20, %60 : vector<256x1xi32>
    %cst_23 = arith.constant 0.000000e+00 : f32
    %62 = vector.shape_cast %61 : vector<256x1xi1> to vector<256x1xi1>
    %63 = vector.broadcast %62 : vector<256x1xi1> to vector<256x32xi1>
    %64 = vector.broadcast %cst_23 : f32 to vector<256x32xf32>
    %65 = arith.select %63, %59, %64 : vector<256x32xi1>, vector<256x32xf32>
    %c249_i32 = arith.constant 249 : i32
    %66 = tpu.dynamic_rotate %17 by %c249_i32 dim 0 : vector<256x32xf32>, i32 -> vector<256x32xf32>
    %c6_i32_24 = arith.constant 6 : i32
    %67 = vector.broadcast %c6_i32_24 : i32 to vector<256x1xi32>
    %68 = arith.cmpi sle, %24, %67 : vector<256x1xi32>
    %c1_i32_25 = arith.constant 1 : i32
    %69 = vector.broadcast %c1_i32_25 : i32 to vector<256x1xi32>
    %70 = arith.cmpi sge, %20, %69 : vector<256x1xi32>
    %71 = arith.andi %68, %70 : vector<256x1xi1>
    %cst_26 = arith.constant 0.000000e+00 : f32
    %72 = vector.shape_cast %71 : vector<256x1xi1> to vector<256x1xi1>
    %73 = vector.broadcast %72 : vector<256x1xi1> to vector<256x32xi1>
    %74 = vector.broadcast %cst_26 : f32 to vector<256x32xf32>
    %75 = arith.select %73, %66, %74 : vector<256x32xi1>, vector<256x32xf32>
    %c248_i32 = arith.constant 248 : i32
    %76 = tpu.dynamic_rotate %17 by %c248_i32 dim 0 : vector<256x32xf32>, i32 -> vector<256x32xf32>
    %c6_i32_27 = arith.constant 6 : i32
    %77 = vector.broadcast %c6_i32_27 : i32 to vector<256x1xi32>
    %78 = arith.cmpi sle, %24, %77 : vector<256x1xi32>
    %cst_28 = arith.constant 0.000000e+00 : f32
    %79 = vector.shape_cast %78 : vector<256x1xi1> to vector<256x1xi1>
    %80 = vector.broadcast %79 : vector<256x1xi1> to vector<256x32xi1>
    %81 = vector.broadcast %cst_28 : f32 to vector<256x32xf32>
    %82 = arith.select %80, %76, %81 : vector<256x32xi1>, vector<256x32xf32>
    %c247_i32 = arith.constant 247 : i32
    %83 = tpu.dynamic_rotate %17 by %c247_i32 dim 0 : vector<256x32xf32>, i32 -> vector<256x32xf32>
    %c6_i32_29 = arith.constant 6 : i32
    %84 = vector.broadcast %c6_i32_29 : i32 to vector<256x1xi32>
    %85 = arith.cmpi sle, %24, %84 : vector<256x1xi32>
    %c6_i32_30 = arith.constant 6 : i32
    %86 = vector.broadcast %c6_i32_30 : i32 to vector<256x1xi32>
    %87 = arith.cmpi sle, %20, %86 : vector<256x1xi32>
    %88 = arith.andi %85, %87 : vector<256x1xi1>
    %cst_31 = arith.constant 0.000000e+00 : f32
    %89 = vector.shape_cast %88 : vector<256x1xi1> to vector<256x1xi1>
    %90 = vector.broadcast %89 : vector<256x1xi1> to vector<256x32xi1>
    %91 = vector.broadcast %cst_31 : f32 to vector<256x32xf32>
    %92 = arith.select %90, %83, %91 : vector<256x32xi1>, vector<256x32xf32>
    %93 = tpu.concatenate %34, %41, %51, %58, %17, %65, %75, %82, %92 in 1 : vector<256x32xf32>, vector<256x32xf32>, vector<256x32xf32>, vector<256x32xf32>, vector<256x32xf32>, vector<256x32xf32>, vector<256x32xf32>, vector<256x32xf32>, vector<256x32xf32> -> vector<256x288xf32>
    %94 = arith.truncf %93 : vector<256x288xf32> to vector<256x288xbf16>
    %c0_32 = arith.constant 0 : index
    %c0_33 = arith.constant 0 : index
    %95 = vector.load %arg5[%c0_32, %c0_33] : memref<288x64xbf16, #tpu.memory_space<vmem>>, vector<288x64xbf16>
    %cst_34 = arith.constant dense<0.000000e+00> : vector<256x64xf32>
    %96 = tpu.matmul %94, %95, %cst_34 {dimension_numbers = #tpu.dot_dimension_numbers<[1], [0], [0], [1], [0, 0, 1, 1], [], []>} : vector<256x288xbf16>, vector<288x64xbf16>, vector<256x64xf32> -> vector<256x64xf32>
    %c0_35 = arith.constant 0 : index
    %c0_36 = arith.constant 0 : index
    %97 = vector.load %arg6[%c0_35, %c0_36] : memref<1x64xf32, #tpu.memory_space<vmem>>, vector<1x64xf32>
    %98 = vector.broadcast %97 : vector<1x64xf32> to vector<256x64xf32>
    %99 = arith.addf %96, %98 : vector<256x64xf32>
    %cst_37 = arith.constant 0.000000e+00 : f32
    %100 = vector.broadcast %cst_37 : f32 to vector<256x64xf32>
    %101 = arith.maximumf %99, %100 : vector<256x64xf32>
    %c255_i32_38 = arith.constant 255 : i32
    %102 = tpu.dynamic_rotate %101 by %c255_i32_38 dim 0 : vector<256x64xf32>, i32 -> vector<256x64xf32>
    %103 = arith.maximumf %101, %102 : vector<256x64xf32>
    %c248_i32_39 = arith.constant 248 : i32
    %104 = tpu.dynamic_rotate %103 by %c248_i32_39 dim 0 : vector<256x64xf32>, i32 -> vector<256x64xf32>
    %105 = arith.maximumf %103, %104 : vector<256x64xf32>
    %106 = vector.shape_cast %105 : vector<256x64xf32> to vector<4x64x64xf32>
    %107 = arith.truncf %106 : vector<4x64x64xf32> to vector<4x64x64xbf16>
    %c0_40 = arith.constant 0 : index
    %c0_41 = arith.constant 0 : index
    %c0_42 = arith.constant 0 : index
    %108 = vector.load %arg7[%c0_40, %c0_41, %c0_42] : memref<4x16x64xbf16, #tpu.memory_space<vmem>>, vector<4x16x64xbf16>
    "tpu.trace_start"() <{level = 10 : i32, message = "bom,bmc->boc"}> : () -> ()
    %cst_43 = arith.constant dense<0.000000e+00> : vector<4x16x64xf32>
    %109 = tpu.matmul %108, %107, %cst_43 {dimension_numbers = #tpu.dot_dimension_numbers<[2], [1], [1], [2], [0, 0, 0, 1, 1, 2], [0], [0]>} : vector<4x16x64xbf16>, vector<4x64x64xbf16>, vector<4x16x64xf32> -> vector<4x16x64xf32>
    "tpu.trace_stop"() : () -> ()
    %110 = vector.shape_cast %109 : vector<4x16x64xf32> to vector<64x64xf32>
    %111 = tpu.iota {dimensions = array<i32: 0>} : vector<64x1xi32>
    %c3_i32_44 = arith.constant 3 : i32
    %112 = vector.broadcast %c3_i32_44 : i32 to vector<64x1xi32>
    %113 = arith.andi %111, %112 : vector<64x1xi32>
    %c2_i32 = arith.constant 2 : i32
    %114 = vector.broadcast %c2_i32 : i32 to vector<64x1xi32>
    %115 = arith.shrsi %111, %114 : vector<64x1xi32>
    %c3_i32_45 = arith.constant 3 : i32
    %116 = vector.broadcast %c3_i32_45 : i32 to vector<64x1xi32>
    %117 = arith.andi %115, %116 : vector<64x1xi32>
    %c5_i32 = arith.constant 5 : i32
    %118 = tpu.dynamic_rotate %110 by %c5_i32 dim 0 : vector<64x64xf32>, i32 -> vector<64x64xf32>
    %c1_i32_46 = arith.constant 1 : i32
    %119 = vector.broadcast %c1_i32_46 : i32 to vector<64x1xi32>
    %120 = arith.cmpi sge, %117, %119 : vector<64x1xi32>
    %c1_i32_47 = arith.constant 1 : i32
    %121 = vector.broadcast %c1_i32_47 : i32 to vector<64x1xi32>
    %122 = arith.cmpi sge, %113, %121 : vector<64x1xi32>
    %123 = arith.andi %120, %122 : vector<64x1xi1>
    %cst_48 = arith.constant 0.000000e+00 : f32
    %124 = vector.shape_cast %123 : vector<64x1xi1> to vector<64x1xi1>
    %125 = vector.broadcast %124 : vector<64x1xi1> to vector<64x64xi1>
    %126 = vector.broadcast %cst_48 : f32 to vector<64x64xf32>
    %127 = arith.select %125, %118, %126 : vector<64x64xi1>, vector<64x64xf32>
    %c4_i32 = arith.constant 4 : i32
    %128 = tpu.dynamic_rotate %110 by %c4_i32 dim 0 : vector<64x64xf32>, i32 -> vector<64x64xf32>
    %c1_i32_49 = arith.constant 1 : i32
    %129 = vector.broadcast %c1_i32_49 : i32 to vector<64x1xi32>
    %130 = arith.cmpi sge, %117, %129 : vector<64x1xi32>
    %cst_50 = arith.constant 0.000000e+00 : f32
    %131 = vector.shape_cast %130 : vector<64x1xi1> to vector<64x1xi1>
    %132 = vector.broadcast %131 : vector<64x1xi1> to vector<64x64xi1>
    %133 = vector.broadcast %cst_50 : f32 to vector<64x64xf32>
    %134 = arith.select %132, %128, %133 : vector<64x64xi1>, vector<64x64xf32>
    %c3_i32_51 = arith.constant 3 : i32
    %135 = tpu.dynamic_rotate %110 by %c3_i32_51 dim 0 : vector<64x64xf32>, i32 -> vector<64x64xf32>
    %c1_i32_52 = arith.constant 1 : i32
    %136 = vector.broadcast %c1_i32_52 : i32 to vector<64x1xi32>
    %137 = arith.cmpi sge, %117, %136 : vector<64x1xi32>
    %c2_i32_53 = arith.constant 2 : i32
    %138 = vector.broadcast %c2_i32_53 : i32 to vector<64x1xi32>
    %139 = arith.cmpi sle, %113, %138 : vector<64x1xi32>
    %140 = arith.andi %137, %139 : vector<64x1xi1>
    %cst_54 = arith.constant 0.000000e+00 : f32
    %141 = vector.shape_cast %140 : vector<64x1xi1> to vector<64x1xi1>
    %142 = vector.broadcast %141 : vector<64x1xi1> to vector<64x64xi1>
    %143 = vector.broadcast %cst_54 : f32 to vector<64x64xf32>
    %144 = arith.select %142, %135, %143 : vector<64x64xi1>, vector<64x64xf32>
    %c1_i32_55 = arith.constant 1 : i32
    %145 = tpu.dynamic_rotate %110 by %c1_i32_55 dim 0 : vector<64x64xf32>, i32 -> vector<64x64xf32>
    %c1_i32_56 = arith.constant 1 : i32
    %146 = vector.broadcast %c1_i32_56 : i32 to vector<64x1xi32>
    %147 = arith.cmpi sge, %113, %146 : vector<64x1xi32>
    %cst_57 = arith.constant 0.000000e+00 : f32
    %148 = vector.shape_cast %147 : vector<64x1xi1> to vector<64x1xi1>
    %149 = vector.broadcast %148 : vector<64x1xi1> to vector<64x64xi1>
    %150 = vector.broadcast %cst_57 : f32 to vector<64x64xf32>
    %151 = arith.select %149, %145, %150 : vector<64x64xi1>, vector<64x64xf32>
    %c63_i32 = arith.constant 63 : i32
    %152 = tpu.dynamic_rotate %110 by %c63_i32 dim 0 : vector<64x64xf32>, i32 -> vector<64x64xf32>
    %c2_i32_58 = arith.constant 2 : i32
    %153 = vector.broadcast %c2_i32_58 : i32 to vector<64x1xi32>
    %154 = arith.cmpi sle, %113, %153 : vector<64x1xi32>
    %cst_59 = arith.constant 0.000000e+00 : f32
    %155 = vector.shape_cast %154 : vector<64x1xi1> to vector<64x1xi1>
    %156 = vector.broadcast %155 : vector<64x1xi1> to vector<64x64xi1>
    %157 = vector.broadcast %cst_59 : f32 to vector<64x64xf32>
    %158 = arith.select %156, %152, %157 : vector<64x64xi1>, vector<64x64xf32>
    %c61_i32 = arith.constant 61 : i32
    %159 = tpu.dynamic_rotate %110 by %c61_i32 dim 0 : vector<64x64xf32>, i32 -> vector<64x64xf32>
    %c2_i32_60 = arith.constant 2 : i32
    %160 = vector.broadcast %c2_i32_60 : i32 to vector<64x1xi32>
    %161 = arith.cmpi sle, %117, %160 : vector<64x1xi32>
    %c1_i32_61 = arith.constant 1 : i32
    %162 = vector.broadcast %c1_i32_61 : i32 to vector<64x1xi32>
    %163 = arith.cmpi sge, %113, %162 : vector<64x1xi32>
    %164 = arith.andi %161, %163 : vector<64x1xi1>
    %cst_62 = arith.constant 0.000000e+00 : f32
    %165 = vector.shape_cast %164 : vector<64x1xi1> to vector<64x1xi1>
    %166 = vector.broadcast %165 : vector<64x1xi1> to vector<64x64xi1>
    %167 = vector.broadcast %cst_62 : f32 to vector<64x64xf32>
    %168 = arith.select %166, %159, %167 : vector<64x64xi1>, vector<64x64xf32>
    %c60_i32 = arith.constant 60 : i32
    %169 = tpu.dynamic_rotate %110 by %c60_i32 dim 0 : vector<64x64xf32>, i32 -> vector<64x64xf32>
    %c2_i32_63 = arith.constant 2 : i32
    %170 = vector.broadcast %c2_i32_63 : i32 to vector<64x1xi32>
    %171 = arith.cmpi sle, %117, %170 : vector<64x1xi32>
    %cst_64 = arith.constant 0.000000e+00 : f32
    %172 = vector.shape_cast %171 : vector<64x1xi1> to vector<64x1xi1>
    %173 = vector.broadcast %172 : vector<64x1xi1> to vector<64x64xi1>
    %174 = vector.broadcast %cst_64 : f32 to vector<64x64xf32>
    %175 = arith.select %173, %169, %174 : vector<64x64xi1>, vector<64x64xf32>
    %c59_i32 = arith.constant 59 : i32
    %176 = tpu.dynamic_rotate %110 by %c59_i32 dim 0 : vector<64x64xf32>, i32 -> vector<64x64xf32>
    %c2_i32_65 = arith.constant 2 : i32
    %177 = vector.broadcast %c2_i32_65 : i32 to vector<64x1xi32>
    %178 = arith.cmpi sle, %117, %177 : vector<64x1xi32>
    %c2_i32_66 = arith.constant 2 : i32
    %179 = vector.broadcast %c2_i32_66 : i32 to vector<64x1xi32>
    %180 = arith.cmpi sle, %113, %179 : vector<64x1xi32>
    %181 = arith.andi %178, %180 : vector<64x1xi1>
    %cst_67 = arith.constant 0.000000e+00 : f32
    %182 = vector.shape_cast %181 : vector<64x1xi1> to vector<64x1xi1>
    %183 = vector.broadcast %182 : vector<64x1xi1> to vector<64x64xi1>
    %184 = vector.broadcast %cst_67 : f32 to vector<64x64xf32>
    %185 = arith.select %183, %176, %184 : vector<64x64xi1>, vector<64x64xf32>
    %186 = tpu.concatenate %127, %134, %144, %151, %110, %158, %168, %175, %185 in 1 : vector<64x64xf32>, vector<64x64xf32>, vector<64x64xf32>, vector<64x64xf32>, vector<64x64xf32>, vector<64x64xf32>, vector<64x64xf32>, vector<64x64xf32>, vector<64x64xf32> -> vector<64x576xf32>
    %187 = arith.truncf %186 : vector<64x576xf32> to vector<64x576xbf16>
    %c0_68 = arith.constant 0 : index
    %c0_69 = arith.constant 0 : index
    %188 = vector.load %arg8[%c0_68, %c0_69] : memref<576x64xbf16, #tpu.memory_space<vmem>>, vector<576x64xbf16>
    %cst_70 = arith.constant dense<0.000000e+00> : vector<64x64xf32>
    %189 = tpu.matmul %187, %188, %cst_70 {dimension_numbers = #tpu.dot_dimension_numbers<[1], [0], [0], [1], [0, 0, 1, 1], [], []>} : vector<64x576xbf16>, vector<576x64xbf16>, vector<64x64xf32> -> vector<64x64xf32>
    %c0_71 = arith.constant 0 : index
    %c0_72 = arith.constant 0 : index
    %190 = vector.load %arg9[%c0_71, %c0_72] : memref<1x64xf32, #tpu.memory_space<vmem>>, vector<1x64xf32>
    %191 = vector.broadcast %190 : vector<1x64xf32> to vector<64x64xf32>
    %192 = arith.addf %189, %191 : vector<64x64xf32>
    %cst_73 = arith.constant 0.000000e+00 : f32
    %193 = vector.broadcast %cst_73 : f32 to vector<64x64xf32>
    %194 = arith.maximumf %192, %193 : vector<64x64xf32>
    %c63_i32_74 = arith.constant 63 : i32
    %195 = tpu.dynamic_rotate %194 by %c63_i32_74 dim 0 : vector<64x64xf32>, i32 -> vector<64x64xf32>
    %196 = arith.maximumf %194, %195 : vector<64x64xf32>
    %c60_i32_75 = arith.constant 60 : i32
    %197 = tpu.dynamic_rotate %196 by %c60_i32_75 dim 0 : vector<64x64xf32>, i32 -> vector<64x64xf32>
    %198 = arith.maximumf %196, %197 : vector<64x64xf32>
    %199 = vector.shape_cast %198 : vector<64x64xf32> to vector<4x16x64xf32>
    %200 = arith.truncf %199 : vector<4x16x64xf32> to vector<4x16x64xbf16>
    %c0_76 = arith.constant 0 : index
    %c0_77 = arith.constant 0 : index
    %c0_78 = arith.constant 0 : index
    %201 = vector.load %arg10[%c0_76, %c0_77, %c0_78] : memref<4x8x16xbf16, #tpu.memory_space<vmem>>, vector<4x8x16xbf16>
    "tpu.trace_start"() <{level = 10 : i32, message = "bom,bmc->boc"}> : () -> ()
    %cst_79 = arith.constant dense<0.000000e+00> : vector<4x8x64xf32>
    %202 = tpu.matmul %201, %200, %cst_79 {dimension_numbers = #tpu.dot_dimension_numbers<[2], [1], [1], [2], [0, 0, 0, 1, 1, 2], [0], [0]>} : vector<4x8x16xbf16>, vector<4x16x64xbf16>, vector<4x8x64xf32> -> vector<4x8x64xf32>
    "tpu.trace_stop"() : () -> ()
    %203 = vector.shape_cast %202 : vector<4x8x64xf32> to vector<32x64xf32>
    %204 = tpu.iota {dimensions = array<i32: 0>} : vector<32x1xi32>
    %c1_i32_80 = arith.constant 1 : i32
    %205 = vector.broadcast %c1_i32_80 : i32 to vector<32x1xi32>
    %206 = arith.andi %204, %205 : vector<32x1xi32>
    %c1_i32_81 = arith.constant 1 : i32
    %207 = vector.broadcast %c1_i32_81 : i32 to vector<32x1xi32>
    %208 = arith.shrsi %204, %207 : vector<32x1xi32>
    %c1_i32_82 = arith.constant 1 : i32
    %209 = vector.broadcast %c1_i32_82 : i32 to vector<32x1xi32>
    %210 = arith.andi %208, %209 : vector<32x1xi32>
    %c3_i32_83 = arith.constant 3 : i32
    %211 = tpu.dynamic_rotate %203 by %c3_i32_83 dim 0 : vector<32x64xf32>, i32 -> vector<32x64xf32>
    %c1_i32_84 = arith.constant 1 : i32
    %212 = vector.broadcast %c1_i32_84 : i32 to vector<32x1xi32>
    %213 = arith.cmpi sge, %210, %212 : vector<32x1xi32>
    %c1_i32_85 = arith.constant 1 : i32
    %214 = vector.broadcast %c1_i32_85 : i32 to vector<32x1xi32>
    %215 = arith.cmpi sge, %206, %214 : vector<32x1xi32>
    %216 = arith.andi %213, %215 : vector<32x1xi1>
    %cst_86 = arith.constant 0.000000e+00 : f32
    %217 = vector.shape_cast %216 : vector<32x1xi1> to vector<32x1xi1>
    %218 = vector.broadcast %217 : vector<32x1xi1> to vector<32x64xi1>
    %219 = vector.broadcast %cst_86 : f32 to vector<32x64xf32>
    %220 = arith.select %218, %211, %219 : vector<32x64xi1>, vector<32x64xf32>
    %c2_i32_87 = arith.constant 2 : i32
    %221 = tpu.dynamic_rotate %203 by %c2_i32_87 dim 0 : vector<32x64xf32>, i32 -> vector<32x64xf32>
    %c1_i32_88 = arith.constant 1 : i32
    %222 = vector.broadcast %c1_i32_88 : i32 to vector<32x1xi32>
    %223 = arith.cmpi sge, %210, %222 : vector<32x1xi32>
    %cst_89 = arith.constant 0.000000e+00 : f32
    %224 = vector.shape_cast %223 : vector<32x1xi1> to vector<32x1xi1>
    %225 = vector.broadcast %224 : vector<32x1xi1> to vector<32x64xi1>
    %226 = vector.broadcast %cst_89 : f32 to vector<32x64xf32>
    %227 = arith.select %225, %221, %226 : vector<32x64xi1>, vector<32x64xf32>
    %c1_i32_90 = arith.constant 1 : i32
    %228 = tpu.dynamic_rotate %203 by %c1_i32_90 dim 0 : vector<32x64xf32>, i32 -> vector<32x64xf32>
    %c1_i32_91 = arith.constant 1 : i32
    %229 = vector.broadcast %c1_i32_91 : i32 to vector<32x1xi32>
    %230 = arith.cmpi sge, %210, %229 : vector<32x1xi32>
    %c0_i32 = arith.constant 0 : i32
    %231 = vector.broadcast %c0_i32 : i32 to vector<32x1xi32>
    %232 = arith.cmpi sle, %206, %231 : vector<32x1xi32>
    %233 = arith.andi %230, %232 : vector<32x1xi1>
    %cst_92 = arith.constant 0.000000e+00 : f32
    %234 = vector.shape_cast %233 : vector<32x1xi1> to vector<32x1xi1>
    %235 = vector.broadcast %234 : vector<32x1xi1> to vector<32x64xi1>
    %236 = vector.broadcast %cst_92 : f32 to vector<32x64xf32>
    %237 = arith.select %235, %228, %236 : vector<32x64xi1>, vector<32x64xf32>
    %c1_i32_93 = arith.constant 1 : i32
    %238 = tpu.dynamic_rotate %203 by %c1_i32_93 dim 0 : vector<32x64xf32>, i32 -> vector<32x64xf32>
    %c1_i32_94 = arith.constant 1 : i32
    %239 = vector.broadcast %c1_i32_94 : i32 to vector<32x1xi32>
    %240 = arith.cmpi sge, %206, %239 : vector<32x1xi32>
    %cst_95 = arith.constant 0.000000e+00 : f32
    %241 = vector.shape_cast %240 : vector<32x1xi1> to vector<32x1xi1>
    %242 = vector.broadcast %241 : vector<32x1xi1> to vector<32x64xi1>
    %243 = vector.broadcast %cst_95 : f32 to vector<32x64xf32>
    %244 = arith.select %242, %238, %243 : vector<32x64xi1>, vector<32x64xf32>
    %c31_i32 = arith.constant 31 : i32
    %245 = tpu.dynamic_rotate %203 by %c31_i32 dim 0 : vector<32x64xf32>, i32 -> vector<32x64xf32>
    %c0_i32_96 = arith.constant 0 : i32
    %246 = vector.broadcast %c0_i32_96 : i32 to vector<32x1xi32>
    %247 = arith.cmpi sle, %206, %246 : vector<32x1xi32>
    %cst_97 = arith.constant 0.000000e+00 : f32
    %248 = vector.shape_cast %247 : vector<32x1xi1> to vector<32x1xi1>
    %249 = vector.broadcast %248 : vector<32x1xi1> to vector<32x64xi1>
    %250 = vector.broadcast %cst_97 : f32 to vector<32x64xf32>
    %251 = arith.select %249, %245, %250 : vector<32x64xi1>, vector<32x64xf32>
    %c31_i32_98 = arith.constant 31 : i32
    %252 = tpu.dynamic_rotate %203 by %c31_i32_98 dim 0 : vector<32x64xf32>, i32 -> vector<32x64xf32>
    %c0_i32_99 = arith.constant 0 : i32
    %253 = vector.broadcast %c0_i32_99 : i32 to vector<32x1xi32>
    %254 = arith.cmpi sle, %210, %253 : vector<32x1xi32>
    %c1_i32_100 = arith.constant 1 : i32
    %255 = vector.broadcast %c1_i32_100 : i32 to vector<32x1xi32>
    %256 = arith.cmpi sge, %206, %255 : vector<32x1xi32>
    %257 = arith.andi %254, %256 : vector<32x1xi1>
    %cst_101 = arith.constant 0.000000e+00 : f32
    %258 = vector.shape_cast %257 : vector<32x1xi1> to vector<32x1xi1>
    %259 = vector.broadcast %258 : vector<32x1xi1> to vector<32x64xi1>
    %260 = vector.broadcast %cst_101 : f32 to vector<32x64xf32>
    %261 = arith.select %259, %252, %260 : vector<32x64xi1>, vector<32x64xf32>
    %c30_i32 = arith.constant 30 : i32
    %262 = tpu.dynamic_rotate %203 by %c30_i32 dim 0 : vector<32x64xf32>, i32 -> vector<32x64xf32>
    %c0_i32_102 = arith.constant 0 : i32
    %263 = vector.broadcast %c0_i32_102 : i32 to vector<32x1xi32>
    %264 = arith.cmpi sle, %210, %263 : vector<32x1xi32>
    %cst_103 = arith.constant 0.000000e+00 : f32
    %265 = vector.shape_cast %264 : vector<32x1xi1> to vector<32x1xi1>
    %266 = vector.broadcast %265 : vector<32x1xi1> to vector<32x64xi1>
    %267 = vector.broadcast %cst_103 : f32 to vector<32x64xf32>
    %268 = arith.select %266, %262, %267 : vector<32x64xi1>, vector<32x64xf32>
    %c29_i32 = arith.constant 29 : i32
    %269 = tpu.dynamic_rotate %203 by %c29_i32 dim 0 : vector<32x64xf32>, i32 -> vector<32x64xf32>
    %c0_i32_104 = arith.constant 0 : i32
    %270 = vector.broadcast %c0_i32_104 : i32 to vector<32x1xi32>
    %271 = arith.cmpi sle, %210, %270 : vector<32x1xi32>
    %c0_i32_105 = arith.constant 0 : i32
    %272 = vector.broadcast %c0_i32_105 : i32 to vector<32x1xi32>
    %273 = arith.cmpi sle, %206, %272 : vector<32x1xi32>
    %274 = arith.andi %271, %273 : vector<32x1xi1>
    %cst_106 = arith.constant 0.000000e+00 : f32
    %275 = vector.shape_cast %274 : vector<32x1xi1> to vector<32x1xi1>
    %276 = vector.broadcast %275 : vector<32x1xi1> to vector<32x64xi1>
    %277 = vector.broadcast %cst_106 : f32 to vector<32x64xf32>
    %278 = arith.select %276, %269, %277 : vector<32x64xi1>, vector<32x64xf32>
    %279 = tpu.concatenate %220, %227, %237, %244, %203, %251, %261, %268, %278 in 1 : vector<32x64xf32>, vector<32x64xf32>, vector<32x64xf32>, vector<32x64xf32>, vector<32x64xf32>, vector<32x64xf32>, vector<32x64xf32>, vector<32x64xf32>, vector<32x64xf32> -> vector<32x576xf32>
    %280 = arith.truncf %279 : vector<32x576xf32> to vector<32x576xbf16>
    %c0_107 = arith.constant 0 : index
    %c0_108 = arith.constant 0 : index
    %281 = vector.load %arg11[%c0_107, %c0_108] : memref<576x32xbf16, #tpu.memory_space<vmem>>, vector<576x32xbf16>
    %cst_109 = arith.constant dense<0.000000e+00> : vector<32x32xf32>
    %282 = tpu.matmul %280, %281, %cst_109 {dimension_numbers = #tpu.dot_dimension_numbers<[1], [0], [0], [1], [0, 0, 1, 1], [], []>} : vector<32x576xbf16>, vector<576x32xbf16>, vector<32x32xf32> -> vector<32x32xf32>
    %c0_110 = arith.constant 0 : index
    %c0_111 = arith.constant 0 : index
    %283 = vector.load %arg12[%c0_110, %c0_111] : memref<1x32xf32, #tpu.memory_space<vmem>>, vector<1x32xf32>
    %284 = vector.broadcast %283 : vector<1x32xf32> to vector<32x32xf32>
    %285 = arith.addf %282, %284 : vector<32x32xf32>
    %cst_112 = arith.constant 0.000000e+00 : f32
    %286 = vector.broadcast %cst_112 : f32 to vector<32x32xf32>
    %287 = arith.maximumf %285, %286 : vector<32x32xf32>
    %c31_i32_113 = arith.constant 31 : i32
    %288 = tpu.dynamic_rotate %287 by %c31_i32_113 dim 0 : vector<32x32xf32>, i32 -> vector<32x32xf32>
    %289 = arith.maximumf %287, %288 : vector<32x32xf32>
    %c30_i32_114 = arith.constant 30 : i32
    %290 = tpu.dynamic_rotate %289 by %c30_i32_114 dim 0 : vector<32x32xf32>, i32 -> vector<32x32xf32>
    %291 = arith.maximumf %289, %290 : vector<32x32xf32>
    %292 = arith.truncf %291 : vector<32x32xf32> to vector<32x32xbf16>
    %c0_115 = arith.constant 0 : index
    %c0_116 = arith.constant 0 : index
    %293 = vector.load %arg13[%c0_115, %c0_116] : memref<32x128xbf16, #tpu.memory_space<vmem>>, vector<32x128xbf16>
    %cst_117 = arith.constant dense<0.000000e+00> : vector<32x128xf32>
    %294 = tpu.matmul %292, %293, %cst_117 {dimension_numbers = #tpu.dot_dimension_numbers<[1], [0], [0], [1], [0, 0, 1, 1], [], []>} : vector<32x32xbf16>, vector<32x128xbf16>, vector<32x128xf32> -> vector<32x128xf32>
    %c0_118 = arith.constant 0 : index
    %c0_119 = arith.constant 0 : index
    %295 = vector.load %arg14[%c0_118, %c0_119] : memref<1x128xf32, #tpu.memory_space<vmem>>, vector<1x128xf32>
    %296 = vector.broadcast %295 : vector<1x128xf32> to vector<32x128xf32>
    %297 = arith.addf %294, %296 : vector<32x128xf32>
    %cst_120 = arith.constant 0.000000e+00 : f32
    %298 = vector.broadcast %cst_120 : f32 to vector<32x128xf32>
    %299 = arith.maximumf %297, %298 : vector<32x128xf32>
    %300 = arith.truncf %299 : vector<32x128xf32> to vector<32x128xbf16>
    %c0_121 = arith.constant 0 : index
    %c0_122 = arith.constant 0 : index
    %301 = vector.load %arg15[%c0_121, %c0_122] : memref<128x128xbf16, #tpu.memory_space<vmem>>, vector<128x128xbf16>
    %cst_123 = arith.constant dense<0.000000e+00> : vector<32x128xf32>
    %302 = tpu.matmul %300, %301, %cst_123 {dimension_numbers = #tpu.dot_dimension_numbers<[1], [0], [0], [1], [0, 0, 1, 1], [], []>} : vector<32x128xbf16>, vector<128x128xbf16>, vector<32x128xf32> -> vector<32x128xf32>
    %c0_124 = arith.constant 0 : index
    %c0_125 = arith.constant 0 : index
    %303 = vector.load %arg16[%c0_124, %c0_125] : memref<1x128xf32, #tpu.memory_space<vmem>>, vector<1x128xf32>
    %304 = vector.broadcast %303 : vector<1x128xf32> to vector<32x128xf32>
    %305 = arith.addf %302, %304 : vector<32x128xf32>
    %306 = vector.shape_cast %305 : vector<32x128xf32> to vector<4x8x128xf32>
    %c0_126 = arith.constant 0 : index
    %c0_127 = arith.constant 0 : index
    %c0_128 = arith.constant 0 : index
    %307 = vector.load %arg17[%c0_126, %c0_127, %c0_128] : memref<4x8x128xf32, #tpu.memory_space<vmem>>, vector<4x8x128xf32>
    tpu.vector_store %arg17[%c0_126, %c0_127, %c0_128], %306 {strides = array<i32>} : memref<4x8x128xf32, #tpu.memory_space<vmem>>, vector<4x8x128xf32>,
    return
  }
  func.func @transform_0(%arg0: i32) -> (i32, i32, i32) {
    %c0_i32 = arith.constant 0 : i32
    %c0_i32_0 = arith.constant 0 : i32
    %c0_i32_1 = arith.constant 0 : i32
    return %arg0, %c0_i32, %c0_i32_0 : i32, i32, i32
  }
  func.func @transform_1(%arg0: i32) -> (i32, i32) {
    %c0_i32 = arith.constant 0 : i32
    %c0_i32_0 = arith.constant 0 : i32
    %c0_i32_1 = arith.constant 0 : i32
    return %c0_i32, %c0_i32_0 : i32, i32
  }
  func.func @transform_2(%arg0: i32) -> (i32, i32) {
    %c0_i32 = arith.constant 0 : i32
    %c0_i32_0 = arith.constant 0 : i32
    %c0_i32_1 = arith.constant 0 : i32
    return %c0_i32, %c0_i32_0 : i32, i32
  }
  func.func @transform_3(%arg0: i32) -> (i32, i32, i32) {
    %c0_i32 = arith.constant 0 : i32
    %c0_i32_0 = arith.constant 0 : i32
    %c0_i32_1 = arith.constant 0 : i32
    %c0_i32_2 = arith.constant 0 : i32
    return %c0_i32, %c0_i32_0, %c0_i32_1 : i32, i32, i32
  }
  func.func @transform_4(%arg0: i32) -> (i32, i32) {
    %c0_i32 = arith.constant 0 : i32
    %c0_i32_0 = arith.constant 0 : i32
    %c0_i32_1 = arith.constant 0 : i32
    return %c0_i32, %c0_i32_0 : i32, i32
  }
  func.func @transform_5(%arg0: i32) -> (i32, i32) {
    %c0_i32 = arith.constant 0 : i32
    %c0_i32_0 = arith.constant 0 : i32
    %c0_i32_1 = arith.constant 0 : i32
    return %c0_i32, %c0_i32_0 : i32, i32
  }
  func.func @transform_6(%arg0: i32) -> (i32, i32, i32) {
    %c0_i32 = arith.constant 0 : i32
    %c0_i32_0 = arith.constant 0 : i32
    %c0_i32_1 = arith.constant 0 : i32
    %c0_i32_2 = arith.constant 0 : i32
    return %c0_i32, %c0_i32_0, %c0_i32_1 : i32, i32, i32
  }
  func.func @transform_7(%arg0: i32) -> (i32, i32) {
    %c0_i32 = arith.constant 0 : i32
    %c0_i32_0 = arith.constant 0 : i32
    %c0_i32_1 = arith.constant 0 : i32
    return %c0_i32, %c0_i32_0 : i32, i32
  }
  func.func @transform_8(%arg0: i32) -> (i32, i32) {
    %c0_i32 = arith.constant 0 : i32
    %c0_i32_0 = arith.constant 0 : i32
    %c0_i32_1 = arith.constant 0 : i32
    return %c0_i32, %c0_i32_0 : i32, i32
  }
  func.func @transform_9(%arg0: i32) -> (i32, i32, i32) {
    %c0_i32 = arith.constant 0 : i32
    %c0_i32_0 = arith.constant 0 : i32
    %c0_i32_1 = arith.constant 0 : i32
    %c0_i32_2 = arith.constant 0 : i32
    return %c0_i32, %c0_i32_0, %c0_i32_1 : i32, i32, i32
  }
  func.func @transform_10(%arg0: i32) -> (i32, i32) {
    %c0_i32 = arith.constant 0 : i32
    %c0_i32_0 = arith.constant 0 : i32
    %c0_i32_1 = arith.constant 0 : i32
    return %c0_i32, %c0_i32_0 : i32, i32
  }
  func.func @transform_11(%arg0: i32) -> (i32, i32) {
    %c0_i32 = arith.constant 0 : i32
    %c0_i32_0 = arith.constant 0 : i32
    %c0_i32_1 = arith.constant 0 : i32
    return %c0_i32, %c0_i32_0 : i32, i32
  }
  func.func @transform_12(%arg0: i32) -> (i32, i32) {
    %c0_i32 = arith.constant 0 : i32
    %c0_i32_0 = arith.constant 0 : i32
    %c0_i32_1 = arith.constant 0 : i32
    return %c0_i32, %c0_i32_0 : i32, i32
  }
  func.func @transform_13(%arg0: i32) -> (i32, i32) {
    %c0_i32 = arith.constant 0 : i32
    %c0_i32_0 = arith.constant 0 : i32
    %c0_i32_1 = arith.constant 0 : i32
    return %c0_i32, %c0_i32_0 : i32, i32
  }
  func.func @transform_14(%arg0: i32) -> (i32, i32) {
    %c0_i32 = arith.constant 0 : i32
    %c0_i32_0 = arith.constant 0 : i32
    %c0_i32_1 = arith.constant 0 : i32
    return %c0_i32, %c0_i32_0 : i32, i32
  }
  func.func @transform_15(%arg0: i32) -> (i32, i32) {
    %c0_i32 = arith.constant 0 : i32
    %c0_i32_0 = arith.constant 0 : i32
    %c0_i32_1 = arith.constant 0 : i32
    return %c0_i32, %c0_i32_0 : i32, i32
  }
  func.func @transform_16(%arg0: i32) -> (i32, i32, i32) {
    %c0_i32 = arith.constant 0 : i32
    %c0_i32_0 = arith.constant 0 : i32
    %c0_i32_1 = arith.constant 0 : i32
    return %arg0, %c0_i32, %c0_i32_0 : i32, i32, i32
  }
}

</mosaic_0001>

<llo_original>
// kernel: mnist_net_forward.1
$region0: #{mnist_net_forward.1}
  #allocation0 [shape = 'u32[]', space=smem, size = 0x4, offset = 0x4, fixed_abs, tag = 'smem constant byte address 0x4 - core index']
  #allocation1 [shape = 'u32[144,128]{1,0:T(1,128)}', space=vmem, size = 0x12000, scoped, tag = 'internal scratch']
  %s0 = inlined_call_operand.vmem [shape: bf16[8,256,9], index: 0, kind: input, shape index: {}]
  %s1 = inlined_call_operand.vmem [shape: bf16[9,32], index: 1, kind: input, shape index: {}]
  %s2 = inlined_call_operand.vmem [shape: f32[1,32], index: 2, kind: input, shape index: {}]
  %s3 = inlined_call_operand.vmem [shape: bf16[4,64,256], index: 3, kind: input, shape index: {}]
  %s4 = inlined_call_operand.vmem [shape: bf16[288,64], index: 4, kind: input, shape index: {}]
  %s5 = inlined_call_operand.vmem [shape: f32[1,64], index: 5, kind: input, shape index: {}]
  %s6 = inlined_call_operand.vmem [shape: bf16[4,16,64], index: 6, kind: input, shape index: {}]
  %s7 = inlined_call_operand.vmem [shape: bf16[576,64], index: 7, kind: input, shape index: {}]
  %s8 = inlined_call_operand.vmem [shape: f32[1,64], index: 8, kind: input, shape index: {}]
  %s9 = inlined_call_operand.vmem [shape: bf16[4,8,16], index: 9, kind: input, shape index: {}]
  %s10 = inlined_call_operand.vmem [shape: bf16[576,32], index: 10, kind: input, shape index: {}]
  %s11 = inlined_call_operand.vmem [shape: f32[1,32], index: 11, kind: input, shape index: {}]
  %s12 = inlined_call_operand.vmem [shape: bf16[32,128], index: 12, kind: input, shape index: {}]
  %s13 = inlined_call_operand.vmem [shape: f32[1,128], index: 13, kind: input, shape index: {}]
  %s14 = inlined_call_operand.vmem [shape: bf16[128,128], index: 14, kind: input, shape index: {}]
  %s15 = inlined_call_operand.vmem [shape: f32[1,128], index: 15, kind: input, shape index: {}]
  %s16 = inlined_call_operand.vmem [shape: f32[8,8,128], index: 16, kind: output, shape index: {}]
  %s17 = sld [smem:[#allocation0]]
  $region97: #{mnist_net_forward.1} parent=0
    _
  %s19 = ssub.s32 1, %s17
  %s20 = scalar_select 0, %s19, %s17
  loop: start=0, step=1, limit=4
  $region2: #{mnist_net_forward.1} parent=0 // loop_pre_header
    _
  $region3: #{mnist_net_forward.1} parent=0 // loop_header
    %s22 = sphi 0, %s26
    %p23 = scmp.ge.s32.totalorder %s22, 4
    %s32 = sphi 0, %s34
    %s35 = sphi 0, %s32
    %s36 = sphi 0, %s35
    %s52 = sphi 0, %s36
    %s56 = sphi 0, %s56
    %s58 = sphi 0, %s56
    %s59 = sphi 0, %s58
    %s73 = sphi 0, %s59
    %s77 = sphi 0, %s77
    %s79 = sphi 0, %s77
    %s80 = sphi 0, %s79
    %s94 = sphi 0, %s80
    %s98 = sphi 0, %s98
    %s100 = sphi 0, %s98
    %s101 = sphi 0, %s100
    %s115 = sphi 0, %s101
    %s119 = sphi 0, %s119
    %s121 = sphi 0, %s119
    %s122 = sphi 0, %s121
    %s136 = sphi 0, %s122
    %s140 = sphi 0, %s140
    %s142 = sphi 0, %s140
    %s143 = sphi 0, %s142
    %s157 = sphi 0, %s143
    %s161 = sphi 0, %s161
    %s163 = sphi 0, %s161
    %s164 = sphi 0, %s163
    %s178 = sphi 0, %s164
    %s182 = sphi 0, %s182
    %s184 = sphi 0, %s182
    %s185 = sphi 0, %s184
    %s199 = sphi 0, %s185
    %s203 = sphi 0, %s203
    %s205 = sphi 0, %s203
    %s206 = sphi 0, %s205
    %s220 = sphi 0, %s206
    %s224 = sphi 0, %s224
    %s226 = sphi 0, %s224
    %s227 = sphi 0, %s226
    %s241 = sphi 0, %s227
    %s245 = sphi 0, %s245
    %s247 = sphi 0, %s245
    %s248 = sphi 0, %s247
    %s262 = sphi 0, %s248
    %s266 = sphi 0, %s266
    %s268 = sphi 0, %s266
    %s269 = sphi 0, %s268
    %s283 = sphi 0, %s269
    %s287 = sphi 0, %s287
    %s289 = sphi 0, %s287
    %s290 = sphi 0, %s289
    %s304 = sphi 0, %s290
    %s308 = sphi 0, %s308
    %s310 = sphi 0, %s308
    %s311 = sphi 0, %s310
    %s325 = sphi 0, %s311
    %s329 = sphi 0, %s329
    %s331 = sphi 0, %s329
    %s332 = sphi 0, %s331
    %s346 = sphi 0, %s332
    %s350 = sphi 0, %s350
    %s352 = sphi 0, %s350
    %s353 = sphi 0, %s352
    %s367 = sphi 0, %s353
    %s373 = sphi 0, %s375
    %s376 = sphi 0, %s373
    %s377 = sphi 0, %s376
    %s393 = sphi 0, %s377
  $region4: #{mnist_net_forward.1} parent=0 // loop_header_branch
    %25 = sbr.rel (%p23) target = $region8
  $region5: #{mnist_net_forward.1} parent=0 // loop_body
    %s27 = ssub.s32 %s22, 1
    %s28 = ssub.s32 %s22, 2
    %s29 = sadd.s32 %s22, 1
    %s30 = ssub.s32 %s22, %s29
    %p31 = scmp.eq.s32.totalorder %s30, 0
    %s33 = sadd.s32 %s32, 1
    %s34 = scalar_select %p31, %s32, %s33
    %p37 = pneg %p31
    %p38 = scmp.eq.s32.totalorder %s22, 1
    %p39 = por %p37, %p38
    %p40 = scmp.ne.s32.totalorder %s32, %s35
    %p41 = scmp.eq.s32.totalorder %s22, 0
    %p42 = por %p40, %p41
    %p43 = scmp.ne.s32.totalorder %s32, %s35
    %p44 = scmp.eq.s32.totalorder %s27, 1
    %p45 = por %p43, %p44
    %p46 = scmp.ne.s32.totalorder %s35, %s36
    %p47 = scmp.eq.s32.totalorder %s27, 0
    %p48 = por %p46, %p47
    %p49 = scmp.ne.s32.totalorder %s35, %s36
    %p50 = scmp.eq.s32.totalorder %s28, 1
    %p51 = por %p49, %p50
    %p53 = scmp.ne.s32.totalorder %s36, %s52
    %p54 = scmp.eq.s32.totalorder %s28, 0
    %p55 = por %p53, %p54
    %s57 = sadd.s32 %s56, 1
    %p60 = scmp.eq.s32.totalorder %s22, 1
    %p61 = scmp.ne.s32.totalorder %s56, %s58
    %p62 = scmp.eq.s32.totalorder %s22, 0
    %p63 = por %p61, %p62
    %p64 = scmp.ne.s32.totalorder %s56, %s58
    %p65 = scmp.eq.s32.totalorder %s27, 1
    %p66 = por %p64, %p65
    %p67 = scmp.ne.s32.totalorder %s58, %s59
    %p68 = scmp.eq.s32.totalorder %s27, 0
    %p69 = por %p67, %p68
    %p70 = scmp.ne.s32.totalorder %s58, %s59
    %p71 = scmp.eq.s32.totalorder %s28, 1
    %p72 = por %p70, %p71
    %p74 = scmp.ne.s32.totalorder %s59, %s73
    %p75 = scmp.eq.s32.totalorder %s28, 0
    %p76 = por %p74, %p75
    %s78 = sadd.s32 %s77, 1
    %p81 = scmp.eq.s32.totalorder %s22, 1
    %p82 = scmp.ne.s32.totalorder %s77, %s79
    %p83 = scmp.eq.s32.totalorder %s22, 0
    %p84 = por %p82, %p83
    %p85 = scmp.ne.s32.totalorder %s77, %s79
    %p86 = scmp.eq.s32.totalorder %s27, 1
    %p87 = por %p85, %p86
    %p88 = scmp.ne.s32.totalorder %s79, %s80
    %p89 = scmp.eq.s32.totalorder %s27, 0
    %p90 = por %p88, %p89
    %p91 = scmp.ne.s32.totalorder %s79, %s80
    %p92 = scmp.eq.s32.totalorder %s28, 1
    %p93 = por %p91, %p92
    %p95 = scmp.ne.s32.totalorder %s80, %s94
    %p96 = scmp.eq.s32.totalorder %s28, 0
    %p97 = por %p95, %p96
    %s99 = sadd.s32 %s98, 1
    %p102 = scmp.eq.s32.totalorder %s22, 1
    %p103 = scmp.ne.s32.totalorder %s98, %s100
    %p104 = scmp.eq.s32.totalorder %s22, 0
    %p105 = por %p103, %p104
    %p106 = scmp.ne.s32.totalorder %s98, %s100
    %p107 = scmp.eq.s32.totalorder %s27, 1
    %p108 = por %p106, %p107
    %p109 = scmp.ne.s32.totalorder %s100, %s101
    %p110 = scmp.eq.s32.totalorder %s27, 0
    %p111 = por %p109, %p110
    %p112 = scmp.ne.s32.totalorder %s100, %s101
    %p113 = scmp.eq.s32.totalorder %s28, 1
    %p114 = por %p112, %p113
    %p116 = scmp.ne.s32.totalorder %s101, %s115
    %p117 = scmp.eq.s32.totalorder %s28, 0
    %p118 = por %p116, %p117
    %s120 = sadd.s32 %s119, 1
    %p123 = scmp.eq.s32.totalorder %s22, 1
    %p124 = scmp.ne.s32.totalorder %s119, %s121
    %p125 = scmp.eq.s32.totalorder %s22, 0
    %p126 = por %p124, %p125
    %p127 = scmp.ne.s32.totalorder %s119, %s121
    %p128 = scmp.eq.s32.totalorder %s27, 1
    %p129 = por %p127, %p128
    %p130 = scmp.ne.s32.totalorder %s121, %s122
    %p131 = scmp.eq.s32.totalorder %s27, 0
    %p132 = por %p130, %p131
    %p133 = scmp.ne.s32.totalorder %s121, %s122
    %p134 = scmp.eq.s32.totalorder %s28, 1
    %p135 = por %p133, %p134
    %p137 = scmp.ne.s32.totalorder %s122, %s136
    %p138 = scmp.eq.s32.totalorder %s28, 0
    %p139 = por %p137, %p138
    %s141 = sadd.s32 %s140, 1
    %p144 = scmp.eq.s32.totalorder %s22, 1
    %p145 = scmp.ne.s32.totalorder %s140, %s142
    %p146 = scmp.eq.s32.totalorder %s22, 0
    %p147 = por %p145, %p146
    %p148 = scmp.ne.s32.totalorder %s140, %s142
    %p149 = scmp.eq.s32.totalorder %s27, 1
    %p150 = por %p148, %p149
    %p151 = scmp.ne.s32.totalorder %s142, %s143
    %p152 = scmp.eq.s32.totalorder %s27, 0
    %p153 = por %p151, %p152
    %p154 = scmp.ne.s32.totalorder %s142, %s143
    %p155 = scmp.eq.s32.totalorder %s28, 1
    %p156 = por %p154, %p155
    %p158 = scmp.ne.s32.totalorder %s143, %s157
    %p159 = scmp.eq.s32.totalorder %s28, 0
    %p160 = por %p158, %p159
    %s162 = sadd.s32 %s161, 1
    %p165 = scmp.eq.s32.totalorder %s22, 1
    %p166 = scmp.ne.s32.totalorder %s161, %s163
    %p167 = scmp.eq.s32.totalorder %s22, 0
    %p168 = por %p166, %p167
    %p169 = scmp.ne.s32.totalorder %s161, %s163
    %p170 = scmp.eq.s32.totalorder %s27, 1
    %p171 = por %p169, %p170
    %p172 = scmp.ne.s32.totalorder %s163, %s164
    %p173 = scmp.eq.s32.totalorder %s27, 0
    %p174 = por %p172, %p173
    %p175 = scmp.ne.s32.totalorder %s163, %s164
    %p176 = scmp.eq.s32.totalorder %s28, 1
    %p177 = por %p175, %p176
    %p179 = scmp.ne.s32.totalorder %s164, %s178
    %p180 = scmp.eq.s32.totalorder %s28, 0
    %p181 = por %p179, %p180
    %s183 = sadd.s32 %s182, 1
    %p186 = scmp.eq.s32.totalorder %s22, 1
    %p187 = scmp.ne.s32.totalorder %s182, %s184
    %p188 = scmp.eq.s32.totalorder %s22, 0
    %p189 = por %p187, %p188
    %p190 = scmp.ne.s32.totalorder %s182, %s184
    %p191 = scmp.eq.s32.totalorder %s27, 1
    %p192 = por %p190, %p191
    %p193 = scmp.ne.s32.totalorder %s184, %s185
    %p194 = scmp.eq.s32.totalorder %s27, 0
    %p195 = por %p193, %p194
    %p196 = scmp.ne.s32.totalorder %s184, %s185
    %p197 = scmp.eq.s32.totalorder %s28, 1
    %p198 = por %p196, %p197
    %p200 = scmp.ne.s32.totalorder %s185, %s199
    %p201 = scmp.eq.s32.totalorder %s28, 0
    %p202 = por %p200, %p201
    %s204 = sadd.s32 %s203, 1
    %p207 = scmp.eq.s32.totalorder %s22, 1
    %p208 = scmp.ne.s32.totalorder %s203, %s205
    %p209 = scmp.eq.s32.totalorder %s22, 0
    %p210 = por %p208, %p209
    %p211 = scmp.ne.s32.totalorder %s203, %s205
    %p212 = scmp.eq.s32.totalorder %s27, 1
    %p213 = por %p211, %p212
    %p214 = scmp.ne.s32.totalorder %s205, %s206
    %p215 = scmp.eq.s32.totalorder %s27, 0
    %p216 = por %p214, %p215
    %p217 = scmp.ne.s32.totalorder %s205, %s206
    %p218 = scmp.eq.s32.totalorder %s28, 1
    %p219 = por %p217, %p218
    %p221 = scmp.ne.s32.totalorder %s206, %s220
    %p222 = scmp.eq.s32.totalorder %s28, 0
    %p223 = por %p221, %p222
    %s225 = sadd.s32 %s224, 1
    %p228 = scmp.eq.s32.totalorder %s22, 1
    %p229 = scmp.ne.s32.totalorder %s224, %s226
    %p230 = scmp.eq.s32.totalorder %s22, 0
    %p231 = por %p229, %p230
    %p232 = scmp.ne.s32.totalorder %s224, %s226
    %p233 = scmp.eq.s32.totalorder %s27, 1
    %p234 = por %p232, %p233
    %p235 = scmp.ne.s32.totalorder %s226, %s227
    %p236 = scmp.eq.s32.totalorder %s27, 0
    %p237 = por %p235, %p236
    %p238 = scmp.ne.s32.totalorder %s226, %s227
    %p239 = scmp.eq.s32.totalorder %s28, 1
    %p240 = por %p238, %p239
    %p242 = scmp.ne.s32.totalorder %s227, %s241
    %p243 = scmp.eq.s32.totalorder %s28, 0
    %p244 = por %p242, %p243
    %s246 = sadd.s32 %s245, 1
    %p249 = scmp.eq.s32.totalorder %s22, 1
    %p250 = scmp.ne.s32.totalorder %s245, %s247
    %p251 = scmp.eq.s32.totalorder %s22, 0
    %p252 = por %p250, %p251
    %p253 = scmp.ne.s32.totalorder %s245, %s247
    %p254 = scmp.eq.s32.totalorder %s27, 1
    %p255 = por %p253, %p254
    %p256 = scmp.ne.s32.totalorder %s247, %s248
    %p257 = scmp.eq.s32.totalorder %s27, 0
    %p258 = por %p256, %p257
    %p259 = scmp.ne.s32.totalorder %s247, %s248
    %p260 = scmp.eq.s32.totalorder %s28, 1
    %p261 = por %p259, %p260
    %p263 = scmp.ne.s32.totalorder %s248, %s262
    %p264 = scmp.eq.s32.totalorder %s28, 0
    %p265 = por %p263, %p264
    %s267 = sadd.s32 %s266, 1
    %p270 = scmp.eq.s32.totalorder %s22, 1
    %p271 = scmp.ne.s32.totalorder %s266, %s268
    %p272 = scmp.eq.s32.totalorder %s22, 0
    %p273 = por %p271, %p272
    %p274 = scmp.ne.s32.totalorder %s266, %s268
    %p275 = scmp.eq.s32.totalorder %s27, 1
    %p276 = por %p274, %p275
    %p277 = scmp.ne.s32.totalorder %s268, %s269
    %p278 = scmp.eq.s32.totalorder %s27, 0
    %p279 = por %p277, %p278
    %p280 = scmp.ne.s32.totalorder %s268, %s269
    %p281 = scmp.eq.s32.totalorder %s28, 1
    %p282 = por %p280, %p281
    %p284 = scmp.ne.s32.totalorder %s269, %s283
    %p285 = scmp.eq.s32.totalorder %s28, 0
    %p286 = por %p284, %p285
    %s288 = sadd.s32 %s287, 1
    %p291 = scmp.eq.s32.totalorder %s22, 1
    %p292 = scmp.ne.s32.totalorder %s287, %s289
    %p293 = scmp.eq.s32.totalorder %s22, 0
    %p294 = por %p292, %p293
    %p295 = scmp.ne.s32.totalorder %s287, %s289
    %p296 = scmp.eq.s32.totalorder %s27, 1
    %p297 = por %p295, %p296
    %p298 = scmp.ne.s32.totalorder %s289, %s290
    %p299 = scmp.eq.s32.totalorder %s27, 0
    %p300 = por %p298, %p299
    %p301 = scmp.ne.s32.totalorder %s289, %s290
    %p302 = scmp.eq.s32.totalorder %s28, 1
    %p303 = por %p301, %p302
    %p305 = scmp.ne.s32.totalorder %s290, %s304
    %p306 = scmp.eq.s32.totalorder %s28, 0
    %p307 = por %p305, %p306
    %s309 = sadd.s32 %s308, 1
    %p312 = scmp.eq.s32.totalorder %s22, 1
    %p313 = scmp.ne.s32.totalorder %s308, %s310
    %p314 = scmp.eq.s32.totalorder %s22, 0
    %p315 = por %p313, %p314
    %p316 = scmp.ne.s32.totalorder %s308, %s310
    %p317 = scmp.eq.s32.totalorder %s27, 1
    %p318 = por %p316, %p317
    %p319 = scmp.ne.s32.totalorder %s310, %s311
    %p320 = scmp.eq.s32.totalorder %s27, 0
    %p321 = por %p319, %p320
    %p322 = scmp.ne.s32.totalorder %s310, %s311
    %p323 = scmp.eq.s32.totalorder %s28, 1
    %p324 = por %p322, %p323
    %p326 = scmp.ne.s32.totalorder %s311, %s325
    %p327 = scmp.eq.s32.totalorder %s28, 0
    %p328 = por %p326, %p327
    %s330 = sadd.s32 %s329, 1
    %p333 = scmp.eq.s32.totalorder %s22, 1
    %p334 = scmp.ne.s32.totalorder %s329, %s331
    %p335 = scmp.eq.s32.totalorder %s22, 0
    %p336 = por %p334, %p335
    %p337 = scmp.ne.s32.totalorder %s329, %s331
    %p338 = scmp.eq.s32.totalorder %s27, 1
    %p339 = por %p337, %p338
    %p340 = scmp.ne.s32.totalorder %s331, %s332
    %p341 = scmp.eq.s32.totalorder %s27, 0
    %p342 = por %p340, %p341
    %p343 = scmp.ne.s32.totalorder %s331, %s332
    %p344 = scmp.eq.s32.totalorder %s28, 1
    %p345 = por %p343, %p344
    %p347 = scmp.ne.s32.totalorder %s332, %s346
    %p348 = scmp.eq.s32.totalorder %s28, 0
    %p349 = por %p347, %p348
    %s351 = sadd.s32 %s350, 1
    %p354 = scmp.eq.s32.totalorder %s22, 1
    %p355 = scmp.ne.s32.totalorder %s350, %s352
    %p356 = scmp.eq.s32.totalorder %s22, 0
    %p357 = por %p355, %p356
    %p358 = scmp.ne.s32.totalorder %s350, %s352
    %p359 = scmp.eq.s32.totalorder %s27, 1
    %p360 = por %p358, %p359
    %p361 = scmp.ne.s32.totalorder %s352, %s353
    %p362 = scmp.eq.s32.totalorder %s27, 0
    %p363 = por %p361, %p362
    %p364 = scmp.ne.s32.totalorder %s352, %s353
    %p365 = scmp.eq.s32.totalorder %s28, 1
    %p366 = por %p364, %p365
    %p368 = scmp.ne.s32.totalorder %s353, %s367
    %p369 = scmp.eq.s32.totalorder %s28, 0
    %p370 = por %p368, %p369
    %s371 = ssub.s32 %s22, %s29
    %p372 = scmp.eq.s32.totalorder %s371, 0
    %s374 = sadd.s32 %s373, 1
    %s375 = scalar_select %p372, %s373, %s374
    %p378 = pneg %p372
    %p379 = scmp.eq.s32.totalorder %s22, 1
    %p380 = por %p378, %p379
    %p381 = scmp.ne.s32.totalorder %s373, %s376
    %p382 = scmp.eq.s32.totalorder %s22, 0
    %p383 = por %p381, %p382
    %p384 = scmp.ne.s32.totalorder %s373, %s376
    %p385 = scmp.eq.s32.totalorder %s27, 1
    %p386 = por %p384, %p385
    %p387 = scmp.ne.s32.totalorder %s376, %s377
    %p388 = scmp.eq.s32.totalorder %s27, 0
    %p389 = por %p387, %p388
    %p390 = scmp.ne.s32.totalorder %s376, %s377
    %p391 = scmp.eq.s32.totalorder %s28, 1
    %p392 = por %p390, %p391
    %p394 = scmp.ne.s32.totalorder %s377, %s393
    %p395 = scmp.eq.s32.totalorder %s28, 0
    %p396 = por %p394, %p395
    %p397 = scmp.le.s32.totalorder 1, %s22
    %p398 = scmp.lt.s32.totalorder %s22, 3
    %p399 = pnand %p397, %p398
    %p400 = pneg %p399
    // Predicated region
    $region9: #{mnist_net_forward.1} parent=5 // pred_check
      _
    $region10: #{mnist_net_forward.1} parent=5 // pred_check_branch
      %402 = sbr.rel (%p399) target = $region12
    $region11: #{mnist_net_forward.1} parent=5 // pred_region
      %s403 = ssub.s32 %s22, 1
      // Predicated region
      $region13: #{mnist_net_forward.1} parent=11 // pred_check
        %p404 = pneg %p69
      $region14: #{mnist_net_forward.1} parent=11 // pred_check_branch
        %406 = sbr.rel (%p404) target = $region16
      $region15: #{mnist_net_forward.1} parent=11 // pred_region
        _
      $region16: #{mnist_net_forward.1} parent=11 // pred_fallthru
        _
      // Predicated region
      $region17: #{mnist_net_forward.1} parent=11 // pred_check
        %p407 = pneg %p90
      $region18: #{mnist_net_forward.1} parent=11 // pred_check_branch
        %409 = sbr.rel (%p407) target = $region20
      $region19: #{mnist_net_forward.1} parent=11 // pred_region
        _
      $region20: #{mnist_net_forward.1} parent=11 // pred_fallthru
        _
      // Predicated region
      $region21: #{mnist_net_forward.1} parent=11 // pred_check
        %p410 = pneg %p111
      $region22: #{mnist_net_forward.1} parent=11 // pred_check_branch
        %412 = sbr.rel (%p410) target = $region24
      $region23: #{mnist_net_forward.1} parent=11 // pred_region
        _
      $region24: #{mnist_net_forward.1} parent=11 // pred_fallthru
        _
      // Predicated region
      $region25: #{mnist_net_forward.1} parent=11 // pred_check
        %p413 = pneg %p132
      $region26: #{mnist_net_forward.1} parent=11 // pred_check_branch
        %415 = sbr.rel (%p413) target = $region28
      $region27: #{mnist_net_forward.1} parent=11 // pred_region
        _
      $region28: #{mnist_net_forward.1} parent=11 // pred_fallthru
        _
      // Predicated region
      $region29: #{mnist_net_forward.1} parent=11 // pred_check
        %p416 = pneg %p153
      $region30: #{mnist_net_forward.1} parent=11 // pred_check_branch
        %418 = sbr.rel (%p416) target = $region32
      $region31: #{mnist_net_forward.1} parent=11 // pred_region
        _
      $region32: #{mnist_net_forward.1} parent=11 // pred_fallthru
        _
      // Predicated region
      $region33: #{mnist_net_forward.1} parent=11 // pred_check
        %p419 = pneg %p174
      $region34: #{mnist_net_forward.1} parent=11 // pred_check_branch
        %421 = sbr.rel (%p419) target = $region36
      $region35: #{mnist_net_forward.1} parent=11 // pred_region
        _
      $region36: #{mnist_net_forward.1} parent=11 // pred_fallthru
        _
      // Predicated region
      $region37: #{mnist_net_forward.1} parent=11 // pred_check
        %p422 = pneg %p195
      $region38: #{mnist_net_forward.1} parent=11 // pred_check_branch
        %424 = sbr.rel (%p422) target = $region40
      $region39: #{mnist_net_forward.1} parent=11 // pred_region
        _
      $region40: #{mnist_net_forward.1} parent=11 // pred_fallthru
        _
      // Predicated region
      $region41: #{mnist_net_forward.1} parent=11 // pred_check
        %p425 = pneg %p216
      $region42: #{mnist_net_forward.1} parent=11 // pred_check_branch
        %427 = sbr.rel (%p425) target = $region44
      $region43: #{mnist_net_forward.1} parent=11 // pred_region
        _
      $region44: #{mnist_net_forward.1} parent=11 // pred_fallthru
        _
      // Predicated region
      $region45: #{mnist_net_forward.1} parent=11 // pred_check
        %p428 = pneg %p237
      $region46: #{mnist_net_forward.1} parent=11 // pred_check_branch
        %430 = sbr.rel (%p428) target = $region48
      $region47: #{mnist_net_forward.1} parent=11 // pred_region
        _
      $region48: #{mnist_net_forward.1} parent=11 // pred_fallthru
        _
      // Predicated region
      $region49: #{mnist_net_forward.1} parent=11 // pred_check
        %p431 = pneg %p258
      $region50: #{mnist_net_forward.1} parent=11 // pred_check_branch
        %433 = sbr.rel (%p431) target = $region52
      $region51: #{mnist_net_forward.1} parent=11 // pred_region
        _
      $region52: #{mnist_net_forward.1} parent=11 // pred_fallthru
        _
      // Predicated region
      $region53: #{mnist_net_forward.1} parent=11 // pred_check
        %p434 = pneg %p279
      $region54: #{mnist_net_forward.1} parent=11 // pred_check_branch
        %436 = sbr.rel (%p434) target = $region56
      $region55: #{mnist_net_forward.1} parent=11 // pred_region
        _
      $region56: #{mnist_net_forward.1} parent=11 // pred_fallthru
        _
      // Predicated region
      $region57: #{mnist_net_forward.1} parent=11 // pred_check
        %p437 = pneg %p300
      $region58: #{mnist_net_forward.1} parent=11 // pred_check_branch
        %439 = sbr.rel (%p437) target = $region60
      $region59: #{mnist_net_forward.1} parent=11 // pred_region
        _
      $region60: #{mnist_net_forward.1} parent=11 // pred_fallthru
        _
      // Predicated region
      $region61: #{mnist_net_forward.1} parent=11 // pred_check
        %p440 = pneg %p321
      $region62: #{mnist_net_forward.1} parent=11 // pred_check_branch
        %442 = sbr.rel (%p440) target = $region64
      $region63: #{mnist_net_forward.1} parent=11 // pred_region
        _
      $region64: #{mnist_net_forward.1} parent=11 // pred_fallthru
        _
      // Predicated region
      $region65: #{mnist_net_forward.1} parent=11 // pred_check
        %p443 = pneg %p342
      $region66: #{mnist_net_forward.1} parent=11 // pred_check_branch
        %445 = sbr.rel (%p443) target = $region68
      $region67: #{mnist_net_forward.1} parent=11 // pred_region
        _
      $region68: #{mnist_net_forward.1} parent=11 // pred_fallthru
        _
      // Predicated region
      $region69: #{mnist_net_forward.1} parent=11 // pred_check
        %p446 = pneg %p363
      $region70: #{mnist_net_forward.1} parent=11 // pred_check_branch
        %448 = sbr.rel (%p446) target = $region72
      $region71: #{mnist_net_forward.1} parent=11 // pred_region
        _
      $region72: #{mnist_net_forward.1} parent=11 // pred_fallthru
        _
    $region12: #{mnist_net_forward.1} parent=5 // pred_fallthru
      _
    %p449 = scmp.lt.s32.totalorder %s22, 2
    // Predicated region
    $region73: #{mnist_net_forward.1} parent=5 // pred_check
      %p450 = pneg %p449
    $region74: #{mnist_net_forward.1} parent=5 // pred_check_branch
      %452 = sbr.rel (%p450) target = $region76
    $region75: #{mnist_net_forward.1} parent=5 // pred_region
      // Predicated region
      $region77: #{mnist_net_forward.1} parent=75 // pred_check
        %p453 = pneg %p42
      $region78: #{mnist_net_forward.1} parent=75 // pred_check_branch
        %455 = sbr.rel (%p453) target = $region80
      $region79: #{mnist_net_forward.1} parent=75 // pred_region
        %s456 = smul.u32 4, %s22
        %p457 = scmp.lt.s32.totalorder %s456, 7
        %s458 = scalar_select %p457, %s456, 7
        %s459 = smul.addr %s458, 32
        %s460 = smul.addr %s459, 4
        %s461 = scalar_lea.vmem %s0, %s460
        %s462 = smul.u32 4, %s22
      $region80: #{mnist_net_forward.1} parent=75 // pred_fallthru
        _
    $region76: #{mnist_net_forward.1} parent=5 // pred_fallthru
      _
    %p463 = scmp.le.s32.totalorder 1, %s22
    %p464 = scmp.lt.s32.totalorder %s22, 3
    %p465 = pnand %p463, %p464
    %p466 = pneg %p465
    // Predicated region
    $region81: #{mnist_net_forward.1} parent=5 // pred_check
      _
    $region82: #{mnist_net_forward.1} parent=5 // pred_check_branch
      %468 = sbr.rel (%p465) target = $region84
    $region83: #{mnist_net_forward.1} parent=5 // pred_region
      %s469 = ssub.s32 %s22, 1
      %s470 = smul.u32 4, %s27
      %p471 = scmp.lt.s32.totalorder %s470, 7
      %s472 = scalar_select %p471, %s470, 7
      %s473 = smul.addr %s472, 32
      %s474 = smul.addr %s473, 4
      %s475 = scalar_lea.vmem %s0, %s474
      %p476 = pneg %p48
      %p477 = pneg %p45
      %p478 = pneg %p69
      %p479 = pneg %p66
      %p480 = pneg %p90
      %p481 = pneg %p87
      %p482 = pneg %p111
      %p483 = pneg %p108
      %p484 = pneg %p132
      %p485 = pneg %p129
      %p486 = pneg %p153
      %p487 = pneg %p150
      %p488 = pneg %p174
      %p489 = pneg %p171
      %p490 = pneg %p195
      %p491 = pneg %p192
      %p492 = pneg %p216
      %p493 = pneg %p213
      %p494 = pneg %p237
      %p495 = pneg %p234
      %p496 = pneg %p258
      %p497 = pneg %p255
      %p498 = pneg %p279
      %p499 = pneg %p276
      %p500 = pneg %p300
      %p501 = pneg %p297
      %p502 = pneg %p321
      %p503 = pneg %p318
      %p504 = pneg %p342
      %p505 = pneg %p339
      %p506 = pneg %p363
      %p507 = pneg %p360
      %p508 = pneg %p389
      %p509 = pneg %p386
      %s510 = smul.u32 4, %s27
      %p511 = scmp.lt.s32.totalorder %s510, 7
      %s512 = scalar_select %p511, %s510, 7
      %s513 = smul.addr %s512, 8
      %s514 = scalar_lea.vmem %s16, %s513
      %s515 = smul.u32 4, %s27
      %p516 = scmp.lt.s32.totalorder %s515, 7
      %s517 = scalar_select %p516, %s515, 7
      %s518 = smul.addr %s517, 32
      %s519 = smul.addr %s518, 4
      %s520 = scalar_lea.vmem %s0, %s519
      %s521 = smul.u32 4, %s27
      %s522 = smul.u32 4, %s27
      %p523 = scmp.lt.s32.totalorder %s522, 7
      %s524 = scalar_select %p523, %s522, 7
      %s525 = smul.addr %s524, 8
      %s526 = scalar_lea.vmem %s16, %s525
      %s527 = smul.u32 4, %s27
      %v529 = vld [vmem:[%s520] sm:$0xf]
      %v530 = vld [vmem:[%s520 + $0x4] sm:$0xf]
      %v531 = vld [vmem:[%s520 + $0x8] sm:$0xf]
      %v532 = vld [vmem:[%s520 + $0xc] sm:$0xf]
      %v533 = vld [vmem:[%s520 + $0x10] sm:$0xf]
      %v534 = vld [vmem:[%s520 + $0x14] sm:$0xf]
      %v535 = vld [vmem:[%s520 + $0x18] sm:$0xf]
      %v536 = vld [vmem:[%s520 + $0x1c] sm:$0xf]
      %v537 = vld [vmem:[%s520 + $0x20] sm:$0xf]
      %v538 = vld [vmem:[%s520 + $0x24] sm:$0xf]
      %v539 = vld [vmem:[%s520 + $0x28] sm:$0xf]
      %v540 = vld [vmem:[%s520 + $0x2c] sm:$0xf]
      %v541 = vld [vmem:[%s520 + $0x30] sm:$0xf]
      %v542 = vld [vmem:[%s520 + $0x34] sm:$0xf]
      %v543 = vld [vmem:[%s520 + $0x38] sm:$0xf]
      %v544 = vld [vmem:[%s520 + $0x3c] sm:$0xf]
      %v545 = vld [vmem:[%s520 + $0x40] sm:$0xf]
      %v546 = vld [vmem:[%s520 + $0x44] sm:$0xf]
      %v547 = vld [vmem:[%s520 + $0x48] sm:$0xf]
      %v548 = vld [vmem:[%s520 + $0x4c] sm:$0xf]
      %v549 = vld [vmem:[%s520 + $0x50] sm:$0xf]
      %v550 = vld [vmem:[%s520 + $0x54] sm:$0xf]
      %v551 = vld [vmem:[%s520 + $0x58] sm:$0xf]
      %v552 = vld [vmem:[%s520 + $0x5c] sm:$0xf]
      %v553 = vld [vmem:[%s520 + $0x60] sm:$0xf]
      %v554 = vld [vmem:[%s520 + $0x64] sm:$0xf]
      %v555 = vld [vmem:[%s520 + $0x68] sm:$0xf]
      %v556 = vld [vmem:[%s520 + $0x6c] sm:$0xf]
      %v557 = vld [vmem:[%s520 + $0x70] sm:$0xf]
      %v558 = vld [vmem:[%s520 + $0x74] sm:$0xf]
      %v559 = vld [vmem:[%s520 + $0x78] sm:$0xf]
      %v560 = vld [vmem:[%s520 + $0x7c] sm:$0xf]
      %v561 = vld [vmem:[%s520 + $0x80] sm:$0xf]
      %v562 = vld [vmem:[%s520 + $0x84] sm:$0xf]
      %v563 = vld [vmem:[%s520 + $0x88] sm:$0xf]
      %v564 = vld [vmem:[%s520 + $0x8c] sm:$0xf]
      %v565 = vld [vmem:[%s520 + $0x90] sm:$0xf]
      %v566 = vld [vmem:[%s520 + $0x94] sm:$0xf]
      %v567 = vld [vmem:[%s520 + $0x98] sm:$0xf]
      %v568 = vld [vmem:[%s520 + $0x9c] sm:$0xf]
      %v569 = vld [vmem:[%s520 + $0xa0] sm:$0xf]
      %v570 = vld [vmem:[%s520 + $0xa4] sm:$0xf]
      %v571 = vld [vmem:[%s520 + $0xa8] sm:$0xf]
      %v572 = vld [vmem:[%s520 + $0xac] sm:$0xf]
      %v573 = vld [vmem:[%s520 + $0xb0] sm:$0xf]
      %v574 = vld [vmem:[%s520 + $0xb4] sm:$0xf]
      %v575 = vld [vmem:[%s520 + $0xb8] sm:$0xf]
      %v576 = vld [vmem:[%s520 + $0xbc] sm:$0xf]
      %v577 = vld [vmem:[%s520 + $0xc0] sm:$0xf]
      %v578 = vld [vmem:[%s520 + $0xc4] sm:$0xf]
      %v579 = vld [vmem:[%s520 + $0xc8] sm:$0xf]
      %v580 = vld [vmem:[%s520 + $0xcc] sm:$0xf]
      %v581 = vld [vmem:[%s520 + $0xd0] sm:$0xf]
      %v582 = vld [vmem:[%s520 + $0xd4] sm:$0xf]
      %v583 = vld [vmem:[%s520 + $0xd8] sm:$0xf]
      %v584 = vld [vmem:[%s520 + $0xdc] sm:$0xf]
      %v585 = vld [vmem:[%s520 + $0xe0] sm:$0xf]
      %v586 = vld [vmem:[%s520 + $0xe4] sm:$0xf]
      %v587 = vld [vmem:[%s520 + $0xe8] sm:$0xf]
      %v588 = vld [vmem:[%s520 + $0xec] sm:$0xf]
      %v589 = vld [vmem:[%s520 + $0xf0] sm:$0xf]
      %v590 = vld [vmem:[%s520 + $0xf4] sm:$0xf]
      %v591 = vld [vmem:[%s520 + $0xf8] sm:$0xf]
      %v592 = vld [vmem:[%s520 + $0xfc] sm:$0xf]
      %v593 = vld [vmem:[%s520 + $0x100] sm:$0xf]
      %v594 = vld [vmem:[%s520 + $0x104] sm:$0xf]
      %v595 = vld [vmem:[%s520 + $0x108] sm:$0xf]
      %v596 = vld [vmem:[%s520 + $0x10c] sm:$0xf]
      %v597 = vld [vmem:[%s520 + $0x110] sm:$0xf]
      %v598 = vld [vmem:[%s520 + $0x114] sm:$0xf]
      %v599 = vld [vmem:[%s520 + $0x118] sm:$0xf]
      %v600 = vld [vmem:[%s520 + $0x11c] sm:$0xf]
      %v601 = vld [vmem:[%s520 + $0x120] sm:$0xf]
      %v602 = vld [vmem:[%s520 + $0x124] sm:$0xf]
      %v603 = vld [vmem:[%s520 + $0x128] sm:$0xf]
      %v604 = vld [vmem:[%s520 + $0x12c] sm:$0xf]
      %v605 = vld [vmem:[%s520 + $0x130] sm:$0xf]
      %v606 = vld [vmem:[%s520 + $0x134] sm:$0xf]
      %v607 = vld [vmem:[%s520 + $0x138] sm:$0xf]
      %v608 = vld [vmem:[%s520 + $0x13c] sm:$0xf]
      %v609 = vld [vmem:[%s520 + $0x140] sm:$0xf]
      %v610 = vld [vmem:[%s520 + $0x144] sm:$0xf]
      %v611 = vld [vmem:[%s520 + $0x148] sm:$0xf]
      %v612 = vld [vmem:[%s520 + $0x14c] sm:$0xf]
      %v613 = vld [vmem:[%s520 + $0x150] sm:$0xf]
      %v614 = vld [vmem:[%s520 + $0x154] sm:$0xf]
      %v615 = vld [vmem:[%s520 + $0x158] sm:$0xf]
      %v616 = vld [vmem:[%s520 + $0x15c] sm:$0xf]
      %v617 = vld [vmem:[%s520 + $0x160] sm:$0xf]
      %v618 = vld [vmem:[%s520 + $0x164] sm:$0xf]
      %v619 = vld [vmem:[%s520 + $0x168] sm:$0xf]
      %v620 = vld [vmem:[%s520 + $0x16c] sm:$0xf]
      %v621 = vld [vmem:[%s520 + $0x170] sm:$0xf]
      %v622 = vld [vmem:[%s520 + $0x174] sm:$0xf]
      %v623 = vld [vmem:[%s520 + $0x178] sm:$0xf]
      %v624 = vld [vmem:[%s520 + $0x17c] sm:$0xf]
      %v625 = vld [vmem:[%s520 + $0x180] sm:$0xf]
      %v626 = vld [vmem:[%s520 + $0x184] sm:$0xf]
      %v627 = vld [vmem:[%s520 + $0x188] sm:$0xf]
      %v628 = vld [vmem:[%s520 + $0x18c] sm:$0xf]
      %v629 = vld [vmem:[%s520 + $0x190] sm:$0xf]
      %v630 = vld [vmem:[%s520 + $0x194] sm:$0xf]
      %v631 = vld [vmem:[%s520 + $0x198] sm:$0xf]
      %v632 = vld [vmem:[%s520 + $0x19c] sm:$0xf]
      %v633 = vld [vmem:[%s520 + $0x1a0] sm:$0xf]
      %v634 = vld [vmem:[%s520 + $0x1a4] sm:$0xf]
      %v635 = vld [vmem:[%s520 + $0x1a8] sm:$0xf]
      %v636 = vld [vmem:[%s520 + $0x1ac] sm:$0xf]
      %v637 = vld [vmem:[%s520 + $0x1b0] sm:$0xf]
      %v638 = vld [vmem:[%s520 + $0x1b4] sm:$0xf]
      %v639 = vld [vmem:[%s520 + $0x1b8] sm:$0xf]
      %v640 = vld [vmem:[%s520 + $0x1bc] sm:$0xf]
      %v641 = vld [vmem:[%s520 + $0x1c0] sm:$0xf]
      %v642 = vld [vmem:[%s520 + $0x1c4] sm:$0xf]
      %v643 = vld [vmem:[%s520 + $0x1c8] sm:$0xf]
      %v644 = vld [vmem:[%s520 + $0x1cc] sm:$0xf]
      %v645 = vld [vmem:[%s520 + $0x1d0] sm:$0xf]
      %v646 = vld [vmem:[%s520 + $0x1d4] sm:$0xf]
      %v647 = vld [vmem:[%s520 + $0x1d8] sm:$0xf]
      %v648 = vld [vmem:[%s520 + $0x1dc] sm:$0xf]
      %v649 = vld [vmem:[%s520 + $0x1e0] sm:$0xf]
      %v650 = vld [vmem:[%s520 + $0x1e4] sm:$0xf]
      %v651 = vld [vmem:[%s520 + $0x1e8] sm:$0xf]
      %v652 = vld [vmem:[%s520 + $0x1ec] sm:$0xf]
      %v653 = vld [vmem:[%s520 + $0x1f0] sm:$0xf]
      %v654 = vld [vmem:[%s520 + $0x1f4] sm:$0xf]
      %v655 = vld [vmem:[%s520 + $0x1f8] sm:$0xf]
      %v656 = vld [vmem:[%s520 + $0x1fc] sm:$0xf]
      %v657 = vld [vmem:[%s1] sm:$0xf]
      %v658 = vld [vmem:[%s1 + $0x4] sm:$0x1]
      %v659 = vld [vmem:[%s2] sm:$0x1]
      %v661 = vlaneseq
      %v662 = vshrl.u32 %v661, 7
      %v663 = vsub.s32 0, %v662
      %v664 = vrot.slane %v659, %v663
      %v794 = vunpack.c.l.b16 %v529
      %v795 = vunpack.c.l.b16 %v530
      %v796 = vunpack.c.l.b16 %v531
      %v797 = vunpack.c.l.b16 %v532
      %v798 = vunpack.c.l.b16 %v533
      %v799 = vunpack.c.l.b16 %v534
      %v800 = vunpack.c.l.b16 %v535
      %v801 = vunpack.c.l.b16 %v536
      %v802 = vunpack.c.l.b16 %v537
      %v803 = vunpack.c.l.b16 %v538
      %v804 = vunpack.c.l.b16 %v539
      %v805 = vunpack.c.l.b16 %v540
      %v806 = vunpack.c.l.b16 %v541
      %v807 = vunpack.c.l.b16 %v542
      %v808 = vunpack.c.l.b16 %v543
      %v809 = vunpack.c.l.b16 %v544
      %v810 = vunpack.c.l.b16 %v545
      %v811 = vunpack.c.l.b16 %v546
      %v812 = vunpack.c.l.b16 %v547
      %v813 = vunpack.c.l.b16 %v548
      %v814 = vunpack.c.l.b16 %v549
      %v815 = vunpack.c.l.b16 %v550
      %v816 = vunpack.c.l.b16 %v551
      %v817 = vunpack.c.l.b16 %v552
      %v818 = vunpack.c.l.b16 %v553
      %v819 = vunpack.c.l.b16 %v554
      %v820 = vunpack.c.l.b16 %v555
      %v821 = vunpack.c.l.b16 %v556
      %v822 = vunpack.c.l.b16 %v557
      %v823 = vunpack.c.l.b16 %v558
      %v824 = vunpack.c.l.b16 %v559
      %v825 = vunpack.c.l.b16 %v560
      %v826 = vunpack.c.l.b16 %v561
      %v827 = vunpack.c.l.b16 %v562
      %v828 = vunpack.c.l.b16 %v563
      %v829 = vunpack.c.l.b16 %v564
      %v830 = vunpack.c.l.b16 %v565
      %v831 = vunpack.c.l.b16 %v566
      %v832 = vunpack.c.l.b16 %v567
      %v833 = vunpack.c.l.b16 %v568
      %v834 = vunpack.c.l.b16 %v569
      %v835 = vunpack.c.l.b16 %v570
      %v836 = vunpack.c.l.b16 %v571
      %v837 = vunpack.c.l.b16 %v572
      %v838 = vunpack.c.l.b16 %v573
      %v839 = vunpack.c.l.b16 %v574
      %v840 = vunpack.c.l.b16 %v575
      %v841 = vunpack.c.l.b16 %v576
      %v842 = vunpack.c.l.b16 %v577
      %v843 = vunpack.c.l.b16 %v578
      %v844 = vunpack.c.l.b16 %v579
      %v845 = vunpack.c.l.b16 %v580
      %v846 = vunpack.c.l.b16 %v581
      %v847 = vunpack.c.l.b16 %v582
      %v848 = vunpack.c.l.b16 %v583
      %v849 = vunpack.c.l.b16 %v584
      %v850 = vunpack.c.l.b16 %v585
      %v851 = vunpack.c.l.b16 %v586
      %v852 = vunpack.c.l.b16 %v587
      %v853 = vunpack.c.l.b16 %v588
      %v854 = vunpack.c.l.b16 %v589
      %v855 = vunpack.c.l.b16 %v590
      %v856 = vunpack.c.l.b16 %v591
      %v857 = vunpack.c.l.b16 %v592
      %v858 = vunpack.c.l.b16 %v593
      %v859 = vunpack.c.l.b16 %v594
      %v860 = vunpack.c.l.b16 %v595
      %v861 = vunpack.c.l.b16 %v596
      %v862 = vunpack.c.l.b16 %v597
      %v863 = vunpack.c.l.b16 %v598
      %v864 = vunpack.c.l.b16 %v599
      %v865 = vunpack.c.l.b16 %v600
      %v866 = vunpack.c.l.b16 %v601
      %v867 = vunpack.c.l.b16 %v602
      %v868 = vunpack.c.l.b16 %v603
      %v869 = vunpack.c.l.b16 %v604
      %v870 = vunpack.c.l.b16 %v605
      %v871 = vunpack.c.l.b16 %v606
      %v872 = vunpack.c.l.b16 %v607
      %v873 = vunpack.c.l.b16 %v608
      %v874 = vunpack.c.l.b16 %v609
      %v875 = vunpack.c.l.b16 %v610
      %v876 = vunpack.c.l.b16 %v611
      %v877 = vunpack.c.l.b16 %v612
      %v878 = vunpack.c.l.b16 %v613
      %v879 = vunpack.c.l.b16 %v614
      %v880 = vunpack.c.l.b16 %v615
      %v881 = vunpack.c.l.b16 %v616
      %v882 = vunpack.c.l.b16 %v617
      %v883 = vunpack.c.l.b16 %v618
      %v884 = vunpack.c.l.b16 %v619
      %v885 = vunpack.c.l.b16 %v620
      %v886 = vunpack.c.l.b16 %v621
      %v887 = vunpack.c.l.b16 %v622
      %v888 = vunpack.c.l.b16 %v623
      %v889 = vunpack.c.l.b16 %v624
      %v890 = vunpack.c.l.b16 %v625
      %v891 = vunpack.c.l.b16 %v626
      %v892 = vunpack.c.l.b16 %v627
      %v893 = vunpack.c.l.b16 %v628
      %v894 = vunpack.c.l.b16 %v629
      %v895 = vunpack.c.l.b16 %v630
      %v896 = vunpack.c.l.b16 %v631
      %v897 = vunpack.c.l.b16 %v632
      %v898 = vunpack.c.l.b16 %v633
      %v899 = vunpack.c.l.b16 %v634
      %v900 = vunpack.c.l.b16 %v635
      %v901 = vunpack.c.l.b16 %v636
      %v902 = vunpack.c.l.b16 %v637
      %v903 = vunpack.c.l.b16 %v638
      %v904 = vunpack.c.l.b16 %v639
      %v905 = vunpack.c.l.b16 %v640
      %v906 = vunpack.c.l.b16 %v641
      %v907 = vunpack.c.l.b16 %v642
      %v908 = vunpack.c.l.b16 %v643
      %v909 = vunpack.c.l.b16 %v644
      %v910 = vunpack.c.l.b16 %v645
      %v911 = vunpack.c.l.b16 %v646
      %v912 = vunpack.c.l.b16 %v647
      %v913 = vunpack.c.l.b16 %v648
      %v914 = vunpack.c.l.b16 %v649
      %v915 = vunpack.c.l.b16 %v650
      %v916 = vunpack.c.l.b16 %v651
      %v917 = vunpack.c.l.b16 %v652
      %v918 = vunpack.c.l.b16 %v653
      %v919 = vunpack.c.l.b16 %v654
      %v920 = vunpack.c.l.b16 %v655
      %v921 = vunpack.c.l.b16 %v656
      %v922 = vpack.c.b16 %v795, %v794
      %v923 = vpack.c.b16 %v797, %v796
      %v924 = vpack.c.b16 %v799, %v798
      %v925 = vpack.c.b16 %v801, %v800
      %v926 = vpack.c.b16 %v803, %v802
      %v927 = vpack.c.b16 %v805, %v804
      %v928 = vpack.c.b16 %v807, %v806
      %v929 = vpack.c.b16 %v809, %v808
      %v930 = vpack.c.b16 %v811, %v810
      %v931 = vpack.c.b16 %v813, %v812
      %v932 = vpack.c.b16 %v815, %v814
      %v933 = vpack.c.b16 %v817, %v816
      %v934 = vpack.c.b16 %v819, %v818
      %v935 = vpack.c.b16 %v821, %v820
      %v936 = vpack.c.b16 %v823, %v822
      %v937 = vpack.c.b16 %v825, %v824
      %v938 = vpack.c.b16 %v827, %v826
      %v939 = vpack.c.b16 %v829, %v828
      %v940 = vpack.c.b16 %v831, %v830
      %v941 = vpack.c.b16 %v833, %v832
      %v942 = vpack.c.b16 %v835, %v834
      %v943 = vpack.c.b16 %v837, %v836
      %v944 = vpack.c.b16 %v839, %v838
      %v945 = vpack.c.b16 %v841, %v840
      %v946 = vpack.c.b16 %v843, %v842
      %v947 = vpack.c.b16 %v845, %v844
      %v948 = vpack.c.b16 %v847, %v846
      %v949 = vpack.c.b16 %v849, %v848
      %v950 = vpack.c.b16 %v851, %v850
      %v951 = vpack.c.b16 %v853, %v852
      %v952 = vpack.c.b16 %v855, %v854
      %v953 = vpack.c.b16 %v857, %v856
      %v954 = vpack.c.b16 %v859, %v858
      %v955 = vpack.c.b16 %v861, %v860
      %v956 = vpack.c.b16 %v863, %v862
      %v957 = vpack.c.b16 %v865, %v864
      %v958 = vpack.c.b16 %v867, %v866
      %v959 = vpack.c.b16 %v869, %v868
      %v960 = vpack.c.b16 %v871, %v870
      %v961 = vpack.c.b16 %v873, %v872
      %v962 = vpack.c.b16 %v875, %v874
      %v963 = vpack.c.b16 %v877, %v876
      %v964 = vpack.c.b16 %v879, %v878
      %v965 = vpack.c.b16 %v881, %v880
      %v966 = vpack.c.b16 %v883, %v882
      %v967 = vpack.c.b16 %v885, %v884
      %v968 = vpack.c.b16 %v887, %v886
      %v969 = vpack.c.b16 %v889, %v888
      %v970 = vpack.c.b16 %v891, %v890
      %v971 = vpack.c.b16 %v893, %v892
      %v972 = vpack.c.b16 %v895, %v894
      %v973 = vpack.c.b16 %v897, %v896
      %v974 = vpack.c.b16 %v899, %v898
      %v975 = vpack.c.b16 %v901, %v900
      %v976 = vpack.c.b16 %v903, %v902
      %v977 = vpack.c.b16 %v905, %v904
      %v978 = vpack.c.b16 %v907, %v906
      %v979 = vpack.c.b16 %v909, %v908
      %v980 = vpack.c.b16 %v911, %v910
      %v981 = vpack.c.b16 %v913, %v912
      %v982 = vpack.c.b16 %v915, %v914
      %v983 = vpack.c.b16 %v917, %v916
      %v984 = vpack.c.b16 %v919, %v918
      %v985 = vpack.c.b16 %v921, %v920
      %v988 = vunpack.c.l.b16 %v657
      %v989 = vunpack.c.l.b16 %v658
      %v990 = vpack.c.b16 %v989, %v988
      %vm991 = vcmask 72704
      %v993 = vsel %vm991, %v922, 0
      %v996 = vsel %vm991, %v923, 0
      %v999 = vsel %vm991, %v924, 0
      %v1002 = vsel %vm991, %v925, 0
      %v1005 = vsel %vm991, %v926, 0
      %v1008 = vsel %vm991, %v927, 0
      %v1011 = vsel %vm991, %v928, 0
      %v1014 = vsel %vm991, %v929, 0
      %v1017 = vsel %vm991, %v930, 0
      %v1020 = vsel %vm991, %v931, 0
      %v1023 = vsel %vm991, %v932, 0
      %v1026 = vsel %vm991, %v933, 0
      %v1029 = vsel %vm991, %v934, 0
      %v1032 = vsel %vm991, %v935, 0
      %v1035 = vsel %vm991, %v936, 0
      %v1038 = vsel %vm991, %v937, 0
      %v1041 = vsel %vm991, %v938, 0
      %v1044 = vsel %vm991, %v939, 0
      %v1047 = vsel %vm991, %v940, 0
      %v1050 = vsel %vm991, %v941, 0
      %v1053 = vsel %vm991, %v942, 0
      %v1056 = vsel %vm991, %v943, 0
      %v1059 = vsel %vm991, %v944, 0
      %v1062 = vsel %vm991, %v945, 0
      %v1065 = vsel %vm991, %v946, 0
      %v1068 = vsel %vm991, %v947, 0
      %v1071 = vsel %vm991, %v948, 0
      %v1074 = vsel %vm991, %v949, 0
      %v1077 = vsel %vm991, %v950, 0
      %v1080 = vsel %vm991, %v951, 0
      %v1083 = vsel %vm991, %v952, 0
      %v1086 = vsel %vm991, %v953, 0
      %v1089 = vsel %vm991, %v954, 0
      %v1092 = vsel %vm991, %v955, 0
      %v1095 = vsel %vm991, %v956, 0
      %v1098 = vsel %vm991, %v957, 0
      %v1101 = vsel %vm991, %v958, 0
      %v1104 = vsel %vm991, %v959, 0
      %v1107 = vsel %vm991, %v960, 0
      %v1110 = vsel %vm991, %v961, 0
      %v1113 = vsel %vm991, %v962, 0
      %v1116 = vsel %vm991, %v963, 0
      %v1119 = vsel %vm991, %v964, 0
      %v1122 = vsel %vm991, %v965, 0
      %v1125 = vsel %vm991, %v966, 0
      %v1128 = vsel %vm991, %v967, 0
      %v1131 = vsel %vm991, %v968, 0
      %v1134 = vsel %vm991, %v969, 0
      %v1137 = vsel %vm991, %v970, 0
      %v1140 = vsel %vm991, %v971, 0
      %v1143 = vsel %vm991, %v972, 0
      %v1146 = vsel %vm991, %v973, 0
      %v1149 = vsel %vm991, %v974, 0
      %v1152 = vsel %vm991, %v975, 0
      %v1155 = vsel %vm991, %v976, 0
      %v1158 = vsel %vm991, %v977, 0
      %v1161 = vsel %vm991, %v978, 0
      %v1164 = vsel %vm991, %v979, 0
      %v1167 = vsel %vm991, %v980, 0
      %v1170 = vsel %vm991, %v981, 0
      %v1173 = vsel %vm991, %v982, 0
      %v1176 = vsel %vm991, %v983, 0
      %v1179 = vsel %vm991, %v984, 0
      %v1182 = vsel %vm991, %v985, 0
      %vm1184 = vcmask 1043456
      %vm1185 = vcmask 1044480
      %v1186 = vsel %vm1184, 4294967295, 65535
      %v1187 = vsel %vm1185, %v1186, 0
      %v1189 = vand.u32 %v990, %v1187
      %1191 = vmatprep.subr.bf16.mxu0 0
      %1192 = vmatpush1.bf16.msra.mxu0 0
      %1193 = vmatprep.subr.bf16.mxu0 0
      %1194 = vmatpush1.bf16.msra.mxu0 0
      %1195 = vmatprep.subr.bf16.mxu0 0
      %1196 = vmatpush1.bf16.msra.mxu0 0
      %1197 = vmatprep.subr.bf16.mxu0 0
      %1198 = vmatpush1.bf16.msra.mxu0 0
      %1199 = vmatprep.subr.bf16.mxu0 0
      %1200 = vmatpush1.bf16.msra.mxu0 0
      %1201 = vmatprep.subr.bf16.mxu0 0
      %1202 = vmatpush1.bf16.msra.mxu0 0
      %1203 = vmatprep.subr.bf16.mxu0 0
      %1204 = vmatpush1.bf16.msra.mxu0 0
      %1205 = vmatprep.subr.bf16.mxu0 0
      %1206 = vmatpush1.bf16.msra.mxu0 %v1189
      %1207 = vmatprep.subr.bf16.mxu0 0
      %1208 = vmatpush2.bf16.msra.mxu0 0
      %1209 = vmatprep.subr.bf16.mxu0 0
      %1210 = vmatpush2.bf16.msra.mxu0 0
      %1211 = vmatprep.subr.bf16.mxu0 0
      %1212 = vmatpush2.bf16.msra.mxu0 0
      %1213 = vmatprep.subr.bf16.mxu0 0
      %1214 = vmatpush2.bf16.msra.mxu0 0
      %1215 = vmatprep.subr.bf16.mxu0 0
      %1216 = vmatpush2.bf16.msra.mxu0 0
      %1217 = vmatprep.subr.bf16.mxu0 0
      %1218 = vmatpush2.bf16.msra.mxu0 0
      %1219 = vmatprep.subr.bf16.mxu0 0
      %1220 = vmatpush2.bf16.msra.mxu0 0
      %1221 = vmatprep.subr.bf16.mxu0 0
      %1222 = vmatpush2.bf16.msra.mxu0 0
      %1223 = vmatprep.mubr.bf16.mxu0 0
      %1224 = vmatmul.mubr.bf16.gmra.mxu0 %v993
      %v1225 = vpop.f32.mrf.mxu0
      %v1226 = vadd.f32 %v664, %v1225
      %v1227 = vpop.f32.mrf.mxu0
      %v1228 = vpop.f32.mrf.mxu0
      %v1229 = vadd.f32 %v664, %v1228
      %v1230 = vpop.f32.mrf.mxu0
      %1231 = vmatprep.mubr.bf16.mxu0 0
      %1232 = vmatmul.mubr.bf16.gmra.mxu0 %v996
      %v1233 = vpop.f32.mrf.mxu0
      %v1234 = vadd.f32 %v664, %v1233
      %v1235 = vpop.f32.mrf.mxu0
      %v1236 = vpop.f32.mrf.mxu0
      %v1237 = vadd.f32 %v664, %v1236
      %v1238 = vpop.f32.mrf.mxu0
      %1239 = vmatprep.mubr.bf16.mxu0 0
      %1240 = vmatmul.mubr.bf16.gmra.mxu0 %v999
      %v1241 = vpop.f32.mrf.mxu0
      %v1242 = vadd.f32 %v664, %v1241
      %v1243 = vpop.f32.mrf.mxu0
      %v1244 = vpop.f32.mrf.mxu0
      %v1245 = vadd.f32 %v664, %v1244
      %v1246 = vpop.f32.mrf.mxu0
      %1247 = vmatprep.mubr.bf16.mxu0 0
      %1248 = vmatmul.mubr.bf16.gmra.mxu0 %v1002
      %v1249 = vpop.f32.mrf.mxu0
      %v1250 = vadd.f32 %v664, %v1249
      %v1251 = vpop.f32.mrf.mxu0
      %v1252 = vpop.f32.mrf.mxu0
      %v1253 = vadd.f32 %v664, %v1252
      %v1254 = vpop.f32.mrf.mxu0
      %1255 = vmatprep.mubr.bf16.mxu0 0
      %1256 = vmatmul.mubr.bf16.gmra.mxu0 %v1005
      %v1257 = vpop.f32.mrf.mxu0
      %v1258 = vadd.f32 %v664, %v1257
      %v1259 = vpop.f32.mrf.mxu0
      %v1260 = vpop.f32.mrf.mxu0
      %v1261 = vadd.f32 %v664, %v1260
      %v1262 = vpop.f32.mrf.mxu0
      %1263 = vmatprep.mubr.bf16.mxu0 0
      %1264 = vmatmul.mubr.bf16.gmra.mxu0 %v1008
      %v1265 = vpop.f32.mrf.mxu0
      %v1266 = vadd.f32 %v664, %v1265
      %v1267 = vpop.f32.mrf.mxu0
      %v1268 = vpop.f32.mrf.mxu0
      %v1269 = vadd.f32 %v664, %v1268
      %v1270 = vpop.f32.mrf.mxu0
      %1271 = vmatprep.mubr.bf16.mxu0 0
      %1272 = vmatmul.mubr.bf16.gmra.mxu0 %v1011
      %v1273 = vpop.f32.mrf.mxu0
      %v1274 = vadd.f32 %v664, %v1273
      %v1275 = vpop.f32.mrf.mxu0
      %v1276 = vpop.f32.mrf.mxu0
      %v1277 = vadd.f32 %v664, %v1276
      %v1278 = vpop.f32.mrf.mxu0
      %1279 = vmatprep.mubr.bf16.mxu0 0
      %1280 = vmatmul.mubr.bf16.gmra.mxu0 %v1014
      %v1281 = vpop.f32.mrf.mxu0
      %v1282 = vadd.f32 %v664, %v1281
      %v1283 = vpop.f32.mrf.mxu0
      %v1284 = vpop.f32.mrf.mxu0
      %v1285 = vadd.f32 %v664, %v1284
      %v1286 = vpop.f32.mrf.mxu0
      %1287 = vmatprep.mubr.bf16.mxu0 0
      %1288 = vmatmul.mubr.bf16.gmra.mxu0 %v1017
      %v1289 = vpop.f32.mrf.mxu0
      %v1290 = vadd.f32 %v664, %v1289
      %v1291 = vpop.f32.mrf.mxu0
      %v1292 = vpop.f32.mrf.mxu0
      %v1293 = vadd.f32 %v664, %v1292
      %v1294 = vpop.f32.mrf.mxu0
      %1295 = vmatprep.mubr.bf16.mxu0 0
      %1296 = vmatmul.mubr.bf16.gmra.mxu0 %v1020
      %v1297 = vpop.f32.mrf.mxu0
      %v1298 = vadd.f32 %v664, %v1297
      %v1299 = vpop.f32.mrf.mxu0
      %v1300 = vpop.f32.mrf.mxu0
      %v1301 = vadd.f32 %v664, %v1300
      %v1302 = vpop.f32.mrf.mxu0
      %1303 = vmatprep.mubr.bf16.mxu0 0
      %1304 = vmatmul.mubr.bf16.gmra.mxu0 %v1023
      %v1305 = vpop.f32.mrf.mxu0
      %v1306 = vadd.f32 %v664, %v1305
      %v1307 = vpop.f32.mrf.mxu0
      %v1308 = vpop.f32.mrf.mxu0
      %v1309 = vadd.f32 %v664, %v1308
      %v1310 = vpop.f32.mrf.mxu0
      %1311 = vmatprep.mubr.bf16.mxu0 0
      %1312 = vmatmul.mubr.bf16.gmra.mxu0 %v1026
      %v1313 = vpop.f32.mrf.mxu0
      %v1314 = vadd.f32 %v664, %v1313
      %v1315 = vpop.f32.mrf.mxu0
      %v1316 = vpop.f32.mrf.mxu0
      %v1317 = vadd.f32 %v664, %v1316
      %v1318 = vpop.f32.mrf.mxu0
      %1319 = vmatprep.mubr.bf16.mxu0 0
      %1320 = vmatmul.mubr.bf16.gmra.mxu0 %v1029
      %v1321 = vpop.f32.mrf.mxu0
      %v1322 = vadd.f32 %v664, %v1321
      %v1323 = vpop.f32.mrf.mxu0
      %v1324 = vpop.f32.mrf.mxu0
      %v1325 = vadd.f32 %v664, %v1324
      %v1326 = vpop.f32.mrf.mxu0
      %1327 = vmatprep.mubr.bf16.mxu0 0
      %1328 = vmatmul.mubr.bf16.gmra.mxu0 %v1032
      %v1329 = vpop.f32.mrf.mxu0
      %v1330 = vadd.f32 %v664, %v1329
      %v1331 = vpop.f32.mrf.mxu0
      %v1332 = vpop.f32.mrf.mxu0
      %v1333 = vadd.f32 %v664, %v1332
      %v1334 = vpop.f32.mrf.mxu0
      %1335 = vmatprep.mubr.bf16.mxu0 0
      %1336 = vmatmul.mubr.bf16.gmra.mxu0 %v1035
      %v1337 = vpop.f32.mrf.mxu0
      %v1338 = vadd.f32 %v664, %v1337
      %v1339 = vpop.f32.mrf.mxu0
      %v1340 = vpop.f32.mrf.mxu0
      %v1341 = vadd.f32 %v664, %v1340
      %v1342 = vpop.f32.mrf.mxu0
      %1343 = vmatprep.mubr.bf16.mxu0 0
      %1344 = vmatmul.mubr.bf16.gmra.mxu0 %v1038
      %v1345 = vpop.f32.mrf.mxu0
      %v1346 = vadd.f32 %v664, %v1345
      %v1347 = vpop.f32.mrf.mxu0
      %v1348 = vpop.f32.mrf.mxu0
      %v1349 = vadd.f32 %v664, %v1348
      %v1350 = vpop.f32.mrf.mxu0
      %1351 = vmatprep.mubr.bf16.mxu0 0
      %1352 = vmatmul.mubr.bf16.gmra.mxu0 %v1041
      %v1353 = vpop.f32.mrf.mxu0
      %v1354 = vadd.f32 %v664, %v1353
      %v1355 = vpop.f32.mrf.mxu0
      %v1356 = vpop.f32.mrf.mxu0
      %v1357 = vadd.f32 %v664, %v1356
      %v1358 = vpop.f32.mrf.mxu0
      %1359 = vmatprep.mubr.bf16.mxu0 0
      %1360 = vmatmul.mubr.bf16.gmra.mxu0 %v1044
      %v1361 = vpop.f32.mrf.mxu0
      %v1362 = vadd.f32 %v664, %v1361
      %v1363 = vpop.f32.mrf.mxu0
      %v1364 = vpop.f32.mrf.mxu0
      %v1365 = vadd.f32 %v664, %v1364
      %v1366 = vpop.f32.mrf.mxu0
      %1367 = vmatprep.mubr.bf16.mxu0 0
      %1368 = vmatmul.mubr.bf16.gmra.mxu0 %v1047
      %v1369 = vpop.f32.mrf.mxu0
      %v1370 = vadd.f32 %v664, %v1369
      %v1371 = vpop.f32.mrf.mxu0
      %v1372 = vpop.f32.mrf.mxu0
      %v1373 = vadd.f32 %v664, %v1372
      %v1374 = vpop.f32.mrf.mxu0
      %1375 = vmatprep.mubr.bf16.mxu0 0
      %1376 = vmatmul.mubr.bf16.gmra.mxu0 %v1050
      %v1377 = vpop.f32.mrf.mxu0
      %v1378 = vadd.f32 %v664, %v1377
      %v1379 = vpop.f32.mrf.mxu0
      %v1380 = vpop.f32.mrf.mxu0
      %v1381 = vadd.f32 %v664, %v1380
      %v1382 = vpop.f32.mrf.mxu0
      %1383 = vmatprep.mubr.bf16.mxu0 0
      %1384 = vmatmul.mubr.bf16.gmra.mxu0 %v1053
      %v1385 = vpop.f32.mrf.mxu0
      %v1386 = vadd.f32 %v664, %v1385
      %v1387 = vpop.f32.mrf.mxu0
      %v1388 = vpop.f32.mrf.mxu0
      %v1389 = vadd.f32 %v664, %v1388
      %v1390 = vpop.f32.mrf.mxu0
      %1391 = vmatprep.mubr.bf16.mxu0 0
      %1392 = vmatmul.mubr.bf16.gmra.mxu0 %v1056
      %v1393 = vpop.f32.mrf.mxu0
      %v1394 = vadd.f32 %v664, %v1393
      %v1395 = vpop.f32.mrf.mxu0
      %v1396 = vpop.f32.mrf.mxu0
      %v1397 = vadd.f32 %v664, %v1396
      %v1398 = vpop.f32.mrf.mxu0
      %1399 = vmatprep.mubr.bf16.mxu0 0
      %1400 = vmatmul.mubr.bf16.gmra.mxu0 %v1059
      %v1401 = vpop.f32.mrf.mxu0
      %v1402 = vadd.f32 %v664, %v1401
      %v1403 = vpop.f32.mrf.mxu0
      %v1404 = vpop.f32.mrf.mxu0
      %v1405 = vadd.f32 %v664, %v1404
      %v1406 = vpop.f32.mrf.mxu0
      %1407 = vmatprep.mubr.bf16.mxu0 0
      %1408 = vmatmul.mubr.bf16.gmra.mxu0 %v1062
      %v1409 = vpop.f32.mrf.mxu0
      %v1410 = vadd.f32 %v664, %v1409
      %v1411 = vpop.f32.mrf.mxu0
      %v1412 = vpop.f32.mrf.mxu0
      %v1413 = vadd.f32 %v664, %v1412
      %v1414 = vpop.f32.mrf.mxu0
      %1415 = vmatprep.mubr.bf16.mxu0 0
      %1416 = vmatmul.mubr.bf16.gmra.mxu0 %v1065
      %v1417 = vpop.f32.mrf.mxu0
      %v1418 = vadd.f32 %v664, %v1417
      %v1419 = vpop.f32.mrf.mxu0
      %v1420 = vpop.f32.mrf.mxu0
      %v1421 = vadd.f32 %v664, %v1420
      %v1422 = vpop.f32.mrf.mxu0
      %1423 = vmatprep.mubr.bf16.mxu0 0
      %1424 = vmatmul.mubr.bf16.gmra.mxu0 %v1068
      %v1425 = vpop.f32.mrf.mxu0
      %v1426 = vadd.f32 %v664, %v1425
      %v1427 = vpop.f32.mrf.mxu0
      %v1428 = vpop.f32.mrf.mxu0
      %v1429 = vadd.f32 %v664, %v1428
      %v1430 = vpop.f32.mrf.mxu0
      %1431 = vmatprep.mubr.bf16.mxu0 0
      %1432 = vmatmul.mubr.bf16.gmra.mxu0 %v1071
      %v1433 = vpop.f32.mrf.mxu0
      %v1434 = vadd.f32 %v664, %v1433
      %v1435 = vpop.f32.mrf.mxu0
      %v1436 = vpop.f32.mrf.mxu0
      %v1437 = vadd.f32 %v664, %v1436
      %v1438 = vpop.f32.mrf.mxu0
      %1439 = vmatprep.mubr.bf16.mxu0 0
      %1440 = vmatmul.mubr.bf16.gmra.mxu0 %v1074
      %v1441 = vpop.f32.mrf.mxu0
      %v1442 = vadd.f32 %v664, %v1441
      %v1443 = vpop.f32.mrf.mxu0
      %v1444 = vpop.f32.mrf.mxu0
      %v1445 = vadd.f32 %v664, %v1444
      %v1446 = vpop.f32.mrf.mxu0
      %1447 = vmatprep.mubr.bf16.mxu0 0
      %1448 = vmatmul.mubr.bf16.gmra.mxu0 %v1077
      %v1449 = vpop.f32.mrf.mxu0
      %v1450 = vadd.f32 %v664, %v1449
      %v1451 = vpop.f32.mrf.mxu0
      %v1452 = vpop.f32.mrf.mxu0
      %v1453 = vadd.f32 %v664, %v1452
      %v1454 = vpop.f32.mrf.mxu0
      %1455 = vmatprep.mubr.bf16.mxu0 0
      %1456 = vmatmul.mubr.bf16.gmra.mxu0 %v1080
      %v1457 = vpop.f32.mrf.mxu0
      %v1458 = vadd.f32 %v664, %v1457
      %v1459 = vpop.f32.mrf.mxu0
      %v1460 = vpop.f32.mrf.mxu0
      %v1461 = vadd.f32 %v664, %v1460
      %v1462 = vpop.f32.mrf.mxu0
      %1463 = vmatprep.mubr.bf16.mxu0 0
      %1464 = vmatmul.mubr.bf16.gmra.mxu0 %v1083
      %v1465 = vpop.f32.mrf.mxu0
      %v1466 = vadd.f32 %v664, %v1465
      %v1467 = vpop.f32.mrf.mxu0
      %v1468 = vpop.f32.mrf.mxu0
      %v1469 = vadd.f32 %v664, %v1468
      %v1470 = vpop.f32.mrf.mxu0
      %1471 = vmatprep.mubr.bf16.mxu0 0
      %1472 = vmatmul.mubr.bf16.gmra.mxu0 %v1086
      %v1473 = vpop.f32.mrf.mxu0
      %v1474 = vadd.f32 %v664, %v1473
      %v1475 = vpop.f32.mrf.mxu0
      %v1476 = vpop.f32.mrf.mxu0
      %v1477 = vadd.f32 %v664, %v1476
      %v1478 = vpop.f32.mrf.mxu0
      %1479 = vmatprep.mubr.bf16.mxu0 0
      %1480 = vmatmul.mubr.bf16.gmra.mxu0 %v1089
      %v1481 = vpop.f32.mrf.mxu0
      %v1482 = vadd.f32 %v664, %v1481
      %v1483 = vpop.f32.mrf.mxu0
      %v1484 = vpop.f32.mrf.mxu0
      %v1485 = vadd.f32 %v664, %v1484
      %v1486 = vpop.f32.mrf.mxu0
      %1487 = vmatprep.mubr.bf16.mxu0 0
      %1488 = vmatmul.mubr.bf16.gmra.mxu0 %v1092
      %v1489 = vpop.f32.mrf.mxu0
      %v1490 = vadd.f32 %v664, %v1489
      %v1491 = vpop.f32.mrf.mxu0
      %v1492 = vpop.f32.mrf.mxu0
      %v1493 = vadd.f32 %v664, %v1492
      %v1494 = vpop.f32.mrf.mxu0
      %1495 = vmatprep.mubr.bf16.mxu0 0
      %1496 = vmatmul.mubr.bf16.gmra.mxu0 %v1095
      %v1497 = vpop.f32.mrf.mxu0
      %v1498 = vadd.f32 %v664, %v1497
      %v1499 = vpop.f32.mrf.mxu0
      %v1500 = vpop.f32.mrf.mxu0
      %v1501 = vadd.f32 %v664, %v1500
      %v1502 = vpop.f32.mrf.mxu0
      %1503 = vmatprep.mubr.bf16.mxu0 0
      %1504 = vmatmul.mubr.bf16.gmra.mxu0 %v1098
      %v1505 = vpop.f32.mrf.mxu0
      %v1506 = vadd.f32 %v664, %v1505
      %v1507 = vpop.f32.mrf.mxu0
      %v1508 = vpop.f32.mrf.mxu0
      %v1509 = vadd.f32 %v664, %v1508
      %v1510 = vpop.f32.mrf.mxu0
      %1511 = vmatprep.mubr.bf16.mxu0 0
      %1512 = vmatmul.mubr.bf16.gmra.mxu0 %v1101
      %v1513 = vpop.f32.mrf.mxu0
      %v1514 = vadd.f32 %v664, %v1513
      %v1515 = vpop.f32.mrf.mxu0
      %v1516 = vpop.f32.mrf.mxu0
      %v1517 = vadd.f32 %v664, %v1516
      %v1518 = vpop.f32.mrf.mxu0
      %1519 = vmatprep.mubr.bf16.mxu0 0
      %1520 = vmatmul.mubr.bf16.gmra.mxu0 %v1104
      %v1521 = vpop.f32.mrf.mxu0
      %v1522 = vadd.f32 %v664, %v1521
      %v1523 = vpop.f32.mrf.mxu0
      %v1524 = vpop.f32.mrf.mxu0
      %v1525 = vadd.f32 %v664, %v1524
      %v1526 = vpop.f32.mrf.mxu0
      %1527 = vmatprep.mubr.bf16.mxu0 0
      %1528 = vmatmul.mubr.bf16.gmra.mxu0 %v1107
      %v1529 = vpop.f32.mrf.mxu0
      %v1530 = vadd.f32 %v664, %v1529
      %v1531 = vpop.f32.mrf.mxu0
      %v1532 = vpop.f32.mrf.mxu0
      %v1533 = vadd.f32 %v664, %v1532
      %v1534 = vpop.f32.mrf.mxu0
      %1535 = vmatprep.mubr.bf16.mxu0 0
      %1536 = vmatmul.mubr.bf16.gmra.mxu0 %v1110
      %v1537 = vpop.f32.mrf.mxu0
      %v1538 = vadd.f32 %v664, %v1537
      %v1539 = vpop.f32.mrf.mxu0
      %v1540 = vpop.f32.mrf.mxu0
      %v1541 = vadd.f32 %v664, %v1540
      %v1542 = vpop.f32.mrf.mxu0
      %1543 = vmatprep.mubr.bf16.mxu0 0
      %1544 = vmatmul.mubr.bf16.gmra.mxu0 %v1113
      %v1545 = vpop.f32.mrf.mxu0
      %v1546 = vadd.f32 %v664, %v1545
      %v1547 = vpop.f32.mrf.mxu0
      %v1548 = vpop.f32.mrf.mxu0
      %v1549 = vadd.f32 %v664, %v1548
      %v1550 = vpop.f32.mrf.mxu0
      %1551 = vmatprep.mubr.bf16.mxu0 0
      %1552 = vmatmul.mubr.bf16.gmra.mxu0 %v1116
      %v1553 = vpop.f32.mrf.mxu0
      %v1554 = vadd.f32 %v664, %v1553
      %v1555 = vpop.f32.mrf.mxu0
      %v1556 = vpop.f32.mrf.mxu0
      %v1557 = vadd.f32 %v664, %v1556
      %v1558 = vpop.f32.mrf.mxu0
      %1559 = vmatprep.mubr.bf16.mxu0 0
      %1560 = vmatmul.mubr.bf16.gmra.mxu0 %v1119
      %v1561 = vpop.f32.mrf.mxu0
      %v1562 = vadd.f32 %v664, %v1561
      %v1563 = vpop.f32.mrf.mxu0
      %v1564 = vpop.f32.mrf.mxu0
      %v1565 = vadd.f32 %v664, %v1564
      %v1566 = vpop.f32.mrf.mxu0
      %1567 = vmatprep.mubr.bf16.mxu0 0
      %1568 = vmatmul.mubr.bf16.gmra.mxu0 %v1122
      %v1569 = vpop.f32.mrf.mxu0
      %v1570 = vadd.f32 %v664, %v1569
      %v1571 = vpop.f32.mrf.mxu0
      %v1572 = vpop.f32.mrf.mxu0
      %v1573 = vadd.f32 %v664, %v1572
      %v1574 = vpop.f32.mrf.mxu0
      %1575 = vmatprep.mubr.bf16.mxu0 0
      %1576 = vmatmul.mubr.bf16.gmra.mxu0 %v1125
      %v1577 = vpop.f32.mrf.mxu0
      %v1578 = vadd.f32 %v664, %v1577
      %v1579 = vpop.f32.mrf.mxu0
      %v1580 = vpop.f32.mrf.mxu0
      %v1581 = vadd.f32 %v664, %v1580
      %v1582 = vpop.f32.mrf.mxu0
      %1583 = vmatprep.mubr.bf16.mxu0 0
      %1584 = vmatmul.mubr.bf16.gmra.mxu0 %v1128
      %v1585 = vpop.f32.mrf.mxu0
      %v1586 = vadd.f32 %v664, %v1585
      %v1587 = vpop.f32.mrf.mxu0
      %v1588 = vpop.f32.mrf.mxu0
      %v1589 = vadd.f32 %v664, %v1588
      %v1590 = vpop.f32.mrf.mxu0
      %1591 = vmatprep.mubr.bf16.mxu0 0
      %1592 = vmatmul.mubr.bf16.gmra.mxu0 %v1131
      %v1593 = vpop.f32.mrf.mxu0
      %v1594 = vadd.f32 %v664, %v1593
      %v1595 = vpop.f32.mrf.mxu0
      %v1596 = vpop.f32.mrf.mxu0
      %v1597 = vadd.f32 %v664, %v1596
      %v1598 = vpop.f32.mrf.mxu0
      %1599 = vmatprep.mubr.bf16.mxu0 0
      %1600 = vmatmul.mubr.bf16.gmra.mxu0 %v1134
      %v1601 = vpop.f32.mrf.mxu0
      %v1602 = vadd.f32 %v664, %v1601
      %v1603 = vpop.f32.mrf.mxu0
      %v1604 = vpop.f32.mrf.mxu0
      %v1605 = vadd.f32 %v664, %v1604
      %v1606 = vpop.f32.mrf.mxu0
      %1607 = vmatprep.mubr.bf16.mxu0 0
      %1608 = vmatmul.mubr.bf16.gmra.mxu0 %v1137
      %v1609 = vpop.f32.mrf.mxu0
      %v1610 = vadd.f32 %v664, %v1609
      %v1611 = vpop.f32.mrf.mxu0
      %v1612 = vpop.f32.mrf.mxu0
      %v1613 = vadd.f32 %v664, %v1612
      %v1614 = vpop.f32.mrf.mxu0
      %1615 = vmatprep.mubr.bf16.mxu0 0
      %1616 = vmatmul.mubr.bf16.gmra.mxu0 %v1140
      %v1617 = vpop.f32.mrf.mxu0
      %v1618 = vadd.f32 %v664, %v1617
      %v1619 = vpop.f32.mrf.mxu0
      %v1620 = vpop.f32.mrf.mxu0
      %v1621 = vadd.f32 %v664, %v1620
      %v1622 = vpop.f32.mrf.mxu0
      %1623 = vmatprep.mubr.bf16.mxu0 0
      %1624 = vmatmul.mubr.bf16.gmra.mxu0 %v1143
      %v1625 = vpop.f32.mrf.mxu0
      %v1626 = vadd.f32 %v664, %v1625
      %v1627 = vpop.f32.mrf.mxu0
      %v1628 = vpop.f32.mrf.mxu0
      %v1629 = vadd.f32 %v664, %v1628
      %v1630 = vpop.f32.mrf.mxu0
      %1631 = vmatprep.mubr.bf16.mxu0 0
      %1632 = vmatmul.mubr.bf16.gmra.mxu0 %v1146
      %v1633 = vpop.f32.mrf.mxu0
      %v1634 = vadd.f32 %v664, %v1633
      %v1635 = vpop.f32.mrf.mxu0
      %v1636 = vpop.f32.mrf.mxu0
      %v1637 = vadd.f32 %v664, %v1636
      %v1638 = vpop.f32.mrf.mxu0
      %1639 = vmatprep.mubr.bf16.mxu0 0
      %1640 = vmatmul.mubr.bf16.gmra.mxu0 %v1149
      %v1641 = vpop.f32.mrf.mxu0
      %v1642 = vadd.f32 %v664, %v1641
      %v1643 = vpop.f32.mrf.mxu0
      %v1644 = vpop.f32.mrf.mxu0
      %v1645 = vadd.f32 %v664, %v1644
      %v1646 = vpop.f32.mrf.mxu0
      %1647 = vmatprep.mubr.bf16.mxu0 0
      %1648 = vmatmul.mubr.bf16.gmra.mxu0 %v1152
      %v1649 = vpop.f32.mrf.mxu0
      %v1650 = vadd.f32 %v664, %v1649
      %v1651 = vpop.f32.mrf.mxu0
      %v1652 = vpop.f32.mrf.mxu0
      %v1653 = vadd.f32 %v664, %v1652
      %v1654 = vpop.f32.mrf.mxu0
      %1655 = vmatprep.mubr.bf16.mxu0 0
      %1656 = vmatmul.mubr.bf16.gmra.mxu0 %v1155
      %v1657 = vpop.f32.mrf.mxu0
      %v1658 = vadd.f32 %v664, %v1657
      %v1659 = vpop.f32.mrf.mxu0
      %v1660 = vpop.f32.mrf.mxu0
      %v1661 = vadd.f32 %v664, %v1660
      %v1662 = vpop.f32.mrf.mxu0
      %1663 = vmatprep.mubr.bf16.mxu0 0
      %1664 = vmatmul.mubr.bf16.gmra.mxu0 %v1158
      %v1665 = vpop.f32.mrf.mxu0
      %v1666 = vadd.f32 %v664, %v1665
      %v1667 = vpop.f32.mrf.mxu0
      %v1668 = vpop.f32.mrf.mxu0
      %v1669 = vadd.f32 %v664, %v1668
      %v1670 = vpop.f32.mrf.mxu0
      %1671 = vmatprep.mubr.bf16.mxu0 0
      %1672 = vmatmul.mubr.bf16.gmra.mxu0 %v1161
      %v1673 = vpop.f32.mrf.mxu0
      %v1674 = vadd.f32 %v664, %v1673
      %v1675 = vpop.f32.mrf.mxu0
      %v1676 = vpop.f32.mrf.mxu0
      %v1677 = vadd.f32 %v664, %v1676
      %v1678 = vpop.f32.mrf.mxu0
      %1679 = vmatprep.mubr.bf16.mxu0 0
      %1680 = vmatmul.mubr.bf16.gmra.mxu0 %v1164
      %v1681 = vpop.f32.mrf.mxu0
      %v1682 = vadd.f32 %v664, %v1681
      %v1683 = vpop.f32.mrf.mxu0
      %v1684 = vpop.f32.mrf.mxu0
      %v1685 = vadd.f32 %v664, %v1684
      %v1686 = vpop.f32.mrf.mxu0
      %1687 = vmatprep.mubr.bf16.mxu0 0
      %1688 = vmatmul.mubr.bf16.gmra.mxu0 %v1167
      %v1689 = vpop.f32.mrf.mxu0
      %v1690 = vadd.f32 %v664, %v1689
      %v1691 = vpop.f32.mrf.mxu0
      %v1692 = vpop.f32.mrf.mxu0
      %v1693 = vadd.f32 %v664, %v1692
      %v1694 = vpop.f32.mrf.mxu0
      %1695 = vmatprep.mubr.bf16.mxu0 0
      %1696 = vmatmul.mubr.bf16.gmra.mxu0 %v1170
      %v1697 = vpop.f32.mrf.mxu0
      %v1698 = vadd.f32 %v664, %v1697
      %v1699 = vpop.f32.mrf.mxu0
      %v1700 = vpop.f32.mrf.mxu0
      %v1701 = vadd.f32 %v664, %v1700
      %v1702 = vpop.f32.mrf.mxu0
      %1703 = vmatprep.mubr.bf16.mxu0 0
      %1704 = vmatmul.mubr.bf16.gmra.mxu0 %v1173
      %v1705 = vpop.f32.mrf.mxu0
      %v1706 = vadd.f32 %v664, %v1705
      %v1707 = vpop.f32.mrf.mxu0
      %v1708 = vpop.f32.mrf.mxu0
      %v1709 = vadd.f32 %v664, %v1708
      %v1710 = vpop.f32.mrf.mxu0
      %1711 = vmatprep.mubr.bf16.mxu0 0
      %1712 = vmatmul.mubr.bf16.gmra.mxu0 %v1176
      %v1713 = vpop.f32.mrf.mxu0
      %v1714 = vadd.f32 %v664, %v1713
      %v1715 = vpop.f32.mrf.mxu0
      %v1716 = vpop.f32.mrf.mxu0
      %v1717 = vadd.f32 %v664, %v1716
      %v1718 = vpop.f32.mrf.mxu0
      %1719 = vmatprep.mubr.bf16.mxu0 0
      %1720 = vmatmul.mubr.bf16.gmra.mxu0 %v1179
      %v1721 = vpop.f32.mrf.mxu0
      %v1722 = vadd.f32 %v664, %v1721
      %v1723 = vpop.f32.mrf.mxu0
      %v1724 = vpop.f32.mrf.mxu0
      %v1725 = vadd.f32 %v664, %v1724
      %v1726 = vpop.f32.mrf.mxu0
      %1727 = vmatprep.mubr.bf16.mxu0 0
      %1728 = vmatmul.mubr.bf16.gmra.mxu0 %v1182
      %v1729 = vpop.f32.mrf.mxu0
      %v1730 = vadd.f32 %v664, %v1729
      %v1731 = vpop.f32.mrf.mxu0
      %v1732 = vpop.f32.mrf.mxu0
      %v1733 = vadd.f32 %v664, %v1732
      %v1734 = vpop.f32.mrf.mxu0
      %1735 = vdwg.mxu0
      %v1736 = vmax.f32 %v1226, 0.0
      %v1737 = vmax.f32 %v1229, 0.0
      %v1738 = vmax.f32 %v1234, 0.0
      %v1739 = vmax.f32 %v1237, 0.0
      %v1740 = vmax.f32 %v1242, 0.0
      %v1741 = vmax.f32 %v1245, 0.0
      %v1742 = vmax.f32 %v1250, 0.0
      %v1743 = vmax.f32 %v1253, 0.0
      %v1744 = vmax.f32 %v1258, 0.0
      %v1745 = vmax.f32 %v1261, 0.0
      %v1746 = vmax.f32 %v1266, 0.0
      %v1747 = vmax.f32 %v1269, 0.0
      %v1748 = vmax.f32 %v1274, 0.0
      %v1749 = vmax.f32 %v1277, 0.0
      %v1750 = vmax.f32 %v1282, 0.0
      %v1751 = vmax.f32 %v1285, 0.0
      %v1752 = vmax.f32 %v1290, 0.0
      %v1753 = vmax.f32 %v1293, 0.0
      %v1754 = vmax.f32 %v1298, 0.0
      %v1755 = vmax.f32 %v1301, 0.0
      %v1756 = vmax.f32 %v1306, 0.0
      %v1757 = vmax.f32 %v1309, 0.0
      %v1758 = vmax.f32 %v1314, 0.0
      %v1759 = vmax.f32 %v1317, 0.0
      %v1760 = vmax.f32 %v1322, 0.0
      %v1761 = vmax.f32 %v1325, 0.0
      %v1762 = vmax.f32 %v1330, 0.0
      %v1763 = vmax.f32 %v1333, 0.0
      %v1764 = vmax.f32 %v1338, 0.0
      %v1765 = vmax.f32 %v1341, 0.0
      %v1766 = vmax.f32 %v1346, 0.0
      %v1767 = vmax.f32 %v1349, 0.0
      %v1768 = vmax.f32 %v1354, 0.0
      %v1769 = vmax.f32 %v1357, 0.0
      %v1770 = vmax.f32 %v1362, 0.0
      %v1771 = vmax.f32 %v1365, 0.0
      %v1772 = vmax.f32 %v1370, 0.0
      %v1773 = vmax.f32 %v1373, 0.0
      %v1774 = vmax.f32 %v1378, 0.0
      %v1775 = vmax.f32 %v1381, 0.0
      %v1776 = vmax.f32 %v1386, 0.0
      %v1777 = vmax.f32 %v1389, 0.0
      %v1778 = vmax.f32 %v1394, 0.0
      %v1779 = vmax.f32 %v1397, 0.0
      %v1780 = vmax.f32 %v1402, 0.0
      %v1781 = vmax.f32 %v1405, 0.0
      %v1782 = vmax.f32 %v1410, 0.0
      %v1783 = vmax.f32 %v1413, 0.0
      %v1784 = vmax.f32 %v1418, 0.0
      %v1785 = vmax.f32 %v1421, 0.0
      %v1786 = vmax.f32 %v1426, 0.0
      %v1787 = vmax.f32 %v1429, 0.0
      %v1788 = vmax.f32 %v1434, 0.0
      %v1789 = vmax.f32 %v1437, 0.0
      %v1790 = vmax.f32 %v1442, 0.0
      %v1791 = vmax.f32 %v1445, 0.0
      %v1792 = vmax.f32 %v1450, 0.0
      %v1793 = vmax.f32 %v1453, 0.0
      %v1794 = vmax.f32 %v1458, 0.0
      %v1795 = vmax.f32 %v1461, 0.0
      %v1796 = vmax.f32 %v1466, 0.0
      %v1797 = vmax.f32 %v1469, 0.0
      %v1798 = vmax.f32 %v1474, 0.0
      %v1799 = vmax.f32 %v1477, 0.0
      %v1800 = vmax.f32 %v1482, 0.0
      %v1801 = vmax.f32 %v1485, 0.0
      %v1802 = vmax.f32 %v1490, 0.0
      %v1803 = vmax.f32 %v1493, 0.0
      %v1804 = vmax.f32 %v1498, 0.0
      %v1805 = vmax.f32 %v1501, 0.0
      %v1806 = vmax.f32 %v1506, 0.0
      %v1807 = vmax.f32 %v1509, 0.0
      %v1808 = vmax.f32 %v1514, 0.0
      %v1809 = vmax.f32 %v1517, 0.0
      %v1810 = vmax.f32 %v1522, 0.0
      %v1811 = vmax.f32 %v1525, 0.0
      %v1812 = vmax.f32 %v1530, 0.0
      %v1813 = vmax.f32 %v1533, 0.0
      %v1814 = vmax.f32 %v1538, 0.0
      %v1815 = vmax.f32 %v1541, 0.0
      %v1816 = vmax.f32 %v1546, 0.0
      %v1817 = vmax.f32 %v1549, 0.0
      %v1818 = vmax.f32 %v1554, 0.0
      %v1819 = vmax.f32 %v1557, 0.0
      %v1820 = vmax.f32 %v1562, 0.0
      %v1821 = vmax.f32 %v1565, 0.0
      %v1822 = vmax.f32 %v1570, 0.0
      %v1823 = vmax.f32 %v1573, 0.0
      %v1824 = vmax.f32 %v1578, 0.0
      %v1825 = vmax.f32 %v1581, 0.0
      %v1826 = vmax.f32 %v1586, 0.0
      %v1827 = vmax.f32 %v1589, 0.0
      %v1828 = vmax.f32 %v1594, 0.0
      %v1829 = vmax.f32 %v1597, 0.0
      %v1830 = vmax.f32 %v1602, 0.0
      %v1831 = vmax.f32 %v1605, 0.0
      %v1832 = vmax.f32 %v1610, 0.0
      %v1833 = vmax.f32 %v1613, 0.0
      %v1834 = vmax.f32 %v1618, 0.0
      %v1835 = vmax.f32 %v1621, 0.0
      %v1836 = vmax.f32 %v1626, 0.0
      %v1837 = vmax.f32 %v1629, 0.0
      %v1838 = vmax.f32 %v1634, 0.0
      %v1839 = vmax.f32 %v1637, 0.0
      %v1840 = vmax.f32 %v1642, 0.0
      %v1841 = vmax.f32 %v1645, 0.0
      %v1842 = vmax.f32 %v1650, 0.0
      %v1843 = vmax.f32 %v1653, 0.0
      %v1844 = vmax.f32 %v1658, 0.0
      %v1845 = vmax.f32 %v1661, 0.0
      %v1846 = vmax.f32 %v1666, 0.0
      %v1847 = vmax.f32 %v1669, 0.0
      %v1848 = vmax.f32 %v1674, 0.0
      %v1849 = vmax.f32 %v1677, 0.0
      %v1850 = vmax.f32 %v1682, 0.0
      %v1851 = vmax.f32 %v1685, 0.0
      %v1852 = vmax.f32 %v1690, 0.0
      %v1853 = vmax.f32 %v1693, 0.0
      %v1854 = vmax.f32 %v1698, 0.0
      %v1855 = vmax.f32 %v1701, 0.0
      %v1856 = vmax.f32 %v1706, 0.0
      %v1857 = vmax.f32 %v1709, 0.0
      %v1858 = vmax.f32 %v1714, 0.0
      %v1859 = vmax.f32 %v1717, 0.0
      %v1860 = vmax.f32 %v1722, 0.0
      %v1861 = vmax.f32 %v1725, 0.0
      %v1862 = vmax.f32 %v1730, 0.0
      %v1863 = vmax.f32 %v1733, 0.0
      %v1864 = vrot.slane %v1736, 1
      %v1865 = vrot.slane %v1737, 1
      %v1866 = vrot.slane %v1738, 1
      %v1867 = vrot.slane %v1739, 1
      %v1868 = vrot.slane %v1740, 1
      %v1869 = vrot.slane %v1741, 1
      %v1870 = vrot.slane %v1742, 1
      %v1871 = vrot.slane %v1743, 1
      %v1872 = vrot.slane %v1744, 1
      %v1873 = vrot.slane %v1745, 1
      %v1874 = vrot.slane %v1746, 1
      %v1875 = vrot.slane %v1747, 1
      %v1876 = vrot.slane %v1748, 1
      %v1877 = vrot.slane %v1749, 1
      %v1878 = vrot.slane %v1750, 1
      %v1879 = vrot.slane %v1751, 1
      %v1880 = vrot.slane %v1752, 1
      %v1881 = vrot.slane %v1753, 1
      %v1882 = vrot.slane %v1754, 1
      %v1883 = vrot.slane %v1755, 1
      %v1884 = vrot.slane %v1756, 1
      %v1885 = vrot.slane %v1757, 1
      %v1886 = vrot.slane %v1758, 1
      %v1887 = vrot.slane %v1759, 1
      %v1888 = vrot.slane %v1760, 1
      %v1889 = vrot.slane %v1761, 1
      %v1890 = vrot.slane %v1762, 1
      %v1891 = vrot.slane %v1763, 1
      %v1892 = vrot.slane %v1764, 1
      %v1893 = vrot.slane %v1765, 1
      %v1894 = vrot.slane %v1766, 1
      %v1895 = vrot.slane %v1767, 1
      %v1896 = vrot.slane %v1768, 1
      %v1897 = vrot.slane %v1769, 1
      %v1898 = vrot.slane %v1770, 1
      %v1899 = vrot.slane %v1771, 1
      %v1900 = vrot.slane %v1772, 1
      %v1901 = vrot.slane %v1773, 1
      %v1902 = vrot.slane %v1774, 1
      %v1903 = vrot.slane %v1775, 1
      %v1904 = vrot.slane %v1776, 1
      %v1905 = vrot.slane %v1777, 1
      %v1906 = vrot.slane %v1778, 1
      %v1907 = vrot.slane %v1779, 1
      %v1908 = vrot.slane %v1780, 1
      %v1909 = vrot.slane %v1781, 1
      %v1910 = vrot.slane %v1782, 1
      %v1911 = vrot.slane %v1783, 1
      %v1912 = vrot.slane %v1784, 1
      %v1913 = vrot.slane %v1785, 1
      %v1914 = vrot.slane %v1786, 1
      %v1915 = vrot.slane %v1787, 1
      %v1916 = vrot.slane %v1788, 1
      %v1917 = vrot.slane %v1789, 1
      %v1918 = vrot.slane %v1790, 1
      %v1919 = vrot.slane %v1791, 1
      %v1920 = vrot.slane %v1792, 1
      %v1921 = vrot.slane %v1793, 1
      %v1922 = vrot.slane %v1794, 1
      %v1923 = vrot.slane %v1795, 1
      %v1924 = vrot.slane %v1796, 1
      %v1925 = vrot.slane %v1797, 1
      %v1926 = vrot.slane %v1798, 1
      %v1927 = vrot.slane %v1799, 1
      %v1928 = vrot.slane %v1800, 1
      %v1929 = vrot.slane %v1801, 1
      %v1930 = vrot.slane %v1802, 1
      %v1931 = vrot.slane %v1803, 1
      %v1932 = vrot.slane %v1804, 1
      %v1933 = vrot.slane %v1805, 1
      %v1934 = vrot.slane %v1806, 1
      %v1935 = vrot.slane %v1807, 1
      %v1936 = vrot.slane %v1808, 1
      %v1937 = vrot.slane %v1809, 1
      %v1938 = vrot.slane %v1810, 1
      %v1939 = vrot.slane %v1811, 1
      %v1940 = vrot.slane %v1812, 1
      %v1941 = vrot.slane %v1813, 1
      %v1942 = vrot.slane %v1814, 1
      %v1943 = vrot.slane %v1815, 1
      %v1944 = vrot.slane %v1816, 1
      %v1945 = vrot.slane %v1817, 1
      %v1946 = vrot.slane %v1818, 1
      %v1947 = vrot.slane %v1819, 1
      %v1948 = vrot.slane %v1820, 1
      %v1949 = vrot.slane %v1821, 1
      %v1950 = vrot.slane %v1822, 1
      %v1951 = vrot.slane %v1823, 1
      %v1952 = vrot.slane %v1824, 1
      %v1953 = vrot.slane %v1825, 1
      %v1954 = vrot.slane %v1826, 1
      %v1955 = vrot.slane %v1827, 1
      %v1956 = vrot.slane %v1828, 1
      %v1957 = vrot.slane %v1829, 1
      %v1958 = vrot.slane %v1830, 1
      %v1959 = vrot.slane %v1831, 1
      %v1960 = vrot.slane %v1832, 1
      %v1961 = vrot.slane %v1833, 1
      %v1962 = vrot.slane %v1834, 1
      %v1963 = vrot.slane %v1835, 1
      %v1964 = vrot.slane %v1836, 1
      %v1965 = vrot.slane %v1837, 1
      %v1966 = vrot.slane %v1838, 1
      %v1967 = vrot.slane %v1839, 1
      %v1968 = vrot.slane %v1840, 1
      %v1969 = vrot.slane %v1841, 1
      %v1970 = vrot.slane %v1842, 1
      %v1971 = vrot.slane %v1843, 1
      %v1972 = vrot.slane %v1844, 1
      %v1973 = vrot.slane %v1845, 1
      %v1974 = vrot.slane %v1846, 1
      %v1975 = vrot.slane %v1847, 1
      %v1976 = vrot.slane %v1848, 1
      %v1977 = vrot.slane %v1849, 1
      %v1978 = vrot.slane %v1850, 1
      %v1979 = vrot.slane %v1851, 1
      %v1980 = vrot.slane %v1852, 1
      %v1981 = vrot.slane %v1853, 1
      %v1982 = vrot.slane %v1854, 1
      %v1983 = vrot.slane %v1855, 1
      %v1984 = vrot.slane %v1856, 1
      %v1985 = vrot.slane %v1857, 1
      %v1986 = vrot.slane %v1858, 1
      %v1987 = vrot.slane %v1859, 1
      %v1988 = vrot.slane %v1860, 1
      %v1989 = vrot.slane %v1861, 1
      %v1990 = vrot.slane %v1862, 1
      %v1991 = vrot.slane %v1863, 1
      %v1992 = vlaneseq
      %v1993 = vshrl.u32 %v1992, 7
      %vm1994 = vcmp.lt.s32.totalorder %v1993, 7
      %v1995 = vsel %vm1994, %v1990, %v1991
      %v1996 = vsel %vm1994, %v1989, %v1990
      %v1997 = vsel %vm1994, %v1988, %v1989
      %v1998 = vsel %vm1994, %v1987, %v1988
      %v1999 = vsel %vm1994, %v1986, %v1987
      %v2000 = vsel %vm1994, %v1985, %v1986
      %v2001 = vsel %vm1994, %v1984, %v1985
      %v2002 = vsel %vm1994, %v1983, %v1984
      %v2003 = vsel %vm1994, %v1982, %v1983
      %v2004 = vsel %vm1994, %v1981, %v1982
      %v2005 = vsel %vm1994, %v1980, %v1981
      %v2006 = vsel %vm1994, %v1979, %v1980
      %v2007 = vsel %vm1994, %v1978, %v1979
      %v2008 = vsel %vm1994, %v1977, %v1978
      %v2009 = vsel %vm1994, %v1976, %v1977
      %v2010 = vsel %vm1994, %v1975, %v1976
      %v2011 = vsel %vm1994, %v1974, %v1975
      %v2012 = vsel %vm1994, %v1973, %v1974
      %v2013 = vsel %vm1994, %v1972, %v1973
      %v2014 = vsel %vm1994, %v1971, %v1972
      %v2015 = vsel %vm1994, %v1970, %v1971
      %v2016 = vsel %vm1994, %v1969, %v1970
      %v2017 = vsel %vm1994, %v1968, %v1969
      %v2018 = vsel %vm1994, %v1967, %v1968
      %v2019 = vsel %vm1994, %v1966, %v1967
      %v2020 = vsel %vm1994, %v1965, %v1966
      %v2021 = vsel %vm1994, %v1964, %v1965
      %v2022 = vsel %vm1994, %v1963, %v1964
      %v2023 = vsel %vm1994, %v1962, %v1963
      %v2024 = vsel %vm1994, %v1961, %v1962
      %v2025 = vsel %vm1994, %v1960, %v1961
      %v2026 = vsel %vm1994, %v1959, %v1960
      %v2027 = vsel %vm1994, %v1958, %v1959
      %v2028 = vsel %vm1994, %v1957, %v1958
      %v2029 = vsel %vm1994, %v1956, %v1957
      %v2030 = vsel %vm1994, %v1955, %v1956
      %v2031 = vsel %vm1994, %v1954, %v1955
      %v2032 = vsel %vm1994, %v1953, %v1954
      %v2033 = vsel %vm1994, %v1952, %v1953
      %v2034 = vsel %vm1994, %v1951, %v1952
      %v2035 = vsel %vm1994, %v1950, %v1951
      %v2036 = vsel %vm1994, %v1949, %v1950
      %v2037 = vsel %vm1994, %v1948, %v1949
      %v2038 = vsel %vm1994, %v1947, %v1948
      %v2039 = vsel %vm1994, %v1946, %v1947
      %v2040 = vsel %vm1994, %v1945, %v1946
      %v2041 = vsel %vm1994, %v1944, %v1945
      %v2042 = vsel %vm1994, %v1943, %v1944
      %v2043 = vsel %vm1994, %v1942, %v1943
      %v2044 = vsel %vm1994, %v1941, %v1942
      %v2045 = vsel %vm1994, %v1940, %v1941
      %v2046 = vsel %vm1994, %v1939, %v1940
      %v2047 = vsel %vm1994, %v1938, %v1939
      %v2048 = vsel %vm1994, %v1937, %v1938
      %v2049 = vsel %vm1994, %v1936, %v1937
      %v2050 = vsel %vm1994, %v1935, %v1936
      %v2051 = vsel %vm1994, %v1934, %v1935
      %v2052 = vsel %vm1994, %v1933, %v1934
      %v2053 = vsel %vm1994, %v1932, %v1933
      %v2054 = vsel %vm1994, %v1931, %v1932
      %v2055 = vsel %vm1994, %v1930, %v1931
      %v2056 = vsel %vm1994, %v1929, %v1930
      %v2057 = vsel %vm1994, %v1928, %v1929
      %v2058 = vsel %vm1994, %v1927, %v1928
      %v2059 = vsel %vm1994, %v1926, %v1927
      %v2060 = vsel %vm1994, %v1925, %v1926
      %v2061 = vsel %vm1994, %v1924, %v1925
      %v2062 = vsel %vm1994, %v1923, %v1924
      %v2063 = vsel %vm1994, %v1922, %v1923
      %v2064 = vsel %vm1994, %v1921, %v1922
      %v2065 = vsel %vm1994, %v1920, %v1921
      %v2066 = vsel %vm1994, %v1919, %v1920
      %v2067 = vsel %vm1994, %v1918, %v1919
      %v2068 = vsel %vm1994, %v1917, %v1918
      %v2069 = vsel %vm1994, %v1916, %v1917
      %v2070 = vsel %vm1994, %v1915, %v1916
      %v2071 = vsel %vm1994, %v1914, %v1915
      %v2072 = vsel %vm1994, %v1913, %v1914
      %v2073 = vsel %vm1994, %v1912, %v1913
      %v2074 = vsel %vm1994, %v1911, %v1912
      %v2075 = vsel %vm1994, %v1910, %v1911
      %v2076 = vsel %vm1994, %v1909, %v1910
      %v2077 = vsel %vm1994, %v1908, %v1909
      %v2078 = vsel %vm1994, %v1907, %v1908
      %v2079 = vsel %vm1994, %v1906, %v1907
      %v2080 = vsel %vm1994, %v1905, %v1906
      %v2081 = vsel %vm1994, %v1904, %v1905
      %v2082 = vsel %vm1994, %v1903, %v1904
      %v2083 = vsel %vm1994, %v1902, %v1903
      %v2084 = vsel %vm1994, %v1901, %v1902
      %v2085 = vsel %vm1994, %v1900, %v1901
      %v2086 = vsel %vm1994, %v1899, %v1900
      %v2087 = vsel %vm1994, %v1898, %v1899
      %v2088 = vsel %vm1994, %v1897, %v1898
      %v2089 = vsel %vm1994, %v1896, %v1897
      %v2090 = vsel %vm1994, %v1895, %v1896
      %v2091 = vsel %vm1994, %v1894, %v1895
      %v2092 = vsel %vm1994, %v1893, %v1894
      %v2093 = vsel %vm1994, %v1892, %v1893
      %v2094 = vsel %vm1994, %v1891, %v1892
      %v2095 = vsel %vm1994, %v1890, %v1891
      %v2096 = vsel %vm1994, %v1889, %v1890
      %v2097 = vsel %vm1994, %v1888, %v1889
      %v2098 = vsel %vm1994, %v1887, %v1888
      %v2099 = vsel %vm1994, %v1886, %v1887
      %v2100 = vsel %vm1994, %v1885, %v1886
      %v2101 = vsel %vm1994, %v1884, %v1885
      %v2102 = vsel %vm1994, %v1883, %v1884
      %v2103 = vsel %vm1994, %v1882, %v1883
      %v2104 = vsel %vm1994, %v1881, %v1882
      %v2105 = vsel %vm1994, %v1880, %v1881
      %v2106 = vsel %vm1994, %v1879, %v1880
      %v2107 = vsel %vm1994, %v1878, %v1879
      %v2108 = vsel %vm1994, %v1877, %v1878
      %v2109 = vsel %vm1994, %v1876, %v1877
      %v2110 = vsel %vm1994, %v1875, %v1876
      %v2111 = vsel %vm1994, %v1874, %v1875
      %v2112 = vsel %vm1994, %v1873, %v1874
      %v2113 = vsel %vm1994, %v1872, %v1873
      %v2114 = vsel %vm1994, %v1871, %v1872
      %v2115 = vsel %vm1994, %v1870, %v1871
      %v2116 = vsel %vm1994, %v1869, %v1870
      %v2117 = vsel %vm1994, %v1868, %v1869
      %v2118 = vsel %vm1994, %v1867, %v1868
      %v2119 = vsel %vm1994, %v1866, %v1867
      %v2120 = vsel %vm1994, %v1865, %v1866
      %v2121 = vsel %vm1994, %v1864, %v1865
      %v2122 = vsel %vm1994, %v1991, %v1864
      %v2123 = vmax.f32 %v1736, %v2121
      %v2124 = vmax.f32 %v1737, %v2120
      %v2125 = vmax.f32 %v1738, %v2119
      %v2126 = vmax.f32 %v1739, %v2118
      %v2127 = vmax.f32 %v1740, %v2117
      %v2128 = vmax.f32 %v1741, %v2116
      %v2129 = vmax.f32 %v1742, %v2115
      %v2130 = vmax.f32 %v1743, %v2114
      %v2131 = vmax.f32 %v1744, %v2113
      %v2132 = vmax.f32 %v1745, %v2112
      %v2133 = vmax.f32 %v1746, %v2111
      %v2134 = vmax.f32 %v1747, %v2110
      %v2135 = vmax.f32 %v1748, %v2109
      %v2136 = vmax.f32 %v1749, %v2108
      %v2137 = vmax.f32 %v1750, %v2107
      %v2138 = vmax.f32 %v1751, %v2106
      %v2139 = vmax.f32 %v1752, %v2105
      %v2140 = vmax.f32 %v1753, %v2104
      %v2141 = vmax.f32 %v1754, %v2103
      %v2142 = vmax.f32 %v1755, %v2102
      %v2143 = vmax.f32 %v1756, %v2101
      %v2144 = vmax.f32 %v1757, %v2100
      %v2145 = vmax.f32 %v1758, %v2099
      %v2146 = vmax.f32 %v1759, %v2098
      %v2147 = vmax.f32 %v1760, %v2097
      %v2148 = vmax.f32 %v1761, %v2096
      %v2149 = vmax.f32 %v1762, %v2095
      %v2150 = vmax.f32 %v1763, %v2094
      %v2151 = vmax.f32 %v1764, %v2093
      %v2152 = vmax.f32 %v1765, %v2092
      %v2153 = vmax.f32 %v1766, %v2091
      %v2154 = vmax.f32 %v1767, %v2090
      %v2155 = vmax.f32 %v1768, %v2089
      %v2156 = vmax.f32 %v1769, %v2088
      %v2157 = vmax.f32 %v1770, %v2087
      %v2158 = vmax.f32 %v1771, %v2086
      %v2159 = vmax.f32 %v1772, %v2085
      %v2160 = vmax.f32 %v1773, %v2084
      %v2161 = vmax.f32 %v1774, %v2083
      %v2162 = vmax.f32 %v1775, %v2082
      %v2163 = vmax.f32 %v1776, %v2081
      %v2164 = vmax.f32 %v1777, %v2080
      %v2165 = vmax.f32 %v1778, %v2079
      %v2166 = vmax.f32 %v1779, %v2078
      %v2167 = vmax.f32 %v1780, %v2077
      %v2168 = vmax.f32 %v1781, %v2076
      %v2169 = vmax.f32 %v1782, %v2075
      %v2170 = vmax.f32 %v1783, %v2074
      %v2171 = vmax.f32 %v1784, %v2073
      %v2172 = vmax.f32 %v1785, %v2072
      %v2173 = vmax.f32 %v1786, %v2071
      %v2174 = vmax.f32 %v1787, %v2070
      %v2175 = vmax.f32 %v1788, %v2069
      %v2176 = vmax.f32 %v1789, %v2068
      %v2177 = vmax.f32 %v1790, %v2067
      %v2178 = vmax.f32 %v1791, %v2066
      %v2179 = vmax.f32 %v1792, %v2065
      %v2180 = vmax.f32 %v1793, %v2064
      %v2181 = vmax.f32 %v1794, %v2063
      %v2182 = vmax.f32 %v1795, %v2062
      %v2183 = vmax.f32 %v1796, %v2061
      %v2184 = vmax.f32 %v1797, %v2060
      %v2185 = vmax.f32 %v1798, %v2059
      %v2186 = vmax.f32 %v1799, %v2058
      %v2187 = vmax.f32 %v1800, %v2057
      %v2188 = vmax.f32 %v1801, %v2056
      %v2189 = vmax.f32 %v1802, %v2055
      %v2190 = vmax.f32 %v1803, %v2054
      %v2191 = vmax.f32 %v1804, %v2053
      %v2192 = vmax.f32 %v1805, %v2052
      %v2193 = vmax.f32 %v1806, %v2051
      %v2194 = vmax.f32 %v1807, %v2050
      %v2195 = vmax.f32 %v1808, %v2049
      %v2196 = vmax.f32 %v1809, %v2048
      %v2197 = vmax.f32 %v1810, %v2047
      %v2198 = vmax.f32 %v1811, %v2046
      %v2199 = vmax.f32 %v1812, %v2045
      %v2200 = vmax.f32 %v1813, %v2044
      %v2201 = vmax.f32 %v1814, %v2043
      %v2202 = vmax.f32 %v1815, %v2042
      %v2203 = vmax.f32 %v1816, %v2041
      %v2204 = vmax.f32 %v1817, %v2040
      %v2205 = vmax.f32 %v1818, %v2039
      %v2206 = vmax.f32 %v1819, %v2038
      %v2207 = vmax.f32 %v1820, %v2037
      %v2208 = vmax.f32 %v1821, %v2036
      %v2209 = vmax.f32 %v1822, %v2035
      %v2210 = vmax.f32 %v1823, %v2034
      %v2211 = vmax.f32 %v1824, %v2033
      %v2212 = vmax.f32 %v1825, %v2032
      %v2213 = vmax.f32 %v1826, %v2031
      %v2214 = vmax.f32 %v1827, %v2030
      %v2215 = vmax.f32 %v1828, %v2029
      %v2216 = vmax.f32 %v1829, %v2028
      %v2217 = vmax.f32 %v1830, %v2027
      %v2218 = vmax.f32 %v1831, %v2026
      %v2219 = vmax.f32 %v1832, %v2025
      %v2220 = vmax.f32 %v1833, %v2024
      %v2221 = vmax.f32 %v1834, %v2023
      %v2222 = vmax.f32 %v1835, %v2022
      %v2223 = vmax.f32 %v1836, %v2021
      %v2224 = vmax.f32 %v1837, %v2020
      %v2225 = vmax.f32 %v1838, %v2019
      %v2226 = vmax.f32 %v1839, %v2018
      %v2227 = vmax.f32 %v1840, %v2017
      %v2228 = vmax.f32 %v1841, %v2016
      %v2229 = vmax.f32 %v1842, %v2015
      %v2230 = vmax.f32 %v1843, %v2014
      %v2231 = vmax.f32 %v1844, %v2013
      %v2232 = vmax.f32 %v1845, %v2012
      %v2233 = vmax.f32 %v1846, %v2011
      %v2234 = vmax.f32 %v1847, %v2010
      %v2235 = vmax.f32 %v1848, %v2009
      %v2236 = vmax.f32 %v1849, %v2008
      %v2237 = vmax.f32 %v1850, %v2007
      %v2238 = vmax.f32 %v1851, %v2006
      %v2239 = vmax.f32 %v1852, %v2005
      %v2240 = vmax.f32 %v1853, %v2004
      %v2241 = vmax.f32 %v1854, %v2003
      %v2242 = vmax.f32 %v1855, %v2002
      %v2243 = vmax.f32 %v1856, %v2001
      %v2244 = vmax.f32 %v1857, %v2000
      %v2245 = vmax.f32 %v1858, %v1999
      %v2246 = vmax.f32 %v1859, %v1998
      %v2247 = vmax.f32 %v1860, %v1997
      %v2248 = vmax.f32 %v1861, %v1996
      %v2249 = vmax.f32 %v1862, %v1995
      %v2250 = vmax.f32 %v1863, %v2122
      %v2251 = vmax.f32 %v2123, %v2125
      %v2252 = vmax.f32 %v2124, %v2126
      %v2253 = vmax.f32 %v2125, %v2127
      %v2254 = vmax.f32 %v2126, %v2128
      %v2255 = vmax.f32 %v2127, %v2129
      %v2256 = vmax.f32 %v2128, %v2130
      %v2257 = vmax.f32 %v2129, %v2131
      %v2258 = vmax.f32 %v2130, %v2132
      %v2259 = vmax.f32 %v2131, %v2133
      %v2260 = vmax.f32 %v2132, %v2134
      %v2261 = vmax.f32 %v2133, %v2135
      %v2262 = vmax.f32 %v2134, %v2136
      %v2263 = vmax.f32 %v2135, %v2137
      %v2264 = vmax.f32 %v2136, %v2138
      %v2265 = vmax.f32 %v2137, %v2139
      %v2266 = vmax.f32 %v2138, %v2140
      %v2267 = vmax.f32 %v2139, %v2141
      %v2268 = vmax.f32 %v2140, %v2142
      %v2269 = vmax.f32 %v2141, %v2143
      %v2270 = vmax.f32 %v2142, %v2144
      %v2271 = vmax.f32 %v2143, %v2145
      %v2272 = vmax.f32 %v2144, %v2146
      %v2273 = vmax.f32 %v2145, %v2147
      %v2274 = vmax.f32 %v2146, %v2148
      %v2275 = vmax.f32 %v2147, %v2149
      %v2276 = vmax.f32 %v2148, %v2150
      %v2277 = vmax.f32 %v2149, %v2151
      %v2278 = vmax.f32 %v2150, %v2152
      %v2279 = vmax.f32 %v2151, %v2153
      %v2280 = vmax.f32 %v2152, %v2154
      %v2281 = vmax.f32 %v2153, %v2155
      %v2282 = vmax.f32 %v2154, %v2156
      %v2283 = vmax.f32 %v2155, %v2157
      %v2284 = vmax.f32 %v2156, %v2158
      %v2285 = vmax.f32 %v2157, %v2159
      %v2286 = vmax.f32 %v2158, %v2160
      %v2287 = vmax.f32 %v2159, %v2161
      %v2288 = vmax.f32 %v2160, %v2162
      %v2289 = vmax.f32 %v2161, %v2163
      %v2290 = vmax.f32 %v2162, %v2164
      %v2291 = vmax.f32 %v2163, %v2165
      %v2292 = vmax.f32 %v2164, %v2166
      %v2293 = vmax.f32 %v2165, %v2167
      %v2294 = vmax.f32 %v2166, %v2168
      %v2295 = vmax.f32 %v2167, %v2169
      %v2296 = vmax.f32 %v2168, %v2170
      %v2297 = vmax.f32 %v2169, %v2171
      %v2298 = vmax.f32 %v2170, %v2172
      %v2299 = vmax.f32 %v2171, %v2173
      %v2300 = vmax.f32 %v2172, %v2174
      %v2301 = vmax.f32 %v2173, %v2175
      %v2302 = vmax.f32 %v2174, %v2176
      %v2303 = vmax.f32 %v2175, %v2177
      %v2304 = vmax.f32 %v2176, %v2178
      %v2305 = vmax.f32 %v2177, %v2179
      %v2306 = vmax.f32 %v2178, %v2180
      %v2307 = vmax.f32 %v2179, %v2181
      %v2308 = vmax.f32 %v2180, %v2182
      %v2309 = vmax.f32 %v2181, %v2183
      %v2310 = vmax.f32 %v2182, %v2184
      %v2311 = vmax.f32 %v2183, %v2185
      %v2312 = vmax.f32 %v2184, %v2186
      %v2313 = vmax.f32 %v2185, %v2187
      %v2314 = vmax.f32 %v2186, %v2188
      %v2315 = vmax.f32 %v2187, %v2189
      %v2316 = vmax.f32 %v2188, %v2190
      %v2317 = vmax.f32 %v2189, %v2191
      %v2318 = vmax.f32 %v2190, %v2192
      %v2319 = vmax.f32 %v2191, %v2193
      %v2320 = vmax.f32 %v2192, %v2194
      %v2321 = vmax.f32 %v2193, %v2195
      %v2322 = vmax.f32 %v2194, %v2196
      %v2323 = vmax.f32 %v2195, %v2197
      %v2324 = vmax.f32 %v2196, %v2198
      %v2325 = vmax.f32 %v2197, %v2199
      %v2326 = vmax.f32 %v2198, %v2200
      %v2327 = vmax.f32 %v2199, %v2201
      %v2328 = vmax.f32 %v2200, %v2202
      %v2329 = vmax.f32 %v2201, %v2203
      %v2330 = vmax.f32 %v2202, %v2204
      %v2331 = vmax.f32 %v2203, %v2205
      %v2332 = vmax.f32 %v2204, %v2206
      %v2333 = vmax.f32 %v2205, %v2207
      %v2334 = vmax.f32 %v2206, %v2208
      %v2335 = vmax.f32 %v2207, %v2209
      %v2336 = vmax.f32 %v2208, %v2210
      %v2337 = vmax.f32 %v2209, %v2211
      %v2338 = vmax.f32 %v2210, %v2212
      %v2339 = vmax.f32 %v2211, %v2213
      %v2340 = vmax.f32 %v2212, %v2214
      %v2341 = vmax.f32 %v2213, %v2215
      %v2342 = vmax.f32 %v2214, %v2216
      %v2343 = vmax.f32 %v2215, %v2217
      %v2344 = vmax.f32 %v2216, %v2218
      %v2345 = vmax.f32 %v2217, %v2219
      %v2346 = vmax.f32 %v2218, %v2220
      %v2347 = vmax.f32 %v2219, %v2221
      %v2348 = vmax.f32 %v2220, %v2222
      %v2349 = vmax.f32 %v2221, %v2223
      %v2350 = vmax.f32 %v2222, %v2224
      %v2351 = vmax.f32 %v2223, %v2225
      %v2352 = vmax.f32 %v2224, %v2226
      %v2353 = vmax.f32 %v2225, %v2227
      %v2354 = vmax.f32 %v2226, %v2228
      %v2355 = vmax.f32 %v2227, %v2229
      %v2356 = vmax.f32 %v2228, %v2230
      %v2357 = vmax.f32 %v2229, %v2231
      %v2358 = vmax.f32 %v2230, %v2232
      %v2359 = vmax.f32 %v2231, %v2233
      %v2360 = vmax.f32 %v2232, %v2234
      %v2361 = vmax.f32 %v2233, %v2235
      %v2362 = vmax.f32 %v2234, %v2236
      %v2363 = vmax.f32 %v2235, %v2237
      %v2364 = vmax.f32 %v2236, %v2238
      %v2365 = vmax.f32 %v2237, %v2239
      %v2366 = vmax.f32 %v2238, %v2240
      %v2367 = vmax.f32 %v2239, %v2241
      %v2368 = vmax.f32 %v2240, %v2242
      %v2369 = vmax.f32 %v2241, %v2243
      %v2370 = vmax.f32 %v2242, %v2244
      %v2371 = vmax.f32 %v2243, %v2245
      %v2372 = vmax.f32 %v2244, %v2246
      %v2373 = vmax.f32 %v2245, %v2247
      %v2374 = vmax.f32 %v2246, %v2248
      %v2375 = vmax.f32 %v2247, %v2249
      %v2376 = vmax.f32 %v2248, %v2250
      %v2377 = vmax.f32 %v2249, %v2123
      %v2378 = vmax.f32 %v2250, %v2124
      %v2379 = vpack.c.bf16 %v2252, %v2251
      %v2380 = vpack.c.bf16 %v2254, %v2253
      %v2381 = vpack.c.bf16 %v2256, %v2255
      %v2382 = vpack.c.bf16 %v2258, %v2257
      %v2383 = vpack.c.bf16 %v2260, %v2259
      %v2384 = vpack.c.bf16 %v2262, %v2261
      %v2385 = vpack.c.bf16 %v2264, %v2263
      %v2386 = vpack.c.bf16 %v2266, %v2265
      %v2387 = vpack.c.bf16 %v2268, %v2267
      %v2388 = vpack.c.bf16 %v2270, %v2269
      %v2389 = vpack.c.bf16 %v2272, %v2271
      %v2390 = vpack.c.bf16 %v2274, %v2273
      %v2391 = vpack.c.bf16 %v2276, %v2275
      %v2392 = vpack.c.bf16 %v2278, %v2277
      %v2393 = vpack.c.bf16 %v2280, %v2279
      %v2394 = vpack.c.bf16 %v2282, %v2281
      %v2395 = vpack.c.bf16 %v2284, %v2283
      %v2396 = vpack.c.bf16 %v2286, %v2285
      %v2397 = vpack.c.bf16 %v2288, %v2287
      %v2398 = vpack.c.bf16 %v2290, %v2289
      %v2399 = vpack.c.bf16 %v2292, %v2291
      %v2400 = vpack.c.bf16 %v2294, %v2293
      %v2401 = vpack.c.bf16 %v2296, %v2295
      %v2402 = vpack.c.bf16 %v2298, %v2297
      %v2403 = vpack.c.bf16 %v2300, %v2299
      %v2404 = vpack.c.bf16 %v2302, %v2301
      %v2405 = vpack.c.bf16 %v2304, %v2303
      %v2406 = vpack.c.bf16 %v2306, %v2305
      %v2407 = vpack.c.bf16 %v2308, %v2307
      %v2408 = vpack.c.bf16 %v2310, %v2309
      %v2409 = vpack.c.bf16 %v2312, %v2311
      %v2410 = vpack.c.bf16 %v2314, %v2313
      %v2411 = vpack.c.bf16 %v2316, %v2315
      %v2412 = vpack.c.bf16 %v2318, %v2317
      %v2413 = vpack.c.bf16 %v2320, %v2319
      %v2414 = vpack.c.bf16 %v2322, %v2321
      %v2415 = vpack.c.bf16 %v2324, %v2323
      %v2416 = vpack.c.bf16 %v2326, %v2325
      %v2417 = vpack.c.bf16 %v2328, %v2327
      %v2418 = vpack.c.bf16 %v2330, %v2329
      %v2419 = vpack.c.bf16 %v2332, %v2331
      %v2420 = vpack.c.bf16 %v2334, %v2333
      %v2421 = vpack.c.bf16 %v2336, %v2335
      %v2422 = vpack.c.bf16 %v2338, %v2337
      %v2423 = vpack.c.bf16 %v2340, %v2339
      %v2424 = vpack.c.bf16 %v2342, %v2341
      %v2425 = vpack.c.bf16 %v2344, %v2343
      %v2426 = vpack.c.bf16 %v2346, %v2345
      %v2427 = vpack.c.bf16 %v2348, %v2347
      %v2428 = vpack.c.bf16 %v2350, %v2349
      %v2429 = vpack.c.bf16 %v2352, %v2351
      %v2430 = vpack.c.bf16 %v2354, %v2353
      %v2431 = vpack.c.bf16 %v2356, %v2355
      %v2432 = vpack.c.bf16 %v2358, %v2357
      %v2433 = vpack.c.bf16 %v2360, %v2359
      %v2434 = vpack.c.bf16 %v2362, %v2361
      %v2435 = vpack.c.bf16 %v2364, %v2363
      %v2436 = vpack.c.bf16 %v2366, %v2365
      %v2437 = vpack.c.bf16 %v2368, %v2367
      %v2438 = vpack.c.bf16 %v2370, %v2369
      %v2439 = vpack.c.bf16 %v2372, %v2371
      %v2440 = vpack.c.bf16 %v2374, %v2373
      %v2441 = vpack.c.bf16 %v2376, %v2375
      %v2442 = vpack.c.bf16 %v2378, %v2377
      %v2443 = vld [vmem:[%s3] sm:$0xff]
      %v2444 = vld [vmem:[%s3 + $0x8] sm:$0xff]
      %v2445 = vld [vmem:[%s3 + $0x10] sm:$0xff]
      %v2446 = vld [vmem:[%s3 + $0x18] sm:$0xff]
      %v2447 = vld [vmem:[%s3 + $0x20] sm:$0xff]
      %v2448 = vld [vmem:[%s3 + $0x28] sm:$0xff]
      %v2449 = vld [vmem:[%s3 + $0x30] sm:$0xff]
      %v2450 = vld [vmem:[%s3 + $0x38] sm:$0xff]
      %v2451 = vld [vmem:[%s3 + $0x40] sm:$0xff]
      %v2452 = vld [vmem:[%s3 + $0x48] sm:$0xff]
      %v2453 = vld [vmem:[%s3 + $0x50] sm:$0xff]
      %v2454 = vld [vmem:[%s3 + $0x58] sm:$0xff]
      %v2455 = vld [vmem:[%s3 + $0x60] sm:$0xff]
      %v2456 = vld [vmem:[%s3 + $0x68] sm:$0xff]
      %v2457 = vld [vmem:[%s3 + $0x70] sm:$0xff]
      %v2458 = vld [vmem:[%s3 + $0x78] sm:$0xff]
      %v2459 = vld [vmem:[%s3 + $0x80] sm:$0xff]
      %v2460 = vld [vmem:[%s3 + $0x88] sm:$0xff]
      %v2461 = vld [vmem:[%s3 + $0x90] sm:$0xff]
      %v2462 = vld [vmem:[%s3 + $0x98] sm:$0xff]
      %v2463 = vld [vmem:[%s3 + $0xa0] sm:$0xff]
      %v2464 = vld [vmem:[%s3 + $0xa8] sm:$0xff]
      %v2465 = vld [vmem:[%s3 + $0xb0] sm:$0xff]
      %v2466 = vld [vmem:[%s3 + $0xb8] sm:$0xff]
      %v2467 = vld [vmem:[%s3 + $0xc0] sm:$0xff]
      %v2468 = vld [vmem:[%s3 + $0xc8] sm:$0xff]
      %v2469 = vld [vmem:[%s3 + $0xd0] sm:$0xff]
      %v2470 = vld [vmem:[%s3 + $0xd8] sm:$0xff]
      %v2471 = vld [vmem:[%s3 + $0xe0] sm:$0xff]
      %v2472 = vld [vmem:[%s3 + $0xe8] sm:$0xff]
      %v2473 = vld [vmem:[%s3 + $0xf0] sm:$0xff]
      %v2474 = vld [vmem:[%s3 + $0xf8] sm:$0xff]
      %v2483 = vunpack.c.l.b16 %v2443
      %v2484 = vunpack.c.h.b16 %v2443
      %v2485 = vunpack.c.l.b16 %v2444
      %v2486 = vunpack.c.h.b16 %v2444
      %v2487 = vunpack.c.l.b16 %v2445
      %v2488 = vunpack.c.h.b16 %v2445
      %v2489 = vunpack.c.l.b16 %v2446
      %v2490 = vunpack.c.h.b16 %v2446
      %v2491 = vunpack.c.l.b16 %v2447
      %v2492 = vunpack.c.h.b16 %v2447
      %v2493 = vunpack.c.l.b16 %v2448
      %v2494 = vunpack.c.h.b16 %v2448
      %v2495 = vunpack.c.l.b16 %v2449
      %v2496 = vunpack.c.h.b16 %v2449
      %v2497 = vunpack.c.l.b16 %v2450
      %v2498 = vunpack.c.h.b16 %v2450
      %v2499 = vpack.c.b16 %v2485, %v2483
      %v2500 = vpack.c.b16 %v2486, %v2484
      %v2501 = vpack.c.b16 %v2489, %v2487
      %v2502 = vpack.c.b16 %v2490, %v2488
      %v2503 = vpack.c.b16 %v2493, %v2491
      %v2504 = vpack.c.b16 %v2494, %v2492
      %v2505 = vpack.c.b16 %v2497, %v2495
      %v2506 = vpack.c.b16 %v2498, %v2496
      %2515 = vmatprep.subr.bf16.mxu0 0
      %2516 = vmatpush1.bf16.msra.mxu0 %v2386
      %2517 = vmatprep.subr.bf16.mxu0 0
      %2518 = vmatpush1.bf16.msra.mxu0 %v2385
      %2519 = vmatprep.subr.bf16.mxu0 0
      %2520 = vmatpush1.bf16.msra.mxu0 %v2384
      %2521 = vmatprep.subr.bf16.mxu0 0
      %2522 = vmatpush1.bf16.msra.mxu0 %v2383
      %2523 = vmatprep.subr.bf16.mxu0 0
      %2524 = vmatpush1.bf16.msra.mxu0 %v2382
      %2525 = vmatprep.subr.bf16.mxu0 0
      %2526 = vmatpush1.bf16.msra.mxu0 %v2381
      %2527 = vmatprep.subr.bf16.mxu0 0
      %2528 = vmatpush1.bf16.msra.mxu0 %v2380
      %2529 = vmatprep.subr.bf16.mxu0 0
      %2530 = vmatpush1.bf16.msra.mxu0 %v2379
      %2531 = vmatprep.subr.bf16.mxu0 0
      %2532 = vmatpush2.bf16.msra.mxu0 %v2394
      %2533 = vmatprep.subr.bf16.mxu0 0
      %2534 = vmatpush2.bf16.msra.mxu0 %v2393
      %2535 = vmatprep.subr.bf16.mxu0 0
      %2536 = vmatpush2.bf16.msra.mxu0 %v2392
      %2537 = vmatprep.subr.bf16.mxu0 0
      %2538 = vmatpush2.bf16.msra.mxu0 %v2391
      %2539 = vmatprep.subr.bf16.mxu0 0
      %2540 = vmatpush2.bf16.msra.mxu0 %v2390
      %2541 = vmatprep.subr.bf16.mxu0 0
      %2542 = vmatpush2.bf16.msra.mxu0 %v2389
      %2543 = vmatprep.subr.bf16.mxu0 0
      %2544 = vmatpush2.bf16.msra.mxu0 %v2388
      %2545 = vmatprep.subr.bf16.mxu0 0
      %2546 = vmatpush2.bf16.msra.mxu0 %v2387
      %2547 = vmatprep.mubr.bf16.mxu0 %v2500
      %2548 = vmatmul.mubr.bf16.gmra.mxu0 %v2499
      %v2549 = vpop.f32.mrf.mxu0
      %v2550 = vadd.f32 0.0, %v2549
      %v2551 = vpop.f32.mrf.mxu0
      %v2552 = vpop.f32.mrf.mxu0
      %v2553 = vadd.f32 0.0, %v2552
      %v2554 = vpop.f32.mrf.mxu0
      %2555 = vmatprep.mubr.bf16.mxu0 %v2502
      %2556 = vmatmul.mubr.bf16.gmra.mxu0 %v2501
      %v2557 = vpop.f32.mrf.mxu0
      %v2558 = vadd.f32 0.0, %v2557
      %v2559 = vpop.f32.mrf.mxu0
      %v2560 = vpop.f32.mrf.mxu0
      %v2561 = vadd.f32 0.0, %v2560
      %v2562 = vpop.f32.mrf.mxu0
      %2563 = vmatprep.mubr.bf16.mxu0 %v2504
      %2564 = vmatmul.mubr.bf16.gmra.mxu0 %v2503
      %v2565 = vpop.f32.mrf.mxu0
      %v2566 = vadd.f32 0.0, %v2565
      %v2567 = vpop.f32.mrf.mxu0
      %v2568 = vpop.f32.mrf.mxu0
      %v2569 = vadd.f32 0.0, %v2568
      %v2570 = vpop.f32.mrf.mxu0
      %2571 = vmatprep.mubr.bf16.mxu0 %v2506
      %2572 = vmatmul.mubr.bf16.gmra.mxu0 %v2505
      %v2573 = vpop.f32.mrf.mxu0
      %v2574 = vadd.f32 0.0, %v2573
      %v2575 = vpop.f32.mrf.mxu0
      %v2576 = vpop.f32.mrf.mxu0
      %v2577 = vadd.f32 0.0, %v2576
      %v2578 = vpop.f32.mrf.mxu0
      %2579 = vdwg.mxu0
      %v2588 = vunpack.c.l.b16 %v2451
      %v2589 = vunpack.c.h.b16 %v2451
      %v2590 = vunpack.c.l.b16 %v2452
      %v2591 = vunpack.c.h.b16 %v2452
      %v2592 = vunpack.c.l.b16 %v2453
      %v2593 = vunpack.c.h.b16 %v2453
      %v2594 = vunpack.c.l.b16 %v2454
      %v2595 = vunpack.c.h.b16 %v2454
      %v2596 = vunpack.c.l.b16 %v2455
      %v2597 = vunpack.c.h.b16 %v2455
      %v2598 = vunpack.c.l.b16 %v2456
      %v2599 = vunpack.c.h.b16 %v2456
      %v2600 = vunpack.c.l.b16 %v2457
      %v2601 = vunpack.c.h.b16 %v2457
      %v2602 = vunpack.c.l.b16 %v2458
      %v2603 = vunpack.c.h.b16 %v2458
      %v2604 = vpack.c.b16 %v2590, %v2588
      %v2605 = vpack.c.b16 %v2591, %v2589
      %v2606 = vpack.c.b16 %v2594, %v2592
      %v2607 = vpack.c.b16 %v2595, %v2593
      %v2608 = vpack.c.b16 %v2598, %v2596
      %v2609 = vpack.c.b16 %v2599, %v2597
      %v2610 = vpack.c.b16 %v2602, %v2600
      %v2611 = vpack.c.b16 %v2603, %v2601
      %2620 = vmatprep.subr.bf16.mxu0 0
      %2621 = vmatpush1.bf16.msra.mxu0 %v2402
      %2622 = vmatprep.subr.bf16.mxu0 0
      %2623 = vmatpush1.bf16.msra.mxu0 %v2401
      %2624 = vmatprep.subr.bf16.mxu0 0
      %2625 = vmatpush1.bf16.msra.mxu0 %v2400
      %2626 = vmatprep.subr.bf16.mxu0 0
      %2627 = vmatpush1.bf16.msra.mxu0 %v2399
      %2628 = vmatprep.subr.bf16.mxu0 0
      %2629 = vmatpush1.bf16.msra.mxu0 %v2398
      %2630 = vmatprep.subr.bf16.mxu0 0
      %2631 = vmatpush1.bf16.msra.mxu0 %v2397
      %2632 = vmatprep.subr.bf16.mxu0 0
      %2633 = vmatpush1.bf16.msra.mxu0 %v2396
      %2634 = vmatprep.subr.bf16.mxu0 0
      %2635 = vmatpush1.bf16.msra.mxu0 %v2395
      %2636 = vmatprep.subr.bf16.mxu0 0
      %2637 = vmatpush2.bf16.msra.mxu0 %v2410
      %2638 = vmatprep.subr.bf16.mxu0 0
      %2639 = vmatpush2.bf16.msra.mxu0 %v2409
      %2640 = vmatprep.subr.bf16.mxu0 0
      %2641 = vmatpush2.bf16.msra.mxu0 %v2408
      %2642 = vmatprep.subr.bf16.mxu0 0
      %2643 = vmatpush2.bf16.msra.mxu0 %v2407
      %2644 = vmatprep.subr.bf16.mxu0 0
      %2645 = vmatpush2.bf16.msra.mxu0 %v2406
      %2646 = vmatprep.subr.bf16.mxu0 0
      %2647 = vmatpush2.bf16.msra.mxu0 %v2405
      %2648 = vmatprep.subr.bf16.mxu0 0
      %2649 = vmatpush2.bf16.msra.mxu0 %v2404
      %2650 = vmatprep.subr.bf16.mxu0 0
      %2651 = vmatpush2.bf16.msra.mxu0 %v2403
      %2652 = vmatprep.mubr.bf16.mxu0 %v2605
      %2653 = vmatmul.mubr.bf16.gmra.mxu0 %v2604
      %v2654 = vpop.f32.mrf.mxu0
      %v2655 = vadd.f32 0.0, %v2654
      %v2656 = vpop.f32.mrf.mxu0
      %v2657 = vpop.f32.mrf.mxu0
      %v2658 = vadd.f32 0.0, %v2657
      %v2659 = vpop.f32.mrf.mxu0
      %2660 = vmatprep.mubr.bf16.mxu0 %v2607
      %2661 = vmatmul.mubr.bf16.gmra.mxu0 %v2606
      %v2662 = vpop.f32.mrf.mxu0
      %v2663 = vadd.f32 0.0, %v2662
      %v2664 = vpop.f32.mrf.mxu0
      %v2665 = vpop.f32.mrf.mxu0
      %v2666 = vadd.f32 0.0, %v2665
      %v2667 = vpop.f32.mrf.mxu0
      %2668 = vmatprep.mubr.bf16.mxu0 %v2609
      %2669 = vmatmul.mubr.bf16.gmra.mxu0 %v2608
      %v2670 = vpop.f32.mrf.mxu0
      %v2671 = vadd.f32 0.0, %v2670
      %v2672 = vpop.f32.mrf.mxu0
      %v2673 = vpop.f32.mrf.mxu0
      %v2674 = vadd.f32 0.0, %v2673
      %v2675 = vpop.f32.mrf.mxu0
      %2676 = vmatprep.mubr.bf16.mxu0 %v2611
      %2677 = vmatmul.mubr.bf16.gmra.mxu0 %v2610
      %v2678 = vpop.f32.mrf.mxu0
      %v2679 = vadd.f32 0.0, %v2678
      %v2680 = vpop.f32.mrf.mxu0
      %v2681 = vpop.f32.mrf.mxu0
      %v2682 = vadd.f32 0.0, %v2681
      %v2683 = vpop.f32.mrf.mxu0
      %2684 = vdwg.mxu0
      %v2693 = vunpack.c.l.b16 %v2459
      %v2694 = vunpack.c.h.b16 %v2459
      %v2695 = vunpack.c.l.b16 %v2460
      %v2696 = vunpack.c.h.b16 %v2460
      %v2697 = vunpack.c.l.b16 %v2461
      %v2698 = vunpack.c.h.b16 %v2461
      %v2699 = vunpack.c.l.b16 %v2462
      %v2700 = vunpack.c.h.b16 %v2462
      %v2701 = vunpack.c.l.b16 %v2463
      %v2702 = vunpack.c.h.b16 %v2463
      %v2703 = vunpack.c.l.b16 %v2464
      %v2704 = vunpack.c.h.b16 %v2464
      %v2705 = vunpack.c.l.b16 %v2465
      %v2706 = vunpack.c.h.b16 %v2465
      %v2707 = vunpack.c.l.b16 %v2466
      %v2708 = vunpack.c.h.b16 %v2466
      %v2709 = vpack.c.b16 %v2695, %v2693
      %v2710 = vpack.c.b16 %v2696, %v2694
      %v2711 = vpack.c.b16 %v2699, %v2697
      %v2712 = vpack.c.b16 %v2700, %v2698
      %v2713 = vpack.c.b16 %v2703, %v2701
      %v2714 = vpack.c.b16 %v2704, %v2702
      %v2715 = vpack.c.b16 %v2707, %v2705
      %v2716 = vpack.c.b16 %v2708, %v2706
      %2725 = vmatprep.subr.bf16.mxu0 0
      %2726 = vmatpush1.bf16.msra.mxu0 %v2418
      %2727 = vmatprep.subr.bf16.mxu0 0
      %2728 = vmatpush1.bf16.msra.mxu0 %v2417
      %2729 = vmatprep.subr.bf16.mxu0 0
      %2730 = vmatpush1.bf16.msra.mxu0 %v2416
      %2731 = vmatprep.subr.bf16.mxu0 0
      %2732 = vmatpush1.bf16.msra.mxu0 %v2415
      %2733 = vmatprep.subr.bf16.mxu0 0
      %2734 = vmatpush1.bf16.msra.mxu0 %v2414
      %2735 = vmatprep.subr.bf16.mxu0 0
      %2736 = vmatpush1.bf16.msra.mxu0 %v2413
      %2737 = vmatprep.subr.bf16.mxu0 0
      %2738 = vmatpush1.bf16.msra.mxu0 %v2412
      %2739 = vmatprep.subr.bf16.mxu0 0
      %2740 = vmatpush1.bf16.msra.mxu0 %v2411
      %2741 = vmatprep.subr.bf16.mxu0 0
      %2742 = vmatpush2.bf16.msra.mxu0 %v2426
      %2743 = vmatprep.subr.bf16.mxu0 0
      %2744 = vmatpush2.bf16.msra.mxu0 %v2425
      %2745 = vmatprep.subr.bf16.mxu0 0
      %2746 = vmatpush2.bf16.msra.mxu0 %v2424
      %2747 = vmatprep.subr.bf16.mxu0 0
      %2748 = vmatpush2.bf16.msra.mxu0 %v2423
      %2749 = vmatprep.subr.bf16.mxu0 0
      %2750 = vmatpush2.bf16.msra.mxu0 %v2422
      %2751 = vmatprep.subr.bf16.mxu0 0
      %2752 = vmatpush2.bf16.msra.mxu0 %v2421
      %2753 = vmatprep.subr.bf16.mxu0 0
      %2754 = vmatpush2.bf16.msra.mxu0 %v2420
      %2755 = vmatprep.subr.bf16.mxu0 0
      %2756 = vmatpush2.bf16.msra.mxu0 %v2419
      %2757 = vmatprep.mubr.bf16.mxu0 %v2710
      %2758 = vmatmul.mubr.bf16.gmra.mxu0 %v2709
      %v2759 = vpop.f32.mrf.mxu0
      %v2760 = vadd.f32 0.0, %v2759
      %v2761 = vpop.f32.mrf.mxu0
      %v2762 = vpop.f32.mrf.mxu0
      %v2763 = vadd.f32 0.0, %v2762
      %v2764 = vpop.f32.mrf.mxu0
      %2765 = vmatprep.mubr.bf16.mxu0 %v2712
      %2766 = vmatmul.mubr.bf16.gmra.mxu0 %v2711
      %v2767 = vpop.f32.mrf.mxu0
      %v2768 = vadd.f32 0.0, %v2767
      %v2769 = vpop.f32.mrf.mxu0
      %v2770 = vpop.f32.mrf.mxu0
      %v2771 = vadd.f32 0.0, %v2770
      %v2772 = vpop.f32.mrf.mxu0
      %2773 = vmatprep.mubr.bf16.mxu0 %v2714
      %2774 = vmatmul.mubr.bf16.gmra.mxu0 %v2713
      %v2775 = vpop.f32.mrf.mxu0
      %v2776 = vadd.f32 0.0, %v2775
      %v2777 = vpop.f32.mrf.mxu0
      %v2778 = vpop.f32.mrf.mxu0
      %v2779 = vadd.f32 0.0, %v2778
      %v2780 = vpop.f32.mrf.mxu0
      %2781 = vmatprep.mubr.bf16.mxu0 %v2716
      %2782 = vmatmul.mubr.bf16.gmra.mxu0 %v2715
      %v2783 = vpop.f32.mrf.mxu0
      %v2784 = vadd.f32 0.0, %v2783
      %v2785 = vpop.f32.mrf.mxu0
      %v2786 = vpop.f32.mrf.mxu0
      %v2787 = vadd.f32 0.0, %v2786
      %v2788 = vpop.f32.mrf.mxu0
      %2789 = vdwg.mxu0
      %v2798 = vunpack.c.l.b16 %v2467
      %v2799 = vunpack.c.h.b16 %v2467
      %v2800 = vunpack.c.l.b16 %v2468
      %v2801 = vunpack.c.h.b16 %v2468
      %v2802 = vunpack.c.l.b16 %v2469
      %v2803 = vunpack.c.h.b16 %v2469
      %v2804 = vunpack.c.l.b16 %v2470
      %v2805 = vunpack.c.h.b16 %v2470
      %v2806 = vunpack.c.l.b16 %v2471
      %v2807 = vunpack.c.h.b16 %v2471
      %v2808 = vunpack.c.l.b16 %v2472
      %v2809 = vunpack.c.h.b16 %v2472
      %v2810 = vunpack.c.l.b16 %v2473
      %v2811 = vunpack.c.h.b16 %v2473
      %v2812 = vunpack.c.l.b16 %v2474
      %v2813 = vunpack.c.h.b16 %v2474
      %v2814 = vpack.c.b16 %v2800, %v2798
      %v2815 = vpack.c.b16 %v2801, %v2799
      %v2816 = vpack.c.b16 %v2804, %v2802
      %v2817 = vpack.c.b16 %v2805, %v2803
      %v2818 = vpack.c.b16 %v2808, %v2806
      %v2819 = vpack.c.b16 %v2809, %v2807
      %v2820 = vpack.c.b16 %v2812, %v2810
      %v2821 = vpack.c.b16 %v2813, %v2811
      %2830 = vmatprep.subr.bf16.mxu0 0
      %2831 = vmatpush1.bf16.msra.mxu0 %v2434
      %2832 = vmatprep.subr.bf16.mxu0 0
      %2833 = vmatpush1.bf16.msra.mxu0 %v2433
      %2834 = vmatprep.subr.bf16.mxu0 0
      %2835 = vmatpush1.bf16.msra.mxu0 %v2432
      %2836 = vmatprep.subr.bf16.mxu0 0
      %2837 = vmatpush1.bf16.msra.mxu0 %v2431
      %2838 = vmatprep.subr.bf16.mxu0 0
      %2839 = vmatpush1.bf16.msra.mxu0 %v2430
      %2840 = vmatprep.subr.bf16.mxu0 0
      %2841 = vmatpush1.bf16.msra.mxu0 %v2429
      %2842 = vmatprep.subr.bf16.mxu0 0
      %2843 = vmatpush1.bf16.msra.mxu0 %v2428
      %2844 = vmatprep.subr.bf16.mxu0 0
      %2845 = vmatpush1.bf16.msra.mxu0 %v2427
      %2846 = vmatprep.subr.bf16.mxu0 0
      %2847 = vmatpush2.bf16.msra.mxu0 %v2442
      %2848 = vmatprep.subr.bf16.mxu0 0
      %2849 = vmatpush2.bf16.msra.mxu0 %v2441
      %2850 = vmatprep.subr.bf16.mxu0 0
      %2851 = vmatpush2.bf16.msra.mxu0 %v2440
      %2852 = vmatprep.subr.bf16.mxu0 0
      %2853 = vmatpush2.bf16.msra.mxu0 %v2439
      %2854 = vmatprep.subr.bf16.mxu0 0
      %2855 = vmatpush2.bf16.msra.mxu0 %v2438
      %2856 = vmatprep.subr.bf16.mxu0 0
      %2857 = vmatpush2.bf16.msra.mxu0 %v2437
      %2858 = vmatprep.subr.bf16.mxu0 0
      %2859 = vmatpush2.bf16.msra.mxu0 %v2436
      %2860 = vmatprep.subr.bf16.mxu0 0
      %2861 = vmatpush2.bf16.msra.mxu0 %v2435
      %2862 = vmatprep.mubr.bf16.mxu0 %v2815
      %2863 = vmatmul.mubr.bf16.gmra.mxu0 %v2814
      %v2864 = vpop.f32.mrf.mxu0
      %v2865 = vadd.f32 0.0, %v2864
      %v2866 = vpop.f32.mrf.mxu0
      %v2867 = vpop.f32.mrf.mxu0
      %v2868 = vadd.f32 0.0, %v2867
      %v2869 = vpop.f32.mrf.mxu0
      %2870 = vmatprep.mubr.bf16.mxu0 %v2817
      %2871 = vmatmul.mubr.bf16.gmra.mxu0 %v2816
      %v2872 = vpop.f32.mrf.mxu0
      %v2873 = vadd.f32 0.0, %v2872
      %v2874 = vpop.f32.mrf.mxu0
      %v2875 = vpop.f32.mrf.mxu0
      %v2876 = vadd.f32 0.0, %v2875
      %v2877 = vpop.f32.mrf.mxu0
      %2878 = vmatprep.mubr.bf16.mxu0 %v2819
      %2879 = vmatmul.mubr.bf16.gmra.mxu0 %v2818
      %v2880 = vpop.f32.mrf.mxu0
      %v2881 = vadd.f32 0.0, %v2880
      %v2882 = vpop.f32.mrf.mxu0
      %v2883 = vpop.f32.mrf.mxu0
      %v2884 = vadd.f32 0.0, %v2883
      %v2885 = vpop.f32.mrf.mxu0
      %2886 = vmatprep.mubr.bf16.mxu0 %v2821
      %2887 = vmatmul.mubr.bf16.gmra.mxu0 %v2820
      %v2888 = vpop.f32.mrf.mxu0
      %v2889 = vadd.f32 0.0, %v2888
      %v2890 = vpop.f32.mrf.mxu0
      %v2891 = vpop.f32.mrf.mxu0
      %v2892 = vadd.f32 0.0, %v2891
      %v2893 = vpop.f32.mrf.mxu0
      %2894 = vdwg.mxu0
      %v2895 = vadd.s32 %v1993, 8
      %v2896 = vadd.s32 %v1993, 16
      %v2897 = vadd.s32 %v1993, 24
      %v2898 = vadd.s32 %v1993, 32
      %v2899 = vadd.s32 %v1993, 40
      %v2900 = vadd.s32 %v1993, 48
      %v2901 = vadd.s32 %v1993, 56
      %v2902 = vadd.s32 %v1993, 64
      %v2903 = vadd.s32 %v1993, 72
      %v2904 = vadd.s32 %v1993, 80
      %v2905 = vadd.s32 %v1993, 88
      %v2906 = vadd.s32 %v1993, 96
      %v2907 = vadd.s32 %v1993, 104
      %v2908 = vadd.s32 %v1993, 112
      %v2909 = vadd.s32 %v1993, 120
      %v2910 = vadd.s32 %v1993, 128
      %v2911 = vadd.s32 %v1993, 136
      %v2912 = vadd.s32 %v1993, 144
      %v2913 = vadd.s32 %v1993, 152
      %v2914 = vadd.s32 %v1993, 160
      %v2915 = vadd.s32 %v1993, 168
      %v2916 = vadd.s32 %v1993, 176
      %v2917 = vadd.s32 %v1993, 184
      %v2918 = vadd.s32 %v1993, 192
      %v2919 = vadd.s32 %v1993, 200
      %v2920 = vadd.s32 %v1993, 208
      %v2921 = vadd.s32 %v1993, 216
      %v2922 = vadd.s32 %v1993, 224
      %v2923 = vadd.s32 %v1993, 232
      %v2924 = vadd.s32 %v1993, 240
      %v2925 = vadd.s32 %v1993, 248
      %v2926 = vand.u32 %v1993, 7
      %v2927 = vand.u32 %v2895, 7
      %v2928 = vand.u32 %v2896, 7
      %v2929 = vand.u32 %v2897, 7
      %v2930 = vand.u32 %v2898, 7
      %v2931 = vand.u32 %v2899, 7
      %v2932 = vand.u32 %v2900, 7
      %v2933 = vand.u32 %v2901, 7
      %v2934 = vand.u32 %v2902, 7
      %v2935 = vand.u32 %v2903, 7
      %v2936 = vand.u32 %v2904, 7
      %v2937 = vand.u32 %v2905, 7
      %v2938 = vand.u32 %v2906, 7
      %v2939 = vand.u32 %v2907, 7
      %v2940 = vand.u32 %v2908, 7
      %v2941 = vand.u32 %v2909, 7
      %v2942 = vand.u32 %v2910, 7
      %v2943 = vand.u32 %v2911, 7
      %v2944 = vand.u32 %v2912, 7
      %v2945 = vand.u32 %v2913, 7
      %v2946 = vand.u32 %v2914, 7
      %v2947 = vand.u32 %v2915, 7
      %v2948 = vand.u32 %v2916, 7
      %v2949 = vand.u32 %v2917, 7
      %v2950 = vand.u32 %v2918, 7
      %v2951 = vand.u32 %v2919, 7
      %v2952 = vand.u32 %v2920, 7
      %v2953 = vand.u32 %v2921, 7
      %v2954 = vand.u32 %v2922, 7
      %v2955 = vand.u32 %v2923, 7
      %v2956 = vand.u32 %v2924, 7
      %v2957 = vand.u32 %v2925, 7
      %v2958 = vshra.s32 %v1993, 3
      %v2959 = vshra.s32 %v2895, 3
      %v2960 = vshra.s32 %v2896, 3
      %v2961 = vshra.s32 %v2897, 3
      %v2962 = vshra.s32 %v2898, 3
      %v2963 = vshra.s32 %v2899, 3
      %v2964 = vshra.s32 %v2900, 3
      %v2965 = vshra.s32 %v2901, 3
      %v2966 = vshra.s32 %v2902, 3
      %v2967 = vshra.s32 %v2903, 3
      %v2968 = vshra.s32 %v2904, 3
      %v2969 = vshra.s32 %v2905, 3
      %v2970 = vshra.s32 %v2906, 3
      %v2971 = vshra.s32 %v2907, 3
      %v2972 = vshra.s32 %v2908, 3
      %v2973 = vshra.s32 %v2909, 3
      %v2974 = vshra.s32 %v2910, 3
      %v2975 = vshra.s32 %v2911, 3
      %v2976 = vshra.s32 %v2912, 3
      %v2977 = vshra.s32 %v2913, 3
      %v2978 = vshra.s32 %v2914, 3
      %v2979 = vshra.s32 %v2915, 3
      %v2980 = vshra.s32 %v2916, 3
      %v2981 = vshra.s32 %v2917, 3
      %v2982 = vshra.s32 %v2918, 3
      %v2983 = vshra.s32 %v2919, 3
      %v2984 = vshra.s32 %v2920, 3
      %v2985 = vshra.s32 %v2921, 3
      %v2986 = vshra.s32 %v2922, 3
      %v2987 = vshra.s32 %v2923, 3
      %v2988 = vshra.s32 %v2924, 3
      %v2989 = vshra.s32 %v2925, 3
      %v2990 = vand.u32 %v2958, 7
      %v2991 = vand.u32 %v2959, 7
      %v2992 = vand.u32 %v2960, 7
      %v2993 = vand.u32 %v2961, 7
      %v2994 = vand.u32 %v2962, 7
      %v2995 = vand.u32 %v2963, 7
      %v2996 = vand.u32 %v2964, 7
      %v2997 = vand.u32 %v2965, 7
      %v2998 = vand.u32 %v2966, 7
      %v2999 = vand.u32 %v2967, 7
      %v3000 = vand.u32 %v2968, 7
      %v3001 = vand.u32 %v2969, 7
      %v3002 = vand.u32 %v2970, 7
      %v3003 = vand.u32 %v2971, 7
      %v3004 = vand.u32 %v2972, 7
      %v3005 = vand.u32 %v2973, 7
      %v3006 = vand.u32 %v2974, 7
      %v3007 = vand.u32 %v2975, 7
      %v3008 = vand.u32 %v2976, 7
      %v3009 = vand.u32 %v2977, 7
      %v3010 = vand.u32 %v2978, 7
      %v3011 = vand.u32 %v2979, 7
      %v3012 = vand.u32 %v2980, 7
      %v3013 = vand.u32 %v2981, 7
      %v3014 = vand.u32 %v2982, 7
      %v3015 = vand.u32 %v2983, 7
      %v3016 = vand.u32 %v2984, 7
      %v3017 = vand.u32 %v2985, 7
      %v3018 = vand.u32 %v2986, 7
      %v3019 = vand.u32 %v2987, 7
      %v3020 = vand.u32 %v2988, 7
      %v3021 = vand.u32 %v2989, 7
      %v3022 = vrot.slane %v2550, 7
      %v3023 = vrot.slane %v2553, 7
      %v3024 = vrot.slane %v2558, 7
      %v3025 = vrot.slane %v2561, 7
      %v3026 = vrot.slane %v2566, 7
      %v3027 = vrot.slane %v2569, 7
      %v3028 = vrot.slane %v2574, 7
      %v3029 = vrot.slane %v2577, 7
      %v3030 = vrot.slane %v2655, 7
      %v3031 = vrot.slane %v2658, 7
      %v3032 = vrot.slane %v2663, 7
      %v3033 = vrot.slane %v2666, 7
      %v3034 = vrot.slane %v2671, 7
      %v3035 = vrot.slane %v2674, 7
      %v3036 = vrot.slane %v2679, 7
      %v3037 = vrot.slane %v2682, 7
      %v3038 = vrot.slane %v2760, 7
      %v3039 = vrot.slane %v2763, 7
      %v3040 = vrot.slane %v2768, 7
      %v3041 = vrot.slane %v2771, 7
      %v3042 = vrot.slane %v2776, 7
      %v3043 = vrot.slane %v2779, 7
      %v3044 = vrot.slane %v2784, 7
      %v3045 = vrot.slane %v2787, 7
      %v3046 = vrot.slane %v2865, 7
      %v3047 = vrot.slane %v2868, 7
      %v3048 = vrot.slane %v2873, 7
      %v3049 = vrot.slane %v2876, 7
      %v3050 = vrot.slane %v2881, 7
      %v3051 = vrot.slane %v2884, 7
      %v3052 = vrot.slane %v2889, 7
      %v3053 = vrot.slane %v2892, 7
      %vm3054 = vcmp.lt.s32.totalorder %v1993, 1
      %v3055 = vsel %vm3054, %v3052, %v3053
      %v3056 = vsel %vm3054, %v3051, %v3052
      %v3057 = vsel %vm3054, %v3050, %v3051
      %v3058 = vsel %vm3054, %v3049, %v3050
      %v3059 = vsel %vm3054, %v3048, %v3049
      %v3060 = vsel %vm3054, %v3047, %v3048
      %v3061 = vsel %vm3054, %v3046, %v3047
      %v3062 = vsel %vm3054, %v3045, %v3046
      %v3063 = vsel %vm3054, %v3044, %v3045
      %v3064 = vsel %vm3054, %v3043, %v3044
      %v3065 = vsel %vm3054, %v3042, %v3043
      %v3066 = vsel %vm3054, %v3041, %v3042
      %v3067 = vsel %vm3054, %v3040, %v3041
      %v3068 = vsel %vm3054, %v3039, %v3040
      %v3069 = vsel %vm3054, %v3038, %v3039
      %v3070 = vsel %vm3054, %v3037, %v3038
      %v3071 = vsel %vm3054, %v3036, %v3037
      %v3072 = vsel %vm3054, %v3035, %v3036
      %v3073 = vsel %vm3054, %v3034, %v3035
      %v3074 = vsel %vm3054, %v3033, %v3034
      %v3075 = vsel %vm3054, %v3032, %v3033
      %v3076 = vsel %vm3054, %v3031, %v3032
      %v3077 = vsel %vm3054, %v3030, %v3031
      %v3078 = vsel %vm3054, %v3029, %v3030
      %v3079 = vsel %vm3054, %v3028, %v3029
      %v3080 = vsel %vm3054, %v3027, %v3028
      %v3081 = vsel %vm3054, %v3026, %v3027
      %v3082 = vsel %vm3054, %v3025, %v3026
      %v3083 = vsel %vm3054, %v3024, %v3025
      %v3084 = vsel %vm3054, %v3023, %v3024
      %v3085 = vsel %vm3054, %v3022, %v3023
      %v3086 = vsel %vm3054, %v3053, %v3022
      %vm3087 = vcmp.ge.s32.totalorder %v2990, 1
      %vm3088 = vcmp.ge.s32.totalorder %v2991, 1
      %vm3089 = vcmp.ge.s32.totalorder %v2992, 1
      %vm3090 = vcmp.ge.s32.totalorder %v2993, 1
      %vm3091 = vcmp.ge.s32.totalorder %v2994, 1
      %vm3092 = vcmp.ge.s32.totalorder %v2995, 1
      %vm3093 = vcmp.ge.s32.totalorder %v2996, 1
      %vm3094 = vcmp.ge.s32.totalorder %v2997, 1
      %vm3095 = vcmp.ge.s32.totalorder %v2998, 1
      %vm3096 = vcmp.ge.s32.totalorder %v2999, 1
      %vm3097 = vcmp.ge.s32.totalorder %v3000, 1
      %vm3098 = vcmp.ge.s32.totalorder %v3001, 1
      %vm3099 = vcmp.ge.s32.totalorder %v3002, 1
      %vm3100 = vcmp.ge.s32.totalorder %v3003, 1
      %vm3101 = vcmp.ge.s32.totalorder %v3004, 1
      %vm3102 = vcmp.ge.s32.totalorder %v3005, 1
      %vm3103 = vcmp.ge.s32.totalorder %v3006, 1
      %vm3104 = vcmp.ge.s32.totalorder %v3007, 1
      %vm3105 = vcmp.ge.s32.totalorder %v3008, 1
      %vm3106 = vcmp.ge.s32.totalorder %v3009, 1
      %vm3107 = vcmp.ge.s32.totalorder %v3010, 1
      %vm3108 = vcmp.ge.s32.totalorder %v3011, 1
      %vm3109 = vcmp.ge.s32.totalorder %v3012, 1
      %vm3110 = vcmp.ge.s32.totalorder %v3013, 1
      %vm3111 = vcmp.ge.s32.totalorder %v3014, 1
      %vm3112 = vcmp.ge.s32.totalorder %v3015, 1
      %vm3113 = vcmp.ge.s32.totalorder %v3016, 1
      %vm3114 = vcmp.ge.s32.totalorder %v3017, 1
      %vm3115 = vcmp.ge.s32.totalorder %v3018, 1
      %vm3116 = vcmp.ge.s32.totalorder %v3019, 1
      %vm3117 = vcmp.ge.s32.totalorder %v3020, 1
      %vm3118 = vcmp.ge.s32.totalorder %v3021, 1
      %vm3119 = vcmp.ge.s32.totalorder %v2926, 1
      %vm3120 = vcmp.ge.s32.totalorder %v2927, 1
      %vm3121 = vcmp.ge.s32.totalorder %v2928, 1
      %vm3122 = vcmp.ge.s32.totalorder %v2929, 1
      %vm3123 = vcmp.ge.s32.totalorder %v2930, 1
      %vm3124 = vcmp.ge.s32.totalorder %v2931, 1
      %vm3125 = vcmp.ge.s32.totalorder %v2932, 1
      %vm3126 = vcmp.ge.s32.totalorder %v2933, 1
      %vm3127 = vcmp.ge.s32.totalorder %v2934, 1
      %vm3128 = vcmp.ge.s32.totalorder %v2935, 1
      %vm3129 = vcmp.ge.s32.totalorder %v2936, 1
      %vm3130 = vcmp.ge.s32.totalorder %v2937, 1
      %vm3131 = vcmp.ge.s32.totalorder %v2938, 1
      %vm3132 = vcmp.ge.s32.totalorder %v2939, 1
      %vm3133 = vcmp.ge.s32.totalorder %v2940, 1
      %vm3134 = vcmp.ge.s32.totalorder %v2941, 1
      %vm3135 = vcmp.ge.s32.totalorder %v2942, 1
      %vm3136 = vcmp.ge.s32.totalorder %v2943, 1
      %vm3137 = vcmp.ge.s32.totalorder %v2944, 1
      %vm3138 = vcmp.ge.s32.totalorder %v2945, 1
      %vm3139 = vcmp.ge.s32.totalorder %v2946, 1
      %vm3140 = vcmp.ge.s32.totalorder %v2947, 1
      %vm3141 = vcmp.ge.s32.totalorder %v2948, 1
      %vm3142 = vcmp.ge.s32.totalorder %v2949, 1
      %vm3143 = vcmp.ge.s32.totalorder %v2950, 1
      %vm3144 = vcmp.ge.s32.totalorder %v2951, 1
      %vm3145 = vcmp.ge.s32.totalorder %v2952, 1
      %vm3146 = vcmp.ge.s32.totalorder %v2953, 1
      %vm3147 = vcmp.ge.s32.totalorder %v2954, 1
      %vm3148 = vcmp.ge.s32.totalorder %v2955, 1
      %vm3149 = vcmp.ge.s32.totalorder %v2956, 1
      %vm3150 = vcmp.ge.s32.totalorder %v2957, 1
      %vm3151 = vmand %vm3087, %vm3119
      %vm3152 = vmand %vm3088, %vm3120
      %vm3153 = vmand %vm3089, %vm3121
      %vm3154 = vmand %vm3090, %vm3122
      %vm3155 = vmand %vm3091, %vm3123
      %vm3156 = vmand %vm3092, %vm3124
      %vm3157 = vmand %vm3093, %vm3125
      %vm3158 = vmand %vm3094, %vm3126
      %vm3159 = vmand %vm3095, %vm3127
      %vm3160 = vmand %vm3096, %vm3128
      %vm3161 = vmand %vm3097, %vm3129
      %vm3162 = vmand %vm3098, %vm3130
      %vm3163 = vmand %vm3099, %vm3131
      %vm3164 = vmand %vm3100, %vm3132
      %vm3165 = vmand %vm3101, %vm3133
      %vm3166 = vmand %vm3102, %vm3134
      %vm3167 = vmand %vm3103, %vm3135
      %vm3168 = vmand %vm3104, %vm3136
      %vm3169 = vmand %vm3105, %vm3137
      %vm3170 = vmand %vm3106, %vm3138
      %vm3171 = vmand %vm3107, %vm3139
      %vm3172 = vmand %vm3108, %vm3140
      %vm3173 = vmand %vm3109, %vm3141
      %vm3174 = vmand %vm3110, %vm3142
      %vm3175 = vmand %vm3111, %vm3143
      %vm3176 = vmand %vm3112, %vm3144
      %vm3177 = vmand %vm3113, %vm3145
      %vm3178 = vmand %vm3114, %vm3146
      %vm3179 = vmand %vm3115, %vm3147
      %vm3180 = vmand %vm3116, %vm3148
      %vm3181 = vmand %vm3117, %vm3149
      %vm3182 = vmand %vm3118, %vm3150
      %v3183 = vsel %vm3151, 1, 0
      %v3184 = vsel %vm3152, 1, 0
      %v3185 = vsel %vm3153, 1, 0
      %v3186 = vsel %vm3154, 1, 0
      %v3187 = vsel %vm3155, 1, 0
      %v3188 = vsel %vm3156, 1, 0
      %v3189 = vsel %vm3157, 1, 0
      %v3190 = vsel %vm3158, 1, 0
      %v3191 = vsel %vm3159, 1, 0
      %v3192 = vsel %vm3160, 1, 0
      %v3193 = vsel %vm3161, 1, 0
      %v3194 = vsel %vm3162, 1, 0
      %v3195 = vsel %vm3163, 1, 0
      %v3196 = vsel %vm3164, 1, 0
      %v3197 = vsel %vm3165, 1, 0
      %v3198 = vsel %vm3166, 1, 0
      %v3199 = vsel %vm3167, 1, 0
      %v3200 = vsel %vm3168, 1, 0
      %v3201 = vsel %vm3169, 1, 0
      %v3202 = vsel %vm3170, 1, 0
      %v3203 = vsel %vm3171, 1, 0
      %v3204 = vsel %vm3172, 1, 0
      %v3205 = vsel %vm3173, 1, 0
      %v3206 = vsel %vm3174, 1, 0
      %v3207 = vsel %vm3175, 1, 0
      %v3208 = vsel %vm3176, 1, 0
      %v3209 = vsel %vm3177, 1, 0
      %v3210 = vsel %vm3178, 1, 0
      %v3211 = vsel %vm3179, 1, 0
      %v3212 = vsel %vm3180, 1, 0
      %v3213 = vsel %vm3181, 1, 0
      %v3214 = vsel %vm3182, 1, 0
      %vm3215 = vcmp.eq.s32.totalorder %v3183, 1
      %vm3216 = vcmp.eq.s32.totalorder %v3184, 1
      %vm3217 = vcmp.eq.s32.totalorder %v3185, 1
      %vm3218 = vcmp.eq.s32.totalorder %v3186, 1
      %vm3219 = vcmp.eq.s32.totalorder %v3187, 1
      %vm3220 = vcmp.eq.s32.totalorder %v3188, 1
      %vm3221 = vcmp.eq.s32.totalorder %v3189, 1
      %vm3222 = vcmp.eq.s32.totalorder %v3190, 1
      %vm3223 = vcmp.eq.s32.totalorder %v3191, 1
      %vm3224 = vcmp.eq.s32.totalorder %v3192, 1
      %vm3225 = vcmp.eq.s32.totalorder %v3193, 1
      %vm3226 = vcmp.eq.s32.totalorder %v3194, 1
      %vm3227 = vcmp.eq.s32.totalorder %v3195, 1
      %vm3228 = vcmp.eq.s32.totalorder %v3196, 1
      %vm3229 = vcmp.eq.s32.totalorder %v3197, 1
      %vm3230 = vcmp.eq.s32.totalorder %v3198, 1
      %vm3231 = vcmp.eq.s32.totalorder %v3199, 1
      %vm3232 = vcmp.eq.s32.totalorder %v3200, 1
      %vm3233 = vcmp.eq.s32.totalorder %v3201, 1
      %vm3234 = vcmp.eq.s32.totalorder %v3202, 1
      %vm3235 = vcmp.eq.s32.totalorder %v3203, 1
      %vm3236 = vcmp.eq.s32.totalorder %v3204, 1
      %vm3237 = vcmp.eq.s32.totalorder %v3205, 1
      %vm3238 = vcmp.eq.s32.totalorder %v3206, 1
      %vm3239 = vcmp.eq.s32.totalorder %v3207, 1
      %vm3240 = vcmp.eq.s32.totalorder %v3208, 1
      %vm3241 = vcmp.eq.s32.totalorder %v3209, 1
      %vm3242 = vcmp.eq.s32.totalorder %v3210, 1
      %vm3243 = vcmp.eq.s32.totalorder %v3211, 1
      %vm3244 = vcmp.eq.s32.totalorder %v3212, 1
      %vm3245 = vcmp.eq.s32.totalorder %v3213, 1
      %vm3246 = vcmp.eq.s32.totalorder %v3214, 1
      %v3247 = vsel %vm3215, %v3055, 0.0
      %v3248 = vsel %vm3216, %v3086, 0.0
      %v3249 = vsel %vm3217, %v3085, 0.0
      %v3250 = vsel %vm3218, %v3084, 0.0
      %v3251 = vsel %vm3219, %v3083, 0.0
      %v3252 = vsel %vm3220, %v3082, 0.0
      %v3253 = vsel %vm3221, %v3081, 0.0
      %v3254 = vsel %vm3222, %v3080, 0.0
      %v3255 = vsel %vm3223, %v3079, 0.0
      %v3256 = vsel %vm3224, %v3078, 0.0
      %v3257 = vsel %vm3225, %v3077, 0.0
      %v3258 = vsel %vm3226, %v3076, 0.0
      %v3259 = vsel %vm3227, %v3075, 0.0
      %v3260 = vsel %vm3228, %v3074, 0.0
      %v3261 = vsel %vm3229, %v3073, 0.0
      %v3262 = vsel %vm3230, %v3072, 0.0
      %v3263 = vsel %vm3231, %v3071, 0.0
      %v3264 = vsel %vm3232, %v3070, 0.0
      %v3265 = vsel %vm3233, %v3069, 0.0
      %v3266 = vsel %vm3234, %v3068, 0.0
      %v3267 = vsel %vm3235, %v3067, 0.0
      %v3268 = vsel %vm3236, %v3066, 0.0
      %v3269 = vsel %vm3237, %v3065, 0.0
      %v3270 = vsel %vm3238, %v3064, 0.0
      %v3271 = vsel %vm3239, %v3063, 0.0
      %v3272 = vsel %vm3240, %v3062, 0.0
      %v3273 = vsel %vm3241, %v3061, 0.0
      %v3274 = vsel %vm3242, %v3060, 0.0
      %v3275 = vsel %vm3243, %v3059, 0.0
      %v3276 = vsel %vm3244, %v3058, 0.0
      %v3277 = vsel %vm3245, %v3057, 0.0
      %v3278 = vsel %vm3246, %v3056, 0.0
      %v3279 = vsel %vm3087, 1, 0
      %v3280 = vsel %vm3088, 1, 0
      %v3281 = vsel %vm3089, 1, 0
      %v3282 = vsel %vm3090, 1, 0
      %v3283 = vsel %vm3091, 1, 0
      %v3284 = vsel %vm3092, 1, 0
      %v3285 = vsel %vm3093, 1, 0
      %v3286 = vsel %vm3094, 1, 0
      %v3287 = vsel %vm3095, 1, 0
      %v3288 = vsel %vm3096, 1, 0
      %v3289 = vsel %vm3097, 1, 0
      %v3290 = vsel %vm3098, 1, 0
      %v3291 = vsel %vm3099, 1, 0
      %v3292 = vsel %vm3100, 1, 0
      %v3293 = vsel %vm3101, 1, 0
      %v3294 = vsel %vm3102, 1, 0
      %v3295 = vsel %vm3103, 1, 0
      %v3296 = vsel %vm3104, 1, 0
      %v3297 = vsel %vm3105, 1, 0
      %v3298 = vsel %vm3106, 1, 0
      %v3299 = vsel %vm3107, 1, 0
      %v3300 = vsel %vm3108, 1, 0
      %v3301 = vsel %vm3109, 1, 0
      %v3302 = vsel %vm3110, 1, 0
      %v3303 = vsel %vm3111, 1, 0
      %v3304 = vsel %vm3112, 1, 0
      %v3305 = vsel %vm3113, 1, 0
      %v3306 = vsel %vm3114, 1, 0
      %v3307 = vsel %vm3115, 1, 0
      %v3308 = vsel %vm3116, 1, 0
      %v3309 = vsel %vm3117, 1, 0
      %v3310 = vsel %vm3118, 1, 0
      %vm3311 = vcmp.eq.s32.totalorder %v3279, 1
      %vm3312 = vcmp.eq.s32.totalorder %v3280, 1
      %vm3313 = vcmp.eq.s32.totalorder %v3281, 1
      %vm3314 = vcmp.eq.s32.totalorder %v3282, 1
      %vm3315 = vcmp.eq.s32.totalorder %v3283, 1
      %vm3316 = vcmp.eq.s32.totalorder %v3284, 1
      %vm3317 = vcmp.eq.s32.totalorder %v3285, 1
      %vm3318 = vcmp.eq.s32.totalorder %v3286, 1
      %vm3319 = vcmp.eq.s32.totalorder %v3287, 1
      %vm3320 = vcmp.eq.s32.totalorder %v3288, 1
      %vm3321 = vcmp.eq.s32.totalorder %v3289, 1
      %vm3322 = vcmp.eq.s32.totalorder %v3290, 1
      %vm3323 = vcmp.eq.s32.totalorder %v3291, 1
      %vm3324 = vcmp.eq.s32.totalorder %v3292, 1
      %vm3325 = vcmp.eq.s32.totalorder %v3293, 1
      %vm3326 = vcmp.eq.s32.totalorder %v3294, 1
      %vm3327 = vcmp.eq.s32.totalorder %v3295, 1
      %vm3328 = vcmp.eq.s32.totalorder %v3296, 1
      %vm3329 = vcmp.eq.s32.totalorder %v3297, 1
      %vm3330 = vcmp.eq.s32.totalorder %v3298, 1
      %vm3331 = vcmp.eq.s32.totalorder %v3299, 1
      %vm3332 = vcmp.eq.s32.totalorder %v3300, 1
      %vm3333 = vcmp.eq.s32.totalorder %v3301, 1
      %vm3334 = vcmp.eq.s32.totalorder %v3302, 1
      %vm3335 = vcmp.eq.s32.totalorder %v3303, 1
      %vm3336 = vcmp.eq.s32.totalorder %v3304, 1
      %vm3337 = vcmp.eq.s32.totalorder %v3305, 1
      %vm3338 = vcmp.eq.s32.totalorder %v3306, 1
      %vm3339 = vcmp.eq.s32.totalorder %v3307, 1
      %vm3340 = vcmp.eq.s32.totalorder %v3308, 1
      %vm3341 = vcmp.eq.s32.totalorder %v3309, 1
      %vm3342 = vcmp.eq.s32.totalorder %v3310, 1
      %v3343 = vsel %vm3311, %v2892, 0.0
      %v3344 = vsel %vm3312, %v2550, 0.0
      %v3345 = vsel %vm3313, %v2553, 0.0
      %v3346 = vsel %vm3314, %v2558, 0.0
      %v3347 = vsel %vm3315, %v2561, 0.0
      %v3348 = vsel %vm3316, %v2566, 0.0
      %v3349 = vsel %vm3317, %v2569, 0.0
      %v3350 = vsel %vm3318, %v2574, 0.0
      %v3351 = vsel %vm3319, %v2577, 0.0
      %v3352 = vsel %vm3320, %v2655, 0.0
      %v3353 = vsel %vm3321, %v2658, 0.0
      %v3354 = vsel %vm3322, %v2663, 0.0
      %v3355 = vsel %vm3323, %v2666, 0.0
      %v3356 = vsel %vm3324, %v2671, 0.0
      %v3357 = vsel %vm3325, %v2674, 0.0
      %v3358 = vsel %vm3326, %v2679, 0.0
      %v3359 = vsel %vm3327, %v2682, 0.0
      %v3360 = vsel %vm3328, %v2760, 0.0
      %v3361 = vsel %vm3329, %v2763, 0.0
      %v3362 = vsel %vm3330, %v2768, 0.0
      %v3363 = vsel %vm3331, %v2771, 0.0
      %v3364 = vsel %vm3332, %v2776, 0.0
      %v3365 = vsel %vm3333, %v2779, 0.0
      %v3366 = vsel %vm3334, %v2784, 0.0
      %v3367 = vsel %vm3335, %v2787, 0.0
      %v3368 = vsel %vm3336, %v2865, 0.0
      %v3369 = vsel %vm3337, %v2868, 0.0
      %v3370 = vsel %vm3338, %v2873, 0.0
      %v3371 = vsel %vm3339, %v2876, 0.0
      %v3372 = vsel %vm3340, %v2881, 0.0
      %v3373 = vsel %vm3341, %v2884, 0.0
      %v3374 = vsel %vm3342, %v2889, 0.0
      %v3375 = vrot.slane %v2550, 1
      %v3376 = vrot.slane %v2553, 1
      %v3377 = vrot.slane %v2558, 1
      %v3378 = vrot.slane %v2561, 1
      %v3379 = vrot.slane %v2566, 1
      %v3380 = vrot.slane %v2569, 1
      %v3381 = vrot.slane %v2574, 1
      %v3382 = vrot.slane %v2577, 1
      %v3383 = vrot.slane %v2655, 1
      %v3384 = vrot.slane %v2658, 1
      %v3385 = vrot.slane %v2663, 1
      %v3386 = vrot.slane %v2666, 1
      %v3387 = vrot.slane %v2671, 1
      %v3388 = vrot.slane %v2674, 1
      %v3389 = vrot.slane %v2679, 1
      %v3390 = vrot.slane %v2682, 1
      %v3391 = vrot.slane %v2760, 1
      %v3392 = vrot.slane %v2763, 1
      %v3393 = vrot.slane %v2768, 1
      %v3394 = vrot.slane %v2771, 1
      %v3395 = vrot.slane %v2776, 1
      %v3396 = vrot.slane %v2779, 1
      %v3397 = vrot.slane %v2784, 1
      %v3398 = vrot.slane %v2787, 1
      %v3399 = vrot.slane %v2865, 1
      %v3400 = vrot.slane %v2868, 1
      %v3401 = vrot.slane %v2873, 1
      %v3402 = vrot.slane %v2876, 1
      %v3403 = vrot.slane %v2881, 1
      %v3404 = vrot.slane %v2884, 1
      %v3405 = vrot.slane %v2889, 1
      %v3406 = vrot.slane %v2892, 1
      %v3407 = vsel %vm1994, %v3405, %v3406
      %v3408 = vsel %vm1994, %v3404, %v3405
      %v3409 = vsel %vm1994, %v3403, %v3404
      %v3410 = vsel %vm1994, %v3402, %v3403
      %v3411 = vsel %vm1994, %v3401, %v3402
      %v3412 = vsel %vm1994, %v3400, %v3401
      %v3413 = vsel %vm1994, %v3399, %v3400
      %v3414 = vsel %vm1994, %v3398, %v3399
      %v3415 = vsel %vm1994, %v3397, %v3398
      %v3416 = vsel %vm1994, %v3396, %v3397
      %v3417 = vsel %vm1994, %v3395, %v3396
      %v3418 = vsel %vm1994, %v3394, %v3395
      %v3419 = vsel %vm1994, %v3393, %v3394
      %v3420 = vsel %vm1994, %v3392, %v3393
      %v3421 = vsel %vm1994, %v3391, %v3392
      %v3422 = vsel %vm1994, %v3390, %v3391
      %v3423 = vsel %vm1994, %v3389, %v3390
      %v3424 = vsel %vm1994, %v3388, %v3389
      %v3425 = vsel %vm1994, %v3387, %v3388
      %v3426 = vsel %vm1994, %v3386, %v3387
      %v3427 = vsel %vm1994, %v3385, %v3386
      %v3428 = vsel %vm1994, %v3384, %v3385
      %v3429 = vsel %vm1994, %v3383, %v3384
      %v3430 = vsel %vm1994, %v3382, %v3383
      %v3431 = vsel %vm1994, %v3381, %v3382
      %v3432 = vsel %vm1994, %v3380, %v3381
      %v3433 = vsel %vm1994, %v3379, %v3380
      %v3434 = vsel %vm1994, %v3378, %v3379
      %v3435 = vsel %vm1994, %v3377, %v3378
      %v3436 = vsel %vm1994, %v3376, %v3377
      %v3437 = vsel %vm1994, %v3375, %v3376
      %v3438 = vsel %vm1994, %v3406, %v3375
      %vm3439 = vcmp.le.s32.totalorder %v2926, 6
      %vm3440 = vcmp.le.s32.totalorder %v2927, 6
      %vm3441 = vcmp.le.s32.totalorder %v2928, 6
      %vm3442 = vcmp.le.s32.totalorder %v2929, 6
      %vm3443 = vcmp.le.s32.totalorder %v2930, 6
      %vm3444 = vcmp.le.s32.totalorder %v2931, 6
      %vm3445 = vcmp.le.s32.totalorder %v2932, 6
      %vm3446 = vcmp.le.s32.totalorder %v2933, 6
      %vm3447 = vcmp.le.s32.totalorder %v2934, 6
      %vm3448 = vcmp.le.s32.totalorder %v2935, 6
      %vm3449 = vcmp.le.s32.totalorder %v2936, 6
      %vm3450 = vcmp.le.s32.totalorder %v2937, 6
      %vm3451 = vcmp.le.s32.totalorder %v2938, 6
      %vm3452 = vcmp.le.s32.totalorder %v2939, 6
      %vm3453 = vcmp.le.s32.totalorder %v2940, 6
      %vm3454 = vcmp.le.s32.totalorder %v2941, 6
      %vm3455 = vcmp.le.s32.totalorder %v2942, 6
      %vm3456 = vcmp.le.s32.totalorder %v2943, 6
      %vm3457 = vcmp.le.s32.totalorder %v2944, 6
      %vm3458 = vcmp.le.s32.totalorder %v2945, 6
      %vm3459 = vcmp.le.s32.totalorder %v2946, 6
      %vm3460 = vcmp.le.s32.totalorder %v2947, 6
      %vm3461 = vcmp.le.s32.totalorder %v2948, 6
      %vm3462 = vcmp.le.s32.totalorder %v2949, 6
      %vm3463 = vcmp.le.s32.totalorder %v2950, 6
      %vm3464 = vcmp.le.s32.totalorder %v2951, 6
      %vm3465 = vcmp.le.s32.totalorder %v2952, 6
      %vm3466 = vcmp.le.s32.totalorder %v2953, 6
      %vm3467 = vcmp.le.s32.totalorder %v2954, 6
      %vm3468 = vcmp.le.s32.totalorder %v2955, 6
      %vm3469 = vcmp.le.s32.totalorder %v2956, 6
      %vm3470 = vcmp.le.s32.totalorder %v2957, 6
      %vm3471 = vmand %vm3087, %vm3439
      %vm3472 = vmand %vm3088, %vm3440
      %vm3473 = vmand %vm3089, %vm3441
      %vm3474 = vmand %vm3090, %vm3442
      %vm3475 = vmand %vm3091, %vm3443
      %vm3476 = vmand %vm3092, %vm3444
      %vm3477 = vmand %vm3093, %vm3445
      %vm3478 = vmand %vm3094, %vm3446
      %vm3479 = vmand %vm3095, %vm3447
      %vm3480 = vmand %vm3096, %vm3448
      %vm3481 = vmand %vm3097, %vm3449
      %vm3482 = vmand %vm3098, %vm3450
      %vm3483 = vmand %vm3099, %vm3451
      %vm3484 = vmand %vm3100, %vm3452
      %vm3485 = vmand %vm3101, %vm3453
      %vm3486 = vmand %vm3102, %vm3454
      %vm3487 = vmand %vm3103, %vm3455
      %vm3488 = vmand %vm3104, %vm3456
      %vm3489 = vmand %vm3105, %vm3457
      %vm3490 = vmand %vm3106, %vm3458
      %vm3491 = vmand %vm3107, %vm3459
      %vm3492 = vmand %vm3108, %vm3460
      %vm3493 = vmand %vm3109, %vm3461
      %vm3494 = vmand %vm3110, %vm3462
      %vm3495 = vmand %vm3111, %vm3463
      %vm3496 = vmand %vm3112, %vm3464
      %vm3497 = vmand %vm3113, %vm3465
      %vm3498 = vmand %vm3114, %vm3466
      %vm3499 = vmand %vm3115, %vm3467
      %vm3500 = vmand %vm3116, %vm3468
      %vm3501 = vmand %vm3117, %vm3469
      %vm3502 = vmand %vm3118, %vm3470
      %v3503 = vsel %vm3471, 1, 0
      %v3504 = vsel %vm3472, 1, 0
      %v3505 = vsel %vm3473, 1, 0
      %v3506 = vsel %vm3474, 1, 0
      %v3507 = vsel %vm3475, 1, 0
      %v3508 = vsel %vm3476, 1, 0
      %v3509 = vsel %vm3477, 1, 0
      %v3510 = vsel %vm3478, 1, 0
      %v3511 = vsel %vm3479, 1, 0
      %v3512 = vsel %vm3480, 1, 0
      %v3513 = vsel %vm3481, 1, 0
      %v3514 = vsel %vm3482, 1, 0
      %v3515 = vsel %vm3483, 1, 0
      %v3516 = vsel %vm3484, 1, 0
      %v3517 = vsel %vm3485, 1, 0
      %v3518 = vsel %vm3486, 1, 0
      %v3519 = vsel %vm3487, 1, 0
      %v3520 = vsel %vm3488, 1, 0
      %v3521 = vsel %vm3489, 1, 0
      %v3522 = vsel %vm3490, 1, 0
      %v3523 = vsel %vm3491, 1, 0
      %v3524 = vsel %vm3492, 1, 0
      %v3525 = vsel %vm3493, 1, 0
      %v3526 = vsel %vm3494, 1, 0
      %v3527 = vsel %vm3495, 1, 0
      %v3528 = vsel %vm3496, 1, 0
      %v3529 = vsel %vm3497, 1, 0
      %v3530 = vsel %vm3498, 1, 0
      %v3531 = vsel %vm3499, 1, 0
      %v3532 = vsel %vm3500, 1, 0
      %v3533 = vsel %vm3501, 1, 0
      %v3534 = vsel %vm3502, 1, 0
      %vm3535 = vcmp.eq.s32.totalorder %v3503, 1
      %vm3536 = vcmp.eq.s32.totalorder %v3504, 1
      %vm3537 = vcmp.eq.s32.totalorder %v3505, 1
      %vm3538 = vcmp.eq.s32.totalorder %v3506, 1
      %vm3539 = vcmp.eq.s32.totalorder %v3507, 1
      %vm3540 = vcmp.eq.s32.totalorder %v3508, 1
      %vm3541 = vcmp.eq.s32.totalorder %v3509, 1
      %vm3542 = vcmp.eq.s32.totalorder %v3510, 1
      %vm3543 = vcmp.eq.s32.totalorder %v3511, 1
      %vm3544 = vcmp.eq.s32.totalorder %v3512, 1
      %vm3545 = vcmp.eq.s32.totalorder %v3513, 1
      %vm3546 = vcmp.eq.s32.totalorder %v3514, 1
      %vm3547 = vcmp.eq.s32.totalorder %v3515, 1
      %vm3548 = vcmp.eq.s32.totalorder %v3516, 1
      %vm3549 = vcmp.eq.s32.totalorder %v3517, 1
      %vm3550 = vcmp.eq.s32.totalorder %v3518, 1
      %vm3551 = vcmp.eq.s32.totalorder %v3519, 1
      %vm3552 = vcmp.eq.s32.totalorder %v3520, 1
      %vm3553 = vcmp.eq.s32.totalorder %v3521, 1
      %vm3554 = vcmp.eq.s32.totalorder %v3522, 1
      %vm3555 = vcmp.eq.s32.totalorder %v3523, 1
      %vm3556 = vcmp.eq.s32.totalorder %v3524, 1
      %vm3557 = vcmp.eq.s32.totalorder %v3525, 1
      %vm3558 = vcmp.eq.s32.totalorder %v3526, 1
      %vm3559 = vcmp.eq.s32.totalorder %v3527, 1
      %vm3560 = vcmp.eq.s32.totalorder %v3528, 1
      %vm3561 = vcmp.eq.s32.totalorder %v3529, 1
      %vm3562 = vcmp.eq.s32.totalorder %v3530, 1
      %vm3563 = vcmp.eq.s32.totalorder %v3531, 1
      %vm3564 = vcmp.eq.s32.totalorder %v3532, 1
      %vm3565 = vcmp.eq.s32.totalorder %v3533, 1
      %vm3566 = vcmp.eq.s32.totalorder %v3534, 1
      %v3567 = vsel %vm3535, %v3438, 0.0
      %v3568 = vsel %vm3536, %v3437, 0.0
      %v3569 = vsel %vm3537, %v3436, 0.0
      %v3570 = vsel %vm3538, %v3435, 0.0
      %v3571 = vsel %vm3539, %v3434, 0.0
      %v3572 = vsel %vm3540, %v3433, 0.0
      %v3573 = vsel %vm3541, %v3432, 0.0
      %v3574 = vsel %vm3542, %v3431, 0.0
      %v3575 = vsel %vm3543, %v3430, 0.0
      %v3576 = vsel %vm3544, %v3429, 0.0
      %v3577 = vsel %vm3545, %v3428, 0.0
      %v3578 = vsel %vm3546, %v3427, 0.0
      %v3579 = vsel %vm3547, %v3426, 0.0
      %v3580 = vsel %vm3548, %v3425, 0.0
      %v3581 = vsel %vm3549, %v3424, 0.0
      %v3582 = vsel %vm3550, %v3423, 0.0
      %v3583 = vsel %vm3551, %v3422, 0.0
      %v3584 = vsel %vm3552, %v3421, 0.0
      %v3585 = vsel %vm3553, %v3420, 0.0
      %v3586 = vsel %vm3554, %v3419, 0.0
      %v3587 = vsel %vm3555, %v3418, 0.0
      %v3588 = vsel %vm3556, %v3417, 0.0
      %v3589 = vsel %vm3557, %v3416, 0.0
      %v3590 = vsel %vm3558, %v3415, 0.0
      %v3591 = vsel %vm3559, %v3414, 0.0
      %v3592 = vsel %vm3560, %v3413, 0.0
      %v3593 = vsel %vm3561, %v3412, 0.0
      %v3594 = vsel %vm3562, %v3411, 0.0
      %v3595 = vsel %vm3563, %v3410, 0.0
      %v3596 = vsel %vm3564, %v3409, 0.0
      %v3597 = vsel %vm3565, %v3408, 0.0
      %v3598 = vsel %vm3566, %v3407, 0.0
      %v3599 = vsel %vm3119, 1, 0
      %v3600 = vsel %vm3120, 1, 0
      %v3601 = vsel %vm3121, 1, 0
      %v3602 = vsel %vm3122, 1, 0
      %v3603 = vsel %vm3123, 1, 0
      %v3604 = vsel %vm3124, 1, 0
      %v3605 = vsel %vm3125, 1, 0
      %v3606 = vsel %vm3126, 1, 0
      %v3607 = vsel %vm3127, 1, 0
      %v3608 = vsel %vm3128, 1, 0
      %v3609 = vsel %vm3129, 1, 0
      %v3610 = vsel %vm3130, 1, 0
      %v3611 = vsel %vm3131, 1, 0
      %v3612 = vsel %vm3132, 1, 0
      %v3613 = vsel %vm3133, 1, 0
      %v3614 = vsel %vm3134, 1, 0
      %v3615 = vsel %vm3135, 1, 0
      %v3616 = vsel %vm3136, 1, 0
      %v3617 = vsel %vm3137, 1, 0
      %v3618 = vsel %vm3138, 1, 0
      %v3619 = vsel %vm3139, 1, 0
      %v3620 = vsel %vm3140, 1, 0
      %v3621 = vsel %vm3141, 1, 0
      %v3622 = vsel %vm3142, 1, 0
      %v3623 = vsel %vm3143, 1, 0
      %v3624 = vsel %vm3144, 1, 0
      %v3625 = vsel %vm3145, 1, 0
      %v3626 = vsel %vm3146, 1, 0
      %v3627 = vsel %vm3147, 1, 0
      %v3628 = vsel %vm3148, 1, 0
      %v3629 = vsel %vm3149, 1, 0
      %v3630 = vsel %vm3150, 1, 0
      %vm3631 = vcmp.eq.s32.totalorder %v3599, 1
      %vm3632 = vcmp.eq.s32.totalorder %v3600, 1
      %vm3633 = vcmp.eq.s32.totalorder %v3601, 1
      %vm3634 = vcmp.eq.s32.totalorder %v3602, 1
      %vm3635 = vcmp.eq.s32.totalorder %v3603, 1
      %vm3636 = vcmp.eq.s32.totalorder %v3604, 1
      %vm3637 = vcmp.eq.s32.totalorder %v3605, 1
      %vm3638 = vcmp.eq.s32.totalorder %v3606, 1
      %vm3639 = vcmp.eq.s32.totalorder %v3607, 1
      %vm3640 = vcmp.eq.s32.totalorder %v3608, 1
      %vm3641 = vcmp.eq.s32.totalorder %v3609, 1
      %vm3642 = vcmp.eq.s32.totalorder %v3610, 1
      %vm3643 = vcmp.eq.s32.totalorder %v3611, 1
      %vm3644 = vcmp.eq.s32.totalorder %v3612, 1
      %vm3645 = vcmp.eq.s32.totalorder %v3613, 1
      %vm3646 = vcmp.eq.s32.totalorder %v3614, 1
      %vm3647 = vcmp.eq.s32.totalorder %v3615, 1
      %vm3648 = vcmp.eq.s32.totalorder %v3616, 1
      %vm3649 = vcmp.eq.s32.totalorder %v3617, 1
      %vm3650 = vcmp.eq.s32.totalorder %v3618, 1
      %vm3651 = vcmp.eq.s32.totalorder %v3619, 1
      %vm3652 = vcmp.eq.s32.totalorder %v3620, 1
      %vm3653 = vcmp.eq.s32.totalorder %v3621, 1
      %vm3654 = vcmp.eq.s32.totalorder %v3622, 1
      %vm3655 = vcmp.eq.s32.totalorder %v3623, 1
      %vm3656 = vcmp.eq.s32.totalorder %v3624, 1
      %vm3657 = vcmp.eq.s32.totalorder %v3625, 1
      %vm3658 = vcmp.eq.s32.totalorder %v3626, 1
      %vm3659 = vcmp.eq.s32.totalorder %v3627, 1
      %vm3660 = vcmp.eq.s32.totalorder %v3628, 1
      %vm3661 = vcmp.eq.s32.totalorder %v3629, 1
      %vm3662 = vcmp.eq.s32.totalorder %v3630, 1
      %v3663 = vsel %vm3631, %v3086, 0.0
      %v3664 = vsel %vm3632, %v3085, 0.0
      %v3665 = vsel %vm3633, %v3084, 0.0
      %v3666 = vsel %vm3634, %v3083, 0.0
      %v3667 = vsel %vm3635, %v3082, 0.0
      %v3668 = vsel %vm3636, %v3081, 0.0
      %v3669 = vsel %vm3637, %v3080, 0.0
      %v3670 = vsel %vm3638, %v3079, 0.0
      %v3671 = vsel %vm3639, %v3078, 0.0
      %v3672 = vsel %vm3640, %v3077, 0.0
      %v3673 = vsel %vm3641, %v3076, 0.0
      %v3674 = vsel %vm3642, %v3075, 0.0
      %v3675 = vsel %vm3643, %v3074, 0.0
      %v3676 = vsel %vm3644, %v3073, 0.0
      %v3677 = vsel %vm3645, %v3072, 0.0
      %v3678 = vsel %vm3646, %v3071, 0.0
      %v3679 = vsel %vm3647, %v3070, 0.0
      %v3680 = vsel %vm3648, %v3069, 0.0
      %v3681 = vsel %vm3649, %v3068, 0.0
      %v3682 = vsel %vm3650, %v3067, 0.0
      %v3683 = vsel %vm3651, %v3066, 0.0
      %v3684 = vsel %vm3652, %v3065, 0.0
      %v3685 = vsel %vm3653, %v3064, 0.0
      %v3686 = vsel %vm3654, %v3063, 0.0
      %v3687 = vsel %vm3655, %v3062, 0.0
      %v3688 = vsel %vm3656, %v3061, 0.0
      %v3689 = vsel %vm3657, %v3060, 0.0
      %v3690 = vsel %vm3658, %v3059, 0.0
      %v3691 = vsel %vm3659, %v3058, 0.0
      %v3692 = vsel %vm3660, %v3057, 0.0
      %v3693 = vsel %vm3661, %v3056, 0.0
      %v3694 = vsel %vm3662, %v3055, 0.0
      %v3695 = vsel %vm3439, 1, 0
      %v3696 = vsel %vm3440, 1, 0
      %v3697 = vsel %vm3441, 1, 0
      %v3698 = vsel %vm3442, 1, 0
      %v3699 = vsel %vm3443, 1, 0
      %v3700 = vsel %vm3444, 1, 0
      %v3701 = vsel %vm3445, 1, 0
      %v3702 = vsel %vm3446, 1, 0
      %v3703 = vsel %vm3447, 1, 0
      %v3704 = vsel %vm3448, 1, 0
      %v3705 = vsel %vm3449, 1, 0
      %v3706 = vsel %vm3450, 1, 0
      %v3707 = vsel %vm3451, 1, 0
      %v3708 = vsel %vm3452, 1, 0
      %v3709 = vsel %vm3453, 1, 0
      %v3710 = vsel %vm3454, 1, 0
      %v3711 = vsel %vm3455, 1, 0
      %v3712 = vsel %vm3456, 1, 0
      %v3713 = vsel %vm3457, 1, 0
      %v3714 = vsel %vm3458, 1, 0
      %v3715 = vsel %vm3459, 1, 0
      %v3716 = vsel %vm3460, 1, 0
      %v3717 = vsel %vm3461, 1, 0
      %v3718 = vsel %vm3462, 1, 0
      %v3719 = vsel %vm3463, 1, 0
      %v3720 = vsel %vm3464, 1, 0
      %v3721 = vsel %vm3465, 1, 0
      %v3722 = vsel %vm3466, 1, 0
      %v3723 = vsel %vm3467, 1, 0
      %v3724 = vsel %vm3468, 1, 0
      %v3725 = vsel %vm3469, 1, 0
      %v3726 = vsel %vm3470, 1, 0
      %vm3727 = vcmp.eq.s32.totalorder %v3695, 1
      %vm3728 = vcmp.eq.s32.totalorder %v3696, 1
      %vm3729 = vcmp.eq.s32.totalorder %v3697, 1
      %vm3730 = vcmp.eq.s32.totalorder %v3698, 1
      %vm3731 = vcmp.eq.s32.totalorder %v3699, 1
      %vm3732 = vcmp.eq.s32.totalorder %v3700, 1
      %vm3733 = vcmp.eq.s32.totalorder %v3701, 1
      %vm3734 = vcmp.eq.s32.totalorder %v3702, 1
      %vm3735 = vcmp.eq.s32.totalorder %v3703, 1
      %vm3736 = vcmp.eq.s32.totalorder %v3704, 1
      %vm3737 = vcmp.eq.s32.totalorder %v3705, 1
      %vm3738 = vcmp.eq.s32.totalorder %v3706, 1
      %vm3739 = vcmp.eq.s32.totalorder %v3707, 1
      %vm3740 = vcmp.eq.s32.totalorder %v3708, 1
      %vm3741 = vcmp.eq.s32.totalorder %v3709, 1
      %vm3742 = vcmp.eq.s32.totalorder %v3710, 1
      %vm3743 = vcmp.eq.s32.totalorder %v3711, 1
      %vm3744 = vcmp.eq.s32.totalorder %v3712, 1
      %vm3745 = vcmp.eq.s32.totalorder %v3713, 1
      %vm3746 = vcmp.eq.s32.totalorder %v3714, 1
      %vm3747 = vcmp.eq.s32.totalorder %v3715, 1
      %vm3748 = vcmp.eq.s32.totalorder %v3716, 1
      %vm3749 = vcmp.eq.s32.totalorder %v3717, 1
      %vm3750 = vcmp.eq.s32.totalorder %v3718, 1
      %vm3751 = vcmp.eq.s32.totalorder %v3719, 1
      %vm3752 = vcmp.eq.s32.totalorder %v3720, 1
      %vm3753 = vcmp.eq.s32.totalorder %v3721, 1
      %vm3754 = vcmp.eq.s32.totalorder %v3722, 1
      %vm3755 = vcmp.eq.s32.totalorder %v3723, 1
      %vm3756 = vcmp.eq.s32.totalorder %v3724, 1
      %vm3757 = vcmp.eq.s32.totalorder %v3725, 1
      %vm3758 = vcmp.eq.s32.totalorder %v3726, 1
      %v3759 = vsel %vm3727, %v3437, 0.0
      %v3760 = vsel %vm3728, %v3436, 0.0
      %v3761 = vsel %vm3729, %v3435, 0.0
      %v3762 = vsel %vm3730, %v3434, 0.0
      %v3763 = vsel %vm3731, %v3433, 0.0
      %v3764 = vsel %vm3732, %v3432, 0.0
      %v3765 = vsel %vm3733, %v3431, 0.0
      %v3766 = vsel %vm3734, %v3430, 0.0
      %v3767 = vsel %vm3735, %v3429, 0.0
      %v3768 = vsel %vm3736, %v3428, 0.0
      %v3769 = vsel %vm3737, %v3427, 0.0
      %v3770 = vsel %vm3738, %v3426, 0.0
      %v3771 = vsel %vm3739, %v3425, 0.0
      %v3772 = vsel %vm3740, %v3424, 0.0
      %v3773 = vsel %vm3741, %v3423, 0.0
      %v3774 = vsel %vm3742, %v3422, 0.0
      %v3775 = vsel %vm3743, %v3421, 0.0
      %v3776 = vsel %vm3744, %v3420, 0.0
      %v3777 = vsel %vm3745, %v3419, 0.0
      %v3778 = vsel %vm3746, %v3418, 0.0
      %v3779 = vsel %vm3747, %v3417, 0.0
      %v3780 = vsel %vm3748, %v3416, 0.0
      %v3781 = vsel %vm3749, %v3415, 0.0
      %v3782 = vsel %vm3750, %v3414, 0.0
      %v3783 = vsel %vm3751, %v3413, 0.0
      %v3784 = vsel %vm3752, %v3412, 0.0
      %v3785 = vsel %vm3753, %v3411, 0.0
      %v3786 = vsel %vm3754, %v3410, 0.0
      %v3787 = vsel %vm3755, %v3409, 0.0
      %v3788 = vsel %vm3756, %v3408, 0.0
      %v3789 = vsel %vm3757, %v3407, 0.0
      %v3790 = vsel %vm3758, %v3438, 0.0
      %vm3791 = vcmp.le.s32.totalorder %v2990, 6
      %vm3792 = vcmp.le.s32.totalorder %v2991, 6
      %vm3793 = vcmp.le.s32.totalorder %v2992, 6
      %vm3794 = vcmp.le.s32.totalorder %v2993, 6
      %vm3795 = vcmp.le.s32.totalorder %v2994, 6
      %vm3796 = vcmp.le.s32.totalorder %v2995, 6
      %vm3797 = vcmp.le.s32.totalorder %v2996, 6
      %vm3798 = vcmp.le.s32.totalorder %v2997, 6
      %vm3799 = vcmp.le.s32.totalorder %v2998, 6
      %vm3800 = vcmp.le.s32.totalorder %v2999, 6
      %vm3801 = vcmp.le.s32.totalorder %v3000, 6
      %vm3802 = vcmp.le.s32.totalorder %v3001, 6
      %vm3803 = vcmp.le.s32.totalorder %v3002, 6
      %vm3804 = vcmp.le.s32.totalorder %v3003, 6
      %vm3805 = vcmp.le.s32.totalorder %v3004, 6
      %vm3806 = vcmp.le.s32.totalorder %v3005, 6
      %vm3807 = vcmp.le.s32.totalorder %v3006, 6
      %vm3808 = vcmp.le.s32.totalorder %v3007, 6
      %vm3809 = vcmp.le.s32.totalorder %v3008, 6
      %vm3810 = vcmp.le.s32.totalorder %v3009, 6
      %vm3811 = vcmp.le.s32.totalorder %v3010, 6
      %vm3812 = vcmp.le.s32.totalorder %v3011, 6
      %vm3813 = vcmp.le.s32.totalorder %v3012, 6
      %vm3814 = vcmp.le.s32.totalorder %v3013, 6
      %vm3815 = vcmp.le.s32.totalorder %v3014, 6
      %vm3816 = vcmp.le.s32.totalorder %v3015, 6
      %vm3817 = vcmp.le.s32.totalorder %v3016, 6
      %vm3818 = vcmp.le.s32.totalorder %v3017, 6
      %vm3819 = vcmp.le.s32.totalorder %v3018, 6
      %vm3820 = vcmp.le.s32.totalorder %v3019, 6
      %vm3821 = vcmp.le.s32.totalorder %v3020, 6
      %vm3822 = vcmp.le.s32.totalorder %v3021, 6
      %vm3823 = vmand %vm3791, %vm3119
      %vm3824 = vmand %vm3792, %vm3120
      %vm3825 = vmand %vm3793, %vm3121
      %vm3826 = vmand %vm3794, %vm3122
      %vm3827 = vmand %vm3795, %vm3123
      %vm3828 = vmand %vm3796, %vm3124
      %vm3829 = vmand %vm3797, %vm3125
      %vm3830 = vmand %vm3798, %vm3126
      %vm3831 = vmand %vm3799, %vm3127
      %vm3832 = vmand %vm3800, %vm3128
      %vm3833 = vmand %vm3801, %vm3129
      %vm3834 = vmand %vm3802, %vm3130
      %vm3835 = vmand %vm3803, %vm3131
      %vm3836 = vmand %vm3804, %vm3132
      %vm3837 = vmand %vm3805, %vm3133
      %vm3838 = vmand %vm3806, %vm3134
      %vm3839 = vmand %vm3807, %vm3135
      %vm3840 = vmand %vm3808, %vm3136
      %vm3841 = vmand %vm3809, %vm3137
      %vm3842 = vmand %vm3810, %vm3138
      %vm3843 = vmand %vm3811, %vm3139
      %vm3844 = vmand %vm3812, %vm3140
      %vm3845 = vmand %vm3813, %vm3141
      %vm3846 = vmand %vm3814, %vm3142
      %vm3847 = vmand %vm3815, %vm3143
      %vm3848 = vmand %vm3816, %vm3144
      %vm3849 = vmand %vm3817, %vm3145
      %vm3850 = vmand %vm3818, %vm3146
      %vm3851 = vmand %vm3819, %vm3147
      %vm3852 = vmand %vm3820, %vm3148
      %vm3853 = vmand %vm3821, %vm3149
      %vm3854 = vmand %vm3822, %vm3150
      %v3855 = vsel %vm3823, 1, 0
      %v3856 = vsel %vm3824, 1, 0
      %v3857 = vsel %vm3825, 1, 0
      %v3858 = vsel %vm3826, 1, 0
      %v3859 = vsel %vm3827, 1, 0
      %v3860 = vsel %vm3828, 1, 0
      %v3861 = vsel %vm3829, 1, 0
      %v3862 = vsel %vm3830, 1, 0
      %v3863 = vsel %vm3831, 1, 0
      %v3864 = vsel %vm3832, 1, 0
      %v3865 = vsel %vm3833, 1, 0
      %v3866 = vsel %vm3834, 1, 0
      %v3867 = vsel %vm3835, 1, 0
      %v3868 = vsel %vm3836, 1, 0
      %v3869 = vsel %vm3837, 1, 0
      %v3870 = vsel %vm3838, 1, 0
      %v3871 = vsel %vm3839, 1, 0
      %v3872 = vsel %vm3840, 1, 0
      %v3873 = vsel %vm3841, 1, 0
      %v3874 = vsel %vm3842, 1, 0
      %v3875 = vsel %vm3843, 1, 0
      %v3876 = vsel %vm3844, 1, 0
      %v3877 = vsel %vm3845, 1, 0
      %v3878 = vsel %vm3846, 1, 0
      %v3879 = vsel %vm3847, 1, 0
      %v3880 = vsel %vm3848, 1, 0
      %v3881 = vsel %vm3849, 1, 0
      %v3882 = vsel %vm3850, 1, 0
      %v3883 = vsel %vm3851, 1, 0
      %v3884 = vsel %vm3852, 1, 0
      %v3885 = vsel %vm3853, 1, 0
      %v3886 = vsel %vm3854, 1, 0
      %vm3887 = vcmp.eq.s32.totalorder %v3855, 1
      %vm3888 = vcmp.eq.s32.totalorder %v3856, 1
      %vm3889 = vcmp.eq.s32.totalorder %v3857, 1
      %vm3890 = vcmp.eq.s32.totalorder %v3858, 1
      %vm3891 = vcmp.eq.s32.totalorder %v3859, 1
      %vm3892 = vcmp.eq.s32.totalorder %v3860, 1
      %vm3893 = vcmp.eq.s32.totalorder %v3861, 1
      %vm3894 = vcmp.eq.s32.totalorder %v3862, 1
      %vm3895 = vcmp.eq.s32.totalorder %v3863, 1
      %vm3896 = vcmp.eq.s32.totalorder %v3864, 1
      %vm3897 = vcmp.eq.s32.totalorder %v3865, 1
      %vm3898 = vcmp.eq.s32.totalorder %v3866, 1
      %vm3899 = vcmp.eq.s32.totalorder %v3867, 1
      %vm3900 = vcmp.eq.s32.totalorder %v3868, 1
      %vm3901 = vcmp.eq.s32.totalorder %v3869, 1
      %vm3902 = vcmp.eq.s32.totalorder %v3870, 1
      %vm3903 = vcmp.eq.s32.totalorder %v3871, 1
      %vm3904 = vcmp.eq.s32.totalorder %v3872, 1
      %vm3905 = vcmp.eq.s32.totalorder %v3873, 1
      %vm3906 = vcmp.eq.s32.totalorder %v3874, 1
      %vm3907 = vcmp.eq.s32.totalorder %v3875, 1
      %vm3908 = vcmp.eq.s32.totalorder %v3876, 1
      %vm3909 = vcmp.eq.s32.totalorder %v3877, 1
      %vm3910 = vcmp.eq.s32.totalorder %v3878, 1
      %vm3911 = vcmp.eq.s32.totalorder %v3879, 1
      %vm3912 = vcmp.eq.s32.totalorder %v3880, 1
      %vm3913 = vcmp.eq.s32.totalorder %v3881, 1
      %vm3914 = vcmp.eq.s32.totalorder %v3882, 1
      %vm3915 = vcmp.eq.s32.totalorder %v3883, 1
      %vm3916 = vcmp.eq.s32.totalorder %v3884, 1
      %vm3917 = vcmp.eq.s32.totalorder %v3885, 1
      %vm3918 = vcmp.eq.s32.totalorder %v3886, 1
      %v3919 = vsel %vm3887, %v3085, 0.0
      %v3920 = vsel %vm3888, %v3084, 0.0
      %v3921 = vsel %vm3889, %v3083, 0.0
      %v3922 = vsel %vm3890, %v3082, 0.0
      %v3923 = vsel %vm3891, %v3081, 0.0
      %v3924 = vsel %vm3892, %v3080, 0.0
      %v3925 = vsel %vm3893, %v3079, 0.0
      %v3926 = vsel %vm3894, %v3078, 0.0
      %v3927 = vsel %vm3895, %v3077, 0.0
      %v3928 = vsel %vm3896, %v3076, 0.0
      %v3929 = vsel %vm3897, %v3075, 0.0
      %v3930 = vsel %vm3898, %v3074, 0.0
      %v3931 = vsel %vm3899, %v3073, 0.0
      %v3932 = vsel %vm3900, %v3072, 0.0
      %v3933 = vsel %vm3901, %v3071, 0.0
      %v3934 = vsel %vm3902, %v3070, 0.0
      %v3935 = vsel %vm3903, %v3069, 0.0
      %v3936 = vsel %vm3904, %v3068, 0.0
      %v3937 = vsel %vm3905, %v3067, 0.0
      %v3938 = vsel %vm3906, %v3066, 0.0
      %v3939 = vsel %vm3907, %v3065, 0.0
      %v3940 = vsel %vm3908, %v3064, 0.0
      %v3941 = vsel %vm3909, %v3063, 0.0
      %v3942 = vsel %vm3910, %v3062, 0.0
      %v3943 = vsel %vm3911, %v3061, 0.0
      %v3944 = vsel %vm3912, %v3060, 0.0
      %v3945 = vsel %vm3913, %v3059, 0.0
      %v3946 = vsel %vm3914, %v3058, 0.0
      %v3947 = vsel %vm3915, %v3057, 0.0
      %v3948 = vsel %vm3916, %v3056, 0.0
      %v3949 = vsel %vm3917, %v3055, 0.0
      %v3950 = vsel %vm3918, %v3086, 0.0
      %v3951 = vsel %vm3791, 1, 0
      %v3952 = vsel %vm3792, 1, 0
      %v3953 = vsel %vm3793, 1, 0
      %v3954 = vsel %vm3794, 1, 0
      %v3955 = vsel %vm3795, 1, 0
      %v3956 = vsel %vm3796, 1, 0
      %v3957 = vsel %vm3797, 1, 0
      %v3958 = vsel %vm3798, 1, 0
      %v3959 = vsel %vm3799, 1, 0
      %v3960 = vsel %vm3800, 1, 0
      %v3961 = vsel %vm3801, 1, 0
      %v3962 = vsel %vm3802, 1, 0
      %v3963 = vsel %vm3803, 1, 0
      %v3964 = vsel %vm3804, 1, 0
      %v3965 = vsel %vm3805, 1, 0
      %v3966 = vsel %vm3806, 1, 0
      %v3967 = vsel %vm3807, 1, 0
      %v3968 = vsel %vm3808, 1, 0
      %v3969 = vsel %vm3809, 1, 0
      %v3970 = vsel %vm3810, 1, 0
      %v3971 = vsel %vm3811, 1, 0
      %v3972 = vsel %vm3812, 1, 0
      %v3973 = vsel %vm3813, 1, 0
      %v3974 = vsel %vm3814, 1, 0
      %v3975 = vsel %vm3815, 1, 0
      %v3976 = vsel %vm3816, 1, 0
      %v3977 = vsel %vm3817, 1, 0
      %v3978 = vsel %vm3818, 1, 0
      %v3979 = vsel %vm3819, 1, 0
      %v3980 = vsel %vm3820, 1, 0
      %v3981 = vsel %vm3821, 1, 0
      %v3982 = vsel %vm3822, 1, 0
      %vm3983 = vcmp.eq.s32.totalorder %v3951, 1
      %vm3984 = vcmp.eq.s32.totalorder %v3952, 1
      %vm3985 = vcmp.eq.s32.totalorder %v3953, 1
      %vm3986 = vcmp.eq.s32.totalorder %v3954, 1
      %vm3987 = vcmp.eq.s32.totalorder %v3955, 1
      %vm3988 = vcmp.eq.s32.totalorder %v3956, 1
      %vm3989 = vcmp.eq.s32.totalorder %v3957, 1
      %vm3990 = vcmp.eq.s32.totalorder %v3958, 1
      %vm3991 = vcmp.eq.s32.totalorder %v3959, 1
      %vm3992 = vcmp.eq.s32.totalorder %v3960, 1
      %vm3993 = vcmp.eq.s32.totalorder %v3961, 1
      %vm3994 = vcmp.eq.s32.totalorder %v3962, 1
      %vm3995 = vcmp.eq.s32.totalorder %v3963, 1
      %vm3996 = vcmp.eq.s32.totalorder %v3964, 1
      %vm3997 = vcmp.eq.s32.totalorder %v3965, 1
      %vm3998 = vcmp.eq.s32.totalorder %v3966, 1
      %vm3999 = vcmp.eq.s32.totalorder %v3967, 1
      %vm4000 = vcmp.eq.s32.totalorder %v3968, 1
      %vm4001 = vcmp.eq.s32.totalorder %v3969, 1
      %vm4002 = vcmp.eq.s32.totalorder %v3970, 1
      %vm4003 = vcmp.eq.s32.totalorder %v3971, 1
      %vm4004 = vcmp.eq.s32.totalorder %v3972, 1
      %vm4005 = vcmp.eq.s32.totalorder %v3973, 1
      %vm4006 = vcmp.eq.s32.totalorder %v3974, 1
      %vm4007 = vcmp.eq.s32.totalorder %v3975, 1
      %vm4008 = vcmp.eq.s32.totalorder %v3976, 1
      %vm4009 = vcmp.eq.s32.totalorder %v3977, 1
      %vm4010 = vcmp.eq.s32.totalorder %v3978, 1
      %vm4011 = vcmp.eq.s32.totalorder %v3979, 1
      %vm4012 = vcmp.eq.s32.totalorder %v3980, 1
      %vm4013 = vcmp.eq.s32.totalorder %v3981, 1
      %vm4014 = vcmp.eq.s32.totalorder %v3982, 1
      %v4015 = vsel %vm3983, %v2553, 0.0
      %v4016 = vsel %vm3984, %v2558, 0.0
      %v4017 = vsel %vm3985, %v2561, 0.0
      %v4018 = vsel %vm3986, %v2566, 0.0
      %v4019 = vsel %vm3987, %v2569, 0.0
      %v4020 = vsel %vm3988, %v2574, 0.0
      %v4021 = vsel %vm3989, %v2577, 0.0
      %v4022 = vsel %vm3990, %v2655, 0.0
      %v4023 = vsel %vm3991, %v2658, 0.0
      %v4024 = vsel %vm3992, %v2663, 0.0
      %v4025 = vsel %vm3993, %v2666, 0.0
      %v4026 = vsel %vm3994, %v2671, 0.0
      %v4027 = vsel %vm3995, %v2674, 0.0
      %v4028 = vsel %vm3996, %v2679, 0.0
      %v4029 = vsel %vm3997, %v2682, 0.0
      %v4030 = vsel %vm3998, %v2760, 0.0
      %v4031 = vsel %vm3999, %v2763, 0.0
      %v4032 = vsel %vm4000, %v2768, 0.0
      %v4033 = vsel %vm4001, %v2771, 0.0
      %v4034 = vsel %vm4002, %v2776, 0.0
      %v4035 = vsel %vm4003, %v2779, 0.0
      %v4036 = vsel %vm4004, %v2784, 0.0
      %v4037 = vsel %vm4005, %v2787, 0.0
      %v4038 = vsel %vm4006, %v2865, 0.0
      %v4039 = vsel %vm4007, %v2868, 0.0
      %v4040 = vsel %vm4008, %v2873, 0.0
      %v4041 = vsel %vm4009, %v2876, 0.0
      %v4042 = vsel %vm4010, %v2881, 0.0
      %v4043 = vsel %vm4011, %v2884, 0.0
      %v4044 = vsel %vm4012, %v2889, 0.0
      %v4045 = vsel %vm4013, %v2892, 0.0
      %v4046 = vsel %vm4014, %v2550, 0.0
      %vm4047 = vmand %vm3791, %vm3439
      %vm4048 = vmand %vm3792, %vm3440
      %vm4049 = vmand %vm3793, %vm3441
      %vm4050 = vmand %vm3794, %vm3442
      %vm4051 = vmand %vm3795, %vm3443
      %vm4052 = vmand %vm3796, %vm3444
      %vm4053 = vmand %vm3797, %vm3445
      %vm4054 = vmand %vm3798, %vm3446
      %vm4055 = vmand %vm3799, %vm3447
      %vm4056 = vmand %vm3800, %vm3448
      %vm4057 = vmand %vm3801, %vm3449
      %vm4058 = vmand %vm3802, %vm3450
      %vm4059 = vmand %vm3803, %vm3451
      %vm4060 = vmand %vm3804, %vm3452
      %vm4061 = vmand %vm3805, %vm3453
      %vm4062 = vmand %vm3806, %vm3454
      %vm4063 = vmand %vm3807, %vm3455
      %vm4064 = vmand %vm3808, %vm3456
      %vm4065 = vmand %vm3809, %vm3457
      %vm4066 = vmand %vm3810, %vm3458
      %vm4067 = vmand %vm3811, %vm3459
      %vm4068 = vmand %vm3812, %vm3460
      %vm4069 = vmand %vm3813, %vm3461
      %vm4070 = vmand %vm3814, %vm3462
      %vm4071 = vmand %vm3815, %vm3463
      %vm4072 = vmand %vm3816, %vm3464
      %vm4073 = vmand %vm3817, %vm3465
      %vm4074 = vmand %vm3818, %vm3466
      %vm4075 = vmand %vm3819, %vm3467
      %vm4076 = vmand %vm3820, %vm3468
      %vm4077 = vmand %vm3821, %vm3469
      %vm4078 = vmand %vm3822, %vm3470
      %v4079 = vsel %vm4047, 1, 0
      %v4080 = vsel %vm4048, 1, 0
      %v4081 = vsel %vm4049, 1, 0
      %v4082 = vsel %vm4050, 1, 0
      %v4083 = vsel %vm4051, 1, 0
      %v4084 = vsel %vm4052, 1, 0
      %v4085 = vsel %vm4053, 1, 0
      %v4086 = vsel %vm4054, 1, 0
      %v4087 = vsel %vm4055, 1, 0
      %v4088 = vsel %vm4056, 1, 0
      %v4089 = vsel %vm4057, 1, 0
      %v4090 = vsel %vm4058, 1, 0
      %v4091 = vsel %vm4059, 1, 0
      %v4092 = vsel %vm4060, 1, 0
      %v4093 = vsel %vm4061, 1, 0
      %v4094 = vsel %vm4062, 1, 0
      %v4095 = vsel %vm4063, 1, 0
      %v4096 = vsel %vm4064, 1, 0
      %v4097 = vsel %vm4065, 1, 0
      %v4098 = vsel %vm4066, 1, 0
      %v4099 = vsel %vm4067, 1, 0
      %v4100 = vsel %vm4068, 1, 0
      %v4101 = vsel %vm4069, 1, 0
      %v4102 = vsel %vm4070, 1, 0
      %v4103 = vsel %vm4071, 1, 0
      %v4104 = vsel %vm4072, 1, 0
      %v4105 = vsel %vm4073, 1, 0
      %v4106 = vsel %vm4074, 1, 0
      %v4107 = vsel %vm4075, 1, 0
      %v4108 = vsel %vm4076, 1, 0
      %v4109 = vsel %vm4077, 1, 0
      %v4110 = vsel %vm4078, 1, 0
      %vm4111 = vcmp.eq.s32.totalorder %v4079, 1
      %vm4112 = vcmp.eq.s32.totalorder %v4080, 1
      %vm4113 = vcmp.eq.s32.totalorder %v4081, 1
      %vm4114 = vcmp.eq.s32.totalorder %v4082, 1
      %vm4115 = vcmp.eq.s32.totalorder %v4083, 1
      %vm4116 = vcmp.eq.s32.totalorder %v4084, 1
      %vm4117 = vcmp.eq.s32.totalorder %v4085, 1
      %vm4118 = vcmp.eq.s32.totalorder %v4086, 1
      %vm4119 = vcmp.eq.s32.totalorder %v4087, 1
      %vm4120 = vcmp.eq.s32.totalorder %v4088, 1
      %vm4121 = vcmp.eq.s32.totalorder %v4089, 1
      %vm4122 = vcmp.eq.s32.totalorder %v4090, 1
      %vm4123 = vcmp.eq.s32.totalorder %v4091, 1
      %vm4124 = vcmp.eq.s32.totalorder %v4092, 1
      %vm4125 = vcmp.eq.s32.totalorder %v4093, 1
      %vm4126 = vcmp.eq.s32.totalorder %v4094, 1
      %vm4127 = vcmp.eq.s32.totalorder %v4095, 1
      %vm4128 = vcmp.eq.s32.totalorder %v4096, 1
      %vm4129 = vcmp.eq.s32.totalorder %v4097, 1
      %vm4130 = vcmp.eq.s32.totalorder %v4098, 1
      %vm4131 = vcmp.eq.s32.totalorder %v4099, 1
      %vm4132 = vcmp.eq.s32.totalorder %v4100, 1
      %vm4133 = vcmp.eq.s32.totalorder %v4101, 1
      %vm4134 = vcmp.eq.s32.totalorder %v4102, 1
      %vm4135 = vcmp.eq.s32.totalorder %v4103, 1
      %vm4136 = vcmp.eq.s32.totalorder %v4104, 1
      %vm4137 = vcmp.eq.s32.totalorder %v4105, 1
      %vm4138 = vcmp.eq.s32.totalorder %v4106, 1
      %vm4139 = vcmp.eq.s32.totalorder %v4107, 1
      %vm4140 = vcmp.eq.s32.totalorder %v4108, 1
      %vm4141 = vcmp.eq.s32.totalorder %v4109, 1
      %vm4142 = vcmp.eq.s32.totalorder %v4110, 1
      %v4143 = vsel %vm4111, %v3436, 0.0
      %v4144 = vsel %vm4112, %v3435, 0.0
      %v4145 = vsel %vm4113, %v3434, 0.0
      %v4146 = vsel %vm4114, %v3433, 0.0
      %v4147 = vsel %vm4115, %v3432, 0.0
      %v4148 = vsel %vm4116, %v3431, 0.0
      %v4149 = vsel %vm4117, %v3430, 0.0
      %v4150 = vsel %vm4118, %v3429, 0.0
      %v4151 = vsel %vm4119, %v3428, 0.0
      %v4152 = vsel %vm4120, %v3427, 0.0
      %v4153 = vsel %vm4121, %v3426, 0.0
      %v4154 = vsel %vm4122, %v3425, 0.0
      %v4155 = vsel %vm4123, %v3424, 0.0
      %v4156 = vsel %vm4124, %v3423, 0.0
      %v4157 = vsel %vm4125, %v3422, 0.0
      %v4158 = vsel %vm4126, %v3421, 0.0
      %v4159 = vsel %vm4127, %v3420, 0.0
      %v4160 = vsel %vm4128, %v3419, 0.0
      %v4161 = vsel %vm4129, %v3418, 0.0
      %v4162 = vsel %vm4130, %v3417, 0.0
      %v4163 = vsel %vm4131, %v3416, 0.0
      %v4164 = vsel %vm4132, %v3415, 0.0
      %v4165 = vsel %vm4133, %v3414, 0.0
      %v4166 = vsel %vm4134, %v3413, 0.0
      %v4167 = vsel %vm4135, %v3412, 0.0
      %v4168 = vsel %vm4136, %v3411, 0.0
      %v4169 = vsel %vm4137, %v3410, 0.0
      %v4170 = vsel %vm4138, %v3409, 0.0
      %v4171 = vsel %vm4139, %v3408, 0.0
      %v4172 = vsel %vm4140, %v3407, 0.0
      %v4173 = vsel %vm4141, %v3438, 0.0
      %v4174 = vsel %vm4142, %v3437, 0.0
      %4207 = vrot.lane.b32.xlu0 %v3343, 32
      %v4208 = vpop.permute.xlu0 %4207
      %4209 = vrot.lane.b32.xlu0 %v3344, 32
      %v4210 = vpop.permute.xlu0 %4209
      %4211 = vrot.lane.b32.xlu0 %v3345, 32
      %v4212 = vpop.permute.xlu0 %4211
      %4213 = vrot.lane.b32.xlu0 %v3346, 32
      %v4214 = vpop.permute.xlu0 %4213
      %4215 = vrot.lane.b32.xlu0 %v3347, 32
      %v4216 = vpop.permute.xlu0 %4215
      %4217 = vrot.lane.b32.xlu0 %v3348, 32
      %v4218 = vpop.permute.xlu0 %4217
      %4219 = vrot.lane.b32.xlu0 %v3349, 32
      %v4220 = vpop.permute.xlu0 %4219
      %4221 = vrot.lane.b32.xlu0 %v3350, 32
      %v4222 = vpop.permute.xlu0 %4221
      %4223 = vrot.lane.b32.xlu0 %v3351, 32
      %v4224 = vpop.permute.xlu0 %4223
      %4225 = vrot.lane.b32.xlu0 %v3352, 32
      %v4226 = vpop.permute.xlu0 %4225
      %4227 = vrot.lane.b32.xlu0 %v3353, 32
      %v4228 = vpop.permute.xlu0 %4227
      %4229 = vrot.lane.b32.xlu0 %v3354, 32
      %v4230 = vpop.permute.xlu0 %4229
      %4231 = vrot.lane.b32.xlu0 %v3355, 32
      %v4232 = vpop.permute.xlu0 %4231
      %4233 = vrot.lane.b32.xlu0 %v3356, 32
      %v4234 = vpop.permute.xlu0 %4233
      %4235 = vrot.lane.b32.xlu0 %v3357, 32
      %v4236 = vpop.permute.xlu0 %4235
      %4237 = vrot.lane.b32.xlu0 %v3358, 32
      %v4238 = vpop.permute.xlu0 %4237
      %4239 = vrot.lane.b32.xlu0 %v3359, 32
      %v4240 = vpop.permute.xlu0 %4239
      %4241 = vrot.lane.b32.xlu0 %v3360, 32
      %v4242 = vpop.permute.xlu0 %4241
      %4243 = vrot.lane.b32.xlu0 %v3361, 32
      %v4244 = vpop.permute.xlu0 %4243
      %4245 = vrot.lane.b32.xlu0 %v3362, 32
      %v4246 = vpop.permute.xlu0 %4245
      %4247 = vrot.lane.b32.xlu0 %v3363, 32
      %v4248 = vpop.permute.xlu0 %4247
      %4249 = vrot.lane.b32.xlu0 %v3364, 32
      %v4250 = vpop.permute.xlu0 %4249
      %4251 = vrot.lane.b32.xlu0 %v3365, 32
      %v4252 = vpop.permute.xlu0 %4251
      %4253 = vrot.lane.b32.xlu0 %v3366, 32
      %v4254 = vpop.permute.xlu0 %4253
      %4255 = vrot.lane.b32.xlu0 %v3367, 32
      %v4256 = vpop.permute.xlu0 %4255
      %4257 = vrot.lane.b32.xlu0 %v3368, 32
      %v4258 = vpop.permute.xlu0 %4257
      %4259 = vrot.lane.b32.xlu0 %v3369, 32
      %v4260 = vpop.permute.xlu0 %4259
      %4261 = vrot.lane.b32.xlu0 %v3370, 32
      %v4262 = vpop.permute.xlu0 %4261
      %4263 = vrot.lane.b32.xlu0 %v3371, 32
      %v4264 = vpop.permute.xlu0 %4263
      %4265 = vrot.lane.b32.xlu0 %v3372, 32
      %v4266 = vpop.permute.xlu0 %4265
      %4267 = vrot.lane.b32.xlu0 %v3373, 32
      %v4268 = vpop.permute.xlu0 %4267
      %4269 = vrot.lane.b32.xlu0 %v3374, 32
      %v4270 = vpop.permute.xlu0 %4269
      %4335 = vrot.lane.b32.xlu0 %v3567, 64
      %v4336 = vpop.permute.xlu0 %4335
      %4337 = vrot.lane.b32.xlu0 %v3568, 64
      %v4338 = vpop.permute.xlu0 %4337
      %4339 = vrot.lane.b32.xlu0 %v3569, 64
      %v4340 = vpop.permute.xlu0 %4339
      %4341 = vrot.lane.b32.xlu0 %v3570, 64
      %v4342 = vpop.permute.xlu0 %4341
      %4343 = vrot.lane.b32.xlu0 %v3571, 64
      %v4344 = vpop.permute.xlu0 %4343
      %4345 = vrot.lane.b32.xlu0 %v3572, 64
      %v4346 = vpop.permute.xlu0 %4345
      %4347 = vrot.lane.b32.xlu0 %v3573, 64
      %v4348 = vpop.permute.xlu0 %4347
      %4349 = vrot.lane.b32.xlu0 %v3574, 64
      %v4350 = vpop.permute.xlu0 %4349
      %4351 = vrot.lane.b32.xlu0 %v3575, 64
      %v4352 = vpop.permute.xlu0 %4351
      %4353 = vrot.lane.b32.xlu0 %v3576, 64
      %v4354 = vpop.permute.xlu0 %4353
      %4355 = vrot.lane.b32.xlu0 %v3577, 64
      %v4356 = vpop.permute.xlu0 %4355
      %4357 = vrot.lane.b32.xlu0 %v3578, 64
      %v4358 = vpop.permute.xlu0 %4357
      %4359 = vrot.lane.b32.xlu0 %v3579, 64
      %v4360 = vpop.permute.xlu0 %4359
      %4361 = vrot.lane.b32.xlu0 %v3580, 64
      %v4362 = vpop.permute.xlu0 %4361
      %4363 = vrot.lane.b32.xlu0 %v3581, 64
      %v4364 = vpop.permute.xlu0 %4363
      %4365 = vrot.lane.b32.xlu0 %v3582, 64
      %v4366 = vpop.permute.xlu0 %4365
      %4367 = vrot.lane.b32.xlu0 %v3583, 64
      %v4368 = vpop.permute.xlu0 %4367
      %4369 = vrot.lane.b32.xlu0 %v3584, 64
      %v4370 = vpop.permute.xlu0 %4369
      %4371 = vrot.lane.b32.xlu0 %v3585, 64
      %v4372 = vpop.permute.xlu0 %4371
      %4373 = vrot.lane.b32.xlu0 %v3586, 64
      %v4374 = vpop.permute.xlu0 %4373
      %4375 = vrot.lane.b32.xlu0 %v3587, 64
      %v4376 = vpop.permute.xlu0 %4375
      %4377 = vrot.lane.b32.xlu0 %v3588, 64
      %v4378 = vpop.permute.xlu0 %4377
      %4379 = vrot.lane.b32.xlu0 %v3589, 64
      %v4380 = vpop.permute.xlu0 %4379
      %4381 = vrot.lane.b32.xlu0 %v3590, 64
      %v4382 = vpop.permute.xlu0 %4381
      %4383 = vrot.lane.b32.xlu0 %v3591, 64
      %v4384 = vpop.permute.xlu0 %4383
      %4385 = vrot.lane.b32.xlu0 %v3592, 64
      %v4386 = vpop.permute.xlu0 %4385
      %4387 = vrot.lane.b32.xlu0 %v3593, 64
      %v4388 = vpop.permute.xlu0 %4387
      %4389 = vrot.lane.b32.xlu0 %v3594, 64
      %v4390 = vpop.permute.xlu0 %4389
      %4391 = vrot.lane.b32.xlu0 %v3595, 64
      %v4392 = vpop.permute.xlu0 %4391
      %4393 = vrot.lane.b32.xlu0 %v3596, 64
      %v4394 = vpop.permute.xlu0 %4393
      %4395 = vrot.lane.b32.xlu0 %v3597, 64
      %v4396 = vpop.permute.xlu0 %4395
      %4397 = vrot.lane.b32.xlu0 %v3598, 64
      %v4398 = vpop.permute.xlu0 %4397
      %4463 = vrot.lane.b32.xlu0 %v3663, 96
      %v4464 = vpop.permute.xlu0 %4463
      %4465 = vrot.lane.b32.xlu0 %v3664, 96
      %v4466 = vpop.permute.xlu0 %4465
      %4467 = vrot.lane.b32.xlu0 %v3665, 96
      %v4468 = vpop.permute.xlu0 %4467
      %4469 = vrot.lane.b32.xlu0 %v3666, 96
      %v4470 = vpop.permute.xlu0 %4469
      %4471 = vrot.lane.b32.xlu0 %v3667, 96
      %v4472 = vpop.permute.xlu0 %4471
      %4473 = vrot.lane.b32.xlu0 %v3668, 96
      %v4474 = vpop.permute.xlu0 %4473
      %4475 = vrot.lane.b32.xlu0 %v3669, 96
      %v4476 = vpop.permute.xlu0 %4475
      %4477 = vrot.lane.b32.xlu0 %v3670, 96
      %v4478 = vpop.permute.xlu0 %4477
      %4479 = vrot.lane.b32.xlu0 %v3671, 96
      %v4480 = vpop.permute.xlu0 %4479
      %4481 = vrot.lane.b32.xlu0 %v3672, 96
      %v4482 = vpop.permute.xlu0 %4481
      %4483 = vrot.lane.b32.xlu0 %v3673, 96
      %v4484 = vpop.permute.xlu0 %4483
      %4485 = vrot.lane.b32.xlu0 %v3674, 96
      %v4486 = vpop.permute.xlu0 %4485
      %4487 = vrot.lane.b32.xlu0 %v3675, 96
      %v4488 = vpop.permute.xlu0 %4487
      %4489 = vrot.lane.b32.xlu0 %v3676, 96
      %v4490 = vpop.permute.xlu0 %4489
      %4491 = vrot.lane.b32.xlu0 %v3677, 96
      %v4492 = vpop.permute.xlu0 %4491
      %4493 = vrot.lane.b32.xlu0 %v3678, 96
      %v4494 = vpop.permute.xlu0 %4493
      %4495 = vrot.lane.b32.xlu0 %v3679, 96
      %v4496 = vpop.permute.xlu0 %4495
      %4497 = vrot.lane.b32.xlu0 %v3680, 96
      %v4498 = vpop.permute.xlu0 %4497
      %4499 = vrot.lane.b32.xlu0 %v3681, 96
      %v4500 = vpop.permute.xlu0 %4499
      %4501 = vrot.lane.b32.xlu0 %v3682, 96
      %v4502 = vpop.permute.xlu0 %4501
      %4503 = vrot.lane.b32.xlu0 %v3683, 96
      %v4504 = vpop.permute.xlu0 %4503
      %4505 = vrot.lane.b32.xlu0 %v3684, 96
      %v4506 = vpop.permute.xlu0 %4505
      %4507 = vrot.lane.b32.xlu0 %v3685, 96
      %v4508 = vpop.permute.xlu0 %4507
      %4509 = vrot.lane.b32.xlu0 %v3686, 96
      %v4510 = vpop.permute.xlu0 %4509
      %4511 = vrot.lane.b32.xlu0 %v3687, 96
      %v4512 = vpop.permute.xlu0 %4511
      %4513 = vrot.lane.b32.xlu0 %v3688, 96
      %v4514 = vpop.permute.xlu0 %4513
      %4515 = vrot.lane.b32.xlu0 %v3689, 96
      %v4516 = vpop.permute.xlu0 %4515
      %4517 = vrot.lane.b32.xlu0 %v3690, 96
      %v4518 = vpop.permute.xlu0 %4517
      %4519 = vrot.lane.b32.xlu0 %v3691, 96
      %v4520 = vpop.permute.xlu0 %4519
      %4521 = vrot.lane.b32.xlu0 %v3692, 96
      %v4522 = vpop.permute.xlu0 %4521
      %4523 = vrot.lane.b32.xlu0 %v3693, 96
      %v4524 = vpop.permute.xlu0 %4523
      %4525 = vrot.lane.b32.xlu0 %v3694, 96
      %v4526 = vpop.permute.xlu0 %4525
      %4591 = vrot.lane.b32.xlu0 %v3759, 32
      %v4592 = vpop.permute.xlu0 %4591
      %4593 = vrot.lane.b32.xlu0 %v3760, 32
      %v4594 = vpop.permute.xlu0 %4593
      %4595 = vrot.lane.b32.xlu0 %v3761, 32
      %v4596 = vpop.permute.xlu0 %4595
      %4597 = vrot.lane.b32.xlu0 %v3762, 32
      %v4598 = vpop.permute.xlu0 %4597
      %4599 = vrot.lane.b32.xlu0 %v3763, 32
      %v4600 = vpop.permute.xlu0 %4599
      %4601 = vrot.lane.b32.xlu0 %v3764, 32
      %v4602 = vpop.permute.xlu0 %4601
      %4603 = vrot.lane.b32.xlu0 %v3765, 32
      %v4604 = vpop.permute.xlu0 %4603
      %4605 = vrot.lane.b32.xlu0 %v3766, 32
      %v4606 = vpop.permute.xlu0 %4605
      %4607 = vrot.lane.b32.xlu0 %v3767, 32
      %v4608 = vpop.permute.xlu0 %4607
      %4609 = vrot.lane.b32.xlu0 %v3768, 32
      %v4610 = vpop.permute.xlu0 %4609
      %4611 = vrot.lane.b32.xlu0 %v3769, 32
      %v4612 = vpop.permute.xlu0 %4611
      %4613 = vrot.lane.b32.xlu0 %v3770, 32
      %v4614 = vpop.permute.xlu0 %4613
      %4615 = vrot.lane.b32.xlu0 %v3771, 32
      %v4616 = vpop.permute.xlu0 %4615
      %4617 = vrot.lane.b32.xlu0 %v3772, 32
      %v4618 = vpop.permute.xlu0 %4617
      %4619 = vrot.lane.b32.xlu0 %v3773, 32
      %v4620 = vpop.permute.xlu0 %4619
      %4621 = vrot.lane.b32.xlu0 %v3774, 32
      %v4622 = vpop.permute.xlu0 %4621
      %4623 = vrot.lane.b32.xlu0 %v3775, 32
      %v4624 = vpop.permute.xlu0 %4623
      %4625 = vrot.lane.b32.xlu0 %v3776, 32
      %v4626 = vpop.permute.xlu0 %4625
      %4627 = vrot.lane.b32.xlu0 %v3777, 32
      %v4628 = vpop.permute.xlu0 %4627
      %4629 = vrot.lane.b32.xlu0 %v3778, 32
      %v4630 = vpop.permute.xlu0 %4629
      %4631 = vrot.lane.b32.xlu0 %v3779, 32
      %v4632 = vpop.permute.xlu0 %4631
      %4633 = vrot.lane.b32.xlu0 %v3780, 32
      %v4634 = vpop.permute.xlu0 %4633
      %4635 = vrot.lane.b32.xlu0 %v3781, 32
      %v4636 = vpop.permute.xlu0 %4635
      %4637 = vrot.lane.b32.xlu0 %v3782, 32
      %v4638 = vpop.permute.xlu0 %4637
      %4639 = vrot.lane.b32.xlu0 %v3783, 32
      %v4640 = vpop.permute.xlu0 %4639
      %4641 = vrot.lane.b32.xlu0 %v3784, 32
      %v4642 = vpop.permute.xlu0 %4641
      %4643 = vrot.lane.b32.xlu0 %v3785, 32
      %v4644 = vpop.permute.xlu0 %4643
      %4645 = vrot.lane.b32.xlu0 %v3786, 32
      %v4646 = vpop.permute.xlu0 %4645
      %4647 = vrot.lane.b32.xlu0 %v3787, 32
      %v4648 = vpop.permute.xlu0 %4647
      %4649 = vrot.lane.b32.xlu0 %v3788, 32
      %v4650 = vpop.permute.xlu0 %4649
      %4651 = vrot.lane.b32.xlu0 %v3789, 32
      %v4652 = vpop.permute.xlu0 %4651
      %4653 = vrot.lane.b32.xlu0 %v3790, 32
      %v4654 = vpop.permute.xlu0 %4653
      %4719 = vrot.lane.b32.xlu0 %v3919, 64
      %v4720 = vpop.permute.xlu0 %4719
      %4721 = vrot.lane.b32.xlu0 %v3920, 64
      %v4722 = vpop.permute.xlu0 %4721
      %4723 = vrot.lane.b32.xlu0 %v3921, 64
      %v4724 = vpop.permute.xlu0 %4723
      %4725 = vrot.lane.b32.xlu0 %v3922, 64
      %v4726 = vpop.permute.xlu0 %4725
      %4727 = vrot.lane.b32.xlu0 %v3923, 64
      %v4728 = vpop.permute.xlu0 %4727
      %4729 = vrot.lane.b32.xlu0 %v3924, 64
      %v4730 = vpop.permute.xlu0 %4729
      %4731 = vrot.lane.b32.xlu0 %v3925, 64
      %v4732 = vpop.permute.xlu0 %4731
      %4733 = vrot.lane.b32.xlu0 %v3926, 64
      %v4734 = vpop.permute.xlu0 %4733
      %4735 = vrot.lane.b32.xlu0 %v3927, 64
      %v4736 = vpop.permute.xlu0 %4735
      %4737 = vrot.lane.b32.xlu0 %v3928, 64
      %v4738 = vpop.permute.xlu0 %4737
      %4739 = vrot.lane.b32.xlu0 %v3929, 64
      %v4740 = vpop.permute.xlu0 %4739
      %4741 = vrot.lane.b32.xlu0 %v3930, 64
      %v4742 = vpop.permute.xlu0 %4741
      %4743 = vrot.lane.b32.xlu0 %v3931, 64
      %v4744 = vpop.permute.xlu0 %4743
      %4745 = vrot.lane.b32.xlu0 %v3932, 64
      %v4746 = vpop.permute.xlu0 %4745
      %4747 = vrot.lane.b32.xlu0 %v3933, 64
      %v4748 = vpop.permute.xlu0 %4747
      %4749 = vrot.lane.b32.xlu0 %v3934, 64
      %v4750 = vpop.permute.xlu0 %4749
      %4751 = vrot.lane.b32.xlu0 %v3935, 64
      %v4752 = vpop.permute.xlu0 %4751
      %4753 = vrot.lane.b32.xlu0 %v3936, 64
      %v4754 = vpop.permute.xlu0 %4753
      %4755 = vrot.lane.b32.xlu0 %v3937, 64
      %v4756 = vpop.permute.xlu0 %4755
      %4757 = vrot.lane.b32.xlu0 %v3938, 64
      %v4758 = vpop.permute.xlu0 %4757
      %4759 = vrot.lane.b32.xlu0 %v3939, 64
      %v4760 = vpop.permute.xlu0 %4759
      %4761 = vrot.lane.b32.xlu0 %v3940, 64
      %v4762 = vpop.permute.xlu0 %4761
      %4763 = vrot.lane.b32.xlu0 %v3941, 64
      %v4764 = vpop.permute.xlu0 %4763
      %4765 = vrot.lane.b32.xlu0 %v3942, 64
      %v4766 = vpop.permute.xlu0 %4765
      %4767 = vrot.lane.b32.xlu0 %v3943, 64
      %v4768 = vpop.permute.xlu0 %4767
      %4769 = vrot.lane.b32.xlu0 %v3944, 64
      %v4770 = vpop.permute.xlu0 %4769
      %4771 = vrot.lane.b32.xlu0 %v3945, 64
      %v4772 = vpop.permute.xlu0 %4771
      %4773 = vrot.lane.b32.xlu0 %v3946, 64
      %v4774 = vpop.permute.xlu0 %4773
      %4775 = vrot.lane.b32.xlu0 %v3947, 64
      %v4776 = vpop.permute.xlu0 %4775
      %4777 = vrot.lane.b32.xlu0 %v3948, 64
      %v4778 = vpop.permute.xlu0 %4777
      %4779 = vrot.lane.b32.xlu0 %v3949, 64
      %v4780 = vpop.permute.xlu0 %4779
      %4781 = vrot.lane.b32.xlu0 %v3950, 64
      %v4782 = vpop.permute.xlu0 %4781
      %4847 = vrot.lane.b32.xlu0 %v4015, 96
      %v4848 = vpop.permute.xlu0 %4847
      %4849 = vrot.lane.b32.xlu0 %v4016, 96
      %v4850 = vpop.permute.xlu0 %4849
      %4851 = vrot.lane.b32.xlu0 %v4017, 96
      %v4852 = vpop.permute.xlu0 %4851
      %4853 = vrot.lane.b32.xlu0 %v4018, 96
      %v4854 = vpop.permute.xlu0 %4853
      %4855 = vrot.lane.b32.xlu0 %v4019, 96
      %v4856 = vpop.permute.xlu0 %4855
      %4857 = vrot.lane.b32.xlu0 %v4020, 96
      %v4858 = vpop.permute.xlu0 %4857
      %4859 = vrot.lane.b32.xlu0 %v4021, 96
      %v4860 = vpop.permute.xlu0 %4859
      %4861 = vrot.lane.b32.xlu0 %v4022, 96
      %v4862 = vpop.permute.xlu0 %4861
      %4863 = vrot.lane.b32.xlu0 %v4023, 96
      %v4864 = vpop.permute.xlu0 %4863
      %4865 = vrot.lane.b32.xlu0 %v4024, 96
      %v4866 = vpop.permute.xlu0 %4865
      %4867 = vrot.lane.b32.xlu0 %v4025, 96
      %v4868 = vpop.permute.xlu0 %4867
      %4869 = vrot.lane.b32.xlu0 %v4026, 96
      %v4870 = vpop.permute.xlu0 %4869
      %4871 = vrot.lane.b32.xlu0 %v4027, 96
      %v4872 = vpop.permute.xlu0 %4871
      %4873 = vrot.lane.b32.xlu0 %v4028, 96
      %v4874 = vpop.permute.xlu0 %4873
      %4875 = vrot.lane.b32.xlu0 %v4029, 96
      %v4876 = vpop.permute.xlu0 %4875
      %4877 = vrot.lane.b32.xlu0 %v4030, 96
      %v4878 = vpop.permute.xlu0 %4877
      %4879 = vrot.lane.b32.xlu0 %v4031, 96
      %v4880 = vpop.permute.xlu0 %4879
      %4881 = vrot.lane.b32.xlu0 %v4032, 96
      %v4882 = vpop.permute.xlu0 %4881
      %4883 = vrot.lane.b32.xlu0 %v4033, 96
      %v4884 = vpop.permute.xlu0 %4883
      %4885 = vrot.lane.b32.xlu0 %v4034, 96
      %v4886 = vpop.permute.xlu0 %4885
      %4887 = vrot.lane.b32.xlu0 %v4035, 96
      %v4888 = vpop.permute.xlu0 %4887
      %4889 = vrot.lane.b32.xlu0 %v4036, 96
      %v4890 = vpop.permute.xlu0 %4889
      %4891 = vrot.lane.b32.xlu0 %v4037, 96
      %v4892 = vpop.permute.xlu0 %4891
      %4893 = vrot.lane.b32.xlu0 %v4038, 96
      %v4894 = vpop.permute.xlu0 %4893
      %4895 = vrot.lane.b32.xlu0 %v4039, 96
      %v4896 = vpop.permute.xlu0 %4895
      %4897 = vrot.lane.b32.xlu0 %v4040, 96
      %v4898 = vpop.permute.xlu0 %4897
      %4899 = vrot.lane.b32.xlu0 %v4041, 96
      %v4900 = vpop.permute.xlu0 %4899
      %4901 = vrot.lane.b32.xlu0 %v4042, 96
      %v4902 = vpop.permute.xlu0 %4901
      %4903 = vrot.lane.b32.xlu0 %v4043, 96
      %v4904 = vpop.permute.xlu0 %4903
      %4905 = vrot.lane.b32.xlu0 %v4044, 96
      %v4906 = vpop.permute.xlu0 %4905
      %4907 = vrot.lane.b32.xlu0 %v4045, 96
      %v4908 = vpop.permute.xlu0 %4907
      %4909 = vrot.lane.b32.xlu0 %v4046, 96
      %v4910 = vpop.permute.xlu0 %4909
      %vm4943 = vcmask 261120
      %v4944 = vsel %vm4943, %v3247, %v4208
      %v4945 = vsel %vm4943, %v3248, %v4210
      %v4946 = vsel %vm4943, %v3249, %v4212
      %v4947 = vsel %vm4943, %v3250, %v4214
      %v4948 = vsel %vm4943, %v3251, %v4216
      %v4949 = vsel %vm4943, %v3252, %v4218
      %v4950 = vsel %vm4943, %v3253, %v4220
      %v4951 = vsel %vm4943, %v3254, %v4222
      %v4952 = vsel %vm4943, %v3255, %v4224
      %v4953 = vsel %vm4943, %v3256, %v4226
      %v4954 = vsel %vm4943, %v3257, %v4228
      %v4955 = vsel %vm4943, %v3258, %v4230
      %v4956 = vsel %vm4943, %v3259, %v4232
      %v4957 = vsel %vm4943, %v3260, %v4234
      %v4958 = vsel %vm4943, %v3261, %v4236
      %v4959 = vsel %vm4943, %v3262, %v4238
      %v4960 = vsel %vm4943, %v3263, %v4240
      %v4961 = vsel %vm4943, %v3264, %v4242
      %v4962 = vsel %vm4943, %v3265, %v4244
      %v4963 = vsel %vm4943, %v3266, %v4246
      %v4964 = vsel %vm4943, %v3267, %v4248
      %v4965 = vsel %vm4943, %v3268, %v4250
      %v4966 = vsel %vm4943, %v3269, %v4252
      %v4967 = vsel %vm4943, %v3270, %v4254
      %v4968 = vsel %vm4943, %v3271, %v4256
      %v4969 = vsel %vm4943, %v3272, %v4258
      %v4970 = vsel %vm4943, %v3273, %v4260
      %v4971 = vsel %vm4943, %v3274, %v4262
      %v4972 = vsel %vm4943, %v3275, %v4264
      %v4973 = vsel %vm4943, %v3276, %v4266
      %v4974 = vsel %vm4943, %v3277, %v4268
      %v4975 = vsel %vm4943, %v3278, %v4270
      %vm4976 = vcmask 523264
      %v4977 = vsel %vm4976, %v4944, %v4336
      %v4978 = vsel %vm4976, %v4945, %v4338
      %v4979 = vsel %vm4976, %v4946, %v4340
      %v4980 = vsel %vm4976, %v4947, %v4342
      %v4981 = vsel %vm4976, %v4948, %v4344
      %v4982 = vsel %vm4976, %v4949, %v4346
      %v4983 = vsel %vm4976, %v4950, %v4348
      %v4984 = vsel %vm4976, %v4951, %v4350
      %v4985 = vsel %vm4976, %v4952, %v4352
      %v4986 = vsel %vm4976, %v4953, %v4354
      %v4987 = vsel %vm4976, %v4954, %v4356
      %v4988 = vsel %vm4976, %v4955, %v4358
      %v4989 = vsel %vm4976, %v4956, %v4360
      %v4990 = vsel %vm4976, %v4957, %v4362
      %v4991 = vsel %vm4976, %v4958, %v4364
      %v4992 = vsel %vm4976, %v4959, %v4366
      %v4993 = vsel %vm4976, %v4960, %v4368
      %v4994 = vsel %vm4976, %v4961, %v4370
      %v4995 = vsel %vm4976, %v4962, %v4372
      %v4996 = vsel %vm4976, %v4963, %v4374
      %v4997 = vsel %vm4976, %v4964, %v4376
      %v4998 = vsel %vm4976, %v4965, %v4378
      %v4999 = vsel %vm4976, %v4966, %v4380
      %v5000 = vsel %vm4976, %v4967, %v4382
      %v5001 = vsel %vm4976, %v4968, %v4384
      %v5002 = vsel %vm4976, %v4969, %v4386
      %v5003 = vsel %vm4976, %v4970, %v4388
      %v5004 = vsel %vm4976, %v4971, %v4390
      %v5005 = vsel %vm4976, %v4972, %v4392
      %v5006 = vsel %vm4976, %v4973, %v4394
      %v5007 = vsel %vm4976, %v4974, %v4396
      %v5008 = vsel %vm4976, %v4975, %v4398
      %vm5009 = vcmask 785408
      %v5010 = vsel %vm5009, %v4977, %v4464
      %v5011 = vsel %vm5009, %v4978, %v4466
      %v5012 = vsel %vm5009, %v4979, %v4468
      %v5013 = vsel %vm5009, %v4980, %v4470
      %v5014 = vsel %vm5009, %v4981, %v4472
      %v5015 = vsel %vm5009, %v4982, %v4474
      %v5016 = vsel %vm5009, %v4983, %v4476
      %v5017 = vsel %vm5009, %v4984, %v4478
      %v5018 = vsel %vm5009, %v4985, %v4480
      %v5019 = vsel %vm5009, %v4986, %v4482
      %v5020 = vsel %vm5009, %v4987, %v4484
      %v5021 = vsel %vm5009, %v4988, %v4486
      %v5022 = vsel %vm5009, %v4989, %v4488
      %v5023 = vsel %vm5009, %v4990, %v4490
      %v5024 = vsel %vm5009, %v4991, %v4492
      %v5025 = vsel %vm5009, %v4992, %v4494
      %v5026 = vsel %vm5009, %v4993, %v4496
      %v5027 = vsel %vm5009, %v4994, %v4498
      %v5028 = vsel %vm5009, %v4995, %v4500
      %v5029 = vsel %vm5009, %v4996, %v4502
      %v5030 = vsel %vm5009, %v4997, %v4504
      %v5031 = vsel %vm5009, %v4998, %v4506
      %v5032 = vsel %vm5009, %v4999, %v4508
      %v5033 = vsel %vm5009, %v5000, %v4510
      %v5034 = vsel %vm5009, %v5001, %v4512
      %v5035 = vsel %vm5009, %v5002, %v4514
      %v5036 = vsel %vm5009, %v5003, %v4516
      %v5037 = vsel %vm5009, %v5004, %v4518
      %v5038 = vsel %vm5009, %v5005, %v4520
      %v5039 = vsel %vm5009, %v5006, %v4522
      %v5040 = vsel %vm5009, %v5007, %v4524
      %v5041 = vsel %vm5009, %v5008, %v4526
      %v5042 = vsel %vm4943, %v2550, %v4592
      %v5043 = vsel %vm4943, %v2553, %v4594
      %v5044 = vsel %vm4943, %v2558, %v4596
      %v5045 = vsel %vm4943, %v2561, %v4598
      %v5046 = vsel %vm4943, %v2566, %v4600
      %v5047 = vsel %vm4943, %v2569, %v4602
      %v5048 = vsel %vm4943, %v2574, %v4604
      %v5049 = vsel %vm4943, %v2577, %v4606
      %v5050 = vsel %vm4943, %v2655, %v4608
      %v5051 = vsel %vm4943, %v2658, %v4610
      %v5052 = vsel %vm4943, %v2663, %v4612
      %v5053 = vsel %vm4943, %v2666, %v4614
      %v5054 = vsel %vm4943, %v2671, %v4616
      %v5055 = vsel %vm4943, %v2674, %v4618
      %v5056 = vsel %vm4943, %v2679, %v4620
      %v5057 = vsel %vm4943, %v2682, %v4622
      %v5058 = vsel %vm4943, %v2760, %v4624
      %v5059 = vsel %vm4943, %v2763, %v4626
      %v5060 = vsel %vm4943, %v2768, %v4628
      %v5061 = vsel %vm4943, %v2771, %v4630
      %v5062 = vsel %vm4943, %v2776, %v4632
      %v5063 = vsel %vm4943, %v2779, %v4634
      %v5064 = vsel %vm4943, %v2784, %v4636
      %v5065 = vsel %vm4943, %v2787, %v4638
      %v5066 = vsel %vm4943, %v2865, %v4640
      %v5067 = vsel %vm4943, %v2868, %v4642
      %v5068 = vsel %vm4943, %v2873, %v4644
      %v5069 = vsel %vm4943, %v2876, %v4646
      %v5070 = vsel %vm4943, %v2881, %v4648
      %v5071 = vsel %vm4943, %v2884, %v4650
      %v5072 = vsel %vm4943, %v2889, %v4652
      %v5073 = vsel %vm4943, %v2892, %v4654
      %v5074 = vsel %vm4976, %v5042, %v4720
      %v5075 = vsel %vm4976, %v5043, %v4722
      %v5076 = vsel %vm4976, %v5044, %v4724
      %v5077 = vsel %vm4976, %v5045, %v4726
      %v5078 = vsel %vm4976, %v5046, %v4728
      %v5079 = vsel %vm4976, %v5047, %v4730
      %v5080 = vsel %vm4976, %v5048, %v4732
      %v5081 = vsel %vm4976, %v5049, %v4734
      %v5082 = vsel %vm4976, %v5050, %v4736
      %v5083 = vsel %vm4976, %v5051, %v4738
      %v5084 = vsel %vm4976, %v5052, %v4740
      %v5085 = vsel %vm4976, %v5053, %v4742
      %v5086 = vsel %vm4976, %v5054, %v4744
      %v5087 = vsel %vm4976, %v5055, %v4746
      %v5088 = vsel %vm4976, %v5056, %v4748
      %v5089 = vsel %vm4976, %v5057, %v4750
      %v5090 = vsel %vm4976, %v5058, %v4752
      %v5091 = vsel %vm4976, %v5059, %v4754
      %v5092 = vsel %vm4976, %v5060, %v4756
      %v5093 = vsel %vm4976, %v5061, %v4758
      %v5094 = vsel %vm4976, %v5062, %v4760
      %v5095 = vsel %vm4976, %v5063, %v4762
      %v5096 = vsel %vm4976, %v5064, %v4764
      %v5097 = vsel %vm4976, %v5065, %v4766
      %v5098 = vsel %vm4976, %v5066, %v4768
      %v5099 = vsel %vm4976, %v5067, %v4770
      %v5100 = vsel %vm4976, %v5068, %v4772
      %v5101 = vsel %vm4976, %v5069, %v4774
      %v5102 = vsel %vm4976, %v5070, %v4776
      %v5103 = vsel %vm4976, %v5071, %v4778
      %v5104 = vsel %vm4976, %v5072, %v4780
      %v5105 = vsel %vm4976, %v5073, %v4782
      %v5106 = vsel %vm5009, %v5074, %v4848
      %v5107 = vsel %vm5009, %v5075, %v4850
      %v5108 = vsel %vm5009, %v5076, %v4852
      %v5109 = vsel %vm5009, %v5077, %v4854
      %v5110 = vsel %vm5009, %v5078, %v4856
      %v5111 = vsel %vm5009, %v5079, %v4858
      %v5112 = vsel %vm5009, %v5080, %v4860
      %v5113 = vsel %vm5009, %v5081, %v4862
      %v5114 = vsel %vm5009, %v5082, %v4864
      %v5115 = vsel %vm5009, %v5083, %v4866
      %v5116 = vsel %vm5009, %v5084, %v4868
      %v5117 = vsel %vm5009, %v5085, %v4870
      %v5118 = vsel %vm5009, %v5086, %v4872
      %v5119 = vsel %vm5009, %v5087, %v4874
      %v5120 = vsel %vm5009, %v5088, %v4876
      %v5121 = vsel %vm5009, %v5089, %v4878
      %v5122 = vsel %vm5009, %v5090, %v4880
      %v5123 = vsel %vm5009, %v5091, %v4882
      %v5124 = vsel %vm5009, %v5092, %v4884
      %v5125 = vsel %vm5009, %v5093, %v4886
      %v5126 = vsel %vm5009, %v5094, %v4888
      %v5127 = vsel %vm5009, %v5095, %v4890
      %v5128 = vsel %vm5009, %v5096, %v4892
      %v5129 = vsel %vm5009, %v5097, %v4894
      %v5130 = vsel %vm5009, %v5098, %v4896
      %v5131 = vsel %vm5009, %v5099, %v4898
      %v5132 = vsel %vm5009, %v5100, %v4900
      %v5133 = vsel %vm5009, %v5101, %v4902
      %v5134 = vsel %vm5009, %v5102, %v4904
      %v5135 = vsel %vm5009, %v5103, %v4906
      %v5136 = vsel %vm5009, %v5104, %v4908
      %v5137 = vsel %vm5009, %v5105, %v4910
      %v5138 = vpack.c.bf16 %v5011, %v5010
      %v5139 = vpack.c.bf16 %v5107, %v5106
      %v5140 = vpack.c.bf16 %v4144, %v4143
      %v5141 = vpack.c.bf16 %v5013, %v5012
      %v5142 = vpack.c.bf16 %v5109, %v5108
      %v5143 = vpack.c.bf16 %v4146, %v4145
      %v5144 = vpack.c.bf16 %v5015, %v5014
      %v5145 = vpack.c.bf16 %v5111, %v5110
      %v5146 = vpack.c.bf16 %v4148, %v4147
      %v5147 = vpack.c.bf16 %v5017, %v5016
      %v5148 = vpack.c.bf16 %v5113, %v5112
      %v5149 = vpack.c.bf16 %v4150, %v4149
      %v5150 = vpack.c.bf16 %v5019, %v5018
      %v5151 = vpack.c.bf16 %v5115, %v5114
      %v5152 = vpack.c.bf16 %v4152, %v4151
      %v5153 = vpack.c.bf16 %v5021, %v5020
      %v5154 = vpack.c.bf16 %v5117, %v5116
      %v5155 = vpack.c.bf16 %v4154, %v4153
      %v5156 = vpack.c.bf16 %v5023, %v5022
      %v5157 = vpack.c.bf16 %v5119, %v5118
      %v5158 = vpack.c.bf16 %v4156, %v4155
      %v5159 = vpack.c.bf16 %v5025, %v5024
      %v5160 = vpack.c.bf16 %v5121, %v5120
      %v5161 = vpack.c.bf16 %v4158, %v4157
      %v5162 = vpack.c.bf16 %v5027, %v5026
      %v5163 = vpack.c.bf16 %v5123, %v5122
      %v5164 = vpack.c.bf16 %v4160, %v4159
      %v5165 = vpack.c.bf16 %v5029, %v5028
      %v5166 = vpack.c.bf16 %v5125, %v5124
      %v5167 = vpack.c.bf16 %v4162, %v4161
      %v5168 = vpack.c.bf16 %v5031, %v5030
      %v5169 = vpack.c.bf16 %v5127, %v5126
      %v5170 = vpack.c.bf16 %v4164, %v4163
      %v5171 = vpack.c.bf16 %v5033, %v5032
      %v5172 = vpack.c.bf16 %v5129, %v5128
      %v5173 = vpack.c.bf16 %v4166, %v4165
      %v5174 = vpack.c.bf16 %v5035, %v5034
      %v5175 = vpack.c.bf16 %v5131, %v5130
      %v5176 = vpack.c.bf16 %v4168, %v4167
      %v5177 = vpack.c.bf16 %v5037, %v5036
      %v5178 = vpack.c.bf16 %v5133, %v5132
      %v5179 = vpack.c.bf16 %v4170, %v4169
      %v5180 = vpack.c.bf16 %v5039, %v5038
      %v5181 = vpack.c.bf16 %v5135, %v5134
      %v5182 = vpack.c.bf16 %v4172, %v4171
      %v5183 = vpack.c.bf16 %v5041, %v5040
      %v5184 = vpack.c.bf16 %v5137, %v5136
      %v5185 = vpack.c.bf16 %v4174, %v4173
      %v5186 = vld [vmem:[%s4] sm:$0xf]
      %v5187 = vld [vmem:[%s4 + $0x4] sm:$0xf]
      %v5188 = vld [vmem:[%s4 + $0x8] sm:$0xf]
      %v5189 = vld [vmem:[%s4 + $0xc] sm:$0xf]
      %v5190 = vld [vmem:[%s4 + $0x10] sm:$0xf]
      %v5191 = vld [vmem:[%s4 + $0x14] sm:$0xf]
      %v5192 = vld [vmem:[%s4 + $0x18] sm:$0xf]
      %v5193 = vld [vmem:[%s4 + $0x1c] sm:$0xf]
      %v5194 = vld [vmem:[%s4 + $0x20] sm:$0xf]
      %v5195 = vld [vmem:[%s4 + $0x24] sm:$0xf]
      %v5196 = vld [vmem:[%s4 + $0x28] sm:$0xf]
      %v5197 = vld [vmem:[%s4 + $0x2c] sm:$0xf]
      %v5198 = vld [vmem:[%s4 + $0x30] sm:$0xf]
      %v5199 = vld [vmem:[%s4 + $0x34] sm:$0xf]
      %v5200 = vld [vmem:[%s4 + $0x38] sm:$0xf]
      %v5201 = vld [vmem:[%s4 + $0x3c] sm:$0xf]
      %v5202 = vld [vmem:[%s4 + $0x40] sm:$0xf]
      %v5203 = vld [vmem:[%s4 + $0x44] sm:$0xf]
      %v5204 = vld [vmem:[%s4 + $0x48] sm:$0xf]
      %v5205 = vld [vmem:[%s4 + $0x4c] sm:$0xf]
      %v5206 = vld [vmem:[%s4 + $0x50] sm:$0xf]
      %v5207 = vld [vmem:[%s4 + $0x54] sm:$0xf]
      %v5208 = vld [vmem:[%s4 + $0x58] sm:$0xf]
      %v5209 = vld [vmem:[%s4 + $0x5c] sm:$0xf]
      %v5210 = vld [vmem:[%s4 + $0x60] sm:$0xf]
      %v5211 = vld [vmem:[%s4 + $0x64] sm:$0xf]
      %v5212 = vld [vmem:[%s4 + $0x68] sm:$0xf]
      %v5213 = vld [vmem:[%s4 + $0x6c] sm:$0xf]
      %v5214 = vld [vmem:[%s4 + $0x70] sm:$0xf]
      %v5215 = vld [vmem:[%s4 + $0x74] sm:$0xf]
      %v5216 = vld [vmem:[%s4 + $0x78] sm:$0xf]
      %v5217 = vld [vmem:[%s4 + $0x7c] sm:$0xf]
      %v5218 = vld [vmem:[%s4 + $0x80] sm:$0xf]
      %v5219 = vld [vmem:[%s4 + $0x84] sm:$0xf]
      %v5220 = vld [vmem:[%s4 + $0x88] sm:$0xf]
      %v5221 = vld [vmem:[%s4 + $0x8c] sm:$0xf]
      %v5222 = vld [vmem:[%s5] sm:$0x1]
      %v5224 = vlaneseq
      %v5225 = vshrl.u32 %v5224, 7
      %v5226 = vsub.s32 0, %v5225
      %v5227 = vrot.slane %v5222, %v5226
      %v5265 = vunpack.c.l.b16 %v5186
      %v5266 = vunpack.c.l.b16 %v5187
      %v5267 = vunpack.c.l.b16 %v5188
      %v5268 = vunpack.c.l.b16 %v5189
      %v5269 = vunpack.c.l.b16 %v5190
      %v5270 = vunpack.c.l.b16 %v5191
      %v5271 = vunpack.c.l.b16 %v5192
      %v5272 = vunpack.c.l.b16 %v5193
      %v5273 = vunpack.c.l.b16 %v5194
      %v5274 = vunpack.c.l.b16 %v5195
      %v5275 = vunpack.c.l.b16 %v5196
      %v5276 = vunpack.c.l.b16 %v5197
      %v5277 = vunpack.c.l.b16 %v5198
      %v5278 = vunpack.c.l.b16 %v5199
      %v5279 = vunpack.c.l.b16 %v5200
      %v5280 = vunpack.c.l.b16 %v5201
      %v5281 = vunpack.c.l.b16 %v5202
      %v5282 = vunpack.c.l.b16 %v5203
      %v5283 = vunpack.c.l.b16 %v5204
      %v5284 = vunpack.c.l.b16 %v5205
      %v5285 = vunpack.c.l.b16 %v5206
      %v5286 = vunpack.c.l.b16 %v5207
      %v5287 = vunpack.c.l.b16 %v5208
      %v5288 = vunpack.c.l.b16 %v5209
      %v5289 = vunpack.c.l.b16 %v5210
      %v5290 = vunpack.c.l.b16 %v5211
      %v5291 = vunpack.c.l.b16 %v5212
      %v5292 = vunpack.c.l.b16 %v5213
      %v5293 = vunpack.c.l.b16 %v5214
      %v5294 = vunpack.c.l.b16 %v5215
      %v5295 = vunpack.c.l.b16 %v5216
      %v5296 = vunpack.c.l.b16 %v5217
      %v5297 = vunpack.c.l.b16 %v5218
      %v5298 = vunpack.c.l.b16 %v5219
      %v5299 = vunpack.c.l.b16 %v5220
      %v5300 = vunpack.c.l.b16 %v5221
      %v5301 = vpack.c.b16 %v5266, %v5265
      %v5302 = vpack.c.b16 %v5268, %v5267
      %v5303 = vpack.c.b16 %v5270, %v5269
      %v5304 = vpack.c.b16 %v5272, %v5271
      %v5305 = vpack.c.b16 %v5274, %v5273
      %v5306 = vpack.c.b16 %v5276, %v5275
      %v5307 = vpack.c.b16 %v5278, %v5277
      %v5308 = vpack.c.b16 %v5280, %v5279
      %v5309 = vpack.c.b16 %v5282, %v5281
      %v5310 = vpack.c.b16 %v5284, %v5283
      %v5311 = vpack.c.b16 %v5286, %v5285
      %v5312 = vpack.c.b16 %v5288, %v5287
      %v5313 = vpack.c.b16 %v5290, %v5289
      %v5314 = vpack.c.b16 %v5292, %v5291
      %v5315 = vpack.c.b16 %v5294, %v5293
      %v5316 = vpack.c.b16 %v5296, %v5295
      %v5317 = vpack.c.b16 %v5298, %v5297
      %v5318 = vpack.c.b16 %v5300, %v5299
      %v5338 = vsel %vm4943, %v5140, 0
      %v5341 = vsel %vm4943, %v5143, 0
      %v5344 = vsel %vm4943, %v5146, 0
      %v5347 = vsel %vm4943, %v5149, 0
      %v5350 = vsel %vm4943, %v5152, 0
      %v5353 = vsel %vm4943, %v5155, 0
      %v5356 = vsel %vm4943, %v5158, 0
      %v5359 = vsel %vm4943, %v5161, 0
      %v5362 = vsel %vm4943, %v5164, 0
      %v5365 = vsel %vm4943, %v5167, 0
      %v5368 = vsel %vm4943, %v5170, 0
      %v5371 = vsel %vm4943, %v5173, 0
      %v5374 = vsel %vm4943, %v5176, 0
      %v5377 = vsel %vm4943, %v5179, 0
      %v5380 = vsel %vm4943, %v5182, 0
      %v5383 = vsel %vm4943, %v5185, 0
      %5385 = vmatprep.subr.bf16.mxu0 0
      %5386 = vmatpush1.bf16.msra.mxu0 %v5308
      %5387 = vmatprep.subr.bf16.mxu0 0
      %5388 = vmatpush1.bf16.msra.mxu0 %v5307
      %5389 = vmatprep.subr.bf16.mxu0 0
      %5390 = vmatpush1.bf16.msra.mxu0 %v5306
      %5391 = vmatprep.subr.bf16.mxu0 0
      %5392 = vmatpush1.bf16.msra.mxu0 %v5305
      %5393 = vmatprep.subr.bf16.mxu0 0
      %5394 = vmatpush1.bf16.msra.mxu0 %v5304
      %5395 = vmatprep.subr.bf16.mxu0 0
      %5396 = vmatpush1.bf16.msra.mxu0 %v5303
      %5397 = vmatprep.subr.bf16.mxu0 0
      %5398 = vmatpush1.bf16.msra.mxu0 %v5302
      %5399 = vmatprep.subr.bf16.mxu0 0
      %5400 = vmatpush1.bf16.msra.mxu0 %v5301
      %5401 = vmatprep.subr.bf16.mxu0 0
      %5402 = vmatpush2.bf16.msra.mxu0 %v5316
      %5403 = vmatprep.subr.bf16.mxu0 0
      %5404 = vmatpush2.bf16.msra.mxu0 %v5315
      %5405 = vmatprep.subr.bf16.mxu0 0
      %5406 = vmatpush2.bf16.msra.mxu0 %v5314
      %5407 = vmatprep.subr.bf16.mxu0 0
      %5408 = vmatpush2.bf16.msra.mxu0 %v5313
      %5409 = vmatprep.subr.bf16.mxu0 0
      %5410 = vmatpush2.bf16.msra.mxu0 %v5312
      %5411 = vmatprep.subr.bf16.mxu0 0
      %5412 = vmatpush2.bf16.msra.mxu0 %v5311
      %5413 = vmatprep.subr.bf16.mxu0 0
      %5414 = vmatpush2.bf16.msra.mxu0 %v5310
      %5415 = vmatprep.subr.bf16.mxu0 0
      %5416 = vmatpush2.bf16.msra.mxu0 %v5309
      %5417 = vmatprep.mubr.bf16.mxu0 %v5139
      %5418 = vmatmul.mubr.bf16.gmra.mxu0 %v5138
      %v5419 = vpop.f32.mrf.mxu0
      %v5420 = vadd.f32 %v5227, %v5419
      %v5421 = vpop.f32.mrf.mxu0
      %v5422 = vpop.f32.mrf.mxu0
      %v5423 = vadd.f32 %v5227, %v5422
      %v5424 = vpop.f32.mrf.mxu0
      %5425 = vmatprep.mubr.bf16.mxu0 %v5142
      %5426 = vmatmul.mubr.bf16.gmra.mxu0 %v5141
      %v5427 = vpop.f32.mrf.mxu0
      %v5428 = vadd.f32 %v5227, %v5427
      %v5429 = vpop.f32.mrf.mxu0
      %v5430 = vpop.f32.mrf.mxu0
      %v5431 = vadd.f32 %v5227, %v5430
      %v5432 = vpop.f32.mrf.mxu0
      %5433 = vmatprep.mubr.bf16.mxu0 %v5145
      %5434 = vmatmul.mubr.bf16.gmra.mxu0 %v5144
      %v5435 = vpop.f32.mrf.mxu0
      %v5436 = vadd.f32 %v5227, %v5435
      %v5437 = vpop.f32.mrf.mxu0
      %v5438 = vpop.f32.mrf.mxu0
      %v5439 = vadd.f32 %v5227, %v5438
      %v5440 = vpop.f32.mrf.mxu0
      %5441 = vmatprep.mubr.bf16.mxu0 %v5148
      %5442 = vmatmul.mubr.bf16.gmra.mxu0 %v5147
      %v5443 = vpop.f32.mrf.mxu0
      %v5444 = vadd.f32 %v5227, %v5443
      %v5445 = vpop.f32.mrf.mxu0
      %v5446 = vpop.f32.mrf.mxu0
      %v5447 = vadd.f32 %v5227, %v5446
      %v5448 = vpop.f32.mrf.mxu0
      %5449 = vmatprep.mubr.bf16.mxu0 %v5151
      %5450 = vmatmul.mubr.bf16.gmra.mxu0 %v5150
      %v5451 = vpop.f32.mrf.mxu0
      %v5452 = vadd.f32 %v5227, %v5451
      %v5453 = vpop.f32.mrf.mxu0
      %v5454 = vpop.f32.mrf.mxu0
      %v5455 = vadd.f32 %v5227, %v5454
      %v5456 = vpop.f32.mrf.mxu0
      %5457 = vmatprep.mubr.bf16.mxu0 %v5154
      %5458 = vmatmul.mubr.bf16.gmra.mxu0 %v5153
      %v5459 = vpop.f32.mrf.mxu0
      %v5460 = vadd.f32 %v5227, %v5459
      %v5461 = vpop.f32.mrf.mxu0
      %v5462 = vpop.f32.mrf.mxu0
      %v5463 = vadd.f32 %v5227, %v5462
      %v5464 = vpop.f32.mrf.mxu0
      %5465 = vmatprep.mubr.bf16.mxu0 %v5157
      %5466 = vmatmul.mubr.bf16.gmra.mxu0 %v5156
      %v5467 = vpop.f32.mrf.mxu0
      %v5468 = vadd.f32 %v5227, %v5467
      %v5469 = vpop.f32.mrf.mxu0
      %v5470 = vpop.f32.mrf.mxu0
      %v5471 = vadd.f32 %v5227, %v5470
      %v5472 = vpop.f32.mrf.mxu0
      %5473 = vmatprep.mubr.bf16.mxu0 %v5160
      %5474 = vmatmul.mubr.bf16.gmra.mxu0 %v5159
      %v5475 = vpop.f32.mrf.mxu0
      %v5476 = vadd.f32 %v5227, %v5475
      %v5477 = vpop.f32.mrf.mxu0
      %v5478 = vpop.f32.mrf.mxu0
      %v5479 = vadd.f32 %v5227, %v5478
      %v5480 = vpop.f32.mrf.mxu0
      %5481 = vmatprep.mubr.bf16.mxu0 %v5163
      %5482 = vmatmul.mubr.bf16.gmra.mxu0 %v5162
      %v5483 = vpop.f32.mrf.mxu0
      %v5484 = vadd.f32 %v5227, %v5483
      %v5485 = vpop.f32.mrf.mxu0
      %v5486 = vpop.f32.mrf.mxu0
      %v5487 = vadd.f32 %v5227, %v5486
      %v5488 = vpop.f32.mrf.mxu0
      %5489 = vmatprep.mubr.bf16.mxu0 %v5166
      %5490 = vmatmul.mubr.bf16.gmra.mxu0 %v5165
      %v5491 = vpop.f32.mrf.mxu0
      %v5492 = vadd.f32 %v5227, %v5491
      %v5493 = vpop.f32.mrf.mxu0
      %v5494 = vpop.f32.mrf.mxu0
      %v5495 = vadd.f32 %v5227, %v5494
      %v5496 = vpop.f32.mrf.mxu0
      %5497 = vmatprep.mubr.bf16.mxu0 %v5169
      %5498 = vmatmul.mubr.bf16.gmra.mxu0 %v5168
      %v5499 = vpop.f32.mrf.mxu0
      %v5500 = vadd.f32 %v5227, %v5499
      %v5501 = vpop.f32.mrf.mxu0
      %v5502 = vpop.f32.mrf.mxu0
      %v5503 = vadd.f32 %v5227, %v5502
      %v5504 = vpop.f32.mrf.mxu0
      %5505 = vmatprep.mubr.bf16.mxu0 %v5172
      %5506 = vmatmul.mubr.bf16.gmra.mxu0 %v5171
      %v5507 = vpop.f32.mrf.mxu0
      %v5508 = vadd.f32 %v5227, %v5507
      %v5509 = vpop.f32.mrf.mxu0
      %v5510 = vpop.f32.mrf.mxu0
      %v5511 = vadd.f32 %v5227, %v5510
      %v5512 = vpop.f32.mrf.mxu0
      %5513 = vmatprep.mubr.bf16.mxu0 %v5175
      %5514 = vmatmul.mubr.bf16.gmra.mxu0 %v5174
      %v5515 = vpop.f32.mrf.mxu0
      %v5516 = vadd.f32 %v5227, %v5515
      %v5517 = vpop.f32.mrf.mxu0
      %v5518 = vpop.f32.mrf.mxu0
      %v5519 = vadd.f32 %v5227, %v5518
      %v5520 = vpop.f32.mrf.mxu0
      %5521 = vmatprep.mubr.bf16.mxu0 %v5178
      %5522 = vmatmul.mubr.bf16.gmra.mxu0 %v5177
      %v5523 = vpop.f32.mrf.mxu0
      %v5524 = vadd.f32 %v5227, %v5523
      %v5525 = vpop.f32.mrf.mxu0
      %v5526 = vpop.f32.mrf.mxu0
      %v5527 = vadd.f32 %v5227, %v5526
      %v5528 = vpop.f32.mrf.mxu0
      %5529 = vmatprep.mubr.bf16.mxu0 %v5181
      %5530 = vmatmul.mubr.bf16.gmra.mxu0 %v5180
      %v5531 = vpop.f32.mrf.mxu0
      %v5532 = vadd.f32 %v5227, %v5531
      %v5533 = vpop.f32.mrf.mxu0
      %v5534 = vpop.f32.mrf.mxu0
      %v5535 = vadd.f32 %v5227, %v5534
      %v5536 = vpop.f32.mrf.mxu0
      %5537 = vmatprep.mubr.bf16.mxu0 %v5184
      %5538 = vmatmul.mubr.bf16.gmra.mxu0 %v5183
      %v5539 = vpop.f32.mrf.mxu0
      %v5540 = vadd.f32 %v5227, %v5539
      %v5541 = vpop.f32.mrf.mxu0
      %v5542 = vpop.f32.mrf.mxu0
      %v5543 = vadd.f32 %v5227, %v5542
      %v5544 = vpop.f32.mrf.mxu0
      %5545 = vdwg.mxu0
      %5546 = vmatprep.subr.bf16.mxu0 0
      %5547 = vmatpush1.bf16.msra.mxu0 0
      %5548 = vmatprep.subr.bf16.mxu0 0
      %5549 = vmatpush1.bf16.msra.mxu0 0
      %5550 = vmatprep.subr.bf16.mxu0 0
      %5551 = vmatpush1.bf16.msra.mxu0 0
      %5552 = vmatprep.subr.bf16.mxu0 0
      %5553 = vmatpush1.bf16.msra.mxu0 0
      %5554 = vmatprep.subr.bf16.mxu0 0
      %5555 = vmatpush1.bf16.msra.mxu0 0
      %5556 = vmatprep.subr.bf16.mxu0 0
      %5557 = vmatpush1.bf16.msra.mxu0 0
      %5558 = vmatprep.subr.bf16.mxu0 0
      %5559 = vmatpush1.bf16.msra.mxu0 %v5318
      %5560 = vmatprep.subr.bf16.mxu0 0
      %5561 = vmatpush1.bf16.msra.mxu0 %v5317
      %5562 = vmatprep.subr.bf16.mxu0 0
      %5563 = vmatpush2.bf16.msra.mxu0 0
      %5564 = vmatprep.subr.bf16.mxu0 0
      %5565 = vmatpush2.bf16.msra.mxu0 0
      %5566 = vmatprep.subr.bf16.mxu0 0
      %5567 = vmatpush2.bf16.msra.mxu0 0
      %5568 = vmatprep.subr.bf16.mxu0 0
      %5569 = vmatpush2.bf16.msra.mxu0 0
      %5570 = vmatprep.subr.bf16.mxu0 0
      %5571 = vmatpush2.bf16.msra.mxu0 0
      %5572 = vmatprep.subr.bf16.mxu0 0
      %5573 = vmatpush2.bf16.msra.mxu0 0
      %5574 = vmatprep.subr.bf16.mxu0 0
      %5575 = vmatpush2.bf16.msra.mxu0 0
      %5576 = vmatprep.subr.bf16.mxu0 0
      %5577 = vmatpush2.bf16.msra.mxu0 0
      %5578 = vmatprep.mubr.bf16.mxu0 0
      %5579 = vmatmul.mubr.bf16.gmra.mxu0 %v5338
      %v5580 = vpop.f32.mrf.mxu0
      %v5581 = vadd.f32 %v5420, %v5580
      %v5582 = vpop.f32.mrf.mxu0
      %v5583 = vpop.f32.mrf.mxu0
      %v5584 = vadd.f32 %v5423, %v5583
      %v5585 = vpop.f32.mrf.mxu0
      %5586 = vmatprep.mubr.bf16.mxu0 0
      %5587 = vmatmul.mubr.bf16.gmra.mxu0 %v5341
      %v5588 = vpop.f32.mrf.mxu0
      %v5589 = vadd.f32 %v5428, %v5588
      %v5590 = vpop.f32.mrf.mxu0
      %v5591 = vpop.f32.mrf.mxu0
      %v5592 = vadd.f32 %v5431, %v5591
      %v5593 = vpop.f32.mrf.mxu0
      %5594 = vmatprep.mubr.bf16.mxu0 0
      %5595 = vmatmul.mubr.bf16.gmra.mxu0 %v5344
      %v5596 = vpop.f32.mrf.mxu0
      %v5597 = vadd.f32 %v5436, %v5596
      %v5598 = vpop.f32.mrf.mxu0
      %v5599 = vpop.f32.mrf.mxu0
      %v5600 = vadd.f32 %v5439, %v5599
      %v5601 = vpop.f32.mrf.mxu0
      %5602 = vmatprep.mubr.bf16.mxu0 0
      %5603 = vmatmul.mubr.bf16.gmra.mxu0 %v5347
      %v5604 = vpop.f32.mrf.mxu0
      %v5605 = vadd.f32 %v5444, %v5604
      %v5606 = vpop.f32.mrf.mxu0
      %v5607 = vpop.f32.mrf.mxu0
      %v5608 = vadd.f32 %v5447, %v5607
      %v5609 = vpop.f32.mrf.mxu0
      %5610 = vmatprep.mubr.bf16.mxu0 0
      %5611 = vmatmul.mubr.bf16.gmra.mxu0 %v5350
      %v5612 = vpop.f32.mrf.mxu0
      %v5613 = vadd.f32 %v5452, %v5612
      %v5614 = vpop.f32.mrf.mxu0
      %v5615 = vpop.f32.mrf.mxu0
      %v5616 = vadd.f32 %v5455, %v5615
      %v5617 = vpop.f32.mrf.mxu0
      %5618 = vmatprep.mubr.bf16.mxu0 0
      %5619 = vmatmul.mubr.bf16.gmra.mxu0 %v5353
      %v5620 = vpop.f32.mrf.mxu0
      %v5621 = vadd.f32 %v5460, %v5620
      %v5622 = vpop.f32.mrf.mxu0
      %v5623 = vpop.f32.mrf.mxu0
      %v5624 = vadd.f32 %v5463, %v5623
      %v5625 = vpop.f32.mrf.mxu0
      %5626 = vmatprep.mubr.bf16.mxu0 0
      %5627 = vmatmul.mubr.bf16.gmra.mxu0 %v5356
      %v5628 = vpop.f32.mrf.mxu0
      %v5629 = vadd.f32 %v5468, %v5628
      %v5630 = vpop.f32.mrf.mxu0
      %v5631 = vpop.f32.mrf.mxu0
      %v5632 = vadd.f32 %v5471, %v5631
      %v5633 = vpop.f32.mrf.mxu0
      %5634 = vmatprep.mubr.bf16.mxu0 0
      %5635 = vmatmul.mubr.bf16.gmra.mxu0 %v5359
      %v5636 = vpop.f32.mrf.mxu0
      %v5637 = vadd.f32 %v5476, %v5636
      %v5638 = vpop.f32.mrf.mxu0
      %v5639 = vpop.f32.mrf.mxu0
      %v5640 = vadd.f32 %v5479, %v5639
      %v5641 = vpop.f32.mrf.mxu0
      %5642 = vmatprep.mubr.bf16.mxu0 0
      %5643 = vmatmul.mubr.bf16.gmra.mxu0 %v5362
      %v5644 = vpop.f32.mrf.mxu0
      %v5645 = vadd.f32 %v5484, %v5644
      %v5646 = vpop.f32.mrf.mxu0
      %v5647 = vpop.f32.mrf.mxu0
      %v5648 = vadd.f32 %v5487, %v5647
      %v5649 = vpop.f32.mrf.mxu0
      %5650 = vmatprep.mubr.bf16.mxu0 0
      %5651 = vmatmul.mubr.bf16.gmra.mxu0 %v5365
      %v5652 = vpop.f32.mrf.mxu0
      %v5653 = vadd.f32 %v5492, %v5652
      %v5654 = vpop.f32.mrf.mxu0
      %v5655 = vpop.f32.mrf.mxu0
      %v5656 = vadd.f32 %v5495, %v5655
      %v5657 = vpop.f32.mrf.mxu0
      %5658 = vmatprep.mubr.bf16.mxu0 0
      %5659 = vmatmul.mubr.bf16.gmra.mxu0 %v5368
      %v5660 = vpop.f32.mrf.mxu0
      %v5661 = vadd.f32 %v5500, %v5660
      %v5662 = vpop.f32.mrf.mxu0
      %v5663 = vpop.f32.mrf.mxu0
      %v5664 = vadd.f32 %v5503, %v5663
      %v5665 = vpop.f32.mrf.mxu0
      %5666 = vmatprep.mubr.bf16.mxu0 0
      %5667 = vmatmul.mubr.bf16.gmra.mxu0 %v5371
      %v5668 = vpop.f32.mrf.mxu0
      %v5669 = vadd.f32 %v5508, %v5668
      %v5670 = vpop.f32.mrf.mxu0
      %v5671 = vpop.f32.mrf.mxu0
      %v5672 = vadd.f32 %v5511, %v5671
      %v5673 = vpop.f32.mrf.mxu0
      %5674 = vmatprep.mubr.bf16.mxu0 0
      %5675 = vmatmul.mubr.bf16.gmra.mxu0 %v5374
      %v5676 = vpop.f32.mrf.mxu0
      %v5677 = vadd.f32 %v5516, %v5676
      %v5678 = vpop.f32.mrf.mxu0
      %v5679 = vpop.f32.mrf.mxu0
      %v5680 = vadd.f32 %v5519, %v5679
      %v5681 = vpop.f32.mrf.mxu0
      %5682 = vmatprep.mubr.bf16.mxu0 0
      %5683 = vmatmul.mubr.bf16.gmra.mxu0 %v5377
      %v5684 = vpop.f32.mrf.mxu0
      %v5685 = vadd.f32 %v5524, %v5684
      %v5686 = vpop.f32.mrf.mxu0
      %v5687 = vpop.f32.mrf.mxu0
      %v5688 = vadd.f32 %v5527, %v5687
      %v5689 = vpop.f32.mrf.mxu0
      %5690 = vmatprep.mubr.bf16.mxu0 0
      %5691 = vmatmul.mubr.bf16.gmra.mxu0 %v5380
      %v5692 = vpop.f32.mrf.mxu0
      %v5693 = vadd.f32 %v5532, %v5692
      %v5694 = vpop.f32.mrf.mxu0
      %v5695 = vpop.f32.mrf.mxu0
      %v5696 = vadd.f32 %v5535, %v5695
      %v5697 = vpop.f32.mrf.mxu0
      %5698 = vmatprep.mubr.bf16.mxu0 0
      %5699 = vmatmul.mubr.bf16.gmra.mxu0 %v5383
      %v5700 = vpop.f32.mrf.mxu0
      %v5701 = vadd.f32 %v5540, %v5700
      %v5702 = vpop.f32.mrf.mxu0
      %v5703 = vpop.f32.mrf.mxu0
      %v5704 = vadd.f32 %v5543, %v5703
      %v5705 = vpop.f32.mrf.mxu0
      %5706 = vdwg.mxu0
      %v5707 = vmax.f32 %v5581, 0.0
      %v5708 = vmax.f32 %v5584, 0.0
      %v5709 = vmax.f32 %v5589, 0.0
      %v5710 = vmax.f32 %v5592, 0.0
      %v5711 = vmax.f32 %v5597, 0.0
      %v5712 = vmax.f32 %v5600, 0.0
      %v5713 = vmax.f32 %v5605, 0.0
      %v5714 = vmax.f32 %v5608, 0.0
      %v5715 = vmax.f32 %v5613, 0.0
      %v5716 = vmax.f32 %v5616, 0.0
      %v5717 = vmax.f32 %v5621, 0.0
      %v5718 = vmax.f32 %v5624, 0.0
      %v5719 = vmax.f32 %v5629, 0.0
      %v5720 = vmax.f32 %v5632, 0.0
      %v5721 = vmax.f32 %v5637, 0.0
      %v5722 = vmax.f32 %v5640, 0.0
      %v5723 = vmax.f32 %v5645, 0.0
      %v5724 = vmax.f32 %v5648, 0.0
      %v5725 = vmax.f32 %v5653, 0.0
      %v5726 = vmax.f32 %v5656, 0.0
      %v5727 = vmax.f32 %v5661, 0.0
      %v5728 = vmax.f32 %v5664, 0.0
      %v5729 = vmax.f32 %v5669, 0.0
      %v5730 = vmax.f32 %v5672, 0.0
      %v5731 = vmax.f32 %v5677, 0.0
      %v5732 = vmax.f32 %v5680, 0.0
      %v5733 = vmax.f32 %v5685, 0.0
      %v5734 = vmax.f32 %v5688, 0.0
      %v5735 = vmax.f32 %v5693, 0.0
      %v5736 = vmax.f32 %v5696, 0.0
      %v5737 = vmax.f32 %v5701, 0.0
      %v5738 = vmax.f32 %v5704, 0.0
      %v5739 = vrot.slane %v5707, 1
      %v5740 = vrot.slane %v5708, 1
      %v5741 = vrot.slane %v5709, 1
      %v5742 = vrot.slane %v5710, 1
      %v5743 = vrot.slane %v5711, 1
      %v5744 = vrot.slane %v5712, 1
      %v5745 = vrot.slane %v5713, 1
      %v5746 = vrot.slane %v5714, 1
      %v5747 = vrot.slane %v5715, 1
      %v5748 = vrot.slane %v5716, 1
      %v5749 = vrot.slane %v5717, 1
      %v5750 = vrot.slane %v5718, 1
      %v5751 = vrot.slane %v5719, 1
      %v5752 = vrot.slane %v5720, 1
      %v5753 = vrot.slane %v5721, 1
      %v5754 = vrot.slane %v5722, 1
      %v5755 = vrot.slane %v5723, 1
      %v5756 = vrot.slane %v5724, 1
      %v5757 = vrot.slane %v5725, 1
      %v5758 = vrot.slane %v5726, 1
      %v5759 = vrot.slane %v5727, 1
      %v5760 = vrot.slane %v5728, 1
      %v5761 = vrot.slane %v5729, 1
      %v5762 = vrot.slane %v5730, 1
      %v5763 = vrot.slane %v5731, 1
      %v5764 = vrot.slane %v5732, 1
      %v5765 = vrot.slane %v5733, 1
      %v5766 = vrot.slane %v5734, 1
      %v5767 = vrot.slane %v5735, 1
      %v5768 = vrot.slane %v5736, 1
      %v5769 = vrot.slane %v5737, 1
      %v5770 = vrot.slane %v5738, 1
      %v5771 = vsel %vm1994, %v5769, %v5770
      %v5772 = vsel %vm1994, %v5768, %v5769
      %v5773 = vsel %vm1994, %v5767, %v5768
      %v5774 = vsel %vm1994, %v5766, %v5767
      %v5775 = vsel %vm1994, %v5765, %v5766
      %v5776 = vsel %vm1994, %v5764, %v5765
      %v5777 = vsel %vm1994, %v5763, %v5764
      %v5778 = vsel %vm1994, %v5762, %v5763
      %v5779 = vsel %vm1994, %v5761, %v5762
      %v5780 = vsel %vm1994, %v5760, %v5761
      %v5781 = vsel %vm1994, %v5759, %v5760
      %v5782 = vsel %vm1994, %v5758, %v5759
      %v5783 = vsel %vm1994, %v5757, %v5758
      %v5784 = vsel %vm1994, %v5756, %v5757
      %v5785 = vsel %vm1994, %v5755, %v5756
      %v5786 = vsel %vm1994, %v5754, %v5755
      %v5787 = vsel %vm1994, %v5753, %v5754
      %v5788 = vsel %vm1994, %v5752, %v5753
      %v5789 = vsel %vm1994, %v5751, %v5752
      %v5790 = vsel %vm1994, %v5750, %v5751
      %v5791 = vsel %vm1994, %v5749, %v5750
      %v5792 = vsel %vm1994, %v5748, %v5749
      %v5793 = vsel %vm1994, %v5747, %v5748
      %v5794 = vsel %vm1994, %v5746, %v5747
      %v5795 = vsel %vm1994, %v5745, %v5746
      %v5796 = vsel %vm1994, %v5744, %v5745
      %v5797 = vsel %vm1994, %v5743, %v5744
      %v5798 = vsel %vm1994, %v5742, %v5743
      %v5799 = vsel %vm1994, %v5741, %v5742
      %v5800 = vsel %vm1994, %v5740, %v5741
      %v5801 = vsel %vm1994, %v5739, %v5740
      %v5802 = vsel %vm1994, %v5770, %v5739
      %v5803 = vmax.f32 %v5707, %v5801
      %v5804 = vmax.f32 %v5708, %v5800
      %v5805 = vmax.f32 %v5709, %v5799
      %v5806 = vmax.f32 %v5710, %v5798
      %v5807 = vmax.f32 %v5711, %v5797
      %v5808 = vmax.f32 %v5712, %v5796
      %v5809 = vmax.f32 %v5713, %v5795
      %v5810 = vmax.f32 %v5714, %v5794
      %v5811 = vmax.f32 %v5715, %v5793
      %v5812 = vmax.f32 %v5716, %v5792
      %v5813 = vmax.f32 %v5717, %v5791
      %v5814 = vmax.f32 %v5718, %v5790
      %v5815 = vmax.f32 %v5719, %v5789
      %v5816 = vmax.f32 %v5720, %v5788
      %v5817 = vmax.f32 %v5721, %v5787
      %v5818 = vmax.f32 %v5722, %v5786
      %v5819 = vmax.f32 %v5723, %v5785
      %v5820 = vmax.f32 %v5724, %v5784
      %v5821 = vmax.f32 %v5725, %v5783
      %v5822 = vmax.f32 %v5726, %v5782
      %v5823 = vmax.f32 %v5727, %v5781
      %v5824 = vmax.f32 %v5728, %v5780
      %v5825 = vmax.f32 %v5729, %v5779
      %v5826 = vmax.f32 %v5730, %v5778
      %v5827 = vmax.f32 %v5731, %v5777
      %v5828 = vmax.f32 %v5732, %v5776
      %v5829 = vmax.f32 %v5733, %v5775
      %v5830 = vmax.f32 %v5734, %v5774
      %v5831 = vmax.f32 %v5735, %v5773
      %v5832 = vmax.f32 %v5736, %v5772
      %v5833 = vmax.f32 %v5737, %v5771
      %v5834 = vmax.f32 %v5738, %v5802
      %v5835 = vmax.f32 %v5803, %v5804
      %v5836 = vmax.f32 %v5804, %v5805
      %v5837 = vmax.f32 %v5805, %v5806
      %v5838 = vmax.f32 %v5806, %v5807
      %v5839 = vmax.f32 %v5807, %v5808
      %v5840 = vmax.f32 %v5808, %v5809
      %v5841 = vmax.f32 %v5809, %v5810
      %v5842 = vmax.f32 %v5810, %v5811
      %v5843 = vmax.f32 %v5811, %v5812
      %v5844 = vmax.f32 %v5812, %v5813
      %v5845 = vmax.f32 %v5813, %v5814
      %v5846 = vmax.f32 %v5814, %v5815
      %v5847 = vmax.f32 %v5815, %v5816
      %v5848 = vmax.f32 %v5816, %v5817
      %v5849 = vmax.f32 %v5817, %v5818
      %v5850 = vmax.f32 %v5818, %v5819
      %v5851 = vmax.f32 %v5819, %v5820
      %v5852 = vmax.f32 %v5820, %v5821
      %v5853 = vmax.f32 %v5821, %v5822
      %v5854 = vmax.f32 %v5822, %v5823
      %v5855 = vmax.f32 %v5823, %v5824
      %v5856 = vmax.f32 %v5824, %v5825
      %v5857 = vmax.f32 %v5825, %v5826
      %v5858 = vmax.f32 %v5826, %v5827
      %v5859 = vmax.f32 %v5827, %v5828
      %v5860 = vmax.f32 %v5828, %v5829
      %v5861 = vmax.f32 %v5829, %v5830
      %v5862 = vmax.f32 %v5830, %v5831
      %v5863 = vmax.f32 %v5831, %v5832
      %v5864 = vmax.f32 %v5832, %v5833
      %v5865 = vmax.f32 %v5833, %v5834
      %v5866 = vmax.f32 %v5834, %v5803
      %v5867 = vpack.c.bf16 %v5836, %v5835
      %v5868 = vpack.c.bf16 %v5838, %v5837
      %v5869 = vpack.c.bf16 %v5840, %v5839
      %v5870 = vpack.c.bf16 %v5842, %v5841
      %v5871 = vpack.c.bf16 %v5844, %v5843
      %v5872 = vpack.c.bf16 %v5846, %v5845
      %v5873 = vpack.c.bf16 %v5848, %v5847
      %v5874 = vpack.c.bf16 %v5850, %v5849
      %v5875 = vpack.c.bf16 %v5852, %v5851
      %v5876 = vpack.c.bf16 %v5854, %v5853
      %v5877 = vpack.c.bf16 %v5856, %v5855
      %v5878 = vpack.c.bf16 %v5858, %v5857
      %v5879 = vpack.c.bf16 %v5860, %v5859
      %v5880 = vpack.c.bf16 %v5862, %v5861
      %v5881 = vpack.c.bf16 %v5864, %v5863
      %v5882 = vpack.c.bf16 %v5866, %v5865
      %v5883 = vld [vmem:[%s6] sm:$0xf]
      %v5884 = vld [vmem:[%s6 + $0x4] sm:$0xf]
      %v5885 = vld [vmem:[%s6 + $0x8] sm:$0xf]
      %v5886 = vld [vmem:[%s6 + $0xc] sm:$0xf]
      %v5887 = vld [vmem:[%s6 + $0x10] sm:$0xf]
      %v5888 = vld [vmem:[%s6 + $0x14] sm:$0xf]
      %v5889 = vld [vmem:[%s6 + $0x18] sm:$0xf]
      %v5890 = vld [vmem:[%s6 + $0x1c] sm:$0xf]
      %v5893 = vunpack.c.l.b16 %v5883
      %v5894 = vunpack.c.l.b16 %v5884
      %v5895 = vpack.c.b16 %v5894, %v5893
      %v5897 = vsel %vm4976, %v5895, 0
      %5899 = vmatprep.subr.bf16.mxu0 0
      %5900 = vmatpush1.bf16.msra.mxu0 0
      %5901 = vmatprep.subr.bf16.mxu0 0
      %5902 = vmatpush1.bf16.msra.mxu0 0
      %5903 = vmatprep.subr.bf16.mxu0 0
      %5904 = vmatpush1.bf16.msra.mxu0 0
      %5905 = vmatprep.subr.bf16.mxu0 0
      %5906 = vmatpush1.bf16.msra.mxu0 0
      %5907 = vmatprep.subr.bf16.mxu0 0
      %5908 = vmatpush1.bf16.msra.mxu0 %v5870
      %5909 = vmatprep.subr.bf16.mxu0 0
      %5910 = vmatpush1.bf16.msra.mxu0 %v5869
      %5911 = vmatprep.subr.bf16.mxu0 0
      %5912 = vmatpush1.bf16.msra.mxu0 %v5868
      %5913 = vmatprep.subr.bf16.mxu0 0
      %5914 = vmatpush1.bf16.msra.mxu0 %v5867
      %5915 = vmatprep.subr.bf16.mxu0 0
      %5916 = vmatpush2.bf16.msra.mxu0 0
      %5917 = vmatprep.subr.bf16.mxu0 0
      %5918 = vmatpush2.bf16.msra.mxu0 0
      %5919 = vmatprep.subr.bf16.mxu0 0
      %5920 = vmatpush2.bf16.msra.mxu0 0
      %5921 = vmatprep.subr.bf16.mxu0 0
      %5922 = vmatpush2.bf16.msra.mxu0 0
      %5923 = vmatprep.subr.bf16.mxu0 0
      %5924 = vmatpush2.bf16.msra.mxu0 0
      %5925 = vmatprep.subr.bf16.mxu0 0
      %5926 = vmatpush2.bf16.msra.mxu0 0
      %5927 = vmatprep.subr.bf16.mxu0 0
      %5928 = vmatpush2.bf16.msra.mxu0 0
      %5929 = vmatprep.subr.bf16.mxu0 0
      %5930 = vmatpush2.bf16.msra.mxu0 0
      %5931 = vmatprep.mubr.bf16.mxu0 0
      %5932 = vmatmul.mubr.bf16.gmra.mxu0 %v5897
      %v5933 = vpop.f32.mrf.mxu0
      %v5934 = vadd.f32 0.0, %v5933
      %v5935 = vpop.f32.mrf.mxu0
      %v5936 = vpop.f32.mrf.mxu0
      %v5937 = vadd.f32 0.0, %v5936
      %v5938 = vpop.f32.mrf.mxu0
      %5939 = vdwg.mxu0
      %v5942 = vunpack.c.l.b16 %v5885
      %v5943 = vunpack.c.l.b16 %v5886
      %v5944 = vpack.c.b16 %v5943, %v5942
      %v5946 = vsel %vm4976, %v5944, 0
      %5948 = vmatprep.subr.bf16.mxu0 0
      %5949 = vmatpush1.bf16.msra.mxu0 0
      %5950 = vmatprep.subr.bf16.mxu0 0
      %5951 = vmatpush1.bf16.msra.mxu0 0
      %5952 = vmatprep.subr.bf16.mxu0 0
      %5953 = vmatpush1.bf16.msra.mxu0 0
      %5954 = vmatprep.subr.bf16.mxu0 0
      %5955 = vmatpush1.bf16.msra.mxu0 0
      %5956 = vmatprep.subr.bf16.mxu0 0
      %5957 = vmatpush1.bf16.msra.mxu0 %v5874
      %5958 = vmatprep.subr.bf16.mxu0 0
      %5959 = vmatpush1.bf16.msra.mxu0 %v5873
      %5960 = vmatprep.subr.bf16.mxu0 0
      %5961 = vmatpush1.bf16.msra.mxu0 %v5872
      %5962 = vmatprep.subr.bf16.mxu0 0
      %5963 = vmatpush1.bf16.msra.mxu0 %v5871
      %5964 = vmatprep.subr.bf16.mxu0 0
      %5965 = vmatpush2.bf16.msra.mxu0 0
      %5966 = vmatprep.subr.bf16.mxu0 0
      %5967 = vmatpush2.bf16.msra.mxu0 0
      %5968 = vmatprep.subr.bf16.mxu0 0
      %5969 = vmatpush2.bf16.msra.mxu0 0
      %5970 = vmatprep.subr.bf16.mxu0 0
      %5971 = vmatpush2.bf16.msra.mxu0 0
      %5972 = vmatprep.subr.bf16.mxu0 0
      %5973 = vmatpush2.bf16.msra.mxu0 0
      %5974 = vmatprep.subr.bf16.mxu0 0
      %5975 = vmatpush2.bf16.msra.mxu0 0
      %5976 = vmatprep.subr.bf16.mxu0 0
      %5977 = vmatpush2.bf16.msra.mxu0 0
      %5978 = vmatprep.subr.bf16.mxu0 0
      %5979 = vmatpush2.bf16.msra.mxu0 0
      %5980 = vmatprep.mubr.bf16.mxu0 0
      %5981 = vmatmul.mubr.bf16.gmra.mxu0 %v5946
      %v5982 = vpop.f32.mrf.mxu0
      %v5983 = vadd.f32 0.0, %v5982
      %v5984 = vpop.f32.mrf.mxu0
      %v5985 = vpop.f32.mrf.mxu0
      %v5986 = vadd.f32 0.0, %v5985
      %v5987 = vpop.f32.mrf.mxu0
      %5988 = vdwg.mxu0
      %v5991 = vunpack.c.l.b16 %v5887
      %v5992 = vunpack.c.l.b16 %v5888
      %v5993 = vpack.c.b16 %v5992, %v5991
      %v5995 = vsel %vm4976, %v5993, 0
      %5997 = vmatprep.subr.bf16.mxu0 0
      %5998 = vmatpush1.bf16.msra.mxu0 0
      %5999 = vmatprep.subr.bf16.mxu0 0
      %6000 = vmatpush1.bf16.msra.mxu0 0
      %6001 = vmatprep.subr.bf16.mxu0 0
      %6002 = vmatpush1.bf16.msra.mxu0 0
      %6003 = vmatprep.subr.bf16.mxu0 0
      %6004 = vmatpush1.bf16.msra.mxu0 0
      %6005 = vmatprep.subr.bf16.mxu0 0
      %6006 = vmatpush1.bf16.msra.mxu0 %v5878
      %6007 = vmatprep.subr.bf16.mxu0 0
      %6008 = vmatpush1.bf16.msra.mxu0 %v5877
      %6009 = vmatprep.subr.bf16.mxu0 0
      %6010 = vmatpush1.bf16.msra.mxu0 %v5876
      %6011 = vmatprep.subr.bf16.mxu0 0
      %6012 = vmatpush1.bf16.msra.mxu0 %v5875
      %6013 = vmatprep.subr.bf16.mxu0 0
      %6014 = vmatpush2.bf16.msra.mxu0 0
      %6015 = vmatprep.subr.bf16.mxu0 0
      %6016 = vmatpush2.bf16.msra.mxu0 0
      %6017 = vmatprep.subr.bf16.mxu0 0
      %6018 = vmatpush2.bf16.msra.mxu0 0
      %6019 = vmatprep.subr.bf16.mxu0 0
      %6020 = vmatpush2.bf16.msra.mxu0 0
      %6021 = vmatprep.subr.bf16.mxu0 0
      %6022 = vmatpush2.bf16.msra.mxu0 0
      %6023 = vmatprep.subr.bf16.mxu0 0
      %6024 = vmatpush2.bf16.msra.mxu0 0
      %6025 = vmatprep.subr.bf16.mxu0 0
      %6026 = vmatpush2.bf16.msra.mxu0 0
      %6027 = vmatprep.subr.bf16.mxu0 0
      %6028 = vmatpush2.bf16.msra.mxu0 0
      %6029 = vmatprep.mubr.bf16.mxu0 0
      %6030 = vmatmul.mubr.bf16.gmra.mxu0 %v5995
      %v6031 = vpop.f32.mrf.mxu0
      %v6032 = vadd.f32 0.0, %v6031
      %v6033 = vpop.f32.mrf.mxu0
      %v6034 = vpop.f32.mrf.mxu0
      %v6035 = vadd.f32 0.0, %v6034
      %v6036 = vpop.f32.mrf.mxu0
      %6037 = vdwg.mxu0
      %v6040 = vunpack.c.l.b16 %v5889
      %v6041 = vunpack.c.l.b16 %v5890
      %v6042 = vpack.c.b16 %v6041, %v6040
      %v6044 = vsel %vm4976, %v6042, 0
      %6046 = vmatprep.subr.bf16.mxu0 0
      %6047 = vmatpush1.bf16.msra.mxu0 0
      %6048 = vmatprep.subr.bf16.mxu0 0
      %6049 = vmatpush1.bf16.msra.mxu0 0
      %6050 = vmatprep.subr.bf16.mxu0 0
      %6051 = vmatpush1.bf16.msra.mxu0 0
      %6052 = vmatprep.subr.bf16.mxu0 0
      %6053 = vmatpush1.bf16.msra.mxu0 0
      %6054 = vmatprep.subr.bf16.mxu0 0
      %6055 = vmatpush1.bf16.msra.mxu0 %v5882
      %6056 = vmatprep.subr.bf16.mxu0 0
      %6057 = vmatpush1.bf16.msra.mxu0 %v5881
      %6058 = vmatprep.subr.bf16.mxu0 0
      %6059 = vmatpush1.bf16.msra.mxu0 %v5880
      %6060 = vmatprep.subr.bf16.mxu0 0
      %6061 = vmatpush1.bf16.msra.mxu0 %v5879
      %6062 = vmatprep.subr.bf16.mxu0 0
      %6063 = vmatpush2.bf16.msra.mxu0 0
      %6064 = vmatprep.subr.bf16.mxu0 0
      %6065 = vmatpush2.bf16.msra.mxu0 0
      %6066 = vmatprep.subr.bf16.mxu0 0
      %6067 = vmatpush2.bf16.msra.mxu0 0
      %6068 = vmatprep.subr.bf16.mxu0 0
      %6069 = vmatpush2.bf16.msra.mxu0 0
      %6070 = vmatprep.subr.bf16.mxu0 0
      %6071 = vmatpush2.bf16.msra.mxu0 0
      %6072 = vmatprep.subr.bf16.mxu0 0
      %6073 = vmatpush2.bf16.msra.mxu0 0
      %6074 = vmatprep.subr.bf16.mxu0 0
      %6075 = vmatpush2.bf16.msra.mxu0 0
      %6076 = vmatprep.subr.bf16.mxu0 0
      %6077 = vmatpush2.bf16.msra.mxu0 0
      %6078 = vmatprep.mubr.bf16.mxu0 0
      %6079 = vmatmul.mubr.bf16.gmra.mxu0 %v6044
      %v6080 = vpop.f32.mrf.mxu0
      %v6081 = vadd.f32 0.0, %v6080
      %v6082 = vpop.f32.mrf.mxu0
      %v6083 = vpop.f32.mrf.mxu0
      %v6084 = vadd.f32 0.0, %v6083
      %v6085 = vpop.f32.mrf.mxu0
      %6086 = vdwg.mxu0
      %v6087 = vand.u32 %v1993, 3
      %v6088 = vand.u32 %v2895, 3
      %v6089 = vand.u32 %v2896, 3
      %v6090 = vand.u32 %v2897, 3
      %v6091 = vand.u32 %v2898, 3
      %v6092 = vand.u32 %v2899, 3
      %v6093 = vand.u32 %v2900, 3
      %v6094 = vand.u32 %v2901, 3
      %v6095 = vshra.s32 %v1993, 2
      %v6096 = vshra.s32 %v2895, 2
      %v6097 = vshra.s32 %v2896, 2
      %v6098 = vshra.s32 %v2897, 2
      %v6099 = vshra.s32 %v2898, 2
      %v6100 = vshra.s32 %v2899, 2
      %v6101 = vshra.s32 %v2900, 2
      %v6102 = vshra.s32 %v2901, 2
      %v6103 = vand.u32 %v6095, 3
      %v6104 = vand.u32 %v6096, 3
      %v6105 = vand.u32 %v6097, 3
      %v6106 = vand.u32 %v6098, 3
      %v6107 = vand.u32 %v6099, 3
      %v6108 = vand.u32 %v6100, 3
      %v6109 = vand.u32 %v6101, 3
      %v6110 = vand.u32 %v6102, 3
      %v6111 = vrot.slane %v5934, 3
      %v6112 = vrot.slane %v5937, 3
      %v6113 = vrot.slane %v5983, 3
      %v6114 = vrot.slane %v5986, 3
      %v6115 = vrot.slane %v6032, 3
      %v6116 = vrot.slane %v6035, 3
      %v6117 = vrot.slane %v6081, 3
      %v6118 = vrot.slane %v6084, 3
      %vm6119 = vcmp.lt.s32.totalorder %v1993, 5
      %v6120 = vsel %vm6119, %v6117, %v6118
      %v6121 = vsel %vm6119, %v6116, %v6117
      %v6122 = vsel %vm6119, %v6115, %v6116
      %v6123 = vsel %vm6119, %v6114, %v6115
      %v6124 = vsel %vm6119, %v6113, %v6114
      %v6125 = vsel %vm6119, %v6112, %v6113
      %v6126 = vsel %vm6119, %v6111, %v6112
      %v6127 = vsel %vm6119, %v6118, %v6111
      %vm6128 = vcmp.ge.s32.totalorder %v6103, 1
      %vm6129 = vcmp.ge.s32.totalorder %v6104, 1
      %vm6130 = vcmp.ge.s32.totalorder %v6105, 1
      %vm6131 = vcmp.ge.s32.totalorder %v6106, 1
      %vm6132 = vcmp.ge.s32.totalorder %v6107, 1
      %vm6133 = vcmp.ge.s32.totalorder %v6108, 1
      %vm6134 = vcmp.ge.s32.totalorder %v6109, 1
      %vm6135 = vcmp.ge.s32.totalorder %v6110, 1
      %vm6136 = vcmp.ge.s32.totalorder %v6087, 1
      %vm6137 = vcmp.ge.s32.totalorder %v6088, 1
      %vm6138 = vcmp.ge.s32.totalorder %v6089, 1
      %vm6139 = vcmp.ge.s32.totalorder %v6090, 1
      %vm6140 = vcmp.ge.s32.totalorder %v6091, 1
      %vm6141 = vcmp.ge.s32.totalorder %v6092, 1
      %vm6142 = vcmp.ge.s32.totalorder %v6093, 1
      %vm6143 = vcmp.ge.s32.totalorder %v6094, 1
      %vm6144 = vmand %vm6128, %vm6136
      %vm6145 = vmand %vm6129, %vm6137
      %vm6146 = vmand %vm6130, %vm6138
      %vm6147 = vmand %vm6131, %vm6139
      %vm6148 = vmand %vm6132, %vm6140
      %vm6149 = vmand %vm6133, %vm6141
      %vm6150 = vmand %vm6134, %vm6142
      %vm6151 = vmand %vm6135, %vm6143
      %v6152 = vsel %vm6144, 1, 0
      %v6153 = vsel %vm6145, 1, 0
      %v6154 = vsel %vm6146, 1, 0
      %v6155 = vsel %vm6147, 1, 0
      %v6156 = vsel %vm6148, 1, 0
      %v6157 = vsel %vm6149, 1, 0
      %v6158 = vsel %vm6150, 1, 0
      %v6159 = vsel %vm6151, 1, 0
      %vm6160 = vcmp.eq.s32.totalorder %v6152, 1
      %vm6161 = vcmp.eq.s32.totalorder %v6153, 1
      %vm6162 = vcmp.eq.s32.totalorder %v6154, 1
      %vm6163 = vcmp.eq.s32.totalorder %v6155, 1
      %vm6164 = vcmp.eq.s32.totalorder %v6156, 1
      %vm6165 = vcmp.eq.s32.totalorder %v6157, 1
      %vm6166 = vcmp.eq.s32.totalorder %v6158, 1
      %vm6167 = vcmp.eq.s32.totalorder %v6159, 1
      %v6168 = vsel %vm6160, %v6127, 0.0
      %v6169 = vsel %vm6161, %v6126, 0.0
      %v6170 = vsel %vm6162, %v6125, 0.0
      %v6171 = vsel %vm6163, %v6124, 0.0
      %v6172 = vsel %vm6164, %v6123, 0.0
      %v6173 = vsel %vm6165, %v6122, 0.0
      %v6174 = vsel %vm6166, %v6121, 0.0
      %v6175 = vsel %vm6167, %v6120, 0.0
      %v6176 = vrot.slane %v5934, 4
      %v6177 = vrot.slane %v5937, 4
      %v6178 = vrot.slane %v5983, 4
      %v6179 = vrot.slane %v5986, 4
      %v6180 = vrot.slane %v6032, 4
      %v6181 = vrot.slane %v6035, 4
      %v6182 = vrot.slane %v6081, 4
      %v6183 = vrot.slane %v6084, 4
      %vm6184 = vcmp.lt.s32.totalorder %v1993, 4
      %v6185 = vsel %vm6184, %v6182, %v6183
      %v6186 = vsel %vm6184, %v6181, %v6182
      %v6187 = vsel %vm6184, %v6180, %v6181
      %v6188 = vsel %vm6184, %v6179, %v6180
      %v6189 = vsel %vm6184, %v6178, %v6179
      %v6190 = vsel %vm6184, %v6177, %v6178
      %v6191 = vsel %vm6184, %v6176, %v6177
      %v6192 = vsel %vm6184, %v6183, %v6176
      %v6193 = vsel %vm6128, 1, 0
      %v6194 = vsel %vm6129, 1, 0
      %v6195 = vsel %vm6130, 1, 0
      %v6196 = vsel %vm6131, 1, 0
      %v6197 = vsel %vm6132, 1, 0
      %v6198 = vsel %vm6133, 1, 0
      %v6199 = vsel %vm6134, 1, 0
      %v6200 = vsel %vm6135, 1, 0
      %vm6201 = vcmp.eq.s32.totalorder %v6193, 1
      %vm6202 = vcmp.eq.s32.totalorder %v6194, 1
      %vm6203 = vcmp.eq.s32.totalorder %v6195, 1
      %vm6204 = vcmp.eq.s32.totalorder %v6196, 1
      %vm6205 = vcmp.eq.s32.totalorder %v6197, 1
      %vm6206 = vcmp.eq.s32.totalorder %v6198, 1
      %vm6207 = vcmp.eq.s32.totalorder %v6199, 1
      %vm6208 = vcmp.eq.s32.totalorder %v6200, 1
      %v6209 = vsel %vm6201, %v6192, 0.0
      %v6210 = vsel %vm6202, %v6191, 0.0
      %v6211 = vsel %vm6203, %v6190, 0.0
      %v6212 = vsel %vm6204, %v6189, 0.0
      %v6213 = vsel %vm6205, %v6188, 0.0
      %v6214 = vsel %vm6206, %v6187, 0.0
      %v6215 = vsel %vm6207, %v6186, 0.0
      %v6216 = vsel %vm6208, %v6185, 0.0
      %v6217 = vrot.slane %v5934, 5
      %v6218 = vrot.slane %v5937, 5
      %v6219 = vrot.slane %v5983, 5
      %v6220 = vrot.slane %v5986, 5
      %v6221 = vrot.slane %v6032, 5
      %v6222 = vrot.slane %v6035, 5
      %v6223 = vrot.slane %v6081, 5
      %v6224 = vrot.slane %v6084, 5
      %vm6225 = vcmp.lt.s32.totalorder %v1993, 3
      %v6226 = vsel %vm6225, %v6223, %v6224
      %v6227 = vsel %vm6225, %v6222, %v6223
      %v6228 = vsel %vm6225, %v6221, %v6222
      %v6229 = vsel %vm6225, %v6220, %v6221
      %v6230 = vsel %vm6225, %v6219, %v6220
      %v6231 = vsel %vm6225, %v6218, %v6219
      %v6232 = vsel %vm6225, %v6217, %v6218
      %v6233 = vsel %vm6225, %v6224, %v6217
      %vm6234 = vcmp.le.s32.totalorder %v6087, 2
      %vm6235 = vcmp.le.s32.totalorder %v6088, 2
      %vm6236 = vcmp.le.s32.totalorder %v6089, 2
      %vm6237 = vcmp.le.s32.totalorder %v6090, 2
      %vm6238 = vcmp.le.s32.totalorder %v6091, 2
      %vm6239 = vcmp.le.s32.totalorder %v6092, 2
      %vm6240 = vcmp.le.s32.totalorder %v6093, 2
      %vm6241 = vcmp.le.s32.totalorder %v6094, 2
      %vm6242 = vmand %vm6128, %vm6234
      %vm6243 = vmand %vm6129, %vm6235
      %vm6244 = vmand %vm6130, %vm6236
      %vm6245 = vmand %vm6131, %vm6237
      %vm6246 = vmand %vm6132, %vm6238
      %vm6247 = vmand %vm6133, %vm6239
      %vm6248 = vmand %vm6134, %vm6240
      %vm6249 = vmand %vm6135, %vm6241
      %v6250 = vsel %vm6242, 1, 0
      %v6251 = vsel %vm6243, 1, 0
      %v6252 = vsel %vm6244, 1, 0
      %v6253 = vsel %vm6245, 1, 0
      %v6254 = vsel %vm6246, 1, 0
      %v6255 = vsel %vm6247, 1, 0
      %v6256 = vsel %vm6248, 1, 0
      %v6257 = vsel %vm6249, 1, 0
      %vm6258 = vcmp.eq.s32.totalorder %v6250, 1
      %vm6259 = vcmp.eq.s32.totalorder %v6251, 1
      %vm6260 = vcmp.eq.s32.totalorder %v6252, 1
      %vm6261 = vcmp.eq.s32.totalorder %v6253, 1
      %vm6262 = vcmp.eq.s32.totalorder %v6254, 1
      %vm6263 = vcmp.eq.s32.totalorder %v6255, 1
      %vm6264 = vcmp.eq.s32.totalorder %v6256, 1
      %vm6265 = vcmp.eq.s32.totalorder %v6257, 1
      %v6266 = vsel %vm6258, %v6233, 0.0
      %v6267 = vsel %vm6259, %v6232, 0.0
      %v6268 = vsel %vm6260, %v6231, 0.0
      %v6269 = vsel %vm6261, %v6230, 0.0
      %v6270 = vsel %vm6262, %v6229, 0.0
      %v6271 = vsel %vm6263, %v6228, 0.0
      %v6272 = vsel %vm6264, %v6227, 0.0
      %v6273 = vsel %vm6265, %v6226, 0.0
      %v6274 = vrot.slane %v5934, 7
      %v6275 = vrot.slane %v5937, 7
      %v6276 = vrot.slane %v5983, 7
      %v6277 = vrot.slane %v5986, 7
      %v6278 = vrot.slane %v6032, 7
      %v6279 = vrot.slane %v6035, 7
      %v6280 = vrot.slane %v6081, 7
      %v6281 = vrot.slane %v6084, 7
      %v6282 = vsel %vm3054, %v6280, %v6281
      %v6283 = vsel %vm3054, %v6279, %v6280
      %v6284 = vsel %vm3054, %v6278, %v6279
      %v6285 = vsel %vm3054, %v6277, %v6278
      %v6286 = vsel %vm3054, %v6276, %v6277
      %v6287 = vsel %vm3054, %v6275, %v6276
      %v6288 = vsel %vm3054, %v6274, %v6275
      %v6289 = vsel %vm3054, %v6281, %v6274
      %v6290 = vsel %vm6136, 1, 0
      %v6291 = vsel %vm6137, 1, 0
      %v6292 = vsel %vm6138, 1, 0
      %v6293 = vsel %vm6139, 1, 0
      %v6294 = vsel %vm6140, 1, 0
      %v6295 = vsel %vm6141, 1, 0
      %v6296 = vsel %vm6142, 1, 0
      %v6297 = vsel %vm6143, 1, 0
      %vm6298 = vcmp.eq.s32.totalorder %v6290, 1
      %vm6299 = vcmp.eq.s32.totalorder %v6291, 1
      %vm6300 = vcmp.eq.s32.totalorder %v6292, 1
      %vm6301 = vcmp.eq.s32.totalorder %v6293, 1
      %vm6302 = vcmp.eq.s32.totalorder %v6294, 1
      %vm6303 = vcmp.eq.s32.totalorder %v6295, 1
      %vm6304 = vcmp.eq.s32.totalorder %v6296, 1
      %vm6305 = vcmp.eq.s32.totalorder %v6297, 1
      %v6306 = vsel %vm6298, %v6289, 0.0
      %v6307 = vsel %vm6299, %v6288, 0.0
      %v6308 = vsel %vm6300, %v6287, 0.0
      %v6309 = vsel %vm6301, %v6286, 0.0
      %v6310 = vsel %vm6302, %v6285, 0.0
      %v6311 = vsel %vm6303, %v6284, 0.0
      %v6312 = vsel %vm6304, %v6283, 0.0
      %v6313 = vsel %vm6305, %v6282, 0.0
      %v6314 = vrot.slane %v5934, 1
      %v6315 = vrot.slane %v5937, 1
      %v6316 = vrot.slane %v5983, 1
      %v6317 = vrot.slane %v5986, 1
      %v6318 = vrot.slane %v6032, 1
      %v6319 = vrot.slane %v6035, 1
      %v6320 = vrot.slane %v6081, 1
      %v6321 = vrot.slane %v6084, 1
      %v6322 = vsel %vm1994, %v6320, %v6321
      %v6323 = vsel %vm1994, %v6319, %v6320
      %v6324 = vsel %vm1994, %v6318, %v6319
      %v6325 = vsel %vm1994, %v6317, %v6318
      %v6326 = vsel %vm1994, %v6316, %v6317
      %v6327 = vsel %vm1994, %v6315, %v6316
      %v6328 = vsel %vm1994, %v6314, %v6315
      %v6329 = vsel %vm1994, %v6321, %v6314
      %v6330 = vsel %vm6234, 1, 0
      %v6331 = vsel %vm6235, 1, 0
      %v6332 = vsel %vm6236, 1, 0
      %v6333 = vsel %vm6237, 1, 0
      %v6334 = vsel %vm6238, 1, 0
      %v6335 = vsel %vm6239, 1, 0
      %v6336 = vsel %vm6240, 1, 0
      %v6337 = vsel %vm6241, 1, 0
      %vm6338 = vcmp.eq.s32.totalorder %v6330, 1
      %vm6339 = vcmp.eq.s32.totalorder %v6331, 1
      %vm6340 = vcmp.eq.s32.totalorder %v6332, 1
      %vm6341 = vcmp.eq.s32.totalorder %v6333, 1
      %vm6342 = vcmp.eq.s32.totalorder %v6334, 1
      %vm6343 = vcmp.eq.s32.totalorder %v6335, 1
      %vm6344 = vcmp.eq.s32.totalorder %v6336, 1
      %vm6345 = vcmp.eq.s32.totalorder %v6337, 1
      %v6346 = vsel %vm6338, %v6328, 0.0
      %v6347 = vsel %vm6339, %v6327, 0.0
      %v6348 = vsel %vm6340, %v6326, 0.0
      %v6349 = vsel %vm6341, %v6325, 0.0
      %v6350 = vsel %vm6342, %v6324, 0.0
      %v6351 = vsel %vm6343, %v6323, 0.0
      %v6352 = vsel %vm6344, %v6322, 0.0
      %v6353 = vsel %vm6345, %v6329, 0.0
      %vm6354 = vcmp.le.s32.totalorder %v6103, 2
      %vm6355 = vcmp.le.s32.totalorder %v6104, 2
      %vm6356 = vcmp.le.s32.totalorder %v6105, 2
      %vm6357 = vcmp.le.s32.totalorder %v6106, 2
      %vm6358 = vcmp.le.s32.totalorder %v6107, 2
      %vm6359 = vcmp.le.s32.totalorder %v6108, 2
      %vm6360 = vcmp.le.s32.totalorder %v6109, 2
      %vm6361 = vcmp.le.s32.totalorder %v6110, 2
      %vm6362 = vmand %vm6354, %vm6136
      %vm6363 = vmand %vm6355, %vm6137
      %vm6364 = vmand %vm6356, %vm6138
      %vm6365 = vmand %vm6357, %vm6139
      %vm6366 = vmand %vm6358, %vm6140
      %vm6367 = vmand %vm6359, %vm6141
      %vm6368 = vmand %vm6360, %vm6142
      %vm6369 = vmand %vm6361, %vm6143
      %v6370 = vsel %vm6362, 1, 0
      %v6371 = vsel %vm6363, 1, 0
      %v6372 = vsel %vm6364, 1, 0
      %v6373 = vsel %vm6365, 1, 0
      %v6374 = vsel %vm6366, 1, 0
      %v6375 = vsel %vm6367, 1, 0
      %v6376 = vsel %vm6368, 1, 0
      %v6377 = vsel %vm6369, 1, 0
      %vm6378 = vcmp.eq.s32.totalorder %v6370, 1
      %vm6379 = vcmp.eq.s32.totalorder %v6371, 1
      %vm6380 = vcmp.eq.s32.totalorder %v6372, 1
      %vm6381 = vcmp.eq.s32.totalorder %v6373, 1
      %vm6382 = vcmp.eq.s32.totalorder %v6374, 1
      %vm6383 = vcmp.eq.s32.totalorder %v6375, 1
      %vm6384 = vcmp.eq.s32.totalorder %v6376, 1
      %vm6385 = vcmp.eq.s32.totalorder %v6377, 1
      %v6386 = vsel %vm6378, %v6126, 0.0
      %v6387 = vsel %vm6379, %v6125, 0.0
      %v6388 = vsel %vm6380, %v6124, 0.0
      %v6389 = vsel %vm6381, %v6123, 0.0
      %v6390 = vsel %vm6382, %v6122, 0.0
      %v6391 = vsel %vm6383, %v6121, 0.0
      %v6392 = vsel %vm6384, %v6120, 0.0
      %v6393 = vsel %vm6385, %v6127, 0.0
      %v6394 = vsel %vm6354, 1, 0
      %v6395 = vsel %vm6355, 1, 0
      %v6396 = vsel %vm6356, 1, 0
      %v6397 = vsel %vm6357, 1, 0
      %v6398 = vsel %vm6358, 1, 0
      %v6399 = vsel %vm6359, 1, 0
      %v6400 = vsel %vm6360, 1, 0
      %v6401 = vsel %vm6361, 1, 0
      %vm6402 = vcmp.eq.s32.totalorder %v6394, 1
      %vm6403 = vcmp.eq.s32.totalorder %v6395, 1
      %vm6404 = vcmp.eq.s32.totalorder %v6396, 1
      %vm6405 = vcmp.eq.s32.totalorder %v6397, 1
      %vm6406 = vcmp.eq.s32.totalorder %v6398, 1
      %vm6407 = vcmp.eq.s32.totalorder %v6399, 1
      %vm6408 = vcmp.eq.s32.totalorder %v6400, 1
      %vm6409 = vcmp.eq.s32.totalorder %v6401, 1
      %v6410 = vsel %vm6402, %v6191, 0.0
      %v6411 = vsel %vm6403, %v6190, 0.0
      %v6412 = vsel %vm6404, %v6189, 0.0
      %v6413 = vsel %vm6405, %v6188, 0.0
      %v6414 = vsel %vm6406, %v6187, 0.0
      %v6415 = vsel %vm6407, %v6186, 0.0
      %v6416 = vsel %vm6408, %v6185, 0.0
      %v6417 = vsel %vm6409, %v6192, 0.0
      %vm6418 = vmand %vm6354, %vm6234
      %vm6419 = vmand %vm6355, %vm6235
      %vm6420 = vmand %vm6356, %vm6236
      %vm6421 = vmand %vm6357, %vm6237
      %vm6422 = vmand %vm6358, %vm6238
      %vm6423 = vmand %vm6359, %vm6239
      %vm6424 = vmand %vm6360, %vm6240
      %vm6425 = vmand %vm6361, %vm6241
      %v6426 = vsel %vm6418, 1, 0
      %v6427 = vsel %vm6419, 1, 0
      %v6428 = vsel %vm6420, 1, 0
      %v6429 = vsel %vm6421, 1, 0
      %v6430 = vsel %vm6422, 1, 0
      %v6431 = vsel %vm6423, 1, 0
      %v6432 = vsel %vm6424, 1, 0
      %v6433 = vsel %vm6425, 1, 0
      %vm6434 = vcmp.eq.s32.totalorder %v6426, 1
      %vm6435 = vcmp.eq.s32.totalorder %v6427, 1
      %vm6436 = vcmp.eq.s32.totalorder %v6428, 1
      %vm6437 = vcmp.eq.s32.totalorder %v6429, 1
      %vm6438 = vcmp.eq.s32.totalorder %v6430, 1
      %vm6439 = vcmp.eq.s32.totalorder %v6431, 1
      %vm6440 = vcmp.eq.s32.totalorder %v6432, 1
      %vm6441 = vcmp.eq.s32.totalorder %v6433, 1
      %v6442 = vsel %vm6434, %v6232, 0.0
      %v6443 = vsel %vm6435, %v6231, 0.0
      %v6444 = vsel %vm6436, %v6230, 0.0
      %v6445 = vsel %vm6437, %v6229, 0.0
      %v6446 = vsel %vm6438, %v6228, 0.0
      %v6447 = vsel %vm6439, %v6227, 0.0
      %v6448 = vsel %vm6440, %v6226, 0.0
      %v6449 = vsel %vm6441, %v6233, 0.0
      %6458 = vrot.lane.b32.xlu0 %v6209, 64
      %v6459 = vpop.permute.xlu0 %6458
      %6460 = vrot.lane.b32.xlu0 %v6210, 64
      %v6461 = vpop.permute.xlu0 %6460
      %6462 = vrot.lane.b32.xlu0 %v6211, 64
      %v6463 = vpop.permute.xlu0 %6462
      %6464 = vrot.lane.b32.xlu0 %v6212, 64
      %v6465 = vpop.permute.xlu0 %6464
      %6466 = vrot.lane.b32.xlu0 %v6213, 64
      %v6467 = vpop.permute.xlu0 %6466
      %6468 = vrot.lane.b32.xlu0 %v6214, 64
      %v6469 = vpop.permute.xlu0 %6468
      %6470 = vrot.lane.b32.xlu0 %v6215, 64
      %v6471 = vpop.permute.xlu0 %6470
      %6472 = vrot.lane.b32.xlu0 %v6216, 64
      %v6473 = vpop.permute.xlu0 %6472
      %6490 = vrot.lane.b32.xlu0 %v6306, 64
      %v6491 = vpop.permute.xlu0 %6490
      %6492 = vrot.lane.b32.xlu0 %v6307, 64
      %v6493 = vpop.permute.xlu0 %6492
      %6494 = vrot.lane.b32.xlu0 %v6308, 64
      %v6495 = vpop.permute.xlu0 %6494
      %6496 = vrot.lane.b32.xlu0 %v6309, 64
      %v6497 = vpop.permute.xlu0 %6496
      %6498 = vrot.lane.b32.xlu0 %v6310, 64
      %v6499 = vpop.permute.xlu0 %6498
      %6500 = vrot.lane.b32.xlu0 %v6311, 64
      %v6501 = vpop.permute.xlu0 %6500
      %6502 = vrot.lane.b32.xlu0 %v6312, 64
      %v6503 = vpop.permute.xlu0 %6502
      %6504 = vrot.lane.b32.xlu0 %v6313, 64
      %v6505 = vpop.permute.xlu0 %6504
      %6522 = vrot.lane.b32.xlu0 %v6346, 64
      %v6523 = vpop.permute.xlu0 %6522
      %6524 = vrot.lane.b32.xlu0 %v6347, 64
      %v6525 = vpop.permute.xlu0 %6524
      %6526 = vrot.lane.b32.xlu0 %v6348, 64
      %v6527 = vpop.permute.xlu0 %6526
      %6528 = vrot.lane.b32.xlu0 %v6349, 64
      %v6529 = vpop.permute.xlu0 %6528
      %6530 = vrot.lane.b32.xlu0 %v6350, 64
      %v6531 = vpop.permute.xlu0 %6530
      %6532 = vrot.lane.b32.xlu0 %v6351, 64
      %v6533 = vpop.permute.xlu0 %6532
      %6534 = vrot.lane.b32.xlu0 %v6352, 64
      %v6535 = vpop.permute.xlu0 %6534
      %6536 = vrot.lane.b32.xlu0 %v6353, 64
      %v6537 = vpop.permute.xlu0 %6536
      %6554 = vrot.lane.b32.xlu0 %v6410, 64
      %v6555 = vpop.permute.xlu0 %6554
      %6556 = vrot.lane.b32.xlu0 %v6411, 64
      %v6557 = vpop.permute.xlu0 %6556
      %6558 = vrot.lane.b32.xlu0 %v6412, 64
      %v6559 = vpop.permute.xlu0 %6558
      %6560 = vrot.lane.b32.xlu0 %v6413, 64
      %v6561 = vpop.permute.xlu0 %6560
      %6562 = vrot.lane.b32.xlu0 %v6414, 64
      %v6563 = vpop.permute.xlu0 %6562
      %6564 = vrot.lane.b32.xlu0 %v6415, 64
      %v6565 = vpop.permute.xlu0 %6564
      %6566 = vrot.lane.b32.xlu0 %v6416, 64
      %v6567 = vpop.permute.xlu0 %6566
      %6568 = vrot.lane.b32.xlu0 %v6417, 64
      %v6569 = vpop.permute.xlu0 %6568
      %v6578 = vsel %vm4976, %v6168, %v6459
      %v6579 = vsel %vm4976, %v6169, %v6461
      %v6580 = vsel %vm4976, %v6170, %v6463
      %v6581 = vsel %vm4976, %v6171, %v6465
      %v6582 = vsel %vm4976, %v6172, %v6467
      %v6583 = vsel %vm4976, %v6173, %v6469
      %v6584 = vsel %vm4976, %v6174, %v6471
      %v6585 = vsel %vm4976, %v6175, %v6473
      %v6586 = vsel %vm4976, %v6266, %v6491
      %v6587 = vsel %vm4976, %v6267, %v6493
      %v6588 = vsel %vm4976, %v6268, %v6495
      %v6589 = vsel %vm4976, %v6269, %v6497
      %v6590 = vsel %vm4976, %v6270, %v6499
      %v6591 = vsel %vm4976, %v6271, %v6501
      %v6592 = vsel %vm4976, %v6272, %v6503
      %v6593 = vsel %vm4976, %v6273, %v6505
      %v6594 = vsel %vm4976, %v5934, %v6523
      %v6595 = vsel %vm4976, %v5937, %v6525
      %v6596 = vsel %vm4976, %v5983, %v6527
      %v6597 = vsel %vm4976, %v5986, %v6529
      %v6598 = vsel %vm4976, %v6032, %v6531
      %v6599 = vsel %vm4976, %v6035, %v6533
      %v6600 = vsel %vm4976, %v6081, %v6535
      %v6601 = vsel %vm4976, %v6084, %v6537
      %v6602 = vsel %vm4976, %v6386, %v6555
      %v6603 = vsel %vm4976, %v6387, %v6557
      %v6604 = vsel %vm4976, %v6388, %v6559
      %v6605 = vsel %vm4976, %v6389, %v6561
      %v6606 = vsel %vm4976, %v6390, %v6563
      %v6607 = vsel %vm4976, %v6391, %v6565
      %v6608 = vsel %vm4976, %v6392, %v6567
      %v6609 = vsel %vm4976, %v6393, %v6569
      %v6610 = vpack.c.bf16 %v6579, %v6578
      %v6611 = vpack.c.bf16 %v6587, %v6586
      %v6612 = vpack.c.bf16 %v6595, %v6594
      %v6613 = vpack.c.bf16 %v6603, %v6602
      %v6614 = vpack.c.bf16 %v6443, %v6442
      %v6615 = vpack.c.bf16 %v6581, %v6580
      %v6616 = vpack.c.bf16 %v6589, %v6588
      %v6617 = vpack.c.bf16 %v6597, %v6596
      %v6618 = vpack.c.bf16 %v6605, %v6604
      %v6619 = vpack.c.bf16 %v6445, %v6444
      %v6620 = vpack.c.bf16 %v6583, %v6582
      %v6621 = vpack.c.bf16 %v6591, %v6590
      %v6622 = vpack.c.bf16 %v6599, %v6598
      %v6623 = vpack.c.bf16 %v6607, %v6606
      %v6624 = vpack.c.bf16 %v6447, %v6446
      %v6625 = vpack.c.bf16 %v6585, %v6584
      %v6626 = vpack.c.bf16 %v6593, %v6592
      %v6627 = vpack.c.bf16 %v6601, %v6600
      %v6628 = vpack.c.bf16 %v6609, %v6608
      %v6629 = vpack.c.bf16 %v6449, %v6448
      %v6630 = vld [vmem:[%s7] sm:$0xf]
      %v6631 = vld [vmem:[%s7 + $0x4] sm:$0xf]
      %v6632 = vld [vmem:[%s7 + $0x8] sm:$0xf]
      %v6633 = vld [vmem:[%s7 + $0xc] sm:$0xf]
      %v6634 = vld [vmem:[%s7 + $0x10] sm:$0xf]
      %v6635 = vld [vmem:[%s7 + $0x14] sm:$0xf]
      %v6636 = vld [vmem:[%s7 + $0x18] sm:$0xf]
      %v6637 = vld [vmem:[%s7 + $0x1c] sm:$0xf]
      %v6638 = vld [vmem:[%s7 + $0x20] sm:$0xf]
      %v6639 = vld [vmem:[%s7 + $0x24] sm:$0xf]
      %v6640 = vld [vmem:[%s7 + $0x28] sm:$0xf]
      %v6641 = vld [vmem:[%s7 + $0x2c] sm:$0xf]
      %v6642 = vld [vmem:[%s7 + $0x30] sm:$0xf]
      %v6643 = vld [vmem:[%s7 + $0x34] sm:$0xf]
      %v6644 = vld [vmem:[%s7 + $0x38] sm:$0xf]
      %v6645 = vld [vmem:[%s7 + $0x3c] sm:$0xf]
      %v6646 = vld [vmem:[%s7 + $0x40] sm:$0xf]
      %v6647 = vld [vmem:[%s7 + $0x44] sm:$0xf]
      %v6648 = vld [vmem:[%s7 + $0x48] sm:$0xf]
      %v6649 = vld [vmem:[%s7 + $0x4c] sm:$0xf]
      %v6650 = vld [vmem:[%s7 + $0x50] sm:$0xf]
      %v6651 = vld [vmem:[%s7 + $0x54] sm:$0xf]
      %v6652 = vld [vmem:[%s7 + $0x58] sm:$0xf]
      %v6653 = vld [vmem:[%s7 + $0x5c] sm:$0xf]
      %v6654 = vld [vmem:[%s7 + $0x60] sm:$0xf]
      %v6655 = vld [vmem:[%s7 + $0x64] sm:$0xf]
      %v6656 = vld [vmem:[%s7 + $0x68] sm:$0xf]
      %v6657 = vld [vmem:[%s7 + $0x6c] sm:$0xf]
      %v6658 = vld [vmem:[%s7 + $0x70] sm:$0xf]
      %v6659 = vld [vmem:[%s7 + $0x74] sm:$0xf]
      %v6660 = vld [vmem:[%s7 + $0x78] sm:$0xf]
      %v6661 = vld [vmem:[%s7 + $0x7c] sm:$0xf]
      %v6662 = vld [vmem:[%s7 + $0x80] sm:$0xf]
      %v6663 = vld [vmem:[%s7 + $0x84] sm:$0xf]
      %v6664 = vld [vmem:[%s7 + $0x88] sm:$0xf]
      %v6665 = vld [vmem:[%s7 + $0x8c] sm:$0xf]
      %v6666 = vld [vmem:[%s7 + $0x90] sm:$0xf]
      %v6667 = vld [vmem:[%s7 + $0x94] sm:$0xf]
      %v6668 = vld [vmem:[%s7 + $0x98] sm:$0xf]
      %v6669 = vld [vmem:[%s7 + $0x9c] sm:$0xf]
      %v6670 = vld [vmem:[%s7 + $0xa0] sm:$0xf]
      %v6671 = vld [vmem:[%s7 + $0xa4] sm:$0xf]
      %v6672 = vld [vmem:[%s7 + $0xa8] sm:$0xf]
      %v6673 = vld [vmem:[%s7 + $0xac] sm:$0xf]
      %v6674 = vld [vmem:[%s7 + $0xb0] sm:$0xf]
      %v6675 = vld [vmem:[%s7 + $0xb4] sm:$0xf]
      %v6676 = vld [vmem:[%s7 + $0xb8] sm:$0xf]
      %v6677 = vld [vmem:[%s7 + $0xbc] sm:$0xf]
      %v6678 = vld [vmem:[%s7 + $0xc0] sm:$0xf]
      %v6679 = vld [vmem:[%s7 + $0xc4] sm:$0xf]
      %v6680 = vld [vmem:[%s7 + $0xc8] sm:$0xf]
      %v6681 = vld [vmem:[%s7 + $0xcc] sm:$0xf]
      %v6682 = vld [vmem:[%s7 + $0xd0] sm:$0xf]
      %v6683 = vld [vmem:[%s7 + $0xd4] sm:$0xf]
      %v6684 = vld [vmem:[%s7 + $0xd8] sm:$0xf]
      %v6685 = vld [vmem:[%s7 + $0xdc] sm:$0xf]
      %v6686 = vld [vmem:[%s7 + $0xe0] sm:$0xf]
      %v6687 = vld [vmem:[%s7 + $0xe4] sm:$0xf]
      %v6688 = vld [vmem:[%s7 + $0xe8] sm:$0xf]
      %v6689 = vld [vmem:[%s7 + $0xec] sm:$0xf]
      %v6690 = vld [vmem:[%s7 + $0xf0] sm:$0xf]
      %v6691 = vld [vmem:[%s7 + $0xf4] sm:$0xf]
      %v6692 = vld [vmem:[%s7 + $0xf8] sm:$0xf]
      %v6693 = vld [vmem:[%s7 + $0xfc] sm:$0xf]
      %v6694 = vld [vmem:[%s7 + $0x100] sm:$0xf]
      %v6695 = vld [vmem:[%s7 + $0x104] sm:$0xf]
      %v6696 = vld [vmem:[%s7 + $0x108] sm:$0xf]
      %v6697 = vld [vmem:[%s7 + $0x10c] sm:$0xf]
      %v6698 = vld [vmem:[%s7 + $0x110] sm:$0xf]
      %v6699 = vld [vmem:[%s7 + $0x114] sm:$0xf]
      %v6700 = vld [vmem:[%s7 + $0x118] sm:$0xf]
      %v6701 = vld [vmem:[%s7 + $0x11c] sm:$0xf]
      %v6702 = vld [vmem:[%s8] sm:$0x1]
      %v6704 = vlaneseq
      %v6705 = vshrl.u32 %v6704, 7
      %v6706 = vsub.s32 0, %v6705
      %v6707 = vrot.slane %v6702, %v6706
      %v6781 = vunpack.c.l.b16 %v6630
      %v6782 = vunpack.c.l.b16 %v6631
      %v6783 = vunpack.c.l.b16 %v6632
      %v6784 = vunpack.c.l.b16 %v6633
      %v6785 = vunpack.c.l.b16 %v6634
      %v6786 = vunpack.c.l.b16 %v6635
      %v6787 = vunpack.c.l.b16 %v6636
      %v6788 = vunpack.c.l.b16 %v6637
      %v6789 = vunpack.c.l.b16 %v6638
      %v6790 = vunpack.c.l.b16 %v6639
      %v6791 = vunpack.c.l.b16 %v6640
      %v6792 = vunpack.c.l.b16 %v6641
      %v6793 = vunpack.c.l.b16 %v6642
      %v6794 = vunpack.c.l.b16 %v6643
      %v6795 = vunpack.c.l.b16 %v6644
      %v6796 = vunpack.c.l.b16 %v6645
      %v6797 = vunpack.c.l.b16 %v6646
      %v6798 = vunpack.c.l.b16 %v6647
      %v6799 = vunpack.c.l.b16 %v6648
      %v6800 = vunpack.c.l.b16 %v6649
      %v6801 = vunpack.c.l.b16 %v6650
      %v6802 = vunpack.c.l.b16 %v6651
      %v6803 = vunpack.c.l.b16 %v6652
      %v6804 = vunpack.c.l.b16 %v6653
      %v6805 = vunpack.c.l.b16 %v6654
      %v6806 = vunpack.c.l.b16 %v6655
      %v6807 = vunpack.c.l.b16 %v6656
      %v6808 = vunpack.c.l.b16 %v6657
      %v6809 = vunpack.c.l.b16 %v6658
      %v6810 = vunpack.c.l.b16 %v6659
      %v6811 = vunpack.c.l.b16 %v6660
      %v6812 = vunpack.c.l.b16 %v6661
      %v6813 = vunpack.c.l.b16 %v6662
      %v6814 = vunpack.c.l.b16 %v6663
      %v6815 = vunpack.c.l.b16 %v6664
      %v6816 = vunpack.c.l.b16 %v6665
      %v6817 = vunpack.c.l.b16 %v6666
      %v6818 = vunpack.c.l.b16 %v6667
      %v6819 = vunpack.c.l.b16 %v6668
      %v6820 = vunpack.c.l.b16 %v6669
      %v6821 = vunpack.c.l.b16 %v6670
      %v6822 = vunpack.c.l.b16 %v6671
      %v6823 = vunpack.c.l.b16 %v6672
      %v6824 = vunpack.c.l.b16 %v6673
      %v6825 = vunpack.c.l.b16 %v6674
      %v6826 = vunpack.c.l.b16 %v6675
      %v6827 = vunpack.c.l.b16 %v6676
      %v6828 = vunpack.c.l.b16 %v6677
      %v6829 = vunpack.c.l.b16 %v6678
      %v6830 = vunpack.c.l.b16 %v6679
      %v6831 = vunpack.c.l.b16 %v6680
      %v6832 = vunpack.c.l.b16 %v6681
      %v6833 = vunpack.c.l.b16 %v6682
      %v6834 = vunpack.c.l.b16 %v6683
      %v6835 = vunpack.c.l.b16 %v6684
      %v6836 = vunpack.c.l.b16 %v6685
      %v6837 = vunpack.c.l.b16 %v6686
      %v6838 = vunpack.c.l.b16 %v6687
      %v6839 = vunpack.c.l.b16 %v6688
      %v6840 = vunpack.c.l.b16 %v6689
      %v6841 = vunpack.c.l.b16 %v6690
      %v6842 = vunpack.c.l.b16 %v6691
      %v6843 = vunpack.c.l.b16 %v6692
      %v6844 = vunpack.c.l.b16 %v6693
      %v6845 = vunpack.c.l.b16 %v6694
      %v6846 = vunpack.c.l.b16 %v6695
      %v6847 = vunpack.c.l.b16 %v6696
      %v6848 = vunpack.c.l.b16 %v6697
      %v6849 = vunpack.c.l.b16 %v6698
      %v6850 = vunpack.c.l.b16 %v6699
      %v6851 = vunpack.c.l.b16 %v6700
      %v6852 = vunpack.c.l.b16 %v6701
      %v6853 = vpack.c.b16 %v6782, %v6781
      %v6854 = vpack.c.b16 %v6784, %v6783
      %v6855 = vpack.c.b16 %v6786, %v6785
      %v6856 = vpack.c.b16 %v6788, %v6787
      %v6857 = vpack.c.b16 %v6790, %v6789
      %v6858 = vpack.c.b16 %v6792, %v6791
      %v6859 = vpack.c.b16 %v6794, %v6793
      %v6860 = vpack.c.b16 %v6796, %v6795
      %v6861 = vpack.c.b16 %v6798, %v6797
      %v6862 = vpack.c.b16 %v6800, %v6799
      %v6863 = vpack.c.b16 %v6802, %v6801
      %v6864 = vpack.c.b16 %v6804, %v6803
      %v6865 = vpack.c.b16 %v6806, %v6805
      %v6866 = vpack.c.b16 %v6808, %v6807
      %v6867 = vpack.c.b16 %v6810, %v6809
      %v6868 = vpack.c.b16 %v6812, %v6811
      %v6869 = vpack.c.b16 %v6814, %v6813
      %v6870 = vpack.c.b16 %v6816, %v6815
      %v6871 = vpack.c.b16 %v6818, %v6817
      %v6872 = vpack.c.b16 %v6820, %v6819
      %v6873 = vpack.c.b16 %v6822, %v6821
      %v6874 = vpack.c.b16 %v6824, %v6823
      %v6875 = vpack.c.b16 %v6826, %v6825
      %v6876 = vpack.c.b16 %v6828, %v6827
      %v6877 = vpack.c.b16 %v6830, %v6829
      %v6878 = vpack.c.b16 %v6832, %v6831
      %v6879 = vpack.c.b16 %v6834, %v6833
      %v6880 = vpack.c.b16 %v6836, %v6835
      %v6881 = vpack.c.b16 %v6838, %v6837
      %v6882 = vpack.c.b16 %v6840, %v6839
      %v6883 = vpack.c.b16 %v6842, %v6841
      %v6884 = vpack.c.b16 %v6844, %v6843
      %v6885 = vpack.c.b16 %v6846, %v6845
      %v6886 = vpack.c.b16 %v6848, %v6847
      %v6887 = vpack.c.b16 %v6850, %v6849
      %v6888 = vpack.c.b16 %v6852, %v6851
      %v6926 = vsel %vm4976, %v6614, 0
      %v6929 = vsel %vm4976, %v6619, 0
      %v6932 = vsel %vm4976, %v6624, 0
      %v6935 = vsel %vm4976, %v6629, 0
      %6937 = vmatprep.subr.bf16.mxu0 0
      %6938 = vmatpush1.bf16.msra.mxu0 %v6860
      %6939 = vmatprep.subr.bf16.mxu0 0
      %6940 = vmatpush1.bf16.msra.mxu0 %v6859
      %6941 = vmatprep.subr.bf16.mxu0 0
      %6942 = vmatpush1.bf16.msra.mxu0 %v6858
      %6943 = vmatprep.subr.bf16.mxu0 0
      %6944 = vmatpush1.bf16.msra.mxu0 %v6857
      %6945 = vmatprep.subr.bf16.mxu0 0
      %6946 = vmatpush1.bf16.msra.mxu0 %v6856
      %6947 = vmatprep.subr.bf16.mxu0 0
      %6948 = vmatpush1.bf16.msra.mxu0 %v6855
      %6949 = vmatprep.subr.bf16.mxu0 0
      %6950 = vmatpush1.bf16.msra.mxu0 %v6854
      %6951 = vmatprep.subr.bf16.mxu0 0
      %6952 = vmatpush1.bf16.msra.mxu0 %v6853
      %6953 = vmatprep.subr.bf16.mxu0 0
      %6954 = vmatpush2.bf16.msra.mxu0 %v6868
      %6955 = vmatprep.subr.bf16.mxu0 0
      %6956 = vmatpush2.bf16.msra.mxu0 %v6867
      %6957 = vmatprep.subr.bf16.mxu0 0
      %6958 = vmatpush2.bf16.msra.mxu0 %v6866
      %6959 = vmatprep.subr.bf16.mxu0 0
      %6960 = vmatpush2.bf16.msra.mxu0 %v6865
      %6961 = vmatprep.subr.bf16.mxu0 0
      %6962 = vmatpush2.bf16.msra.mxu0 %v6864
      %6963 = vmatprep.subr.bf16.mxu0 0
      %6964 = vmatpush2.bf16.msra.mxu0 %v6863
      %6965 = vmatprep.subr.bf16.mxu0 0
      %6966 = vmatpush2.bf16.msra.mxu0 %v6862
      %6967 = vmatprep.subr.bf16.mxu0 0
      %6968 = vmatpush2.bf16.msra.mxu0 %v6861
      %6969 = vmatprep.mubr.bf16.mxu0 %v6611
      %6970 = vmatmul.mubr.bf16.gmra.mxu0 %v6610
      %v6971 = vpop.f32.mrf.mxu0
      %v6972 = vadd.f32 %v6707, %v6971
      %v6973 = vpop.f32.mrf.mxu0
      %v6974 = vpop.f32.mrf.mxu0
      %v6975 = vadd.f32 %v6707, %v6974
      %v6976 = vpop.f32.mrf.mxu0
      %6977 = vmatprep.mubr.bf16.mxu0 %v6616
      %6978 = vmatmul.mubr.bf16.gmra.mxu0 %v6615
      %v6979 = vpop.f32.mrf.mxu0
      %v6980 = vadd.f32 %v6707, %v6979
      %v6981 = vpop.f32.mrf.mxu0
      %v6982 = vpop.f32.mrf.mxu0
      %v6983 = vadd.f32 %v6707, %v6982
      %v6984 = vpop.f32.mrf.mxu0
      %6985 = vmatprep.mubr.bf16.mxu0 %v6621
      %6986 = vmatmul.mubr.bf16.gmra.mxu0 %v6620
      %v6987 = vpop.f32.mrf.mxu0
      %v6988 = vadd.f32 %v6707, %v6987
      %v6989 = vpop.f32.mrf.mxu0
      %v6990 = vpop.f32.mrf.mxu0
      %v6991 = vadd.f32 %v6707, %v6990
      %v6992 = vpop.f32.mrf.mxu0
      %6993 = vmatprep.mubr.bf16.mxu0 %v6626
      %6994 = vmatmul.mubr.bf16.gmra.mxu0 %v6625
      %v6995 = vpop.f32.mrf.mxu0
      %v6996 = vadd.f32 %v6707, %v6995
      %v6997 = vpop.f32.mrf.mxu0
      %v6998 = vpop.f32.mrf.mxu0
      %v6999 = vadd.f32 %v6707, %v6998
      %v7000 = vpop.f32.mrf.mxu0
      %7001 = vdwg.mxu0
      %7002 = vmatprep.subr.bf16.mxu0 0
      %7003 = vmatpush1.bf16.msra.mxu0 %v6876
      %7004 = vmatprep.subr.bf16.mxu0 0
      %7005 = vmatpush1.bf16.msra.mxu0 %v6875
      %7006 = vmatprep.subr.bf16.mxu0 0
      %7007 = vmatpush1.bf16.msra.mxu0 %v6874
      %7008 = vmatprep.subr.bf16.mxu0 0
      %7009 = vmatpush1.bf16.msra.mxu0 %v6873
      %7010 = vmatprep.subr.bf16.mxu0 0
      %7011 = vmatpush1.bf16.msra.mxu0 %v6872
      %7012 = vmatprep.subr.bf16.mxu0 0
      %7013 = vmatpush1.bf16.msra.mxu0 %v6871
      %7014 = vmatprep.subr.bf16.mxu0 0
      %7015 = vmatpush1.bf16.msra.mxu0 %v6870
      %7016 = vmatprep.subr.bf16.mxu0 0
      %7017 = vmatpush1.bf16.msra.mxu0 %v6869
      %7018 = vmatprep.subr.bf16.mxu0 0
      %7019 = vmatpush2.bf16.msra.mxu0 %v6884
      %7020 = vmatprep.subr.bf16.mxu0 0
      %7021 = vmatpush2.bf16.msra.mxu0 %v6883
      %7022 = vmatprep.subr.bf16.mxu0 0
      %7023 = vmatpush2.bf16.msra.mxu0 %v6882
      %7024 = vmatprep.subr.bf16.mxu0 0
      %7025 = vmatpush2.bf16.msra.mxu0 %v6881
      %7026 = vmatprep.subr.bf16.mxu0 0
      %7027 = vmatpush2.bf16.msra.mxu0 %v6880
      %7028 = vmatprep.subr.bf16.mxu0 0
      %7029 = vmatpush2.bf16.msra.mxu0 %v6879
      %7030 = vmatprep.subr.bf16.mxu0 0
      %7031 = vmatpush2.bf16.msra.mxu0 %v6878
      %7032 = vmatprep.subr.bf16.mxu0 0
      %7033 = vmatpush2.bf16.msra.mxu0 %v6877
      %7034 = vmatprep.mubr.bf16.mxu0 %v6613
      %7035 = vmatmul.mubr.bf16.gmra.mxu0 %v6612
      %v7036 = vpop.f32.mrf.mxu0
      %v7037 = vadd.f32 %v6972, %v7036
      %v7038 = vpop.f32.mrf.mxu0
      %v7039 = vpop.f32.mrf.mxu0
      %v7040 = vadd.f32 %v6975, %v7039
      %v7041 = vpop.f32.mrf.mxu0
      %7042 = vmatprep.mubr.bf16.mxu0 %v6618
      %7043 = vmatmul.mubr.bf16.gmra.mxu0 %v6617
      %v7044 = vpop.f32.mrf.mxu0
      %v7045 = vadd.f32 %v6980, %v7044
      %v7046 = vpop.f32.mrf.mxu0
      %v7047 = vpop.f32.mrf.mxu0
      %v7048 = vadd.f32 %v6983, %v7047
      %v7049 = vpop.f32.mrf.mxu0
      %7050 = vmatprep.mubr.bf16.mxu0 %v6623
      %7051 = vmatmul.mubr.bf16.gmra.mxu0 %v6622
      %v7052 = vpop.f32.mrf.mxu0
      %v7053 = vadd.f32 %v6988, %v7052
      %v7054 = vpop.f32.mrf.mxu0
      %v7055 = vpop.f32.mrf.mxu0
      %v7056 = vadd.f32 %v6991, %v7055
      %v7057 = vpop.f32.mrf.mxu0
      %7058 = vmatprep.mubr.bf16.mxu0 %v6628
      %7059 = vmatmul.mubr.bf16.gmra.mxu0 %v6627
      %v7060 = vpop.f32.mrf.mxu0
      %v7061 = vadd.f32 %v6996, %v7060
      %v7062 = vpop.f32.mrf.mxu0
      %v7063 = vpop.f32.mrf.mxu0
      %v7064 = vadd.f32 %v6999, %v7063
      %v7065 = vpop.f32.mrf.mxu0
      %7066 = vdwg.mxu0
      %7067 = vmatprep.subr.bf16.mxu0 0
      %7068 = vmatpush1.bf16.msra.mxu0 0
      %7069 = vmatprep.subr.bf16.mxu0 0
      %7070 = vmatpush1.bf16.msra.mxu0 0
      %7071 = vmatprep.subr.bf16.mxu0 0
      %7072 = vmatpush1.bf16.msra.mxu0 0
      %7073 = vmatprep.subr.bf16.mxu0 0
      %7074 = vmatpush1.bf16.msra.mxu0 0
      %7075 = vmatprep.subr.bf16.mxu0 0
      %7076 = vmatpush1.bf16.msra.mxu0 %v6888
      %7077 = vmatprep.subr.bf16.mxu0 0
      %7078 = vmatpush1.bf16.msra.mxu0 %v6887
      %7079 = vmatprep.subr.bf16.mxu0 0
      %7080 = vmatpush1.bf16.msra.mxu0 %v6886
      %7081 = vmatprep.subr.bf16.mxu0 0
      %7082 = vmatpush1.bf16.msra.mxu0 %v6885
      %7083 = vmatprep.subr.bf16.mxu0 0
      %7084 = vmatpush2.bf16.msra.mxu0 0
      %7085 = vmatprep.subr.bf16.mxu0 0
      %7086 = vmatpush2.bf16.msra.mxu0 0
      %7087 = vmatprep.subr.bf16.mxu0 0
      %7088 = vmatpush2.bf16.msra.mxu0 0
      %7089 = vmatprep.subr.bf16.mxu0 0
      %7090 = vmatpush2.bf16.msra.mxu0 0
      %7091 = vmatprep.subr.bf16.mxu0 0
      %7092 = vmatpush2.bf16.msra.mxu0 0
      %7093 = vmatprep.subr.bf16.mxu0 0
      %7094 = vmatpush2.bf16.msra.mxu0 0
      %7095 = vmatprep.subr.bf16.mxu0 0
      %7096 = vmatpush2.bf16.msra.mxu0 0
      %7097 = vmatprep.subr.bf16.mxu0 0
      %7098 = vmatpush2.bf16.msra.mxu0 0
      %7099 = vmatprep.mubr.bf16.mxu0 0
      %7100 = vmatmul.mubr.bf16.gmra.mxu0 %v6926
      %v7101 = vpop.f32.mrf.mxu0
      %v7102 = vadd.f32 %v7037, %v7101
      %v7103 = vpop.f32.mrf.mxu0
      %v7104 = vpop.f32.mrf.mxu0
      %v7105 = vadd.f32 %v7040, %v7104
      %v7106 = vpop.f32.mrf.mxu0
      %7107 = vmatprep.mubr.bf16.mxu0 0
      %7108 = vmatmul.mubr.bf16.gmra.mxu0 %v6929
      %v7109 = vpop.f32.mrf.mxu0
      %v7110 = vadd.f32 %v7045, %v7109
      %v7111 = vpop.f32.mrf.mxu0
      %v7112 = vpop.f32.mrf.mxu0
      %v7113 = vadd.f32 %v7048, %v7112
      %v7114 = vpop.f32.mrf.mxu0
      %7115 = vmatprep.mubr.bf16.mxu0 0
      %7116 = vmatmul.mubr.bf16.gmra.mxu0 %v6932
      %v7117 = vpop.f32.mrf.mxu0
      %v7118 = vadd.f32 %v7053, %v7117
      %v7119 = vpop.f32.mrf.mxu0
      %v7120 = vpop.f32.mrf.mxu0
      %v7121 = vadd.f32 %v7056, %v7120
      %v7122 = vpop.f32.mrf.mxu0
      %7123 = vmatprep.mubr.bf16.mxu0 0
      %7124 = vmatmul.mubr.bf16.gmra.mxu0 %v6935
      %v7125 = vpop.f32.mrf.mxu0
      %v7126 = vadd.f32 %v7061, %v7125
      %v7127 = vpop.f32.mrf.mxu0
      %v7128 = vpop.f32.mrf.mxu0
      %v7129 = vadd.f32 %v7064, %v7128
      %v7130 = vpop.f32.mrf.mxu0
      %7131 = vdwg.mxu0
      %v7132 = vmax.f32 %v7102, 0.0
      %v7133 = vmax.f32 %v7105, 0.0
      %v7134 = vmax.f32 %v7110, 0.0
      %v7135 = vmax.f32 %v7113, 0.0
      %v7136 = vmax.f32 %v7118, 0.0
      %v7137 = vmax.f32 %v7121, 0.0
      %v7138 = vmax.f32 %v7126, 0.0
      %v7139 = vmax.f32 %v7129, 0.0
      %v7140 = vrot.slane %v7132, 1
      %v7141 = vrot.slane %v7133, 1
      %v7142 = vrot.slane %v7134, 1
      %v7143 = vrot.slane %v7135, 1
      %v7144 = vrot.slane %v7136, 1
      %v7145 = vrot.slane %v7137, 1
      %v7146 = vrot.slane %v7138, 1
      %v7147 = vrot.slane %v7139, 1
      %v7148 = vsel %vm1994, %v7146, %v7147
      %v7149 = vsel %vm1994, %v7145, %v7146
      %v7150 = vsel %vm1994, %v7144, %v7145
      %v7151 = vsel %vm1994, %v7143, %v7144
      %v7152 = vsel %vm1994, %v7142, %v7143
      %v7153 = vsel %vm1994, %v7141, %v7142
      %v7154 = vsel %vm1994, %v7140, %v7141
      %v7155 = vsel %vm1994, %v7147, %v7140
      %v7156 = vmax.f32 %v7132, %v7154
      %v7157 = vmax.f32 %v7133, %v7153
      %v7158 = vmax.f32 %v7134, %v7152
      %v7159 = vmax.f32 %v7135, %v7151
      %v7160 = vmax.f32 %v7136, %v7150
      %v7161 = vmax.f32 %v7137, %v7149
      %v7162 = vmax.f32 %v7138, %v7148
      %v7163 = vmax.f32 %v7139, %v7155
      %v7164 = vrot.slane %v7156, 4
      %v7165 = vrot.slane %v7157, 4
      %v7166 = vrot.slane %v7158, 4
      %v7167 = vrot.slane %v7159, 4
      %v7168 = vrot.slane %v7160, 4
      %v7169 = vrot.slane %v7161, 4
      %v7170 = vrot.slane %v7162, 4
      %v7171 = vrot.slane %v7163, 4
      %v7172 = vsel %vm6184, %v7170, %v7171
      %v7173 = vsel %vm6184, %v7169, %v7170
      %v7174 = vsel %vm6184, %v7168, %v7169
      %v7175 = vsel %vm6184, %v7167, %v7168
      %v7176 = vsel %vm6184, %v7166, %v7167
      %v7177 = vsel %vm6184, %v7165, %v7166
      %v7178 = vsel %vm6184, %v7164, %v7165
      %v7179 = vsel %vm6184, %v7171, %v7164
      %v7180 = vmax.f32 %v7156, %v7178
      %v7181 = vmax.f32 %v7157, %v7177
      %v7182 = vmax.f32 %v7158, %v7176
      %v7183 = vmax.f32 %v7159, %v7175
      %v7184 = vmax.f32 %v7160, %v7174
      %v7185 = vmax.f32 %v7161, %v7173
      %v7186 = vmax.f32 %v7162, %v7172
      %v7187 = vmax.f32 %v7163, %v7179
      %v7188 = vpack.c.bf16 %v7181, %v7180
      %v7189 = vpack.c.bf16 %v7183, %v7182
      %v7190 = vpack.c.bf16 %v7185, %v7184
      %v7191 = vpack.c.bf16 %v7187, %v7186
      %v7192 = vld [vmem:[%s9] sm:$0xf]
      %v7193 = vld [vmem:[%s9 + $0x4] sm:$0xf]
      %v7194 = vld [vmem:[%s9 + $0x8] sm:$0xf]
      %v7195 = vld [vmem:[%s9 + $0xc] sm:$0xf]
      %vm7196 = vcmask 130048
      %v7198 = vsel %vm7196, %v7192, 0
      %7200 = vmatprep.subr.bf16.mxu0 0
      %7201 = vmatpush1.bf16.msra.mxu0 0
      %7202 = vmatprep.subr.bf16.mxu0 0
      %7203 = vmatpush1.bf16.msra.mxu0 0
      %7204 = vmatprep.subr.bf16.mxu0 0
      %7205 = vmatpush1.bf16.msra.mxu0 0
      %7206 = vmatprep.subr.bf16.mxu0 0
      %7207 = vmatpush1.bf16.msra.mxu0 0
      %7208 = vmatprep.subr.bf16.mxu0 0
      %7209 = vmatpush1.bf16.msra.mxu0 0
      %7210 = vmatprep.subr.bf16.mxu0 0
      %7211 = vmatpush1.bf16.msra.mxu0 0
      %7212 = vmatprep.subr.bf16.mxu0 0
      %7213 = vmatpush1.bf16.msra.mxu0 0
      %7214 = vmatprep.subr.bf16.mxu0 0
      %7215 = vmatpush1.bf16.msra.mxu0 %v7188
      %7216 = vmatprep.subr.bf16.mxu0 0
      %7217 = vmatpush2.bf16.msra.mxu0 0
      %7218 = vmatprep.subr.bf16.mxu0 0
      %7219 = vmatpush2.bf16.msra.mxu0 0
      %7220 = vmatprep.subr.bf16.mxu0 0
      %7221 = vmatpush2.bf16.msra.mxu0 0
      %7222 = vmatprep.subr.bf16.mxu0 0
      %7223 = vmatpush2.bf16.msra.mxu0 0
      %7224 = vmatprep.subr.bf16.mxu0 0
      %7225 = vmatpush2.bf16.msra.mxu0 0
      %7226 = vmatprep.subr.bf16.mxu0 0
      %7227 = vmatpush2.bf16.msra.mxu0 0
      %7228 = vmatprep.subr.bf16.mxu0 0
      %7229 = vmatpush2.bf16.msra.mxu0 0
      %7230 = vmatprep.subr.bf16.mxu0 0
      %7231 = vmatpush2.bf16.msra.mxu0 0
      %7232 = vmatprep.mubr.bf16.mxu0 0
      %7233 = vmatmul.mubr.bf16.gmra.mxu0 %v7198
      %v7234 = vpop.f32.mrf.mxu0
      %v7235 = vadd.f32 0.0, %v7234
      %v7236 = vpop.f32.mrf.mxu0
      %v7237 = vpop.f32.mrf.mxu0
      %v7238 = vpop.f32.mrf.mxu0
      %7239 = vdwg.mxu0
      %v7241 = vsel %vm7196, %v7193, 0
      %7243 = vmatprep.subr.bf16.mxu0 0
      %7244 = vmatpush1.bf16.msra.mxu0 0
      %7245 = vmatprep.subr.bf16.mxu0 0
      %7246 = vmatpush1.bf16.msra.mxu0 0
      %7247 = vmatprep.subr.bf16.mxu0 0
      %7248 = vmatpush1.bf16.msra.mxu0 0
      %7249 = vmatprep.subr.bf16.mxu0 0
      %7250 = vmatpush1.bf16.msra.mxu0 0
      %7251 = vmatprep.subr.bf16.mxu0 0
      %7252 = vmatpush1.bf16.msra.mxu0 0
      %7253 = vmatprep.subr.bf16.mxu0 0
      %7254 = vmatpush1.bf16.msra.mxu0 0
      %7255 = vmatprep.subr.bf16.mxu0 0
      %7256 = vmatpush1.bf16.msra.mxu0 0
      %7257 = vmatprep.subr.bf16.mxu0 0
      %7258 = vmatpush1.bf16.msra.mxu0 %v7189
      %7259 = vmatprep.subr.bf16.mxu0 0
      %7260 = vmatpush2.bf16.msra.mxu0 0
      %7261 = vmatprep.subr.bf16.mxu0 0
      %7262 = vmatpush2.bf16.msra.mxu0 0
      %7263 = vmatprep.subr.bf16.mxu0 0
      %7264 = vmatpush2.bf16.msra.mxu0 0
      %7265 = vmatprep.subr.bf16.mxu0 0
      %7266 = vmatpush2.bf16.msra.mxu0 0
      %7267 = vmatprep.subr.bf16.mxu0 0
      %7268 = vmatpush2.bf16.msra.mxu0 0
      %7269 = vmatprep.subr.bf16.mxu0 0
      %7270 = vmatpush2.bf16.msra.mxu0 0
      %7271 = vmatprep.subr.bf16.mxu0 0
      %7272 = vmatpush2.bf16.msra.mxu0 0
      %7273 = vmatprep.subr.bf16.mxu0 0
      %7274 = vmatpush2.bf16.msra.mxu0 0
      %7275 = vmatprep.mubr.bf16.mxu0 0
      %7276 = vmatmul.mubr.bf16.gmra.mxu0 %v7241
      %v7277 = vpop.f32.mrf.mxu0
      %v7278 = vadd.f32 0.0, %v7277
      %v7279 = vpop.f32.mrf.mxu0
      %v7280 = vpop.f32.mrf.mxu0
      %v7281 = vpop.f32.mrf.mxu0
      %7282 = vdwg.mxu0
      %v7284 = vsel %vm7196, %v7194, 0
      %7286 = vmatprep.subr.bf16.mxu0 0
      %7287 = vmatpush1.bf16.msra.mxu0 0
      %7288 = vmatprep.subr.bf16.mxu0 0
      %7289 = vmatpush1.bf16.msra.mxu0 0
      %7290 = vmatprep.subr.bf16.mxu0 0
      %7291 = vmatpush1.bf16.msra.mxu0 0
      %7292 = vmatprep.subr.bf16.mxu0 0
      %7293 = vmatpush1.bf16.msra.mxu0 0
      %7294 = vmatprep.subr.bf16.mxu0 0
      %7295 = vmatpush1.bf16.msra.mxu0 0
      %7296 = vmatprep.subr.bf16.mxu0 0
      %7297 = vmatpush1.bf16.msra.mxu0 0
      %7298 = vmatprep.subr.bf16.mxu0 0
      %7299 = vmatpush1.bf16.msra.mxu0 0
      %7300 = vmatprep.subr.bf16.mxu0 0
      %7301 = vmatpush1.bf16.msra.mxu0 %v7190
      %7302 = vmatprep.subr.bf16.mxu0 0
      %7303 = vmatpush2.bf16.msra.mxu0 0
      %7304 = vmatprep.subr.bf16.mxu0 0
      %7305 = vmatpush2.bf16.msra.mxu0 0
      %7306 = vmatprep.subr.bf16.mxu0 0
      %7307 = vmatpush2.bf16.msra.mxu0 0
      %7308 = vmatprep.subr.bf16.mxu0 0
      %7309 = vmatpush2.bf16.msra.mxu0 0
      %7310 = vmatprep.subr.bf16.mxu0 0
      %7311 = vmatpush2.bf16.msra.mxu0 0
      %7312 = vmatprep.subr.bf16.mxu0 0
      %7313 = vmatpush2.bf16.msra.mxu0 0
      %7314 = vmatprep.subr.bf16.mxu0 0
      %7315 = vmatpush2.bf16.msra.mxu0 0
      %7316 = vmatprep.subr.bf16.mxu0 0
      %7317 = vmatpush2.bf16.msra.mxu0 0
      %7318 = vmatprep.mubr.bf16.mxu0 0
      %7319 = vmatmul.mubr.bf16.gmra.mxu0 %v7284
      %v7320 = vpop.f32.mrf.mxu0
      %v7321 = vadd.f32 0.0, %v7320
      %v7322 = vpop.f32.mrf.mxu0
      %v7323 = vpop.f32.mrf.mxu0
      %v7324 = vpop.f32.mrf.mxu0
      %7325 = vdwg.mxu0
      %v7327 = vsel %vm7196, %v7195, 0
      %7329 = vmatprep.subr.bf16.mxu0 0
      %7330 = vmatpush1.bf16.msra.mxu0 0
      %7331 = vmatprep.subr.bf16.mxu0 0
      %7332 = vmatpush1.bf16.msra.mxu0 0
      %7333 = vmatprep.subr.bf16.mxu0 0
      %7334 = vmatpush1.bf16.msra.mxu0 0
      %7335 = vmatprep.subr.bf16.mxu0 0
      %7336 = vmatpush1.bf16.msra.mxu0 0
      %7337 = vmatprep.subr.bf16.mxu0 0
      %7338 = vmatpush1.bf16.msra.mxu0 0
      %7339 = vmatprep.subr.bf16.mxu0 0
      %7340 = vmatpush1.bf16.msra.mxu0 0
      %7341 = vmatprep.subr.bf16.mxu0 0
      %7342 = vmatpush1.bf16.msra.mxu0 0
      %7343 = vmatprep.subr.bf16.mxu0 0
      %7344 = vmatpush1.bf16.msra.mxu0 %v7191
      %7345 = vmatprep.subr.bf16.mxu0 0
      %7346 = vmatpush2.bf16.msra.mxu0 0
      %7347 = vmatprep.subr.bf16.mxu0 0
      %7348 = vmatpush2.bf16.msra.mxu0 0
      %7349 = vmatprep.subr.bf16.mxu0 0
      %7350 = vmatpush2.bf16.msra.mxu0 0
      %7351 = vmatprep.subr.bf16.mxu0 0
      %7352 = vmatpush2.bf16.msra.mxu0 0
      %7353 = vmatprep.subr.bf16.mxu0 0
      %7354 = vmatpush2.bf16.msra.mxu0 0
      %7355 = vmatprep.subr.bf16.mxu0 0
      %7356 = vmatpush2.bf16.msra.mxu0 0
      %7357 = vmatprep.subr.bf16.mxu0 0
      %7358 = vmatpush2.bf16.msra.mxu0 0
      %7359 = vmatprep.subr.bf16.mxu0 0
      %7360 = vmatpush2.bf16.msra.mxu0 0
      %7361 = vmatprep.mubr.bf16.mxu0 0
      %7362 = vmatmul.mubr.bf16.gmra.mxu0 %v7327
      %v7363 = vpop.f32.mrf.mxu0
      %v7364 = vadd.f32 0.0, %v7363
      %v7365 = vpop.f32.mrf.mxu0
      %v7366 = vpop.f32.mrf.mxu0
      %v7367 = vpop.f32.mrf.mxu0
      %7368 = vdwg.mxu0
      %v7369 = vand.u32 %v1993, 1
      %v7370 = vand.u32 %v2895, 1
      %v7371 = vand.u32 %v2896, 1
      %v7372 = vand.u32 %v2897, 1
      %v7373 = vshra.s32 %v1993, 1
      %v7374 = vshra.s32 %v2895, 1
      %v7375 = vshra.s32 %v2896, 1
      %v7376 = vshra.s32 %v2897, 1
      %v7377 = vand.u32 %v7373, 1
      %v7378 = vand.u32 %v7374, 1
      %v7379 = vand.u32 %v7375, 1
      %v7380 = vand.u32 %v7376, 1
      %v7381 = vrot.slane %v7235, 5
      %v7382 = vrot.slane %v7278, 5
      %v7383 = vrot.slane %v7321, 5
      %v7384 = vrot.slane %v7364, 5
      %v7385 = vsel %vm6225, %v7383, %v7384
      %v7386 = vsel %vm6225, %v7382, %v7383
      %v7387 = vsel %vm6225, %v7381, %v7382
      %v7388 = vsel %vm6225, %v7384, %v7381
      %vm7389 = vcmp.ge.s32.totalorder %v7377, 1
      %vm7390 = vcmp.ge.s32.totalorder %v7378, 1
      %vm7391 = vcmp.ge.s32.totalorder %v7379, 1
      %vm7392 = vcmp.ge.s32.totalorder %v7380, 1
      %vm7393 = vcmp.ge.s32.totalorder %v7369, 1
      %vm7394 = vcmp.ge.s32.totalorder %v7370, 1
      %vm7395 = vcmp.ge.s32.totalorder %v7371, 1
      %vm7396 = vcmp.ge.s32.totalorder %v7372, 1
      %vm7397 = vmand %vm7389, %vm7393
      %vm7398 = vmand %vm7390, %vm7394
      %vm7399 = vmand %vm7391, %vm7395
      %vm7400 = vmand %vm7392, %vm7396
      %v7401 = vsel %vm7397, 1, 0
      %v7402 = vsel %vm7398, 1, 0
      %v7403 = vsel %vm7399, 1, 0
      %v7404 = vsel %vm7400, 1, 0
      %vm7405 = vcmp.eq.s32.totalorder %v7401, 1
      %vm7406 = vcmp.eq.s32.totalorder %v7402, 1
      %vm7407 = vcmp.eq.s32.totalorder %v7403, 1
      %vm7408 = vcmp.eq.s32.totalorder %v7404, 1
      %v7409 = vsel %vm7405, %v7388, 0.0
      %v7410 = vsel %vm7406, %v7387, 0.0
      %v7411 = vsel %vm7407, %v7386, 0.0
      %v7412 = vsel %vm7408, %v7385, 0.0
      %v7413 = vrot.slane %v7235, 6
      %v7414 = vrot.slane %v7278, 6
      %v7415 = vrot.slane %v7321, 6
      %v7416 = vrot.slane %v7364, 6
      %vm7417 = vcmp.lt.s32.totalorder %v1993, 2
      %v7418 = vsel %vm7417, %v7415, %v7416
      %v7419 = vsel %vm7417, %v7414, %v7415
      %v7420 = vsel %vm7417, %v7413, %v7414
      %v7421 = vsel %vm7417, %v7416, %v7413
      %v7422 = vsel %vm7389, 1, 0
      %v7423 = vsel %vm7390, 1, 0
      %v7424 = vsel %vm7391, 1, 0
      %v7425 = vsel %vm7392, 1, 0
      %vm7426 = vcmp.eq.s32.totalorder %v7422, 1
      %vm7427 = vcmp.eq.s32.totalorder %v7423, 1
      %vm7428 = vcmp.eq.s32.totalorder %v7424, 1
      %vm7429 = vcmp.eq.s32.totalorder %v7425, 1
      %v7430 = vsel %vm7426, %v7421, 0.0
      %v7431 = vsel %vm7427, %v7420, 0.0
      %v7432 = vsel %vm7428, %v7419, 0.0
      %v7433 = vsel %vm7429, %v7418, 0.0
      %v7434 = vrot.slane %v7235, 7
      %v7435 = vrot.slane %v7278, 7
      %v7436 = vrot.slane %v7321, 7
      %v7437 = vrot.slane %v7364, 7
      %v7438 = vsel %vm3054, %v7436, %v7437
      %v7439 = vsel %vm3054, %v7435, %v7436
      %v7440 = vsel %vm3054, %v7434, %v7435
      %v7441 = vsel %vm3054, %v7437, %v7434
      %vm7442 = vcmp.le.s32.totalorder %v7369, 0
      %vm7443 = vcmp.le.s32.totalorder %v7370, 0
      %vm7444 = vcmp.le.s32.totalorder %v7371, 0
      %vm7445 = vcmp.le.s32.totalorder %v7372, 0
      %vm7446 = vmand %vm7389, %vm7442
      %vm7447 = vmand %vm7390, %vm7443
      %vm7448 = vmand %vm7391, %vm7444
      %vm7449 = vmand %vm7392, %vm7445
      %v7450 = vsel %vm7446, 1, 0
      %v7451 = vsel %vm7447, 1, 0
      %v7452 = vsel %vm7448, 1, 0
      %v7453 = vsel %vm7449, 1, 0
      %vm7454 = vcmp.eq.s32.totalorder %v7450, 1
      %vm7455 = vcmp.eq.s32.totalorder %v7451, 1
      %vm7456 = vcmp.eq.s32.totalorder %v7452, 1
      %vm7457 = vcmp.eq.s32.totalorder %v7453, 1
      %v7458 = vsel %vm7454, %v7441, 0.0
      %v7459 = vsel %vm7455, %v7440, 0.0
      %v7460 = vsel %vm7456, %v7439, 0.0
      %v7461 = vsel %vm7457, %v7438, 0.0
      %v7462 = vsel %vm7393, 1, 0
      %v7463 = vsel %vm7394, 1, 0
      %v7464 = vsel %vm7395, 1, 0
      %v7465 = vsel %vm7396, 1, 0
      %vm7466 = vcmp.eq.s32.totalorder %v7462, 1
      %vm7467 = vcmp.eq.s32.totalorder %v7463, 1
      %vm7468 = vcmp.eq.s32.totalorder %v7464, 1
      %vm7469 = vcmp.eq.s32.totalorder %v7465, 1
      %v7470 = vsel %vm7466, %v7441, 0.0
      %v7471 = vsel %vm7467, %v7440, 0.0
      %v7472 = vsel %vm7468, %v7439, 0.0
      %v7473 = vsel %vm7469, %v7438, 0.0
      %v7474 = vrot.slane %v7235, 1
      %v7475 = vrot.slane %v7278, 1
      %v7476 = vrot.slane %v7321, 1
      %v7477 = vrot.slane %v7364, 1
      %v7478 = vsel %vm1994, %v7476, %v7477
      %v7479 = vsel %vm1994, %v7475, %v7476
      %v7480 = vsel %vm1994, %v7474, %v7475
      %v7481 = vsel %vm1994, %v7477, %v7474
      %v7482 = vsel %vm7442, 1, 0
      %v7483 = vsel %vm7443, 1, 0
      %v7484 = vsel %vm7444, 1, 0
      %v7485 = vsel %vm7445, 1, 0
      %vm7486 = vcmp.eq.s32.totalorder %v7482, 1
      %vm7487 = vcmp.eq.s32.totalorder %v7483, 1
      %vm7488 = vcmp.eq.s32.totalorder %v7484, 1
      %vm7489 = vcmp.eq.s32.totalorder %v7485, 1
      %v7490 = vsel %vm7486, %v7480, 0.0
      %v7491 = vsel %vm7487, %v7479, 0.0
      %v7492 = vsel %vm7488, %v7478, 0.0
      %v7493 = vsel %vm7489, %v7481, 0.0
      %vm7494 = vcmp.le.s32.totalorder %v7377, 0
      %vm7495 = vcmp.le.s32.totalorder %v7378, 0
      %vm7496 = vcmp.le.s32.totalorder %v7379, 0
      %vm7497 = vcmp.le.s32.totalorder %v7380, 0
      %vm7498 = vmand %vm7494, %vm7393
      %vm7499 = vmand %vm7495, %vm7394
      %vm7500 = vmand %vm7496, %vm7395
      %vm7501 = vmand %vm7497, %vm7396
      %v7502 = vsel %vm7498, 1, 0
      %v7503 = vsel %vm7499, 1, 0
      %v7504 = vsel %vm7500, 1, 0
      %v7505 = vsel %vm7501, 1, 0
      %vm7506 = vcmp.eq.s32.totalorder %v7502, 1
      %vm7507 = vcmp.eq.s32.totalorder %v7503, 1
      %vm7508 = vcmp.eq.s32.totalorder %v7504, 1
      %vm7509 = vcmp.eq.s32.totalorder %v7505, 1
      %v7510 = vsel %vm7506, %v7480, 0.0
      %v7511 = vsel %vm7507, %v7479, 0.0
      %v7512 = vsel %vm7508, %v7478, 0.0
      %v7513 = vsel %vm7509, %v7481, 0.0
      %v7514 = vrot.slane %v7235, 2
      %v7515 = vrot.slane %v7278, 2
      %v7516 = vrot.slane %v7321, 2
      %v7517 = vrot.slane %v7364, 2
      %vm7518 = vcmp.lt.s32.totalorder %v1993, 6
      %v7519 = vsel %vm7518, %v7516, %v7517
      %v7520 = vsel %vm7518, %v7515, %v7516
      %v7521 = vsel %vm7518, %v7514, %v7515
      %v7522 = vsel %vm7518, %v7517, %v7514
      %v7523 = vsel %vm7494, 1, 0
      %v7524 = vsel %vm7495, 1, 0
      %v7525 = vsel %vm7496, 1, 0
      %v7526 = vsel %vm7497, 1, 0
      %vm7527 = vcmp.eq.s32.totalorder %v7523, 1
      %vm7528 = vcmp.eq.s32.totalorder %v7524, 1
      %vm7529 = vcmp.eq.s32.totalorder %v7525, 1
      %vm7530 = vcmp.eq.s32.totalorder %v7526, 1
      %v7531 = vsel %vm7527, %v7521, 0.0
      %v7532 = vsel %vm7528, %v7520, 0.0
      %v7533 = vsel %vm7529, %v7519, 0.0
      %v7534 = vsel %vm7530, %v7522, 0.0
      %v7535 = vrot.slane %v7235, 3
      %v7536 = vrot.slane %v7278, 3
      %v7537 = vrot.slane %v7321, 3
      %v7538 = vrot.slane %v7364, 3
      %v7539 = vsel %vm6119, %v7537, %v7538
      %v7540 = vsel %vm6119, %v7536, %v7537
      %v7541 = vsel %vm6119, %v7535, %v7536
      %v7542 = vsel %vm6119, %v7538, %v7535
      %vm7543 = vmand %vm7494, %vm7442
      %vm7544 = vmand %vm7495, %vm7443
      %vm7545 = vmand %vm7496, %vm7444
      %vm7546 = vmand %vm7497, %vm7445
      %v7547 = vsel %vm7543, 1, 0
      %v7548 = vsel %vm7544, 1, 0
      %v7549 = vsel %vm7545, 1, 0
      %v7550 = vsel %vm7546, 1, 0
      %vm7551 = vcmp.eq.s32.totalorder %v7547, 1
      %vm7552 = vcmp.eq.s32.totalorder %v7548, 1
      %vm7553 = vcmp.eq.s32.totalorder %v7549, 1
      %vm7554 = vcmp.eq.s32.totalorder %v7550, 1
      %v7555 = vsel %vm7551, %v7541, 0.0
      %v7556 = vsel %vm7552, %v7540, 0.0
      %v7557 = vsel %vm7553, %v7539, 0.0
      %v7558 = vsel %vm7554, %v7542, 0.0
      %7563 = vrot.lane.b32.xlu0 %v7430, 64
      %v7564 = vpop.permute.xlu0 %7563
      %7565 = vrot.lane.b32.xlu0 %v7431, 64
      %v7566 = vpop.permute.xlu0 %7565
      %7567 = vrot.lane.b32.xlu0 %v7432, 64
      %v7568 = vpop.permute.xlu0 %7567
      %7569 = vrot.lane.b32.xlu0 %v7433, 64
      %v7570 = vpop.permute.xlu0 %7569
      %7579 = vrot.lane.b32.xlu0 %v7470, 64
      %v7580 = vpop.permute.xlu0 %7579
      %7581 = vrot.lane.b32.xlu0 %v7471, 64
      %v7582 = vpop.permute.xlu0 %7581
      %7583 = vrot.lane.b32.xlu0 %v7472, 64
      %v7584 = vpop.permute.xlu0 %7583
      %7585 = vrot.lane.b32.xlu0 %v7473, 64
      %v7586 = vpop.permute.xlu0 %7585
      %7595 = vrot.lane.b32.xlu0 %v7490, 64
      %v7596 = vpop.permute.xlu0 %7595
      %7597 = vrot.lane.b32.xlu0 %v7491, 64
      %v7598 = vpop.permute.xlu0 %7597
      %7599 = vrot.lane.b32.xlu0 %v7492, 64
      %v7600 = vpop.permute.xlu0 %7599
      %7601 = vrot.lane.b32.xlu0 %v7493, 64
      %v7602 = vpop.permute.xlu0 %7601
      %7611 = vrot.lane.b32.xlu0 %v7531, 64
      %v7612 = vpop.permute.xlu0 %7611
      %7613 = vrot.lane.b32.xlu0 %v7532, 64
      %v7614 = vpop.permute.xlu0 %7613
      %7615 = vrot.lane.b32.xlu0 %v7533, 64
      %v7616 = vpop.permute.xlu0 %7615
      %7617 = vrot.lane.b32.xlu0 %v7534, 64
      %v7618 = vpop.permute.xlu0 %7617
      %v7623 = vsel %vm4976, %v7409, %v7564
      %v7624 = vsel %vm4976, %v7410, %v7566
      %v7625 = vsel %vm4976, %v7411, %v7568
      %v7626 = vsel %vm4976, %v7412, %v7570
      %v7627 = vsel %vm4976, %v7458, %v7580
      %v7628 = vsel %vm4976, %v7459, %v7582
      %v7629 = vsel %vm4976, %v7460, %v7584
      %v7630 = vsel %vm4976, %v7461, %v7586
      %v7631 = vsel %vm4976, %v7235, %v7596
      %v7632 = vsel %vm4976, %v7278, %v7598
      %v7633 = vsel %vm4976, %v7321, %v7600
      %v7634 = vsel %vm4976, %v7364, %v7602
      %v7635 = vsel %vm4976, %v7510, %v7612
      %v7636 = vsel %vm4976, %v7511, %v7614
      %v7637 = vsel %vm4976, %v7512, %v7616
      %v7638 = vsel %vm4976, %v7513, %v7618
      %v7639 = vpack.c.bf16 %v7624, %v7623
      %v7640 = vpack.c.bf16 %v7628, %v7627
      %v7641 = vpack.c.bf16 %v7632, %v7631
      %v7642 = vpack.c.bf16 %v7636, %v7635
      %v7643 = vpack.c.bf16 %v7556, %v7555
      %v7644 = vpack.c.bf16 %v7626, %v7625
      %v7645 = vpack.c.bf16 %v7630, %v7629
      %v7646 = vpack.c.bf16 %v7634, %v7633
      %v7647 = vpack.c.bf16 %v7638, %v7637
      %v7648 = vpack.c.bf16 %v7558, %v7557
      %v7649 = vld [vmem:[%s10] sm:$0xf]
      %v7650 = vld [vmem:[%s10 + $0x4] sm:$0xf]
      %v7651 = vld [vmem:[%s10 + $0x8] sm:$0xf]
      %v7652 = vld [vmem:[%s10 + $0xc] sm:$0xf]
      %v7653 = vld [vmem:[%s10 + $0x10] sm:$0xf]
      %v7654 = vld [vmem:[%s10 + $0x14] sm:$0xf]
      %v7655 = vld [vmem:[%s10 + $0x18] sm:$0xf]
      %v7656 = vld [vmem:[%s10 + $0x1c] sm:$0xf]
      %v7657 = vld [vmem:[%s10 + $0x20] sm:$0xf]
      %v7658 = vld [vmem:[%s10 + $0x24] sm:$0xf]
      %v7659 = vld [vmem:[%s10 + $0x28] sm:$0xf]
      %v7660 = vld [vmem:[%s10 + $0x2c] sm:$0xf]
      %v7661 = vld [vmem:[%s10 + $0x30] sm:$0xf]
      %v7662 = vld [vmem:[%s10 + $0x34] sm:$0xf]
      %v7663 = vld [vmem:[%s10 + $0x38] sm:$0xf]
      %v7664 = vld [vmem:[%s10 + $0x3c] sm:$0xf]
      %v7665 = vld [vmem:[%s10 + $0x40] sm:$0xf]
      %v7666 = vld [vmem:[%s10 + $0x44] sm:$0xf]
      %v7667 = vld [vmem:[%s10 + $0x48] sm:$0xf]
      %v7668 = vld [vmem:[%s10 + $0x4c] sm:$0xf]
      %v7669 = vld [vmem:[%s10 + $0x50] sm:$0xf]
      %v7670 = vld [vmem:[%s10 + $0x54] sm:$0xf]
      %v7671 = vld [vmem:[%s10 + $0x58] sm:$0xf]
      %v7672 = vld [vmem:[%s10 + $0x5c] sm:$0xf]
      %v7673 = vld [vmem:[%s10 + $0x60] sm:$0xf]
      %v7674 = vld [vmem:[%s10 + $0x64] sm:$0xf]
      %v7675 = vld [vmem:[%s10 + $0x68] sm:$0xf]
      %v7676 = vld [vmem:[%s10 + $0x6c] sm:$0xf]
      %v7677 = vld [vmem:[%s10 + $0x70] sm:$0xf]
      %v7678 = vld [vmem:[%s10 + $0x74] sm:$0xf]
      %v7679 = vld [vmem:[%s10 + $0x78] sm:$0xf]
      %v7680 = vld [vmem:[%s10 + $0x7c] sm:$0xf]
      %v7681 = vld [vmem:[%s10 + $0x80] sm:$0xf]
      %v7682 = vld [vmem:[%s10 + $0x84] sm:$0xf]
      %v7683 = vld [vmem:[%s10 + $0x88] sm:$0xf]
      %v7684 = vld [vmem:[%s10 + $0x8c] sm:$0xf]
      %v7685 = vld [vmem:[%s10 + $0x90] sm:$0xf]
      %v7686 = vld [vmem:[%s10 + $0x94] sm:$0xf]
      %v7687 = vld [vmem:[%s10 + $0x98] sm:$0xf]
      %v7688 = vld [vmem:[%s10 + $0x9c] sm:$0xf]
      %v7689 = vld [vmem:[%s10 + $0xa0] sm:$0xf]
      %v7690 = vld [vmem:[%s10 + $0xa4] sm:$0xf]
      %v7691 = vld [vmem:[%s10 + $0xa8] sm:$0xf]
      %v7692 = vld [vmem:[%s10 + $0xac] sm:$0xf]
      %v7693 = vld [vmem:[%s10 + $0xb0] sm:$0xf]
      %v7694 = vld [vmem:[%s10 + $0xb4] sm:$0xf]
      %v7695 = vld [vmem:[%s10 + $0xb8] sm:$0xf]
      %v7696 = vld [vmem:[%s10 + $0xbc] sm:$0xf]
      %v7697 = vld [vmem:[%s10 + $0xc0] sm:$0xf]
      %v7698 = vld [vmem:[%s10 + $0xc4] sm:$0xf]
      %v7699 = vld [vmem:[%s10 + $0xc8] sm:$0xf]
      %v7700 = vld [vmem:[%s10 + $0xcc] sm:$0xf]
      %v7701 = vld [vmem:[%s10 + $0xd0] sm:$0xf]
      %v7702 = vld [vmem:[%s10 + $0xd4] sm:$0xf]
      %v7703 = vld [vmem:[%s10 + $0xd8] sm:$0xf]
      %v7704 = vld [vmem:[%s10 + $0xdc] sm:$0xf]
      %v7705 = vld [vmem:[%s10 + $0xe0] sm:$0xf]
      %v7706 = vld [vmem:[%s10 + $0xe4] sm:$0xf]
      %v7707 = vld [vmem:[%s10 + $0xe8] sm:$0xf]
      %v7708 = vld [vmem:[%s10 + $0xec] sm:$0xf]
      %v7709 = vld [vmem:[%s10 + $0xf0] sm:$0xf]
      %v7710 = vld [vmem:[%s10 + $0xf4] sm:$0xf]
      %v7711 = vld [vmem:[%s10 + $0xf8] sm:$0xf]
      %v7712 = vld [vmem:[%s10 + $0xfc] sm:$0xf]
      %v7713 = vld [vmem:[%s10 + $0x100] sm:$0xf]
      %v7714 = vld [vmem:[%s10 + $0x104] sm:$0xf]
      %v7715 = vld [vmem:[%s10 + $0x108] sm:$0xf]
      %v7716 = vld [vmem:[%s10 + $0x10c] sm:$0xf]
      %v7717 = vld [vmem:[%s10 + $0x110] sm:$0xf]
      %v7718 = vld [vmem:[%s10 + $0x114] sm:$0xf]
      %v7719 = vld [vmem:[%s10 + $0x118] sm:$0xf]
      %v7720 = vld [vmem:[%s10 + $0x11c] sm:$0xf]
      %v7721 = vld [vmem:[%s11] sm:$0x1]
      %v7723 = vlaneseq
      %v7724 = vshrl.u32 %v7723, 7
      %v7725 = vsub.s32 0, %v7724
      %v7726 = vrot.slane %v7721, %v7725
      %v7800 = vunpack.c.l.b16 %v7649
      %v7801 = vunpack.c.l.b16 %v7650
      %v7802 = vunpack.c.l.b16 %v7651
      %v7803 = vunpack.c.l.b16 %v7652
      %v7804 = vunpack.c.l.b16 %v7653
      %v7805 = vunpack.c.l.b16 %v7654
      %v7806 = vunpack.c.l.b16 %v7655
      %v7807 = vunpack.c.l.b16 %v7656
      %v7808 = vunpack.c.l.b16 %v7657
      %v7809 = vunpack.c.l.b16 %v7658
      %v7810 = vunpack.c.l.b16 %v7659
      %v7811 = vunpack.c.l.b16 %v7660
      %v7812 = vunpack.c.l.b16 %v7661
      %v7813 = vunpack.c.l.b16 %v7662
      %v7814 = vunpack.c.l.b16 %v7663
      %v7815 = vunpack.c.l.b16 %v7664
      %v7816 = vunpack.c.l.b16 %v7665
      %v7817 = vunpack.c.l.b16 %v7666
      %v7818 = vunpack.c.l.b16 %v7667
      %v7819 = vunpack.c.l.b16 %v7668
      %v7820 = vunpack.c.l.b16 %v7669
      %v7821 = vunpack.c.l.b16 %v7670
      %v7822 = vunpack.c.l.b16 %v7671
      %v7823 = vunpack.c.l.b16 %v7672
      %v7824 = vunpack.c.l.b16 %v7673
      %v7825 = vunpack.c.l.b16 %v7674
      %v7826 = vunpack.c.l.b16 %v7675
      %v7827 = vunpack.c.l.b16 %v7676
      %v7828 = vunpack.c.l.b16 %v7677
      %v7829 = vunpack.c.l.b16 %v7678
      %v7830 = vunpack.c.l.b16 %v7679
      %v7831 = vunpack.c.l.b16 %v7680
      %v7832 = vunpack.c.l.b16 %v7681
      %v7833 = vunpack.c.l.b16 %v7682
      %v7834 = vunpack.c.l.b16 %v7683
      %v7835 = vunpack.c.l.b16 %v7684
      %v7836 = vunpack.c.l.b16 %v7685
      %v7837 = vunpack.c.l.b16 %v7686
      %v7838 = vunpack.c.l.b16 %v7687
      %v7839 = vunpack.c.l.b16 %v7688
      %v7840 = vunpack.c.l.b16 %v7689
      %v7841 = vunpack.c.l.b16 %v7690
      %v7842 = vunpack.c.l.b16 %v7691
      %v7843 = vunpack.c.l.b16 %v7692
      %v7844 = vunpack.c.l.b16 %v7693
      %v7845 = vunpack.c.l.b16 %v7694
      %v7846 = vunpack.c.l.b16 %v7695
      %v7847 = vunpack.c.l.b16 %v7696
      %v7848 = vunpack.c.l.b16 %v7697
      %v7849 = vunpack.c.l.b16 %v7698
      %v7850 = vunpack.c.l.b16 %v7699
      %v7851 = vunpack.c.l.b16 %v7700
      %v7852 = vunpack.c.l.b16 %v7701
      %v7853 = vunpack.c.l.b16 %v7702
      %v7854 = vunpack.c.l.b16 %v7703
      %v7855 = vunpack.c.l.b16 %v7704
      %v7856 = vunpack.c.l.b16 %v7705
      %v7857 = vunpack.c.l.b16 %v7706
      %v7858 = vunpack.c.l.b16 %v7707
      %v7859 = vunpack.c.l.b16 %v7708
      %v7860 = vunpack.c.l.b16 %v7709
      %v7861 = vunpack.c.l.b16 %v7710
      %v7862 = vunpack.c.l.b16 %v7711
      %v7863 = vunpack.c.l.b16 %v7712
      %v7864 = vunpack.c.l.b16 %v7713
      %v7865 = vunpack.c.l.b16 %v7714
      %v7866 = vunpack.c.l.b16 %v7715
      %v7867 = vunpack.c.l.b16 %v7716
      %v7868 = vunpack.c.l.b16 %v7717
      %v7869 = vunpack.c.l.b16 %v7718
      %v7870 = vunpack.c.l.b16 %v7719
      %v7871 = vunpack.c.l.b16 %v7720
      %v7872 = vpack.c.b16 %v7801, %v7800
      %v7873 = vpack.c.b16 %v7803, %v7802
      %v7874 = vpack.c.b16 %v7805, %v7804
      %v7875 = vpack.c.b16 %v7807, %v7806
      %v7876 = vpack.c.b16 %v7809, %v7808
      %v7877 = vpack.c.b16 %v7811, %v7810
      %v7878 = vpack.c.b16 %v7813, %v7812
      %v7879 = vpack.c.b16 %v7815, %v7814
      %v7880 = vpack.c.b16 %v7817, %v7816
      %v7881 = vpack.c.b16 %v7819, %v7818
      %v7882 = vpack.c.b16 %v7821, %v7820
      %v7883 = vpack.c.b16 %v7823, %v7822
      %v7884 = vpack.c.b16 %v7825, %v7824
      %v7885 = vpack.c.b16 %v7827, %v7826
      %v7886 = vpack.c.b16 %v7829, %v7828
      %v7887 = vpack.c.b16 %v7831, %v7830
      %v7888 = vpack.c.b16 %v7833, %v7832
      %v7889 = vpack.c.b16 %v7835, %v7834
      %v7890 = vpack.c.b16 %v7837, %v7836
      %v7891 = vpack.c.b16 %v7839, %v7838
      %v7892 = vpack.c.b16 %v7841, %v7840
      %v7893 = vpack.c.b16 %v7843, %v7842
      %v7894 = vpack.c.b16 %v7845, %v7844
      %v7895 = vpack.c.b16 %v7847, %v7846
      %v7896 = vpack.c.b16 %v7849, %v7848
      %v7897 = vpack.c.b16 %v7851, %v7850
      %v7898 = vpack.c.b16 %v7853, %v7852
      %v7899 = vpack.c.b16 %v7855, %v7854
      %v7900 = vpack.c.b16 %v7857, %v7856
      %v7901 = vpack.c.b16 %v7859, %v7858
      %v7902 = vpack.c.b16 %v7861, %v7860
      %v7903 = vpack.c.b16 %v7863, %v7862
      %v7904 = vpack.c.b16 %v7865, %v7864
      %v7905 = vpack.c.b16 %v7867, %v7866
      %v7906 = vpack.c.b16 %v7869, %v7868
      %v7907 = vpack.c.b16 %v7871, %v7870
      %v7945 = vsel %vm4976, %v7643, 0
      %v7948 = vsel %vm4976, %v7648, 0
      %7950 = vmatprep.subr.bf16.mxu0 0
      %7951 = vmatpush1.bf16.msra.mxu0 %v7879
      %7952 = vmatprep.subr.bf16.mxu0 0
      %7953 = vmatpush1.bf16.msra.mxu0 %v7878
      %7954 = vmatprep.subr.bf16.mxu0 0
      %7955 = vmatpush1.bf16.msra.mxu0 %v7877
      %7956 = vmatprep.subr.bf16.mxu0 0
      %7957 = vmatpush1.bf16.msra.mxu0 %v7876
      %7958 = vmatprep.subr.bf16.mxu0 0
      %7959 = vmatpush1.bf16.msra.mxu0 %v7875
      %7960 = vmatprep.subr.bf16.mxu0 0
      %7961 = vmatpush1.bf16.msra.mxu0 %v7874
      %7962 = vmatprep.subr.bf16.mxu0 0
      %7963 = vmatpush1.bf16.msra.mxu0 %v7873
      %7964 = vmatprep.subr.bf16.mxu0 0
      %7965 = vmatpush1.bf16.msra.mxu0 %v7872
      %7966 = vmatprep.subr.bf16.mxu0 0
      %7967 = vmatpush2.bf16.msra.mxu0 %v7887
      %7968 = vmatprep.subr.bf16.mxu0 0
      %7969 = vmatpush2.bf16.msra.mxu0 %v7886
      %7970 = vmatprep.subr.bf16.mxu0 0
      %7971 = vmatpush2.bf16.msra.mxu0 %v7885
      %7972 = vmatprep.subr.bf16.mxu0 0
      %7973 = vmatpush2.bf16.msra.mxu0 %v7884
      %7974 = vmatprep.subr.bf16.mxu0 0
      %7975 = vmatpush2.bf16.msra.mxu0 %v7883
      %7976 = vmatprep.subr.bf16.mxu0 0
      %7977 = vmatpush2.bf16.msra.mxu0 %v7882
      %7978 = vmatprep.subr.bf16.mxu0 0
      %7979 = vmatpush2.bf16.msra.mxu0 %v7881
      %7980 = vmatprep.subr.bf16.mxu0 0
      %7981 = vmatpush2.bf16.msra.mxu0 %v7880
      %7982 = vmatprep.mubr.bf16.mxu0 %v7640
      %7983 = vmatmul.mubr.bf16.gmra.mxu0 %v7639
      %v7984 = vpop.f32.mrf.mxu0
      %v7985 = vadd.f32 %v7726, %v7984
      %v7986 = vpop.f32.mrf.mxu0
      %v7987 = vpop.f32.mrf.mxu0
      %v7988 = vadd.f32 %v7726, %v7987
      %v7989 = vpop.f32.mrf.mxu0
      %7990 = vmatprep.mubr.bf16.mxu0 %v7645
      %7991 = vmatmul.mubr.bf16.gmra.mxu0 %v7644
      %v7992 = vpop.f32.mrf.mxu0
      %v7993 = vadd.f32 %v7726, %v7992
      %v7994 = vpop.f32.mrf.mxu0
      %v7995 = vpop.f32.mrf.mxu0
      %v7996 = vadd.f32 %v7726, %v7995
      %v7997 = vpop.f32.mrf.mxu0
      %7998 = vdwg.mxu0
      %7999 = vmatprep.subr.bf16.mxu0 0
      %8000 = vmatpush1.bf16.msra.mxu0 %v7895
      %8001 = vmatprep.subr.bf16.mxu0 0
      %8002 = vmatpush1.bf16.msra.mxu0 %v7894
      %8003 = vmatprep.subr.bf16.mxu0 0
      %8004 = vmatpush1.bf16.msra.mxu0 %v7893
      %8005 = vmatprep.subr.bf16.mxu0 0
      %8006 = vmatpush1.bf16.msra.mxu0 %v7892
      %8007 = vmatprep.subr.bf16.mxu0 0
      %8008 = vmatpush1.bf16.msra.mxu0 %v7891
      %8009 = vmatprep.subr.bf16.mxu0 0
      %8010 = vmatpush1.bf16.msra.mxu0 %v7890
      %8011 = vmatprep.subr.bf16.mxu0 0
      %8012 = vmatpush1.bf16.msra.mxu0 %v7889
      %8013 = vmatprep.subr.bf16.mxu0 0
      %8014 = vmatpush1.bf16.msra.mxu0 %v7888
      %8015 = vmatprep.subr.bf16.mxu0 0
      %8016 = vmatpush2.bf16.msra.mxu0 %v7903
      %8017 = vmatprep.subr.bf16.mxu0 0
      %8018 = vmatpush2.bf16.msra.mxu0 %v7902
      %8019 = vmatprep.subr.bf16.mxu0 0
      %8020 = vmatpush2.bf16.msra.mxu0 %v7901
      %8021 = vmatprep.subr.bf16.mxu0 0
      %8022 = vmatpush2.bf16.msra.mxu0 %v7900
      %8023 = vmatprep.subr.bf16.mxu0 0
      %8024 = vmatpush2.bf16.msra.mxu0 %v7899
      %8025 = vmatprep.subr.bf16.mxu0 0
      %8026 = vmatpush2.bf16.msra.mxu0 %v7898
      %8027 = vmatprep.subr.bf16.mxu0 0
      %8028 = vmatpush2.bf16.msra.mxu0 %v7897
      %8029 = vmatprep.subr.bf16.mxu0 0
      %8030 = vmatpush2.bf16.msra.mxu0 %v7896
      %8031 = vmatprep.mubr.bf16.mxu0 %v7642
      %8032 = vmatmul.mubr.bf16.gmra.mxu0 %v7641
      %v8033 = vpop.f32.mrf.mxu0
      %v8034 = vadd.f32 %v7985, %v8033
      %v8035 = vpop.f32.mrf.mxu0
      %v8036 = vpop.f32.mrf.mxu0
      %v8037 = vadd.f32 %v7988, %v8036
      %v8038 = vpop.f32.mrf.mxu0
      %8039 = vmatprep.mubr.bf16.mxu0 %v7647
      %8040 = vmatmul.mubr.bf16.gmra.mxu0 %v7646
      %v8041 = vpop.f32.mrf.mxu0
      %v8042 = vadd.f32 %v7993, %v8041
      %v8043 = vpop.f32.mrf.mxu0
      %v8044 = vpop.f32.mrf.mxu0
      %v8045 = vadd.f32 %v7996, %v8044
      %v8046 = vpop.f32.mrf.mxu0
      %8047 = vdwg.mxu0
      %8048 = vmatprep.subr.bf16.mxu0 0
      %8049 = vmatpush1.bf16.msra.mxu0 0
      %8050 = vmatprep.subr.bf16.mxu0 0
      %8051 = vmatpush1.bf16.msra.mxu0 0
      %8052 = vmatprep.subr.bf16.mxu0 0
      %8053 = vmatpush1.bf16.msra.mxu0 0
      %8054 = vmatprep.subr.bf16.mxu0 0
      %8055 = vmatpush1.bf16.msra.mxu0 0
      %8056 = vmatprep.subr.bf16.mxu0 0
      %8057 = vmatpush1.bf16.msra.mxu0 %v7907
      %8058 = vmatprep.subr.bf16.mxu0 0
      %8059 = vmatpush1.bf16.msra.mxu0 %v7906
      %8060 = vmatprep.subr.bf16.mxu0 0
      %8061 = vmatpush1.bf16.msra.mxu0 %v7905
      %8062 = vmatprep.subr.bf16.mxu0 0
      %8063 = vmatpush1.bf16.msra.mxu0 %v7904
      %8064 = vmatprep.subr.bf16.mxu0 0
      %8065 = vmatpush2.bf16.msra.mxu0 0
      %8066 = vmatprep.subr.bf16.mxu0 0
      %8067 = vmatpush2.bf16.msra.mxu0 0
      %8068 = vmatprep.subr.bf16.mxu0 0
      %8069 = vmatpush2.bf16.msra.mxu0 0
      %8070 = vmatprep.subr.bf16.mxu0 0
      %8071 = vmatpush2.bf16.msra.mxu0 0
      %8072 = vmatprep.subr.bf16.mxu0 0
      %8073 = vmatpush2.bf16.msra.mxu0 0
      %8074 = vmatprep.subr.bf16.mxu0 0
      %8075 = vmatpush2.bf16.msra.mxu0 0
      %8076 = vmatprep.subr.bf16.mxu0 0
      %8077 = vmatpush2.bf16.msra.mxu0 0
      %8078 = vmatprep.subr.bf16.mxu0 0
      %8079 = vmatpush2.bf16.msra.mxu0 0
      %8080 = vmatprep.mubr.bf16.mxu0 0
      %8081 = vmatmul.mubr.bf16.gmra.mxu0 %v7945
      %v8082 = vpop.f32.mrf.mxu0
      %v8083 = vadd.f32 %v8034, %v8082
      %v8084 = vpop.f32.mrf.mxu0
      %v8085 = vpop.f32.mrf.mxu0
      %v8086 = vadd.f32 %v8037, %v8085
      %v8087 = vpop.f32.mrf.mxu0
      %8088 = vmatprep.mubr.bf16.mxu0 0
      %8089 = vmatmul.mubr.bf16.gmra.mxu0 %v7948
      %v8090 = vpop.f32.mrf.mxu0
      %v8091 = vadd.f32 %v8042, %v8090
      %v8092 = vpop.f32.mrf.mxu0
      %v8093 = vpop.f32.mrf.mxu0
      %v8094 = vadd.f32 %v8045, %v8093
      %v8095 = vpop.f32.mrf.mxu0
      %8096 = vdwg.mxu0
      %v8097 = vmax.f32 %v8083, 0.0
      %v8098 = vmax.f32 %v8086, 0.0
      %v8099 = vmax.f32 %v8091, 0.0
      %v8100 = vmax.f32 %v8094, 0.0
      %v8101 = vrot.slane %v8097, 1
      %v8102 = vrot.slane %v8098, 1
      %v8103 = vrot.slane %v8099, 1
      %v8104 = vrot.slane %v8100, 1
      %v8105 = vsel %vm1994, %v8103, %v8104
      %v8106 = vsel %vm1994, %v8102, %v8103
      %v8107 = vsel %vm1994, %v8101, %v8102
      %v8108 = vsel %vm1994, %v8104, %v8101
      %v8109 = vmax.f32 %v8097, %v8107
      %v8110 = vmax.f32 %v8098, %v8106
      %v8111 = vmax.f32 %v8099, %v8105
      %v8112 = vmax.f32 %v8100, %v8108
      %v8113 = vrot.slane %v8109, 2
      %v8114 = vrot.slane %v8110, 2
      %v8115 = vrot.slane %v8111, 2
      %v8116 = vrot.slane %v8112, 2
      %v8117 = vsel %vm7518, %v8115, %v8116
      %v8118 = vsel %vm7518, %v8114, %v8115
      %v8119 = vsel %vm7518, %v8113, %v8114
      %v8120 = vsel %vm7518, %v8116, %v8113
      %v8121 = vmax.f32 %v8109, %v8119
      %v8122 = vmax.f32 %v8110, %v8118
      %v8123 = vmax.f32 %v8111, %v8117
      %v8124 = vmax.f32 %v8112, %v8120
      %v8125 = vpack.c.bf16 %v8122, %v8121
      %v8126 = vpack.c.bf16 %v8124, %v8123
      %v8127 = vld [vmem:[%s12] sm:$0xf]
      %v8128 = vld [vmem:[%s12 + $0x4] sm:$0xf]
      %v8129 = vld [vmem:[%s12 + $0x8] sm:$0xf]
      %v8130 = vld [vmem:[%s12 + $0xc] sm:$0xf]
      %v8131 = vld [vmem:[%s13] sm:$0x1]
      %v8133 = vlaneseq
      %v8134 = vshrl.u32 %v8133, 7
      %v8135 = vsub.s32 0, %v8134
      %v8136 = vrot.slane %v8131, %v8135
      %v8142 = vunpack.c.l.b16 %v8127
      %v8143 = vunpack.c.l.b16 %v8128
      %v8144 = vunpack.c.l.b16 %v8129
      %v8145 = vunpack.c.l.b16 %v8130
      %v8146 = vpack.c.b16 %v8143, %v8142
      %v8147 = vpack.c.b16 %v8145, %v8144
      %v8151 = vsel %vm4943, %v8125, 0
      %v8154 = vsel %vm4943, %v8126, 0
      %8156 = vmatprep.subr.bf16.mxu0 0
      %8157 = vmatpush1.bf16.msra.mxu0 0
      %8158 = vmatprep.subr.bf16.mxu0 0
      %8159 = vmatpush1.bf16.msra.mxu0 0
      %8160 = vmatprep.subr.bf16.mxu0 0
      %8161 = vmatpush1.bf16.msra.mxu0 0
      %8162 = vmatprep.subr.bf16.mxu0 0
      %8163 = vmatpush1.bf16.msra.mxu0 0
      %8164 = vmatprep.subr.bf16.mxu0 0
      %8165 = vmatpush1.bf16.msra.mxu0 0
      %8166 = vmatprep.subr.bf16.mxu0 0
      %8167 = vmatpush1.bf16.msra.mxu0 0
      %8168 = vmatprep.subr.bf16.mxu0 0
      %8169 = vmatpush1.bf16.msra.mxu0 %v8147
      %8170 = vmatprep.subr.bf16.mxu0 0
      %8171 = vmatpush1.bf16.msra.mxu0 %v8146
      %8172 = vmatprep.subr.bf16.mxu0 0
      %8173 = vmatpush2.bf16.msra.mxu0 0
      %8174 = vmatprep.subr.bf16.mxu0 0
      %8175 = vmatpush2.bf16.msra.mxu0 0
      %8176 = vmatprep.subr.bf16.mxu0 0
      %8177 = vmatpush2.bf16.msra.mxu0 0
      %8178 = vmatprep.subr.bf16.mxu0 0
      %8179 = vmatpush2.bf16.msra.mxu0 0
      %8180 = vmatprep.subr.bf16.mxu0 0
      %8181 = vmatpush2.bf16.msra.mxu0 0
      %8182 = vmatprep.subr.bf16.mxu0 0
      %8183 = vmatpush2.bf16.msra.mxu0 0
      %8184 = vmatprep.subr.bf16.mxu0 0
      %8185 = vmatpush2.bf16.msra.mxu0 0
      %8186 = vmatprep.subr.bf16.mxu0 0
      %8187 = vmatpush2.bf16.msra.mxu0 0
      %8188 = vmatprep.mubr.bf16.mxu0 0
      %8189 = vmatmul.mubr.bf16.gmra.mxu0 %v8151
      %v8190 = vpop.f32.mrf.mxu0
      %v8191 = vadd.f32 %v8136, %v8190
      %v8192 = vpop.f32.mrf.mxu0
      %v8193 = vpop.f32.mrf.mxu0
      %v8194 = vadd.f32 %v8136, %v8193
      %v8195 = vpop.f32.mrf.mxu0
      %8196 = vmatprep.mubr.bf16.mxu0 0
      %8197 = vmatmul.mubr.bf16.gmra.mxu0 %v8154
      %v8198 = vpop.f32.mrf.mxu0
      %v8199 = vadd.f32 %v8136, %v8198
      %v8200 = vpop.f32.mrf.mxu0
      %v8201 = vpop.f32.mrf.mxu0
      %v8202 = vadd.f32 %v8136, %v8201
      %v8203 = vpop.f32.mrf.mxu0
      %8204 = vdwg.mxu0
      %v8205 = vmax.f32 %v8191, 0.0
      %v8206 = vmax.f32 %v8194, 0.0
      %v8207 = vmax.f32 %v8199, 0.0
      %v8208 = vmax.f32 %v8202, 0.0
      %v8209 = vpack.c.bf16 %v8206, %v8205
      %v8210 = vpack.c.bf16 %v8208, %v8207
      %v8211 = vld [vmem:[%s14] sm:$0xf]
      %v8212 = vld [vmem:[%s14 + $0x4] sm:$0xf]
      %v8213 = vld [vmem:[%s14 + $0x8] sm:$0xf]
      %v8214 = vld [vmem:[%s14 + $0xc] sm:$0xf]
      %v8215 = vld [vmem:[%s14 + $0x10] sm:$0xf]
      %v8216 = vld [vmem:[%s14 + $0x14] sm:$0xf]
      %v8217 = vld [vmem:[%s14 + $0x18] sm:$0xf]
      %v8218 = vld [vmem:[%s14 + $0x1c] sm:$0xf]
      %v8219 = vld [vmem:[%s14 + $0x20] sm:$0xf]
      %v8220 = vld [vmem:[%s14 + $0x24] sm:$0xf]
      %v8221 = vld [vmem:[%s14 + $0x28] sm:$0xf]
      %v8222 = vld [vmem:[%s14 + $0x2c] sm:$0xf]
      %v8223 = vld [vmem:[%s14 + $0x30] sm:$0xf]
      %v8224 = vld [vmem:[%s14 + $0x34] sm:$0xf]
      %v8225 = vld [vmem:[%s14 + $0x38] sm:$0xf]
      %v8226 = vld [vmem:[%s14 + $0x3c] sm:$0xf]
      %v8227 = vld [vmem:[%s15] sm:$0x1]
      %v8229 = vlaneseq
      %v8230 = vshrl.u32 %v8229, 7
      %v8231 = vsub.s32 0, %v8230
      %v8232 = vrot.slane %v8227, %v8231
      %v8250 = vunpack.c.l.b16 %v8211
      %v8251 = vunpack.c.l.b16 %v8212
      %v8252 = vunpack.c.l.b16 %v8213
      %v8253 = vunpack.c.l.b16 %v8214
      %v8254 = vunpack.c.l.b16 %v8215
      %v8255 = vunpack.c.l.b16 %v8216
      %v8256 = vunpack.c.l.b16 %v8217
      %v8257 = vunpack.c.l.b16 %v8218
      %v8258 = vunpack.c.l.b16 %v8219
      %v8259 = vunpack.c.l.b16 %v8220
      %v8260 = vunpack.c.l.b16 %v8221
      %v8261 = vunpack.c.l.b16 %v8222
      %v8262 = vunpack.c.l.b16 %v8223
      %v8263 = vunpack.c.l.b16 %v8224
      %v8264 = vunpack.c.l.b16 %v8225
      %v8265 = vunpack.c.l.b16 %v8226
      %v8266 = vpack.c.b16 %v8251, %v8250
      %v8267 = vpack.c.b16 %v8253, %v8252
      %v8268 = vpack.c.b16 %v8255, %v8254
      %v8269 = vpack.c.b16 %v8257, %v8256
      %v8270 = vpack.c.b16 %v8259, %v8258
      %v8271 = vpack.c.b16 %v8261, %v8260
      %v8272 = vpack.c.b16 %v8263, %v8262
      %v8273 = vpack.c.b16 %v8265, %v8264
      %8282 = vmatprep.subr.bf16.mxu0 0
      %8283 = vmatpush1.bf16.msra.mxu0 %v8273
      %8284 = vmatprep.subr.bf16.mxu0 0
      %8285 = vmatpush1.bf16.msra.mxu0 %v8272
      %8286 = vmatprep.subr.bf16.mxu0 0
      %8287 = vmatpush1.bf16.msra.mxu0 %v8271
      %8288 = vmatprep.subr.bf16.mxu0 0
      %8289 = vmatpush1.bf16.msra.mxu0 %v8270
      %8290 = vmatprep.subr.bf16.mxu0 0
      %8291 = vmatpush1.bf16.msra.mxu0 %v8269
      %8292 = vmatprep.subr.bf16.mxu0 0
      %8293 = vmatpush1.bf16.msra.mxu0 %v8268
      %8294 = vmatprep.subr.bf16.mxu0 0
      %8295 = vmatpush1.bf16.msra.mxu0 %v8267
      %8296 = vmatprep.subr.bf16.mxu0 0
      %8297 = vmatpush1.bf16.msra.mxu0 %v8266
      %8298 = vmatprep.subr.bf16.mxu0 0
      %8299 = vmatpush2.bf16.msra.mxu0 0
      %8300 = vmatprep.subr.bf16.mxu0 0
      %8301 = vmatpush2.bf16.msra.mxu0 0
      %8302 = vmatprep.subr.bf16.mxu0 0
      %8303 = vmatpush2.bf16.msra.mxu0 0
      %8304 = vmatprep.subr.bf16.mxu0 0
      %8305 = vmatpush2.bf16.msra.mxu0 0
      %8306 = vmatprep.subr.bf16.mxu0 0
      %8307 = vmatpush2.bf16.msra.mxu0 0
      %8308 = vmatprep.subr.bf16.mxu0 0
      %8309 = vmatpush2.bf16.msra.mxu0 0
      %8310 = vmatprep.subr.bf16.mxu0 0
      %8311 = vmatpush2.bf16.msra.mxu0 0
      %8312 = vmatprep.subr.bf16.mxu0 0
      %8313 = vmatpush2.bf16.msra.mxu0 0
      %8314 = vmatprep.mubr.bf16.mxu0 0
      %8315 = vmatmul.mubr.bf16.gmra.mxu0 %v8209
      %v8316 = vpop.f32.mrf.mxu0
      %v8317 = vadd.f32 %v8232, %v8316
      %v8318 = vpop.f32.mrf.mxu0
      %v8319 = vpop.f32.mrf.mxu0
      %v8320 = vadd.f32 %v8232, %v8319
      %v8321 = vpop.f32.mrf.mxu0
      %8322 = vmatprep.mubr.bf16.mxu0 0
      %8323 = vmatmul.mubr.bf16.gmra.mxu0 %v8210
      %v8324 = vpop.f32.mrf.mxu0
      %v8325 = vadd.f32 %v8232, %v8324
      %v8326 = vpop.f32.mrf.mxu0
      %v8327 = vpop.f32.mrf.mxu0
      %v8328 = vadd.f32 %v8232, %v8327
      %v8329 = vpop.f32.mrf.mxu0
      %8330 = vdwg.mxu0
      %8331 = vst [vmem:[%s526] sm:$0xff] %v8317
      %8332 = vst [vmem:[%s526 + $0x8] sm:$0xff] %v8320
      %8333 = vst [vmem:[%s526 + $0x10] sm:$0xff] %v8325
      %8334 = vst [vmem:[%s526 + $0x18] sm:$0xff] %v8328
      %s8335 = smul.u32 4, %s27
      %p8336 = scmp.lt.s32.totalorder %s8335, 7
      %s8337 = scalar_select %p8336, %s8335, 7
      %s8338 = smul.addr %s8337, 8
      %s8339 = scalar_lea.vmem %s16, %s8338
      // Predicated region
      $region85: #{mnist_net_forward.1} parent=83 // pred_check
        %p8340 = pneg %p386
      $region86: #{mnist_net_forward.1} parent=83 // pred_check_branch
        %8342 = sbr.rel (%p8340) target = $region88
      $region87: #{mnist_net_forward.1} parent=83 // pred_region
        %s8343 = smul.u32 4, %s27
      $region88: #{mnist_net_forward.1} parent=83 // pred_fallthru
        _
    $region84: #{mnist_net_forward.1} parent=5 // pred_fallthru
      _
    %p8344 = scmp.le.s32.totalorder 2, %s22
    // Predicated region
    $region89: #{mnist_net_forward.1} parent=5 // pred_check
      %p8345 = pneg %p8344
    $region90: #{mnist_net_forward.1} parent=5 // pred_check_branch
      %8347 = sbr.rel (%p8345) target = $region92
    $region91: #{mnist_net_forward.1} parent=5 // pred_region
      %s8348 = ssub.s32 %s22, 2
      // Predicated region
      $region93: #{mnist_net_forward.1} parent=91 // pred_check
        %p8349 = pneg %p392
      $region94: #{mnist_net_forward.1} parent=91 // pred_check_branch
        %8351 = sbr.rel (%p8349) target = $region96
      $region95: #{mnist_net_forward.1} parent=91 // pred_region
        %s8352 = smul.u32 4, %s28
        %p8353 = scmp.lt.s32.totalorder %s8352, 7
        %s8354 = scalar_select %p8353, %s8352, 7
        %s8355 = smul.addr %s8354, 8
        %s8356 = scalar_lea.vmem %s16, %s8355
      $region96: #{mnist_net_forward.1} parent=91 // pred_fallthru
        _
    $region92: #{mnist_net_forward.1} parent=5 // pred_fallthru
      _
  $region6: #{mnist_net_forward.1} parent=0 // loop_footer
    %s26 = sadd.s32 1, %s22
  $region7: #{mnist_net_forward.1} parent=0 // loop_footer_branch
    %21 = sbr.rel target = $region3
  $region8: #{mnist_net_forward.1} parent=0 // loop_exit
    _

</llo_original>
